<compile_context>
chip_gen: v7x
topology: tpu7x:2x2x1
jax: 0.10.0
libtpu: 0.0.40
codegen_flags: <defaults>
</compile_context>

<pallas_src>
import functools

import jax
import jax.numpy as jnp
import numpy as np
from jax import lax
from jax.experimental import pallas as pl
from jax.experimental.pallas import tpu as pltpu

EPS = 1e-5


def _round_up(x, m):
    return (x + m - 1) // m * m


# ----------------------------------------------------------------------------
# Fused bottleneck kernel
# ----------------------------------------------------------------------------
def _bottleneck_kernel(*refs, stride, nb, tho, W, has_proj):
    it = iter(refs)
    xb_ref = next(it)                                  # (nb, th_in, W, Cin) bf16
    xt_ref = next(it)                                  # (nb, 1, W, Cin) top halo
    xo_ref = next(it) if stride == 1 else None         # bottom halo (stride 1 only)
    w1_ref = next(it)                                  # (Cin, C1)
    w2_ref = next(it)                                  # (3, 3, C1, C1)
    w3_ref = next(it)                                  # (C1, C4)
    wsc_ref = next(it) if has_proj else None           # (Cin, C4)
    bn12_ref = next(it)                                # (4, C1)  s1,b1,s2,b2
    bn34_ref = next(it)                                # (2|4, C4) s3,b3[,ssc,bsc]
    out_ref = next(it)                                 # (nb, tho, Wo, C4)
    slab_ref = next(it)                                # (nb, R, Wpad, C1) bf16
    acc_ref = next(it)                                 # (nb, tho, Wpad, C1) f32

    f32 = jnp.float32
    i = pl.program_id(1)
    n_tiles = pl.num_programs(1)
    th_in = tho * stride
    Wo = W // stride
    R = slab_ref.shape[1]
    Wpad = slab_ref.shape[2]
    C1 = slab_ref.shape[3]
    C4 = out_ref.shape[3]
    Cin = xb_ref.shape[3]

    s1, b1 = bn12_ref[0:1, :], bn12_ref[1:2, :]
    s2, b2 = bn12_ref[2:3, :], bn12_ref[3:4, :]
    s3, b3 = bn34_ref[0:1, :], bn34_ref[1:2, :]

    # ---- conv1 (1x1) + bn1 + relu : one merged matmul over body + halo rows ----
    if stride == 1:
        xall = jnp.concatenate([xt_ref[...], xb_ref[...], xo_ref[...]], axis=1)
    else:
        xall = jnp.concatenate([xt_ref[...], xb_ref[...]], axis=1)
    # xall: (nb, R, W, Cin)
    y1 = jnp.dot(xall.reshape(nb * R * W, Cin), w1_ref[...],
                 preferred_element_type=f32)
    y1 = jnp.maximum(y1 * s1 + b1, 0.0)
    slab_ref[:, :, 0:W, :] = y1.reshape(nb, R, W, C1).astype(slab_ref.dtype)
    # Right padding columns must hold zeros: the kw result-shifts below pull
    # them in as the 3x3 conv's horizontal zero padding.
    slab_ref[:, :, W:Wpad, :] = jnp.zeros((nb, R, Wpad - W, C1), slab_ref.dtype)
    # Halo rows are the 3x3 conv's *vertical* zero padding at image borders:
    # overwrite with real zeros (no masked multiply -> NaN-safe).
    @pl.when(i == 0)
    def _():
        slab_ref[:, 0:1, :, :] = jnp.zeros((nb, 1, Wpad, C1), slab_ref.dtype)

    if stride == 1:
        @pl.when(i == n_tiles - 1)
        def _():
            slab_ref[:, R - 1:R, :, :] = jnp.zeros((nb, 1, Wpad, C1),
                                                   slab_ref.dtype)

    # ---- conv2 (3x3, stride): 3 aligned accumulator passes -------------------
    Mh = nb * tho * Wpad

    def _shift_down1(t):   # out[q] = t[q - 1]; wrap lands in padding columns
        return jnp.concatenate([t[-1:], t[:-1]], axis=0)

    def _shift_up1(t):     # out[q] = t[q + 1]; wrap lands in padding columns
        return jnp.concatenate([t[1:], t[:1]], axis=0)

    for kh in range(3):
        if stride == 1:
            rows = slab_ref[:, kh:kh + tho, :, :]                # (nb,tho,Wpad,C1)
        else:
            start = min(kh, 1)
            par = kh - start
            chunk = slab_ref[:, start:start + 2 * tho, :, :]     # (nb,2tho,Wpad,C1)
            rows = chunk.reshape(nb, tho, 2, Wpad, C1)[:, :, par, :, :]
        lhs = rows.reshape(Mh, C1)                               # shared by the 3 kw
        t0 = jnp.dot(lhs, w2_ref[kh, 0, :, :], preferred_element_type=f32)
        t1 = jnp.dot(lhs, w2_ref[kh, 1, :, :], preferred_element_type=f32)
        t2 = jnp.dot(lhs, w2_ref[kh, 2, :, :], preferred_element_type=f32)
        contrib = (_shift_down1(t0) + t1 + _shift_up1(t2)).reshape(
            nb, tho, Wpad, C1)
        if kh == 0:
            acc_ref[...] = contrib          # direct store, no zero-init pass
        else:
            acc_ref[...] += contrib

    # ---- bn2 + relu, stride-aware column extraction (no extra round trip) ----
    if stride == 1:
        y2 = acc_ref[:, :, 0:W, :]
    else:
        y2 = acc_ref[:, :, pl.ds(0, Wo, stride=2), :]            # even columns
    Mo = nb * tho * Wo
    y2 = jnp.maximum(y2.reshape(Mo, C1) * s2 + b2, 0.0)

    # ---- conv3 (1x1) + bn3 (dropout p=0 / eval -> identity) -------------------
    z = jnp.dot(y2.astype(w3_ref.dtype), w3_ref[...], preferred_element_type=f32)
    z = z * s3 + b3

    # ---- shortcut (identity or fused 1x1-stride-s conv + bn) ------------------
    if stride == 1:
        xs = xb_ref[...]                                         # (nb, tho, W, Cin)
    else:
        xcols = xb_ref[:, :, pl.ds(0, Wo, stride=2), :]          # (nb, th_in, Wo, Cin)
        xs = xcols.reshape(nb, tho, 2, Wo, Cin)[:, :, 0, :, :]
    xs = xs.reshape(Mo, Cin)
    if has_proj:
        ssc, bsc = bn34_ref[2:3, :], bn34_ref[3:4, :]
        sc = jnp.dot(xs, wsc_ref[...], preferred_element_type=f32) * ssc + bsc
    else:
        # NOTE: identity shortcut adds the bf16-rounded x (x is cast to bf16 for
        # the MXU path); tiny deviation from the f32 PyTorch reference.
        sc = xs.astype(f32)

    out = jnp.maximum(z + sc, 0.0)
    out_ref[...] = out.reshape(nb, tho, Wo, C4).astype(out_ref.dtype)


# ----------------------------------------------------------------------------
# Parameter setup / glue
# ----------------------------------------------------------------------------
def fold_bn(bn_params):
    gamma, beta, mean, var = bn_params
    scale = gamma / jnp.sqrt(var + EPS)
    return scale, beta - mean * scale


def _pick_tiles(N, H, W, Cin, C1, C4, stride, out_itemsize, act_budget):
    """Pick (images per step nb, output rows per step tho): feed the MXU
    (target >= 512 matmul rows for conv3/shortcut) within a VMEM budget."""
    Ho, Wo = H // stride, W // stride
    Wpad = _round_up(W + 1, 8)

    def act_bytes(nb, tho):
        th_in = tho * stride
        R = th_in + (2 if stride == 1 else 1)
        n_halo = 2 if stride == 1 else 1
        x_blk = nb * th_in * W * Cin * 2
        halo = nb * n_halo * W * Cin * 2
        out_blk = nb * tho * Wo * C4 * out_itemsize
        slab = nb * R * Wpad * C1 * 2
        acc = nb * tho * Wpad * C1 * 4
        return 2 * (x_blk + halo + out_blk) + slab + acc   # in/out double-buffered

    best, best_key = (1, 1), None
    for tho in (t for t in range(1, Ho + 1) if Ho % t == 0):
        for nb in (b for b in range(1, N + 1) if N % b == 0):
            vb = act_bytes(nb, tho)
            if vb > act_budget:
                continue
            m = nb * tho * Wo
            key = (min(m, 512), -vb)
            if best_key is None or key > best_key:
                best, best_key = (nb, tho), key
    return best


def init_params(key, in_planes, planes, stride):
    expansion = 4
    cexp = planes * expansion
    ks = jax.random.split(key, 8)

    def w(k, shape, s=0.1):
        return s * jax.random.normal(k, shape, jnp.float32)

    def bn(k, c):
        kg, kb, km, kv = jax.random.split(k, 4)
        gamma = 1.0 + 0.1 * jax.random.normal(kg, (c,), jnp.float32)
        beta = 0.1 * jax.random.normal(kb, (c,), jnp.float32)
        mean = 0.05 * jax.random.normal(km, (c,), jnp.float32)
        var = 1.0 + 0.1 * jnp.abs(jax.random.normal(kv, (c,), jnp.float32))
        return (gamma, beta, mean, var)

    p = {
        'w1': w(ks[0], (in_planes, planes)),        # 1x1 conv as (Cin, Cout)
        'bn1': bn(ks[1], planes),
        'w2': w(ks[2], (3, 3, planes, planes)),     # 3x3 conv, HWIO
        'bn2': bn(ks[3], planes),
        'w3': w(ks[4], (planes, cexp)),             # 1x1 conv as (Cin, Cout)
        'bn3': bn(ks[5], cexp),
    }
    if stride != 1 or in_planes != cexp:
        p['w_sc'] = w(ks[6], (in_planes, cexp))     # shortcut 1x1 conv
        p['bn_sc'] = bn(ks[7], cexp)
    else:
        p['w_sc'] = None
    return p


def bottleneck_forward_nhwc(x, p, stride=1, out_dtype=jnp.bfloat16):
    """BottleneckBlock.forward (eval BN, dropout p=0): NHWC in -> NHWC out,
    one fused pallas_call.  bf16 output by default (halves HBM writeback)."""
    assert stride in (1, 2)
    N, H, W, Cin = x.shape
    C1 = p['w1'].shape[1]
    C4 = p['w3'].shape[1]
    assert H % stride == 0 and W % stride == 0, (H, W, stride)
    Ho, Wo = H // stride, W // stride
    has_proj = p['w_sc'] is not None
    if not has_proj:
        assert stride == 1 and Cin == C4

    cdt = jnp.bfloat16                  # MXU compute / activation storage dtype
    xc = x.astype(cdt)
    w1 = p['w1'].astype(cdt)
    w2 = p['w2'].astype(cdt)
    w3 = p['w3'].astype(cdt)

    s1, b1 = fold_bn(p['bn1'])
    s2, b2 = fold_bn(p['bn2'])
    s3, b3 = fold_bn(p['bn3'])
    bn12 = jnp.stack([s1, b1, s2, b2]).astype(jnp.float32)          # (4, C1)
    if has_proj:
        ssc, bsc = fold_bn(p['bn_sc'])
        bn34 = jnp.stack([s3, b3, ssc, bsc]).astype(jnp.float32)    # (4, C4)
    else:
        bn34 = jnp.stack([s3, b3]).astype(jnp.float32)              # (2, C4)

    wbytes = (w1.size + w2.size + w3.size) * 2 + (bn12.size + bn34.size) * 4
    if has_proj:
        wbytes += Cin * C4 * 2
    out_itemsize = jnp.dtype(out_dtype).itemsize
    # Keep total VMEM (activations + double-buffered weights) under ~48 MiB so
    # the kernel fits v7x (64 MiB) and stays comfortable on v5e/v6e.
    act_budget = max(6 << 20, (48 << 20) - 2 * wbytes)
    nb, tho = _pick_tiles(N, H, W, Cin, C1, C4, stride, out_itemsize, act_budget)
    th_in = tho * stride
    R = th_in + (2 if stride == 1 else 1)
    Wpad = _round_up(W + 1, 8)
    n_halo = 2 if stride == 1 else 1
    grid = (N // nb, Ho // tho)

    in_specs = [
        # body rows of x for this tile
        pl.BlockSpec((nb, th_in, W, Cin), lambda n, i: (n, i, 0, 0)),
        # 1-row top halo (clamped at the image border, zeroed in-kernel)
        pl.BlockSpec((nb, 1, W, Cin),
                     lambda n, i: (n, jnp.maximum(i * th_in - 1, 0), 0, 0)),
    ]
    args = [xc, xc]
    if stride == 1:
        # bottom halo only needed for stride 1
        in_specs.append(pl.BlockSpec(
            (nb, 1, W, Cin),
            lambda n, i: (n, jnp.minimum((i + 1) * th_in, H - 1), 0, 0)))
        args.append(xc)
    in_specs += [
        pl.BlockSpec((Cin, C1), lambda n, i: (0, 0)),
        pl.BlockSpec((3, 3, C1, C1), lambda n, i: (0, 0, 0, 0)),
        pl.BlockSpec((C1, C4), lambda n, i: (0, 0)),
    ]
    args += [w1, w2, w3]
    if has_proj:
        in_specs.append(pl.BlockSpec((Cin, C4), lambda n, i: (0, 0)))
        args.append(p['w_sc'].astype(cdt))
    in_specs += [
        pl.BlockSpec(bn12.shape, lambda n, i: (0, 0)),
        pl.BlockSpec(bn34.shape, lambda n, i: (0, 0)),
    ]
    args += [bn12, bn34]

    kernel = functools.partial(_bottleneck_kernel, stride=stride, nb=nb,
                               tho=tho, W=W, has_proj=has_proj)

    act_need = (2 * (nb * th_in * W * Cin * 2 + nb * n_halo * W * Cin * 2
                     + nb * tho * Wo * C4 * out_itemsize)
                + nb * R * Wpad * C1 * 2 + nb * tho * Wpad * C1 * 4)
    vmem_limit = int(min(max(act_need + 2 * wbytes + (4 << 20), 32 << 20),
                         64 << 20))

    flops = (2 * N * (H + grid[1] * n_halo) * W * Cin * C1      # conv1 (+halos)
             + 2 * N * Ho * W * 9 * C1 * C1                     # conv2 (dense cols)
             + 2 * N * Ho * Wo * C1 * C4)                       # conv3
    if has_proj:
        flops += 2 * N * Ho * Wo * Cin * C4
    bytes_accessed = (int(xc.size) * 2 + N * Ho * Wo * C4 * out_itemsize
                      + 2 * int(wbytes))

    out = pl.pallas_call(
        kernel,
        out_shape=jax.ShapeDtypeStruct((N, Ho, Wo, C4), out_dtype),
        grid=grid,
        in_specs=in_specs,
        out_specs=pl.BlockSpec((nb, tho, Wo, C4), lambda n, i: (n, i, 0, 0)),
        scratch_shapes=[
            pltpu.VMEM((nb, R, Wpad, C1), cdt),             # padded y1 slab
            pltpu.VMEM((nb, tho, Wpad, C1), jnp.float32),   # conv2 accumulator
        ],
        compiler_params=pltpu.CompilerParams(
            dimension_semantics=("parallel", "parallel"),
            vmem_limit_bytes=vmem_limit),
        cost_estimate=pl.CostEstimate(flops=int(flops), transcendentals=0,
                                      bytes_accessed=int(bytes_accessed)),
    )(*args)
    return out


def bottleneck_forward(x_nchw, p, stride=1, out_dtype=jnp.bfloat16):
    """PyTorch-interface wrapper (NCHW in / NCHW out).  In a fused network keep
    activations NHWC/bf16 and call bottleneck_forward_nhwc directly — the
    transposes here exist only for parity with the PyTorch reference."""
    x = jnp.transpose(x_nchw, (0, 2, 3, 1))
    out = bottleneck_forward_nhwc(x, p, stride=stride, out_dtype=out_dtype)
    return jnp.transpose(out, (0, 3, 1, 2))


# ----------------------------------------------------------------------------
# Pure-JAX reference (correctness check only)
# ----------------------------------------------------------------------------
def reference_forward(x_nchw, p, stride=1):
    x = jnp.transpose(x_nchw, (0, 2, 3, 1)).astype(jnp.float32)
    hi = lax.Precision.HIGHEST

    def bn_apply(y, bnp):
        g, b, m, v = bnp
        return (y - m) / jnp.sqrt(v + EPS) * g + b

    y = jnp.einsum('nhwc,cd->nhwd', x, p['w1'], precision=hi)
    y = jax.nn.relu(bn_apply(y, p['bn1']))
    y = lax.conv_general_dilated(y, p['w2'], (stride, stride), ((1, 1), (1, 1)),
                                 dimension_numbers=('NHWC', 'HWIO', 'NHWC'),
                                 precision=hi)
    y = jax.nn.relu(bn_apply(y, p['bn2']))
    y = jnp.einsum('nhwc,cd->nhwd', y, p['w3'], precision=hi)
    y = bn_apply(y, p['bn3'])
    if p['w_sc'] is None:
        sc = x[:, ::stride, ::stride, :]
    else:
        sc = jnp.einsum('nhwc,cd->nhwd', x[:, ::stride, ::stride, :],
                        p['w_sc'], precision=hi)
        sc = bn_apply(sc, p['bn_sc'])
    out = jax.nn.relu(y + sc)
    return jnp.transpose(out, (0, 3, 1, 2))


if __name__ == "__main__":
    key = jax.random.PRNGKey(0)
    N, H, W = 2, 16, 16
    configs = [
        # (in_planes, planes, stride)
        (16, 4, 1),   # identity shortcut
        (4, 4, 1),    # 1x1 projection shortcut
        (4, 4, 2),    # strided projection shortcut
    ]
    for idx, (in_planes, planes, stride) in enumerate(configs):
        kx, kp = jax.random.split(jax.random.fold_in(key, idx))
        x = jax.random.normal(kx, (N, in_planes, H, W), jnp.float32)   # NCHW
        params = init_params(kp, in_planes, planes, stride)

        out = jax.block_until_ready(
            bottleneck_forward(x, params, stride=stride, out_dtype=jnp.bfloat16))
        ref = jax.block_until_ready(reference_forward(x, params, stride=stride))

        assert out.shape == (N, planes * 4, H // stride, W // stride), out.shape
        # bf16 MXU compute with f32 accumulation (and bf16 output) vs f32 reference.
        np.testing.assert_allclose(np.asarray(out.astype(jnp.float32)),
                                   np.asarray(ref), rtol=2e-2, atol=2e-2)
    print("KERNEL_OK")
</pallas_src>

<mosaic_0001>
module attributes {stable_mosaic.version = 11 : i64} {
  func.func @_bottleneck_kernel(%arg0: i32, %arg1: i32, %arg2: memref<2x16x16x16xbf16, #tpu.memory_space<vmem>>, %arg3: memref<2x1x16x16xbf16, #tpu.memory_space<vmem>>, %arg4: memref<2x1x16x16xbf16, #tpu.memory_space<vmem>>, %arg5: memref<16x4xbf16, #tpu.memory_space<vmem>>, %arg6: memref<3x3x4x4xbf16, #tpu.memory_space<vmem>>, %arg7: memref<4x16xbf16, #tpu.memory_space<vmem>>, %arg8: memref<4x4xf32, #tpu.memory_space<vmem>>, %arg9: memref<2x16xf32, #tpu.memory_space<vmem>>, %arg10: memref<2x16x16x16xbf16, #tpu.memory_space<vmem>>, %arg11: memref<2x18x24x4xbf16, #tpu.memory_space<vmem>>, %arg12: memref<2x16x24x4xf32, #tpu.memory_space<vmem>>) attributes {dimension_semantics = [#tpu.dimension_semantics<parallel>, #tpu.dimension_semantics<parallel>], iteration_bounds = array<i64: 1, 1>, scalar_prefetch = 0 : i64, scratch_operands = 2 : i64, tpu.core_type = #tpu.core_type<tc>, window_params = [{transform_indices = @transform_0, window_bounds = array<i64: 2, 16, 16, 16>}, {transform_indices = @transform_1, window_bounds = array<i64: 2, 1, 16, 16>}, {transform_indices = @transform_2, window_bounds = array<i64: 2, 1, 16, 16>}, {pipeline_mode = #tpu.pipeline_mode<synchronous>, transform_indices = @transform_3, window_bounds = array<i64: 16, 4>}, {pipeline_mode = #tpu.pipeline_mode<synchronous>, transform_indices = @transform_4, window_bounds = array<i64: 3, 3, 4, 4>}, {pipeline_mode = #tpu.pipeline_mode<synchronous>, transform_indices = @transform_5, window_bounds = array<i64: 4, 16>}, {pipeline_mode = #tpu.pipeline_mode<synchronous>, transform_indices = @transform_6, window_bounds = array<i64: 4, 4>}, {pipeline_mode = #tpu.pipeline_mode<synchronous>, transform_indices = @transform_7, window_bounds = array<i64: 2, 16>}, {transform_indices = @transform_8, window_bounds = array<i64: 2, 16, 16, 16>}]} {
    %c0 = arith.constant 0 : index
    %c0_0 = arith.constant 0 : index
    %0 = vector.load %arg8[%c0, %c0_0] : memref<4x4xf32, #tpu.memory_space<vmem>>, vector<1x4xf32>
    %c1 = arith.constant 1 : index
    %c0_1 = arith.constant 0 : index
    %1 = vector.load %arg8[%c1, %c0_1] : memref<4x4xf32, #tpu.memory_space<vmem>>, vector<1x4xf32>
    %c2 = arith.constant 2 : index
    %c0_2 = arith.constant 0 : index
    %2 = vector.load %arg8[%c2, %c0_2] : memref<4x4xf32, #tpu.memory_space<vmem>>, vector<1x4xf32>
    %c3 = arith.constant 3 : index
    %c0_3 = arith.constant 0 : index
    %3 = vector.load %arg8[%c3, %c0_3] : memref<4x4xf32, #tpu.memory_space<vmem>>, vector<1x4xf32>
    %c0_4 = arith.constant 0 : index
    %c0_5 = arith.constant 0 : index
    %4 = vector.load %arg9[%c0_4, %c0_5] : memref<2x16xf32, #tpu.memory_space<vmem>>, vector<1x16xf32>
    %c1_6 = arith.constant 1 : index
    %c0_7 = arith.constant 0 : index
    %5 = vector.load %arg9[%c1_6, %c0_7] : memref<2x16xf32, #tpu.memory_space<vmem>>, vector<1x16xf32>
    %c0_8 = arith.constant 0 : index
    %c0_9 = arith.constant 0 : index
    %c0_10 = arith.constant 0 : index
    %c0_11 = arith.constant 0 : index
    %6 = vector.load %arg3[%c0_8, %c0_9, %c0_10, %c0_11] : memref<2x1x16x16xbf16, #tpu.memory_space<vmem>>, vector<2x1x16x16xbf16>
    %c0_12 = arith.constant 0 : index
    %c0_13 = arith.constant 0 : index
    %c0_14 = arith.constant 0 : index
    %c0_15 = arith.constant 0 : index
    %7 = vector.load %arg2[%c0_12, %c0_13, %c0_14, %c0_15] : memref<2x16x16x16xbf16, #tpu.memory_space<vmem>>, vector<2x16x16x16xbf16>
    %c0_16 = arith.constant 0 : index
    %c0_17 = arith.constant 0 : index
    %c0_18 = arith.constant 0 : index
    %c0_19 = arith.constant 0 : index
    %8 = vector.load %arg4[%c0_16, %c0_17, %c0_18, %c0_19] : memref<2x1x16x16xbf16, #tpu.memory_space<vmem>>, vector<2x1x16x16xbf16>
    %9 = tpu.concatenate %6, %7, %8 in 1 : vector<2x1x16x16xbf16>, vector<2x16x16x16xbf16>, vector<2x1x16x16xbf16> -> vector<2x18x16x16xbf16>
    %10 = vector.shape_cast %9 : vector<2x18x16x16xbf16> to vector<576x16xbf16>
    %c0_20 = arith.constant 0 : index
    %c0_21 = arith.constant 0 : index
    %11 = vector.load %arg5[%c0_20, %c0_21] : memref<16x4xbf16, #tpu.memory_space<vmem>>, vector<16x4xbf16>
    %cst = arith.constant dense<0.000000e+00> : vector<576x4xf32>
    %12 = tpu.matmul %10, %11, %cst {dimension_numbers = #tpu.dot_dimension_numbers<[1], [0], [0], [1], [0, 0, 1, 1], [], []>} : vector<576x16xbf16>, vector<16x4xbf16>, vector<576x4xf32> -> vector<576x4xf32>
    %13 = vector.broadcast %0 : vector<1x4xf32> to vector<576x4xf32>
    %14 = arith.mulf %12, %13 : vector<576x4xf32>
    %15 = vector.broadcast %1 : vector<1x4xf32> to vector<576x4xf32>
    %16 = arith.addf %14, %15 : vector<576x4xf32>
    %cst_22 = arith.constant 0.000000e+00 : f32
    %17 = vector.broadcast %cst_22 : f32 to vector<576x4xf32>
    %18 = arith.maximumf %16, %17 : vector<576x4xf32>
    %19 = vector.shape_cast %18 : vector<576x4xf32> to vector<2x18x16x4xf32>
    %20 = arith.truncf %19 : vector<2x18x16x4xf32> to vector<2x18x16x4xbf16>
    %c0_23 = arith.constant 0 : index
    %c0_24 = arith.constant 0 : index
    %c0_25 = arith.constant 0 : index
    %c0_26 = arith.constant 0 : index
    %21 = vector.load %arg11[%c0_23, %c0_24, %c0_25, %c0_26] : memref<2x18x24x4xbf16, #tpu.memory_space<vmem>>, vector<2x18x16x4xbf16>
    tpu.vector_store %arg11[%c0_23, %c0_24, %c0_25, %c0_26], %20 {strides = array<i32>} : memref<2x18x24x4xbf16, #tpu.memory_space<vmem>>, vector<2x18x16x4xbf16>,
    %cst_27 = arith.constant 0.000000e+00 : bf16
    %22 = vector.broadcast %cst_27 : bf16 to vector<2x18x8x4xbf16>
    %c0_28 = arith.constant 0 : index
    %c0_29 = arith.constant 0 : index
    %c16 = arith.constant 16 : index
    %c0_30 = arith.constant 0 : index
    %23 = vector.load %arg11[%c0_28, %c0_29, %c16, %c0_30] : memref<2x18x24x4xbf16, #tpu.memory_space<vmem>>, vector<2x18x8x4xbf16>
    tpu.vector_store %arg11[%c0_28, %c0_29, %c16, %c0_30], %22 {strides = array<i32>} : memref<2x18x24x4xbf16, #tpu.memory_space<vmem>>, vector<2x18x8x4xbf16>,
    %c0_i32 = arith.constant 0 : i32
    %24 = arith.cmpi eq, %arg1, %c0_i32 : i32
    %25 = arith.extui %24 : i1 to i32
    %c0_i32_31 = arith.constant 0 : i32
    %26 = arith.cmpi ne, %25, %c0_i32_31 : i32
    scf.if %26 {
      %cst_128 = arith.constant 0.000000e+00 : bf16
      %121 = vector.broadcast %cst_128 : bf16 to vector<2x1x24x4xbf16>
      %c0_129 = arith.constant 0 : index
      %c0_130 = arith.constant 0 : index
      %c0_131 = arith.constant 0 : index
      %c0_132 = arith.constant 0 : index
      %122 = vector.load %arg11[%c0_129, %c0_130, %c0_131, %c0_132] : memref<2x18x24x4xbf16, #tpu.memory_space<vmem>>, vector<2x1x24x4xbf16>
      tpu.vector_store %arg11[%c0_129, %c0_130, %c0_131, %c0_132], %121 {strides = array<i32>} : memref<2x18x24x4xbf16, #tpu.memory_space<vmem>>, vector<2x1x24x4xbf16>,
    } else {
    }
    %c0_i32_32 = arith.constant 0 : i32
    %27 = arith.cmpi eq, %arg1, %c0_i32_32 : i32
    %28 = arith.extui %27 : i1 to i32
    %c0_i32_33 = arith.constant 0 : i32
    %29 = arith.cmpi ne, %28, %c0_i32_33 : i32
    scf.if %29 {
      %cst_128 = arith.constant 0.000000e+00 : bf16
      %121 = vector.broadcast %cst_128 : bf16 to vector<2x1x24x4xbf16>
      %c0_129 = arith.constant 0 : index
      %c17 = arith.constant 17 : index
      %c0_130 = arith.constant 0 : index
      %c0_131 = arith.constant 0 : index
      %122 = vector.load %arg11[%c0_129, %c17, %c0_130, %c0_131] : memref<2x18x24x4xbf16, #tpu.memory_space<vmem>>, vector<2x1x24x4xbf16>
      tpu.vector_store %arg11[%c0_129, %c17, %c0_130, %c0_131], %121 {strides = array<i32>} : memref<2x18x24x4xbf16, #tpu.memory_space<vmem>>, vector<2x1x24x4xbf16>,
    } else {
    }
    %c0_34 = arith.constant 0 : index
    %c0_35 = arith.constant 0 : index
    %c0_36 = arith.constant 0 : index
    %c0_37 = arith.constant 0 : index
    %30 = vector.load %arg11[%c0_34, %c0_35, %c0_36, %c0_37] : memref<2x18x24x4xbf16, #tpu.memory_space<vmem>>, vector<2x16x24x4xbf16>
    %31 = vector.shape_cast %30 : vector<2x16x24x4xbf16> to vector<768x4xbf16>
    %c0_38 = arith.constant 0 : index
    %c0_39 = arith.constant 0 : index
    %c0_40 = arith.constant 0 : index
    %c0_41 = arith.constant 0 : index
    %32 = vector.load %arg6[%c0_38, %c0_39, %c0_40, %c0_41] : memref<3x3x4x4xbf16, #tpu.memory_space<vmem>>, vector<1x1x4x4xbf16>
    %33 = vector.shape_cast %32 : vector<1x1x4x4xbf16> to vector<4x4xbf16>
    %cst_42 = arith.constant dense<0.000000e+00> : vector<768x4xf32>
    %34 = tpu.matmul %31, %33, %cst_42 {dimension_numbers = #tpu.dot_dimension_numbers<[1], [0], [0], [1], [0, 0, 1, 1], [], []>} : vector<768x4xbf16>, vector<4x4xbf16>, vector<768x4xf32> -> vector<768x4xf32>
    %c0_43 = arith.constant 0 : index
    %c1_44 = arith.constant 1 : index
    %c0_45 = arith.constant 0 : index
    %c0_46 = arith.constant 0 : index
    %35 = vector.load %arg6[%c0_43, %c1_44, %c0_45, %c0_46] : memref<3x3x4x4xbf16, #tpu.memory_space<vmem>>, vector<1x1x4x4xbf16>
    %36 = vector.shape_cast %35 : vector<1x1x4x4xbf16> to vector<4x4xbf16>
    %cst_47 = arith.constant dense<0.000000e+00> : vector<768x4xf32>
    %37 = tpu.matmul %31, %36, %cst_47 {dimension_numbers = #tpu.dot_dimension_numbers<[1], [0], [0], [1], [0, 0, 1, 1], [], []>} : vector<768x4xbf16>, vector<4x4xbf16>, vector<768x4xf32> -> vector<768x4xf32>
    %c0_48 = arith.constant 0 : index
    %c2_49 = arith.constant 2 : index
    %c0_50 = arith.constant 0 : index
    %c0_51 = arith.constant 0 : index
    %38 = vector.load %arg6[%c0_48, %c2_49, %c0_50, %c0_51] : memref<3x3x4x4xbf16, #tpu.memory_space<vmem>>, vector<1x1x4x4xbf16>
    %39 = vector.shape_cast %38 : vector<1x1x4x4xbf16> to vector<4x4xbf16>
    %cst_52 = arith.constant dense<0.000000e+00> : vector<768x4xf32>
    %40 = tpu.matmul %31, %39, %cst_52 {dimension_numbers = #tpu.dot_dimension_numbers<[1], [0], [0], [1], [0, 0, 1, 1], [], []>} : vector<768x4xbf16>, vector<4x4xbf16>, vector<768x4xf32> -> vector<768x4xf32>
    %41 = vector.extract_strided_slice %34 {offsets = [767, 0], sizes = [1, 4], strides = [1, 1]} : vector<768x4xf32> to vector<1x4xf32>
    %42 = vector.extract_strided_slice %34 {offsets = [0, 0], sizes = [767, 4], strides = [1, 1]} : vector<768x4xf32> to vector<767x4xf32>
    %43 = tpu.concatenate %41, %42 in 0 : vector<1x4xf32>, vector<767x4xf32> -> vector<768x4xf32>
    %44 = arith.addf %43, %37 : vector<768x4xf32>
    %45 = vector.extract_strided_slice %40 {offsets = [1, 0], sizes = [767, 4], strides = [1, 1]} : vector<768x4xf32> to vector<767x4xf32>
    %46 = vector.extract_strided_slice %40 {offsets = [0, 0], sizes = [1, 4], strides = [1, 1]} : vector<768x4xf32> to vector<1x4xf32>
    %47 = tpu.concatenate %45, %46 in 0 : vector<767x4xf32>, vector<1x4xf32> -> vector<768x4xf32>
    %48 = arith.addf %44, %47 : vector<768x4xf32>
    %49 = vector.shape_cast %48 : vector<768x4xf32> to vector<2x16x24x4xf32>
    %c0_53 = arith.constant 0 : index
    %c0_54 = arith.constant 0 : index
    %c0_55 = arith.constant 0 : index
    %c0_56 = arith.constant 0 : index
    %50 = vector.load %arg12[%c0_53, %c0_54, %c0_55, %c0_56] : memref<2x16x24x4xf32, #tpu.memory_space<vmem>>, vector<2x16x24x4xf32>
    tpu.vector_store %arg12[%c0_53, %c0_54, %c0_55, %c0_56], %49 {strides = array<i32>} : memref<2x16x24x4xf32, #tpu.memory_space<vmem>>, vector<2x16x24x4xf32>,
    %c0_57 = arith.constant 0 : index
    %c1_58 = arith.constant 1 : index
    %c0_59 = arith.constant 0 : index
    %c0_60 = arith.constant 0 : index
    %51 = vector.load %arg11[%c0_57, %c1_58, %c0_59, %c0_60] : memref<2x18x24x4xbf16, #tpu.memory_space<vmem>>, vector<2x16x24x4xbf16>
    %52 = vector.shape_cast %51 : vector<2x16x24x4xbf16> to vector<768x4xbf16>
    %c1_61 = arith.constant 1 : index
    %c0_62 = arith.constant 0 : index
    %c0_63 = arith.constant 0 : index
    %c0_64 = arith.constant 0 : index
    %53 = vector.load %arg6[%c1_61, %c0_62, %c0_63, %c0_64] : memref<3x3x4x4xbf16, #tpu.memory_space<vmem>>, vector<1x1x4x4xbf16>
    %54 = vector.shape_cast %53 : vector<1x1x4x4xbf16> to vector<4x4xbf16>
    %cst_65 = arith.constant dense<0.000000e+00> : vector<768x4xf32>
    %55 = tpu.matmul %52, %54, %cst_65 {dimension_numbers = #tpu.dot_dimension_numbers<[1], [0], [0], [1], [0, 0, 1, 1], [], []>} : vector<768x4xbf16>, vector<4x4xbf16>, vector<768x4xf32> -> vector<768x4xf32>
    %c1_66 = arith.constant 1 : index
    %c1_67 = arith.constant 1 : index
    %c0_68 = arith.constant 0 : index
    %c0_69 = arith.constant 0 : index
    %56 = vector.load %arg6[%c1_66, %c1_67, %c0_68, %c0_69] : memref<3x3x4x4xbf16, #tpu.memory_space<vmem>>, vector<1x1x4x4xbf16>
    %57 = vector.shape_cast %56 : vector<1x1x4x4xbf16> to vector<4x4xbf16>
    %cst_70 = arith.constant dense<0.000000e+00> : vector<768x4xf32>
    %58 = tpu.matmul %52, %57, %cst_70 {dimension_numbers = #tpu.dot_dimension_numbers<[1], [0], [0], [1], [0, 0, 1, 1], [], []>} : vector<768x4xbf16>, vector<4x4xbf16>, vector<768x4xf32> -> vector<768x4xf32>
    %c1_71 = arith.constant 1 : index
    %c2_72 = arith.constant 2 : index
    %c0_73 = arith.constant 0 : index
    %c0_74 = arith.constant 0 : index
    %59 = vector.load %arg6[%c1_71, %c2_72, %c0_73, %c0_74] : memref<3x3x4x4xbf16, #tpu.memory_space<vmem>>, vector<1x1x4x4xbf16>
    %60 = vector.shape_cast %59 : vector<1x1x4x4xbf16> to vector<4x4xbf16>
    %cst_75 = arith.constant dense<0.000000e+00> : vector<768x4xf32>
    %61 = tpu.matmul %52, %60, %cst_75 {dimension_numbers = #tpu.dot_dimension_numbers<[1], [0], [0], [1], [0, 0, 1, 1], [], []>} : vector<768x4xbf16>, vector<4x4xbf16>, vector<768x4xf32> -> vector<768x4xf32>
    %62 = vector.extract_strided_slice %55 {offsets = [767, 0], sizes = [1, 4], strides = [1, 1]} : vector<768x4xf32> to vector<1x4xf32>
    %63 = vector.extract_strided_slice %55 {offsets = [0, 0], sizes = [767, 4], strides = [1, 1]} : vector<768x4xf32> to vector<767x4xf32>
    %64 = tpu.concatenate %62, %63 in 0 : vector<1x4xf32>, vector<767x4xf32> -> vector<768x4xf32>
    %65 = arith.addf %64, %58 : vector<768x4xf32>
    %66 = vector.extract_strided_slice %61 {offsets = [1, 0], sizes = [767, 4], strides = [1, 1]} : vector<768x4xf32> to vector<767x4xf32>
    %67 = vector.extract_strided_slice %61 {offsets = [0, 0], sizes = [1, 4], strides = [1, 1]} : vector<768x4xf32> to vector<1x4xf32>
    %68 = tpu.concatenate %66, %67 in 0 : vector<767x4xf32>, vector<1x4xf32> -> vector<768x4xf32>
    %69 = arith.addf %65, %68 : vector<768x4xf32>
    %70 = vector.shape_cast %69 : vector<768x4xf32> to vector<2x16x24x4xf32>
    %c0_76 = arith.constant 0 : index
    %c0_77 = arith.constant 0 : index
    %c0_78 = arith.constant 0 : index
    %c0_79 = arith.constant 0 : index
    %71 = vector.load %arg12[%c0_76, %c0_77, %c0_78, %c0_79] : memref<2x16x24x4xf32, #tpu.memory_space<vmem>>, vector<2x16x24x4xf32>
    %72 = arith.addf %71, %70 : vector<2x16x24x4xf32>
    %c0_80 = arith.constant 0 : index
    %c0_81 = arith.constant 0 : index
    %c0_82 = arith.constant 0 : index
    %c0_83 = arith.constant 0 : index
    %73 = vector.load %arg12[%c0_80, %c0_81, %c0_82, %c0_83] : memref<2x16x24x4xf32, #tpu.memory_space<vmem>>, vector<2x16x24x4xf32>
    tpu.vector_store %arg12[%c0_80, %c0_81, %c0_82, %c0_83], %72 {strides = array<i32>} : memref<2x16x24x4xf32, #tpu.memory_space<vmem>>, vector<2x16x24x4xf32>,
    %c0_84 = arith.constant 0 : index
    %c2_85 = arith.constant 2 : index
    %c0_86 = arith.constant 0 : index
    %c0_87 = arith.constant 0 : index
    %74 = vector.load %arg11[%c0_84, %c2_85, %c0_86, %c0_87] : memref<2x18x24x4xbf16, #tpu.memory_space<vmem>>, vector<2x16x24x4xbf16>
    %75 = vector.shape_cast %74 : vector<2x16x24x4xbf16> to vector<768x4xbf16>
    %c2_88 = arith.constant 2 : index
    %c0_89 = arith.constant 0 : index
    %c0_90 = arith.constant 0 : index
    %c0_91 = arith.constant 0 : index
    %76 = vector.load %arg6[%c2_88, %c0_89, %c0_90, %c0_91] : memref<3x3x4x4xbf16, #tpu.memory_space<vmem>>, vector<1x1x4x4xbf16>
    %77 = vector.shape_cast %76 : vector<1x1x4x4xbf16> to vector<4x4xbf16>
    %cst_92 = arith.constant dense<0.000000e+00> : vector<768x4xf32>
    %78 = tpu.matmul %75, %77, %cst_92 {dimension_numbers = #tpu.dot_dimension_numbers<[1], [0], [0], [1], [0, 0, 1, 1], [], []>} : vector<768x4xbf16>, vector<4x4xbf16>, vector<768x4xf32> -> vector<768x4xf32>
    %c2_93 = arith.constant 2 : index
    %c1_94 = arith.constant 1 : index
    %c0_95 = arith.constant 0 : index
    %c0_96 = arith.constant 0 : index
    %79 = vector.load %arg6[%c2_93, %c1_94, %c0_95, %c0_96] : memref<3x3x4x4xbf16, #tpu.memory_space<vmem>>, vector<1x1x4x4xbf16>
    %80 = vector.shape_cast %79 : vector<1x1x4x4xbf16> to vector<4x4xbf16>
    %cst_97 = arith.constant dense<0.000000e+00> : vector<768x4xf32>
    %81 = tpu.matmul %75, %80, %cst_97 {dimension_numbers = #tpu.dot_dimension_numbers<[1], [0], [0], [1], [0, 0, 1, 1], [], []>} : vector<768x4xbf16>, vector<4x4xbf16>, vector<768x4xf32> -> vector<768x4xf32>
    %c2_98 = arith.constant 2 : index
    %c2_99 = arith.constant 2 : index
    %c0_100 = arith.constant 0 : index
    %c0_101 = arith.constant 0 : index
    %82 = vector.load %arg6[%c2_98, %c2_99, %c0_100, %c0_101] : memref<3x3x4x4xbf16, #tpu.memory_space<vmem>>, vector<1x1x4x4xbf16>
    %83 = vector.shape_cast %82 : vector<1x1x4x4xbf16> to vector<4x4xbf16>
    %cst_102 = arith.constant dense<0.000000e+00> : vector<768x4xf32>
    %84 = tpu.matmul %75, %83, %cst_102 {dimension_numbers = #tpu.dot_dimension_numbers<[1], [0], [0], [1], [0, 0, 1, 1], [], []>} : vector<768x4xbf16>, vector<4x4xbf16>, vector<768x4xf32> -> vector<768x4xf32>
    %85 = vector.extract_strided_slice %78 {offsets = [767, 0], sizes = [1, 4], strides = [1, 1]} : vector<768x4xf32> to vector<1x4xf32>
    %86 = vector.extract_strided_slice %78 {offsets = [0, 0], sizes = [767, 4], strides = [1, 1]} : vector<768x4xf32> to vector<767x4xf32>
    %87 = tpu.concatenate %85, %86 in 0 : vector<1x4xf32>, vector<767x4xf32> -> vector<768x4xf32>
    %88 = arith.addf %87, %81 : vector<768x4xf32>
    %89 = vector.extract_strided_slice %84 {offsets = [1, 0], sizes = [767, 4], strides = [1, 1]} : vector<768x4xf32> to vector<767x4xf32>
    %90 = vector.extract_strided_slice %84 {offsets = [0, 0], sizes = [1, 4], strides = [1, 1]} : vector<768x4xf32> to vector<1x4xf32>
    %91 = tpu.concatenate %89, %90 in 0 : vector<767x4xf32>, vector<1x4xf32> -> vector<768x4xf32>
    %92 = arith.addf %88, %91 : vector<768x4xf32>
    %93 = vector.shape_cast %92 : vector<768x4xf32> to vector<2x16x24x4xf32>
    %c0_103 = arith.constant 0 : index
    %c0_104 = arith.constant 0 : index
    %c0_105 = arith.constant 0 : index
    %c0_106 = arith.constant 0 : index
    %94 = vector.load %arg12[%c0_103, %c0_104, %c0_105, %c0_106] : memref<2x16x24x4xf32, #tpu.memory_space<vmem>>, vector<2x16x24x4xf32>
    %95 = arith.addf %94, %93 : vector<2x16x24x4xf32>
    %c0_107 = arith.constant 0 : index
    %c0_108 = arith.constant 0 : index
    %c0_109 = arith.constant 0 : index
    %c0_110 = arith.constant 0 : index
    %96 = vector.load %arg12[%c0_107, %c0_108, %c0_109, %c0_110] : memref<2x16x24x4xf32, #tpu.memory_space<vmem>>, vector<2x16x24x4xf32>
    tpu.vector_store %arg12[%c0_107, %c0_108, %c0_109, %c0_110], %95 {strides = array<i32>} : memref<2x16x24x4xf32, #tpu.memory_space<vmem>>, vector<2x16x24x4xf32>,
    %c0_111 = arith.constant 0 : index
    %c0_112 = arith.constant 0 : index
    %c0_113 = arith.constant 0 : index
    %c0_114 = arith.constant 0 : index
    %97 = vector.load %arg12[%c0_111, %c0_112, %c0_113, %c0_114] : memref<2x16x24x4xf32, #tpu.memory_space<vmem>>, vector<2x16x16x4xf32>
    %98 = vector.shape_cast %97 : vector<2x16x16x4xf32> to vector<512x4xf32>
    %99 = vector.broadcast %2 : vector<1x4xf32> to vector<512x4xf32>
    %100 = arith.mulf %98, %99 : vector<512x4xf32>
    %101 = vector.broadcast %3 : vector<1x4xf32> to vector<512x4xf32>
    %102 = arith.addf %100, %101 : vector<512x4xf32>
    %cst_115 = arith.constant 0.000000e+00 : f32
    %103 = vector.broadcast %cst_115 : f32 to vector<512x4xf32>
    %104 = arith.maximumf %102, %103 : vector<512x4xf32>
    %105 = arith.truncf %104 : vector<512x4xf32> to vector<512x4xbf16>
    %c0_116 = arith.constant 0 : index
    %c0_117 = arith.constant 0 : index
    %106 = vector.load %arg7[%c0_116, %c0_117] : memref<4x16xbf16, #tpu.memory_space<vmem>>, vector<4x16xbf16>
    %cst_118 = arith.constant dense<0.000000e+00> : vector<512x16xf32>
    %107 = tpu.matmul %105, %106, %cst_118 {dimension_numbers = #tpu.dot_dimension_numbers<[1], [0], [0], [1], [0, 0, 1, 1], [], []>} : vector<512x4xbf16>, vector<4x16xbf16>, vector<512x16xf32> -> vector<512x16xf32>
    %108 = vector.broadcast %4 : vector<1x16xf32> to vector<512x16xf32>
    %109 = arith.mulf %107, %108 : vector<512x16xf32>
    %110 = vector.broadcast %5 : vector<1x16xf32> to vector<512x16xf32>
    %111 = arith.addf %109, %110 : vector<512x16xf32>
    %c0_119 = arith.constant 0 : index
    %c0_120 = arith.constant 0 : index
    %c0_121 = arith.constant 0 : index
    %c0_122 = arith.constant 0 : index
    %112 = vector.load %arg2[%c0_119, %c0_120, %c0_121, %c0_122] : memref<2x16x16x16xbf16, #tpu.memory_space<vmem>>, vector<2x16x16x16xbf16>
    %113 = vector.shape_cast %112 : vector<2x16x16x16xbf16> to vector<512x16xbf16>
    %114 = arith.extf %113 : vector<512x16xbf16> to vector<512x16xf32>
    %115 = arith.addf %111, %114 : vector<512x16xf32>
    %cst_123 = arith.constant 0.000000e+00 : f32
    %116 = vector.broadcast %cst_123 : f32 to vector<512x16xf32>
    %117 = arith.maximumf %115, %116 : vector<512x16xf32>
    %118 = vector.shape_cast %117 : vector<512x16xf32> to vector<2x16x16x16xf32>
    %119 = arith.truncf %118 : vector<2x16x16x16xf32> to vector<2x16x16x16xbf16>
    %c0_124 = arith.constant 0 : index
    %c0_125 = arith.constant 0 : index
    %c0_126 = arith.constant 0 : index
    %c0_127 = arith.constant 0 : index
    %120 = vector.load %arg10[%c0_124, %c0_125, %c0_126, %c0_127] : memref<2x16x16x16xbf16, #tpu.memory_space<vmem>>, vector<2x16x16x16xbf16>
    tpu.vector_store %arg10[%c0_124, %c0_125, %c0_126, %c0_127], %119 {strides = array<i32>} : memref<2x16x16x16xbf16, #tpu.memory_space<vmem>>, vector<2x16x16x16xbf16>,
    return
  }
  func.func @transform_0(%arg0: i32, %arg1: i32) -> (i32, i32, i32, i32) {
    %c0_i32 = arith.constant 0 : i32
    %c0_i32_0 = arith.constant 0 : i32
    %c0_i32_1 = arith.constant 0 : i32
    return %arg0, %arg1, %c0_i32, %c0_i32_0 : i32, i32, i32, i32
  }
  func.func @transform_1(%arg0: i32, %arg1: i32) -> (i32, i32, i32, i32) {
    %c16_i32 = arith.constant 16 : i32
    %0 = arith.muli %arg1, %c16_i32 : i32
    %c1_i32 = arith.constant 1 : i32
    %1 = arith.subi %0, %c1_i32 : i32
    %c0_i32 = arith.constant 0 : i32
    %2 = arith.maxsi %1, %c0_i32 : i32
    %c0_i32_0 = arith.constant 0 : i32
    %c0_i32_1 = arith.constant 0 : i32
    %c0_i32_2 = arith.constant 0 : i32
    return %arg0, %2, %c0_i32_0, %c0_i32_1 : i32, i32, i32, i32
  }
  func.func @transform_2(%arg0: i32, %arg1: i32) -> (i32, i32, i32, i32) {
    %c1_i32 = arith.constant 1 : i32
    %0 = arith.addi %arg1, %c1_i32 : i32
    %c16_i32 = arith.constant 16 : i32
    %1 = arith.muli %0, %c16_i32 : i32
    %c15_i32 = arith.constant 15 : i32
    %2 = arith.minsi %1, %c15_i32 : i32
    %c0_i32 = arith.constant 0 : i32
    %c0_i32_0 = arith.constant 0 : i32
    %c0_i32_1 = arith.constant 0 : i32
    return %arg0, %2, %c0_i32, %c0_i32_0 : i32, i32, i32, i32
  }
  func.func @transform_3(%arg0: i32, %arg1: i32) -> (i32, i32) {
    %c0_i32 = arith.constant 0 : i32
    %c0_i32_0 = arith.constant 0 : i32
    %c0_i32_1 = arith.constant 0 : i32
    return %c0_i32, %c0_i32_0 : i32, i32
  }
  func.func @transform_4(%arg0: i32, %arg1: i32) -> (i32, i32, i32, i32) {
    %c0_i32 = arith.constant 0 : i32
    %c0_i32_0 = arith.constant 0 : i32
    %c0_i32_1 = arith.constant 0 : i32
    %c0_i32_2 = arith.constant 0 : i32
    %c0_i32_3 = arith.constant 0 : i32
    return %c0_i32, %c0_i32_0, %c0_i32_1, %c0_i32_2 : i32, i32, i32, i32
  }
  func.func @transform_5(%arg0: i32, %arg1: i32) -> (i32, i32) {
    %c0_i32 = arith.constant 0 : i32
    %c0_i32_0 = arith.constant 0 : i32
    %c0_i32_1 = arith.constant 0 : i32
    return %c0_i32, %c0_i32_0 : i32, i32
  }
  func.func @transform_6(%arg0: i32, %arg1: i32) -> (i32, i32) {
    %c0_i32 = arith.constant 0 : i32
    %c0_i32_0 = arith.constant 0 : i32
    %c0_i32_1 = arith.constant 0 : i32
    return %c0_i32, %c0_i32_0 : i32, i32
  }
  func.func @transform_7(%arg0: i32, %arg1: i32) -> (i32, i32) {
    %c0_i32 = arith.constant 0 : i32
    %c0_i32_0 = arith.constant 0 : i32
    %c0_i32_1 = arith.constant 0 : i32
    return %c0_i32, %c0_i32_0 : i32, i32
  }
  func.func @transform_8(%arg0: i32, %arg1: i32) -> (i32, i32, i32, i32) {
    %c0_i32 = arith.constant 0 : i32
    %c0_i32_0 = arith.constant 0 : i32
    %c0_i32_1 = arith.constant 0 : i32
    return %arg0, %arg1, %c0_i32, %c0_i32_0 : i32, i32, i32, i32
  }
}

</mosaic_0001>

<llo_original>
// kernel: tpu_custom_call.1
$region0: #{tpu_custom_call.1}
  #allocation0 [shape = 'u32[]', space=smem, size = 0x4, offset = 0x4, fixed_abs, tag = 'smem constant byte address 0x4 - core index']
  #allocation1 [shape = 'u32[144,128]{1,0:T(1,128)}', space=vmem, size = 0x12000, scoped, tag = 'internal scratch']
  #allocation2 [shape = 'bf16[2,18,24,4]{3,2,1,0:T(8,128)(2,1)}', space=vmem, size = 0x36000, scoped, tag = 'scratch operand']
  #allocation3 [shape = 'f32[2,16,24,4]{3,2,1,0:T(8,128)}', space=vmem, size = 0x60000, scoped, tag = 'scratch operand']
  #allocation11 [shape = 's32[]', space=sflag, size = 0x4, offset = 0, fixed_abs, tag = 'sflag constant byte address 0x0 - dummy sync flag']
  #allocation13 [shape = 's32[]', space=sflag, size = 0x4, offset = 0, fixed_abs, tag = 'sflag constant byte address 0x0 - dummy sync flag']
  %s0 = inlined_call_operand.hbm [shape: bf16[2,16,16,16], index: 0, kind: input, shape index: {}]
  %s1 = inlined_call_operand.hbm [shape: bf16[2,16,16,16], index: 1, kind: input, shape index: {}]
  %s2 = inlined_call_operand.hbm [shape: bf16[2,16,16,16], index: 2, kind: input, shape index: {}]
  %s3 = inlined_call_operand.vmem [shape: bf16[16,4], index: 3, kind: input, shape index: {}]
  %s4 = inlined_call_operand.vmem [shape: bf16[3,3,4,4], index: 4, kind: input, shape index: {}]
  %s5 = inlined_call_operand.vmem [shape: bf16[4,16], index: 5, kind: input, shape index: {}]
  %s6 = inlined_call_operand.vmem [shape: f32[4,4], index: 6, kind: input, shape index: {}]
  %s7 = inlined_call_operand.vmem [shape: f32[2,16], index: 7, kind: input, shape index: {}]
  %s8 = inlined_call_operand.hbm [shape: bf16[2,16,16,16], index: 8, kind: output, shape index: {}]
  %s9 = sld [smem:[#allocation0]]
  $region58: #{tpu_custom_call.1} parent=0
    _
  %s11 = ssub.s32 1, %s9
  %s12 = scalar_select 0, %s11, %s9
  $region1: #{tpu_custom_call.1} parent=0
    #allocation4 [shape = 'u8[131072]{0}', space=vmem, size = 0x20000, scoped, tag = 'input window, operand 0, single buffered']
    #allocation5 [shape = 's32[1]{0}', space=sflag, size = 0x4, scoped, tag = 'scoped memory for tpu_custom_call.1']
    #allocation6 [shape = 's32[1]{0}', space=sflag, size = 0x4, scoped, tag = 'scoped memory for tpu_custom_call.1']
    #allocation7 [shape = 'u8[8192]{0}', space=vmem, size = 0x2000, scoped, tag = 'input window, operand 1, single buffered']
    #allocation8 [shape = 's32[1]{0}', space=sflag, size = 0x4, scoped, tag = 'scoped memory for tpu_custom_call.1']
    #allocation9 [shape = 'u8[8192]{0}', space=vmem, size = 0x2000, scoped, tag = 'input window, operand 2, single buffered']
    #allocation10 [shape = 'u8[131072]{0}', space=vmem, size = 0x20000, scoped, tag = 'output window, operand 0, single buffered']
    %13 = vsyncpa [#allocation5], 0
    %14 = vsyncpa [#allocation8], 0
    %15 = vsyncpa [#allocation6], 0
    // Predicated region
    $region2: #{tpu_custom_call.1} parent=1 // pred_check
      _
    $region3: #{tpu_custom_call.1} parent=1 // pred_check_branch
      %17 = sbr.rel (0) target = $region5
    $region4: #{tpu_custom_call.1} parent=1 // pred_region
      %s19 = ssub.s32 4096, 4096
      %20 = vsyncadd [#allocation5], %s19
      %s21 = sshll.u32 [#allocation4], 4
      %s22 = int_to_ptr.vmem [resolvable:$true] %s21
      %27 = dma.hbm_to_vmem [thread:$0]  %s0, 4096, %s22, [#allocation5], 64, 64, 4
    $region5: #{tpu_custom_call.1} parent=1 // pred_fallthru
      _
    // Predicated region
    $region6: #{tpu_custom_call.1} parent=1 // pred_check
      _
    $region7: #{tpu_custom_call.1} parent=1 // pred_check_branch
      %29 = sbr.rel (0) target = $region9
    $region8: #{tpu_custom_call.1} parent=1 // pred_region
      #allocation12 [shape = 'u32[6]{0}', space=smem, size = 0x18, scoped, tag = 'DMA stride descriptor']
      %s30 = smul.u32 0, 16
      %s31 = ssub.s32 %s30, 1
      %p32 = scmp.gt.s32.totalorder %s31, 0
      %s33 = scalar_select %p32, %s31, 0
      %s35 = ssub.s32 256, 256
      %36 = vsyncadd [#allocation8], %s35
      %s37 = smul.addr %s33, 2
      %s38 = smul.addr %s37, 64
      %s39 = scalar_lea.hbm %s1, %s38
      %s41 = sshll.u32 1, 14
      %s42 = sxor.u32 4294967295, %s41
      %s44 = sld [smem:[#allocation0]]
      %s45 = sadd.s32 2, %s44
      %s47 = sshll.u32 7, 26
      %s48 = sxor.u32 4294967295, %s47
      %s49 = sand.u32 0, %s48
      %s50 = sshll.u32 %s45, 26
      %s51 = sor.u32 %s49, %s50
      %s52 = sshll.u32 [#allocation7], 4
      %s53 = int_to_ptr.vmem [resolvable:$true] %s52
      %59 = sst [smem:[#allocation12]] 2048
      %s60 = scalar_lea.smem [#allocation12], 1
      %61 = sst [smem:[%s60]] 128
      %s62 = scalar_lea.smem [#allocation12], 2
      %63 = sst [smem:[%s62]] 2
      %s64 = scalar_lea.smem [#allocation12], 3
      %65 = sst [smem:[%s64]] 64
      %s66 = scalar_lea.smem [#allocation12], 4
      %67 = sst [smem:[%s66]] 64
      %s68 = scalar_lea.smem [#allocation12], 5
      %69 = sst [smem:[%s68]] 4
      %71 = dma.general %s39, 256, %s53, [#allocation8], [#allocation11], [#allocation12], %s51, 0
    $region9: #{tpu_custom_call.1} parent=1 // pred_fallthru
      _
    // Predicated region
    $region10: #{tpu_custom_call.1} parent=1 // pred_check
      _
    $region11: #{tpu_custom_call.1} parent=1 // pred_check_branch
      %73 = sbr.rel (0) target = $region13
    $region12: #{tpu_custom_call.1} parent=1 // pred_region
      #allocation14 [shape = 'u32[6]{0}', space=smem, size = 0x18, scoped, tag = 'DMA stride descriptor']
      %s74 = sadd.s32 0, 1
      %s75 = smul.u32 %s74, 16
      %p76 = scmp.lt.s32.totalorder %s75, 15
      %s77 = scalar_select %p76, %s75, 15
      %s79 = ssub.s32 256, 256
      %80 = vsyncadd [#allocation8], %s79
      %s81 = smul.addr %s77, 2
      %s82 = smul.addr %s81, 64
      %s83 = scalar_lea.hbm %s2, %s82
      %s85 = sshll.u32 1, 14
      %s86 = sxor.u32 4294967295, %s85
      %s88 = sld [smem:[#allocation0]]
      %s89 = sadd.s32 2, %s88
      %s91 = sshll.u32 7, 26
      %s92 = sxor.u32 4294967295, %s91
      %s93 = sand.u32 0, %s92
      %s94 = sshll.u32 %s89, 26
      %s95 = sor.u32 %s93, %s94
      %s96 = sshll.u32 [#allocation9], 4
      %s97 = int_to_ptr.vmem [resolvable:$true] %s96
      %103 = sst [smem:[#allocation14]] 2048
      %s104 = scalar_lea.smem [#allocation14], 1
      %105 = sst [smem:[%s104]] 128
      %s106 = scalar_lea.smem [#allocation14], 2
      %107 = sst [smem:[%s106]] 2
      %s108 = scalar_lea.smem [#allocation14], 3
      %109 = sst [smem:[%s108]] 64
      %s110 = scalar_lea.smem [#allocation14], 4
      %111 = sst [smem:[%s110]] 64
      %s112 = scalar_lea.smem [#allocation14], 5
      %113 = sst [smem:[%s112]] 4
      %115 = dma.general %s83, 256, %s97, [#allocation8], [#allocation13], [#allocation14], %s95, 0
    $region13: #{tpu_custom_call.1} parent=1 // pred_fallthru
      _
    // Predicated region
    $region14: #{tpu_custom_call.1} parent=1 // pred_check
      _
    $region15: #{tpu_custom_call.1} parent=1 // pred_check_branch
      %117 = sbr.rel (0) target = $region17
    $region16: #{tpu_custom_call.1} parent=1 // pred_region
      _
    $region17: #{tpu_custom_call.1} parent=1 // pred_fallthru
      _
    // Predicated region
    $region18: #{tpu_custom_call.1} parent=1 // pred_check
      _
    $region19: #{tpu_custom_call.1} parent=1 // pred_check_branch
      %119 = sbr.rel (0) target = $region21
    $region20: #{tpu_custom_call.1} parent=1 // pred_region
      _
    $region21: #{tpu_custom_call.1} parent=1 // pred_fallthru
      _
    // Predicated region
    $region22: #{tpu_custom_call.1} parent=1 // pred_check
      _
    $region23: #{tpu_custom_call.1} parent=1 // pred_check_branch
      %121 = sbr.rel (0) target = $region25
    $region24: #{tpu_custom_call.1} parent=1 // pred_region
      _
    $region25: #{tpu_custom_call.1} parent=1 // pred_fallthru
      _
    // Predicated region
    $region26: #{tpu_custom_call.1} parent=1 // pred_check
      _
    $region27: #{tpu_custom_call.1} parent=1 // pred_check_branch
      %123 = sbr.rel (0) target = $region29
    $region28: #{tpu_custom_call.1} parent=1 // pred_region
      _
    $region29: #{tpu_custom_call.1} parent=1 // pred_fallthru
      _
    // Predicated region
    $region30: #{tpu_custom_call.1} parent=1 // pred_check
      _
    $region31: #{tpu_custom_call.1} parent=1 // pred_check_branch
      %125 = sbr.rel (0) target = $region33
    $region32: #{tpu_custom_call.1} parent=1 // pred_region
      _
    $region33: #{tpu_custom_call.1} parent=1 // pred_fallthru
      _
    // Predicated region
    $region34: #{tpu_custom_call.1} parent=1 // pred_check
      _
    $region35: #{tpu_custom_call.1} parent=1 // pred_check_branch
      %127 = sbr.rel (0) target = $region37
    $region36: #{tpu_custom_call.1} parent=1 // pred_region
      %128 = dma.done [#allocation5], 4096
    $region37: #{tpu_custom_call.1} parent=1 // pred_fallthru
      _
    // Predicated region
    $region38: #{tpu_custom_call.1} parent=1 // pred_check
      _
    $region39: #{tpu_custom_call.1} parent=1 // pred_check_branch
      %130 = sbr.rel (0) target = $region41
    $region40: #{tpu_custom_call.1} parent=1 // pred_region
      %131 = dma.done [#allocation8], 256
    $region41: #{tpu_custom_call.1} parent=1 // pred_fallthru
      _
    // Predicated region
    $region42: #{tpu_custom_call.1} parent=1 // pred_check
      _
    $region43: #{tpu_custom_call.1} parent=1 // pred_check_branch
      %133 = sbr.rel (0) target = $region45
    $region44: #{tpu_custom_call.1} parent=1 // pred_region
      %134 = dma.done [#allocation8], 256
    $region45: #{tpu_custom_call.1} parent=1 // pred_fallthru
      _
    %s135 = smul.u32 0, 16
    %s136 = ssub.s32 %s135, 1
    %p137 = scmp.gt.s32.totalorder %s136, 0
    %s138 = scalar_select %p137, %s136, 0
    %s139 = sadd.s32 0, 1
    %s140 = smul.u32 %s139, 16
    %p141 = scmp.lt.s32.totalorder %s140, 15
    %s142 = scalar_select %p141, %s140, 15
    %v144 = vld [vmem:[%s6] sm:$0x1]
    %v145 = vld [vmem:[%s6 + $0x1] sm:$0x1]
    %v146 = vld [vmem:[%s6 + $0x2] sm:$0x1]
    %v147 = vld [vmem:[%s6 + $0x3] sm:$0x1]
    %v148 = vld [vmem:[%s7] sm:$0x1]
    %v149 = vld [vmem:[%s7 + $0x1] sm:$0x1]
    %v150 = vld [vmem:[#allocation7] sm:$0xf]
    %v151 = vld [vmem:[#allocation7 + $0x4] sm:$0xf]
    %v152 = vld [vmem:[#allocation7 + $0x8] sm:$0xf]
    %v153 = vld [vmem:[#allocation7 + $0xc] sm:$0xf]
    %v154 = vld [vmem:[#allocation4] sm:$0xf]
    %v155 = vld [vmem:[#allocation4 + $0x4] sm:$0xf]
    %v156 = vld [vmem:[#allocation4 + $0x8] sm:$0xf]
    %v157 = vld [vmem:[#allocation4 + $0xc] sm:$0xf]
    %v158 = vld [vmem:[#allocation4 + $0x10] sm:$0xf]
    %v159 = vld [vmem:[#allocation4 + $0x14] sm:$0xf]
    %v160 = vld [vmem:[#allocation4 + $0x18] sm:$0xf]
    %v161 = vld [vmem:[#allocation4 + $0x1c] sm:$0xf]
    %v162 = vld [vmem:[#allocation4 + $0x20] sm:$0xf]
    %v163 = vld [vmem:[#allocation4 + $0x24] sm:$0xf]
    %v164 = vld [vmem:[#allocation4 + $0x28] sm:$0xf]
    %v165 = vld [vmem:[#allocation4 + $0x2c] sm:$0xf]
    %v166 = vld [vmem:[#allocation4 + $0x30] sm:$0xf]
    %v167 = vld [vmem:[#allocation4 + $0x34] sm:$0xf]
    %v168 = vld [vmem:[#allocation4 + $0x38] sm:$0xf]
    %v169 = vld [vmem:[#allocation4 + $0x3c] sm:$0xf]
    %v170 = vld [vmem:[#allocation4 + $0x40] sm:$0xf]
    %v171 = vld [vmem:[#allocation4 + $0x44] sm:$0xf]
    %v172 = vld [vmem:[#allocation4 + $0x48] sm:$0xf]
    %v173 = vld [vmem:[#allocation4 + $0x4c] sm:$0xf]
    %v174 = vld [vmem:[#allocation4 + $0x50] sm:$0xf]
    %v175 = vld [vmem:[#allocation4 + $0x54] sm:$0xf]
    %v176 = vld [vmem:[#allocation4 + $0x58] sm:$0xf]
    %v177 = vld [vmem:[#allocation4 + $0x5c] sm:$0xf]
    %v178 = vld [vmem:[#allocation4 + $0x60] sm:$0xf]
    %v179 = vld [vmem:[#allocation4 + $0x64] sm:$0xf]
    %v180 = vld [vmem:[#allocation4 + $0x68] sm:$0xf]
    %v181 = vld [vmem:[#allocation4 + $0x6c] sm:$0xf]
    %v182 = vld [vmem:[#allocation4 + $0x70] sm:$0xf]
    %v183 = vld [vmem:[#allocation4 + $0x74] sm:$0xf]
    %v184 = vld [vmem:[#allocation4 + $0x78] sm:$0xf]
    %v185 = vld [vmem:[#allocation4 + $0x7c] sm:$0xf]
    %v186 = vld [vmem:[#allocation4 + $0x80] sm:$0xf]
    %v187 = vld [vmem:[#allocation4 + $0x84] sm:$0xf]
    %v188 = vld [vmem:[#allocation4 + $0x88] sm:$0xf]
    %v189 = vld [vmem:[#allocation4 + $0x8c] sm:$0xf]
    %v190 = vld [vmem:[#allocation4 + $0x90] sm:$0xf]
    %v191 = vld [vmem:[#allocation4 + $0x94] sm:$0xf]
    %v192 = vld [vmem:[#allocation4 + $0x98] sm:$0xf]
    %v193 = vld [vmem:[#allocation4 + $0x9c] sm:$0xf]
    %v194 = vld [vmem:[#allocation4 + $0xa0] sm:$0xf]
    %v195 = vld [vmem:[#allocation4 + $0xa4] sm:$0xf]
    %v196 = vld [vmem:[#allocation4 + $0xa8] sm:$0xf]
    %v197 = vld [vmem:[#allocation4 + $0xac] sm:$0xf]
    %v198 = vld [vmem:[#allocation4 + $0xb0] sm:$0xf]
    %v199 = vld [vmem:[#allocation4 + $0xb4] sm:$0xf]
    %v200 = vld [vmem:[#allocation4 + $0xb8] sm:$0xf]
    %v201 = vld [vmem:[#allocation4 + $0xbc] sm:$0xf]
    %v202 = vld [vmem:[#allocation4 + $0xc0] sm:$0xf]
    %v203 = vld [vmem:[#allocation4 + $0xc4] sm:$0xf]
    %v204 = vld [vmem:[#allocation4 + $0xc8] sm:$0xf]
    %v205 = vld [vmem:[#allocation4 + $0xcc] sm:$0xf]
    %v206 = vld [vmem:[#allocation4 + $0xd0] sm:$0xf]
    %v207 = vld [vmem:[#allocation4 + $0xd4] sm:$0xf]
    %v208 = vld [vmem:[#allocation4 + $0xd8] sm:$0xf]
    %v209 = vld [vmem:[#allocation4 + $0xdc] sm:$0xf]
    %v210 = vld [vmem:[#allocation4 + $0xe0] sm:$0xf]
    %v211 = vld [vmem:[#allocation4 + $0xe4] sm:$0xf]
    %v212 = vld [vmem:[#allocation4 + $0xe8] sm:$0xf]
    %v213 = vld [vmem:[#allocation4 + $0xec] sm:$0xf]
    %v214 = vld [vmem:[#allocation4 + $0xf0] sm:$0xf]
    %v215 = vld [vmem:[#allocation4 + $0xf4] sm:$0xf]
    %v216 = vld [vmem:[#allocation4 + $0xf8] sm:$0xf]
    %v217 = vld [vmem:[#allocation4 + $0xfc] sm:$0xf]
    %v218 = vld [vmem:[#allocation9] sm:$0xf]
    %v219 = vld [vmem:[#allocation9 + $0x4] sm:$0xf]
    %v220 = vld [vmem:[#allocation9 + $0x8] sm:$0xf]
    %v221 = vld [vmem:[#allocation9 + $0xc] sm:$0xf]
    %v222 = vld [vmem:[%s3] sm:$0xf]
    %v223 = vld [vmem:[%s3 + $0x4] sm:$0xf]
    %v296 = vunpack.c.l.b16 %v150
    %v297 = vunpack.c.l.b16 %v151
    %v298 = vunpack.c.l.b16 %v154
    %v299 = vunpack.c.l.b16 %v155
    %v300 = vunpack.c.l.b16 %v156
    %v301 = vunpack.c.l.b16 %v157
    %v302 = vunpack.c.l.b16 %v158
    %v303 = vunpack.c.l.b16 %v159
    %v304 = vunpack.c.l.b16 %v160
    %v305 = vunpack.c.l.b16 %v161
    %v306 = vunpack.c.l.b16 %v162
    %v307 = vunpack.c.l.b16 %v163
    %v308 = vunpack.c.l.b16 %v164
    %v309 = vunpack.c.l.b16 %v165
    %v310 = vunpack.c.l.b16 %v166
    %v311 = vunpack.c.l.b16 %v167
    %v312 = vunpack.c.l.b16 %v168
    %v313 = vunpack.c.l.b16 %v169
    %v314 = vunpack.c.l.b16 %v170
    %v315 = vunpack.c.l.b16 %v171
    %v316 = vunpack.c.l.b16 %v172
    %v317 = vunpack.c.l.b16 %v173
    %v318 = vunpack.c.l.b16 %v174
    %v319 = vunpack.c.l.b16 %v175
    %v320 = vunpack.c.l.b16 %v176
    %v321 = vunpack.c.l.b16 %v177
    %v322 = vunpack.c.l.b16 %v178
    %v323 = vunpack.c.l.b16 %v179
    %v324 = vunpack.c.l.b16 %v180
    %v325 = vunpack.c.l.b16 %v181
    %v326 = vunpack.c.l.b16 %v182
    %v327 = vunpack.c.l.b16 %v183
    %v328 = vunpack.c.l.b16 %v184
    %v329 = vunpack.c.l.b16 %v185
    %v330 = vunpack.c.l.b16 %v218
    %v331 = vunpack.c.l.b16 %v219
    %v332 = vunpack.c.l.b16 %v152
    %v333 = vunpack.c.l.b16 %v153
    %v334 = vunpack.c.l.b16 %v186
    %v335 = vunpack.c.l.b16 %v187
    %v336 = vunpack.c.l.b16 %v188
    %v337 = vunpack.c.l.b16 %v189
    %v338 = vunpack.c.l.b16 %v190
    %v339 = vunpack.c.l.b16 %v191
    %v340 = vunpack.c.l.b16 %v192
    %v341 = vunpack.c.l.b16 %v193
    %v342 = vunpack.c.l.b16 %v194
    %v343 = vunpack.c.l.b16 %v195
    %v344 = vunpack.c.l.b16 %v196
    %v345 = vunpack.c.l.b16 %v197
    %v346 = vunpack.c.l.b16 %v198
    %v347 = vunpack.c.l.b16 %v199
    %v348 = vunpack.c.l.b16 %v200
    %v349 = vunpack.c.l.b16 %v201
    %v350 = vunpack.c.l.b16 %v202
    %v351 = vunpack.c.l.b16 %v203
    %v352 = vunpack.c.l.b16 %v204
    %v353 = vunpack.c.l.b16 %v205
    %v354 = vunpack.c.l.b16 %v206
    %v355 = vunpack.c.l.b16 %v207
    %v356 = vunpack.c.l.b16 %v208
    %v357 = vunpack.c.l.b16 %v209
    %v358 = vunpack.c.l.b16 %v210
    %v359 = vunpack.c.l.b16 %v211
    %v360 = vunpack.c.l.b16 %v212
    %v361 = vunpack.c.l.b16 %v213
    %v362 = vunpack.c.l.b16 %v214
    %v363 = vunpack.c.l.b16 %v215
    %v364 = vunpack.c.l.b16 %v216
    %v365 = vunpack.c.l.b16 %v217
    %v366 = vunpack.c.l.b16 %v220
    %v367 = vunpack.c.l.b16 %v221
    %v368 = vpack.c.b16 %v297, %v296
    %v369 = vpack.c.b16 %v299, %v298
    %v370 = vpack.c.b16 %v301, %v300
    %v371 = vpack.c.b16 %v303, %v302
    %v372 = vpack.c.b16 %v305, %v304
    %v373 = vpack.c.b16 %v307, %v306
    %v374 = vpack.c.b16 %v309, %v308
    %v375 = vpack.c.b16 %v311, %v310
    %v376 = vpack.c.b16 %v313, %v312
    %v377 = vpack.c.b16 %v315, %v314
    %v378 = vpack.c.b16 %v317, %v316
    %v379 = vpack.c.b16 %v319, %v318
    %v380 = vpack.c.b16 %v321, %v320
    %v381 = vpack.c.b16 %v323, %v322
    %v382 = vpack.c.b16 %v325, %v324
    %v383 = vpack.c.b16 %v327, %v326
    %v384 = vpack.c.b16 %v329, %v328
    %v385 = vpack.c.b16 %v331, %v330
    %v386 = vpack.c.b16 %v333, %v332
    %v387 = vpack.c.b16 %v335, %v334
    %v388 = vpack.c.b16 %v337, %v336
    %v389 = vpack.c.b16 %v339, %v338
    %v390 = vpack.c.b16 %v341, %v340
    %v391 = vpack.c.b16 %v343, %v342
    %v392 = vpack.c.b16 %v345, %v344
    %v393 = vpack.c.b16 %v347, %v346
    %v394 = vpack.c.b16 %v349, %v348
    %v395 = vpack.c.b16 %v351, %v350
    %v396 = vpack.c.b16 %v353, %v352
    %v397 = vpack.c.b16 %v355, %v354
    %v398 = vpack.c.b16 %v357, %v356
    %v399 = vpack.c.b16 %v359, %v358
    %v400 = vpack.c.b16 %v361, %v360
    %v401 = vpack.c.b16 %v363, %v362
    %v402 = vpack.c.b16 %v365, %v364
    %v403 = vpack.c.b16 %v367, %v366
    %v406 = vunpack.c.l.b16 %v222
    %v407 = vunpack.c.l.b16 %v223
    %v408 = vpack.c.b16 %v407, %v406
    %vm410 = vcmask 130048
    %v412 = vsel %vm410, %v368, 0
    %v415 = vsel %vm410, %v369, 0
    %v418 = vsel %vm410, %v370, 0
    %v421 = vsel %vm410, %v371, 0
    %v424 = vsel %vm410, %v372, 0
    %v427 = vsel %vm410, %v373, 0
    %v430 = vsel %vm410, %v374, 0
    %v433 = vsel %vm410, %v375, 0
    %v436 = vsel %vm410, %v376, 0
    %v439 = vsel %vm410, %v377, 0
    %v442 = vsel %vm410, %v378, 0
    %v445 = vsel %vm410, %v379, 0
    %v448 = vsel %vm410, %v380, 0
    %v451 = vsel %vm410, %v381, 0
    %v454 = vsel %vm410, %v382, 0
    %v457 = vsel %vm410, %v383, 0
    %v460 = vsel %vm410, %v384, 0
    %v463 = vsel %vm410, %v385, 0
    %v466 = vsel %vm410, %v386, 0
    %v469 = vsel %vm410, %v387, 0
    %v472 = vsel %vm410, %v388, 0
    %v475 = vsel %vm410, %v389, 0
    %v478 = vsel %vm410, %v390, 0
    %v481 = vsel %vm410, %v391, 0
    %v484 = vsel %vm410, %v392, 0
    %v487 = vsel %vm410, %v393, 0
    %v490 = vsel %vm410, %v394, 0
    %v493 = vsel %vm410, %v395, 0
    %v496 = vsel %vm410, %v396, 0
    %v499 = vsel %vm410, %v397, 0
    %v502 = vsel %vm410, %v398, 0
    %v505 = vsel %vm410, %v399, 0
    %v508 = vsel %vm410, %v400, 0
    %v511 = vsel %vm410, %v401, 0
    %v514 = vsel %vm410, %v402, 0
    %v517 = vsel %vm410, %v403, 0
    %519 = vmatprep.subr.bf16.mxu0 0
    %520 = vmatpush1.bf16.msra.mxu0 %v408
    %521 = vmatprep.subr.bf16.mxu0 0
    %522 = vmatpush1.bf16.msra.mxu0 0
    %523 = vmatprep.subr.bf16.mxu0 0
    %524 = vmatpush1.bf16.msra.mxu0 0
    %525 = vmatprep.subr.bf16.mxu0 0
    %526 = vmatpush1.bf16.msra.mxu0 0
    %527 = vmatprep.subr.bf16.mxu0 0
    %528 = vmatpush1.bf16.msra.mxu0 0
    %529 = vmatprep.subr.bf16.mxu0 0
    %530 = vmatpush1.bf16.msra.mxu0 0
    %531 = vmatprep.subr.bf16.mxu0 0
    %532 = vmatpush1.bf16.msra.mxu0 0
    %533 = vmatprep.subr.bf16.mxu0 0
    %534 = vmatpush1.bf16.msra.mxu0 0
    %535 = vmatprep.subr.bf16.mxu0 0
    %536 = vmatpush1.bf16.msra.mxu0 0
    %537 = vmatprep.subr.bf16.mxu0 0
    %538 = vmatpush1.bf16.msra.mxu0 0
    %539 = vmatprep.subr.bf16.mxu0 0
    %540 = vmatpush1.bf16.msra.mxu0 0
    %541 = vmatprep.subr.bf16.mxu0 0
    %542 = vmatpush1.bf16.msra.mxu0 0
    %543 = vmatprep.subr.bf16.mxu0 0
    %544 = vmatpush1.bf16.msra.mxu0 0
    %545 = vmatprep.subr.bf16.mxu0 0
    %546 = vmatpush1.bf16.msra.mxu0 0
    %547 = vmatprep.subr.bf16.mxu0 0
    %548 = vmatpush1.bf16.msra.mxu0 0
    %549 = vmatprep.subr.bf16.mxu0 0
    %550 = vmatpush1.bf16.msra.mxu0 0
    %551 = vmatprep.mubr.bf16.mxu0 0
    %552 = vmatmul.mubr.bf16.gmra.mrb[0].mxu0 %v412
    %v553 = vpop.f32.mrb[0].mxu0
    %v554 = vadd.f32 0.0, %v553
    %v555 = vpop.f32.mrb[0].mxu0
    %v556 = vpop.f32.mrb[0].mxu0
    %v557 = vadd.f32 0.0, %v556
    %v558 = vpop.f32.mrb[0].mxu0
    %559 = vmatprep.mubr.bf16.mxu0 0
    %560 = vmatmul.mubr.bf16.gmra.mrb[0].mxu0 %v415
    %v561 = vpop.f32.mrb[0].mxu0
    %v562 = vadd.f32 0.0, %v561
    %v563 = vpop.f32.mrb[0].mxu0
    %v564 = vpop.f32.mrb[0].mxu0
    %v565 = vadd.f32 0.0, %v564
    %v566 = vpop.f32.mrb[0].mxu0
    %567 = vmatprep.mubr.bf16.mxu0 0
    %568 = vmatmul.mubr.bf16.gmra.mrb[0].mxu0 %v418
    %v569 = vpop.f32.mrb[0].mxu0
    %v570 = vadd.f32 0.0, %v569
    %v571 = vpop.f32.mrb[0].mxu0
    %v572 = vpop.f32.mrb[0].mxu0
    %v573 = vadd.f32 0.0, %v572
    %v574 = vpop.f32.mrb[0].mxu0
    %575 = vmatprep.mubr.bf16.mxu0 0
    %576 = vmatmul.mubr.bf16.gmra.mrb[0].mxu0 %v421
    %v577 = vpop.f32.mrb[0].mxu0
    %v578 = vadd.f32 0.0, %v577
    %v579 = vpop.f32.mrb[0].mxu0
    %v580 = vpop.f32.mrb[0].mxu0
    %v581 = vadd.f32 0.0, %v580
    %v582 = vpop.f32.mrb[0].mxu0
    %583 = vmatprep.mubr.bf16.mxu0 0
    %584 = vmatmul.mubr.bf16.gmra.mrb[0].mxu0 %v424
    %v585 = vpop.f32.mrb[0].mxu0
    %v586 = vadd.f32 0.0, %v585
    %v587 = vpop.f32.mrb[0].mxu0
    %v588 = vpop.f32.mrb[0].mxu0
    %v589 = vadd.f32 0.0, %v588
    %v590 = vpop.f32.mrb[0].mxu0
    %591 = vmatprep.mubr.bf16.mxu0 0
    %592 = vmatmul.mubr.bf16.gmra.mrb[0].mxu0 %v427
    %v593 = vpop.f32.mrb[0].mxu0
    %v594 = vadd.f32 0.0, %v593
    %v595 = vpop.f32.mrb[0].mxu0
    %v596 = vpop.f32.mrb[0].mxu0
    %v597 = vadd.f32 0.0, %v596
    %v598 = vpop.f32.mrb[0].mxu0
    %599 = vmatprep.mubr.bf16.mxu0 0
    %600 = vmatmul.mubr.bf16.gmra.mrb[0].mxu0 %v430
    %v601 = vpop.f32.mrb[0].mxu0
    %v602 = vadd.f32 0.0, %v601
    %v603 = vpop.f32.mrb[0].mxu0
    %v604 = vpop.f32.mrb[0].mxu0
    %v605 = vadd.f32 0.0, %v604
    %v606 = vpop.f32.mrb[0].mxu0
    %607 = vmatprep.mubr.bf16.mxu0 0
    %608 = vmatmul.mubr.bf16.gmra.mrb[0].mxu0 %v433
    %v609 = vpop.f32.mrb[0].mxu0
    %v610 = vadd.f32 0.0, %v609
    %v611 = vpop.f32.mrb[0].mxu0
    %v612 = vpop.f32.mrb[0].mxu0
    %v613 = vadd.f32 0.0, %v612
    %v614 = vpop.f32.mrb[0].mxu0
    %615 = vmatprep.mubr.bf16.mxu0 0
    %616 = vmatmul.mubr.bf16.gmra.mrb[0].mxu0 %v436
    %v617 = vpop.f32.mrb[0].mxu0
    %v618 = vadd.f32 0.0, %v617
    %v619 = vpop.f32.mrb[0].mxu0
    %v620 = vpop.f32.mrb[0].mxu0
    %v621 = vadd.f32 0.0, %v620
    %v622 = vpop.f32.mrb[0].mxu0
    %623 = vmatprep.mubr.bf16.mxu0 0
    %624 = vmatmul.mubr.bf16.gmra.mrb[0].mxu0 %v439
    %v625 = vpop.f32.mrb[0].mxu0
    %v626 = vadd.f32 0.0, %v625
    %v627 = vpop.f32.mrb[0].mxu0
    %v628 = vpop.f32.mrb[0].mxu0
    %v629 = vadd.f32 0.0, %v628
    %v630 = vpop.f32.mrb[0].mxu0
    %631 = vmatprep.mubr.bf16.mxu0 0
    %632 = vmatmul.mubr.bf16.gmra.mrb[0].mxu0 %v442
    %v633 = vpop.f32.mrb[0].mxu0
    %v634 = vadd.f32 0.0, %v633
    %v635 = vpop.f32.mrb[0].mxu0
    %v636 = vpop.f32.mrb[0].mxu0
    %v637 = vadd.f32 0.0, %v636
    %v638 = vpop.f32.mrb[0].mxu0
    %639 = vmatprep.mubr.bf16.mxu0 0
    %640 = vmatmul.mubr.bf16.gmra.mrb[0].mxu0 %v445
    %v641 = vpop.f32.mrb[0].mxu0
    %v642 = vadd.f32 0.0, %v641
    %v643 = vpop.f32.mrb[0].mxu0
    %v644 = vpop.f32.mrb[0].mxu0
    %v645 = vadd.f32 0.0, %v644
    %v646 = vpop.f32.mrb[0].mxu0
    %647 = vmatprep.mubr.bf16.mxu0 0
    %648 = vmatmul.mubr.bf16.gmra.mrb[0].mxu0 %v448
    %v649 = vpop.f32.mrb[0].mxu0
    %v650 = vadd.f32 0.0, %v649
    %v651 = vpop.f32.mrb[0].mxu0
    %v652 = vpop.f32.mrb[0].mxu0
    %v653 = vadd.f32 0.0, %v652
    %v654 = vpop.f32.mrb[0].mxu0
    %655 = vmatprep.mubr.bf16.mxu0 0
    %656 = vmatmul.mubr.bf16.gmra.mrb[0].mxu0 %v451
    %v657 = vpop.f32.mrb[0].mxu0
    %v658 = vadd.f32 0.0, %v657
    %v659 = vpop.f32.mrb[0].mxu0
    %v660 = vpop.f32.mrb[0].mxu0
    %v661 = vadd.f32 0.0, %v660
    %v662 = vpop.f32.mrb[0].mxu0
    %663 = vmatprep.mubr.bf16.mxu0 0
    %664 = vmatmul.mubr.bf16.gmra.mrb[0].mxu0 %v454
    %v665 = vpop.f32.mrb[0].mxu0
    %v666 = vadd.f32 0.0, %v665
    %v667 = vpop.f32.mrb[0].mxu0
    %v668 = vpop.f32.mrb[0].mxu0
    %v669 = vadd.f32 0.0, %v668
    %v670 = vpop.f32.mrb[0].mxu0
    %671 = vmatprep.mubr.bf16.mxu0 0
    %672 = vmatmul.mubr.bf16.gmra.mrb[0].mxu0 %v457
    %v673 = vpop.f32.mrb[0].mxu0
    %v674 = vadd.f32 0.0, %v673
    %v675 = vpop.f32.mrb[0].mxu0
    %v676 = vpop.f32.mrb[0].mxu0
    %v677 = vadd.f32 0.0, %v676
    %v678 = vpop.f32.mrb[0].mxu0
    %679 = vmatprep.mubr.bf16.mxu0 0
    %680 = vmatmul.mubr.bf16.gmra.mrb[0].mxu0 %v460
    %v681 = vpop.f32.mrb[0].mxu0
    %v682 = vadd.f32 0.0, %v681
    %v683 = vpop.f32.mrb[0].mxu0
    %v684 = vpop.f32.mrb[0].mxu0
    %v685 = vadd.f32 0.0, %v684
    %v686 = vpop.f32.mrb[0].mxu0
    %687 = vmatprep.mubr.bf16.mxu0 0
    %688 = vmatmul.mubr.bf16.gmra.mrb[0].mxu0 %v463
    %v689 = vpop.f32.mrb[0].mxu0
    %v690 = vadd.f32 0.0, %v689
    %v691 = vpop.f32.mrb[0].mxu0
    %v692 = vpop.f32.mrb[0].mxu0
    %v693 = vadd.f32 0.0, %v692
    %v694 = vpop.f32.mrb[0].mxu0
    %695 = vmatprep.mubr.bf16.mxu0 0
    %696 = vmatmul.mubr.bf16.gmra.mrb[0].mxu0 %v466
    %v697 = vpop.f32.mrb[0].mxu0
    %v698 = vadd.f32 0.0, %v697
    %v699 = vpop.f32.mrb[0].mxu0
    %v700 = vpop.f32.mrb[0].mxu0
    %v701 = vadd.f32 0.0, %v700
    %v702 = vpop.f32.mrb[0].mxu0
    %703 = vmatprep.mubr.bf16.mxu0 0
    %704 = vmatmul.mubr.bf16.gmra.mrb[0].mxu0 %v469
    %v705 = vpop.f32.mrb[0].mxu0
    %v706 = vadd.f32 0.0, %v705
    %v707 = vpop.f32.mrb[0].mxu0
    %v708 = vpop.f32.mrb[0].mxu0
    %v709 = vadd.f32 0.0, %v708
    %v710 = vpop.f32.mrb[0].mxu0
    %711 = vmatprep.mubr.bf16.mxu0 0
    %712 = vmatmul.mubr.bf16.gmra.mrb[0].mxu0 %v472
    %v713 = vpop.f32.mrb[0].mxu0
    %v714 = vadd.f32 0.0, %v713
    %v715 = vpop.f32.mrb[0].mxu0
    %v716 = vpop.f32.mrb[0].mxu0
    %v717 = vadd.f32 0.0, %v716
    %v718 = vpop.f32.mrb[0].mxu0
    %719 = vmatprep.mubr.bf16.mxu0 0
    %720 = vmatmul.mubr.bf16.gmra.mrb[0].mxu0 %v475
    %v721 = vpop.f32.mrb[0].mxu0
    %v722 = vadd.f32 0.0, %v721
    %v723 = vpop.f32.mrb[0].mxu0
    %v724 = vpop.f32.mrb[0].mxu0
    %v725 = vadd.f32 0.0, %v724
    %v726 = vpop.f32.mrb[0].mxu0
    %727 = vmatprep.mubr.bf16.mxu0 0
    %728 = vmatmul.mubr.bf16.gmra.mrb[0].mxu0 %v478
    %v729 = vpop.f32.mrb[0].mxu0
    %v730 = vadd.f32 0.0, %v729
    %v731 = vpop.f32.mrb[0].mxu0
    %v732 = vpop.f32.mrb[0].mxu0
    %v733 = vadd.f32 0.0, %v732
    %v734 = vpop.f32.mrb[0].mxu0
    %735 = vmatprep.mubr.bf16.mxu0 0
    %736 = vmatmul.mubr.bf16.gmra.mrb[0].mxu0 %v481
    %v737 = vpop.f32.mrb[0].mxu0
    %v738 = vadd.f32 0.0, %v737
    %v739 = vpop.f32.mrb[0].mxu0
    %v740 = vpop.f32.mrb[0].mxu0
    %v741 = vadd.f32 0.0, %v740
    %v742 = vpop.f32.mrb[0].mxu0
    %743 = vmatprep.mubr.bf16.mxu0 0
    %744 = vmatmul.mubr.bf16.gmra.mrb[0].mxu0 %v484
    %v745 = vpop.f32.mrb[0].mxu0
    %v746 = vadd.f32 0.0, %v745
    %v747 = vpop.f32.mrb[0].mxu0
    %v748 = vpop.f32.mrb[0].mxu0
    %v749 = vadd.f32 0.0, %v748
    %v750 = vpop.f32.mrb[0].mxu0
    %751 = vmatprep.mubr.bf16.mxu0 0
    %752 = vmatmul.mubr.bf16.gmra.mrb[0].mxu0 %v487
    %v753 = vpop.f32.mrb[0].mxu0
    %v754 = vadd.f32 0.0, %v753
    %v755 = vpop.f32.mrb[0].mxu0
    %v756 = vpop.f32.mrb[0].mxu0
    %v757 = vadd.f32 0.0, %v756
    %v758 = vpop.f32.mrb[0].mxu0
    %759 = vmatprep.mubr.bf16.mxu0 0
    %760 = vmatmul.mubr.bf16.gmra.mrb[0].mxu0 %v490
    %v761 = vpop.f32.mrb[0].mxu0
    %v762 = vadd.f32 0.0, %v761
    %v763 = vpop.f32.mrb[0].mxu0
    %v764 = vpop.f32.mrb[0].mxu0
    %v765 = vadd.f32 0.0, %v764
    %v766 = vpop.f32.mrb[0].mxu0
    %767 = vmatprep.mubr.bf16.mxu0 0
    %768 = vmatmul.mubr.bf16.gmra.mrb[0].mxu0 %v493
    %v769 = vpop.f32.mrb[0].mxu0
    %v770 = vadd.f32 0.0, %v769
    %v771 = vpop.f32.mrb[0].mxu0
    %v772 = vpop.f32.mrb[0].mxu0
    %v773 = vadd.f32 0.0, %v772
    %v774 = vpop.f32.mrb[0].mxu0
    %775 = vmatprep.mubr.bf16.mxu0 0
    %776 = vmatmul.mubr.bf16.gmra.mrb[0].mxu0 %v496
    %v777 = vpop.f32.mrb[0].mxu0
    %v778 = vadd.f32 0.0, %v777
    %v779 = vpop.f32.mrb[0].mxu0
    %v780 = vpop.f32.mrb[0].mxu0
    %v781 = vadd.f32 0.0, %v780
    %v782 = vpop.f32.mrb[0].mxu0
    %783 = vmatprep.mubr.bf16.mxu0 0
    %784 = vmatmul.mubr.bf16.gmra.mrb[0].mxu0 %v499
    %v785 = vpop.f32.mrb[0].mxu0
    %v786 = vadd.f32 0.0, %v785
    %v787 = vpop.f32.mrb[0].mxu0
    %v788 = vpop.f32.mrb[0].mxu0
    %v789 = vadd.f32 0.0, %v788
    %v790 = vpop.f32.mrb[0].mxu0
    %791 = vmatprep.mubr.bf16.mxu0 0
    %792 = vmatmul.mubr.bf16.gmra.mrb[0].mxu0 %v502
    %v793 = vpop.f32.mrb[0].mxu0
    %v794 = vadd.f32 0.0, %v793
    %v795 = vpop.f32.mrb[0].mxu0
    %v796 = vpop.f32.mrb[0].mxu0
    %v797 = vadd.f32 0.0, %v796
    %v798 = vpop.f32.mrb[0].mxu0
    %799 = vmatprep.mubr.bf16.mxu0 0
    %800 = vmatmul.mubr.bf16.gmra.mrb[0].mxu0 %v505
    %v801 = vpop.f32.mrb[0].mxu0
    %v802 = vadd.f32 0.0, %v801
    %v803 = vpop.f32.mrb[0].mxu0
    %v804 = vpop.f32.mrb[0].mxu0
    %v805 = vadd.f32 0.0, %v804
    %v806 = vpop.f32.mrb[0].mxu0
    %807 = vmatprep.mubr.bf16.mxu0 0
    %808 = vmatmul.mubr.bf16.gmra.mrb[0].mxu0 %v508
    %v809 = vpop.f32.mrb[0].mxu0
    %v810 = vadd.f32 0.0, %v809
    %v811 = vpop.f32.mrb[0].mxu0
    %v812 = vpop.f32.mrb[0].mxu0
    %v813 = vadd.f32 0.0, %v812
    %v814 = vpop.f32.mrb[0].mxu0
    %815 = vmatprep.mubr.bf16.mxu0 0
    %816 = vmatmul.mubr.bf16.gmra.mrb[0].mxu0 %v511
    %v817 = vpop.f32.mrb[0].mxu0
    %v818 = vadd.f32 0.0, %v817
    %v819 = vpop.f32.mrb[0].mxu0
    %v820 = vpop.f32.mrb[0].mxu0
    %v821 = vadd.f32 0.0, %v820
    %v822 = vpop.f32.mrb[0].mxu0
    %823 = vmatprep.mubr.bf16.mxu0 0
    %824 = vmatmul.mubr.bf16.gmra.mrb[0].mxu0 %v514
    %v825 = vpop.f32.mrb[0].mxu0
    %v826 = vadd.f32 0.0, %v825
    %v827 = vpop.f32.mrb[0].mxu0
    %v828 = vpop.f32.mrb[0].mxu0
    %v829 = vadd.f32 0.0, %v828
    %v830 = vpop.f32.mrb[0].mxu0
    %831 = vmatprep.mubr.bf16.mxu0 0
    %832 = vmatmul.mubr.bf16.gmra.mrb[0].mxu0 %v517
    %v833 = vpop.f32.mrb[0].mxu0
    %v834 = vadd.f32 0.0, %v833
    %v835 = vpop.f32.mrb[0].mxu0
    %v836 = vpop.f32.mrb[0].mxu0
    %v837 = vadd.f32 0.0, %v836
    %v838 = vpop.f32.mrb[0].mxu0
    %839 = vdwg.mxu0
    %v840 = vlaneseq
    %v841 = vshrl.u32 %v840, 7
    %v842 = vsub.s32 0, %v841
    %v843 = vrot.slane %v144, %v842
    %v844 = vmul.f32 %v554, %v843
    %v845 = vmul.f32 %v557, %v843
    %v846 = vmul.f32 %v562, %v843
    %v847 = vmul.f32 %v565, %v843
    %v848 = vmul.f32 %v570, %v843
    %v849 = vmul.f32 %v573, %v843
    %v850 = vmul.f32 %v578, %v843
    %v851 = vmul.f32 %v581, %v843
    %v852 = vmul.f32 %v586, %v843
    %v853 = vmul.f32 %v589, %v843
    %v854 = vmul.f32 %v594, %v843
    %v855 = vmul.f32 %v597, %v843
    %v856 = vmul.f32 %v602, %v843
    %v857 = vmul.f32 %v605, %v843
    %v858 = vmul.f32 %v610, %v843
    %v859 = vmul.f32 %v613, %v843
    %v860 = vmul.f32 %v618, %v843
    %v861 = vmul.f32 %v621, %v843
    %v862 = vmul.f32 %v626, %v843
    %v863 = vmul.f32 %v629, %v843
    %v864 = vmul.f32 %v634, %v843
    %v865 = vmul.f32 %v637, %v843
    %v866 = vmul.f32 %v642, %v843
    %v867 = vmul.f32 %v645, %v843
    %v868 = vmul.f32 %v650, %v843
    %v869 = vmul.f32 %v653, %v843
    %v870 = vmul.f32 %v658, %v843
    %v871 = vmul.f32 %v661, %v843
    %v872 = vmul.f32 %v666, %v843
    %v873 = vmul.f32 %v669, %v843
    %v874 = vmul.f32 %v674, %v843
    %v875 = vmul.f32 %v677, %v843
    %v876 = vmul.f32 %v682, %v843
    %v877 = vmul.f32 %v685, %v843
    %v878 = vmul.f32 %v690, %v843
    %v879 = vmul.f32 %v693, %v843
    %v880 = vmul.f32 %v698, %v843
    %v881 = vmul.f32 %v701, %v843
    %v882 = vmul.f32 %v706, %v843
    %v883 = vmul.f32 %v709, %v843
    %v884 = vmul.f32 %v714, %v843
    %v885 = vmul.f32 %v717, %v843
    %v886 = vmul.f32 %v722, %v843
    %v887 = vmul.f32 %v725, %v843
    %v888 = vmul.f32 %v730, %v843
    %v889 = vmul.f32 %v733, %v843
    %v890 = vmul.f32 %v738, %v843
    %v891 = vmul.f32 %v741, %v843
    %v892 = vmul.f32 %v746, %v843
    %v893 = vmul.f32 %v749, %v843
    %v894 = vmul.f32 %v754, %v843
    %v895 = vmul.f32 %v757, %v843
    %v896 = vmul.f32 %v762, %v843
    %v897 = vmul.f32 %v765, %v843
    %v898 = vmul.f32 %v770, %v843
    %v899 = vmul.f32 %v773, %v843
    %v900 = vmul.f32 %v778, %v843
    %v901 = vmul.f32 %v781, %v843
    %v902 = vmul.f32 %v786, %v843
    %v903 = vmul.f32 %v789, %v843
    %v904 = vmul.f32 %v794, %v843
    %v905 = vmul.f32 %v797, %v843
    %v906 = vmul.f32 %v802, %v843
    %v907 = vmul.f32 %v805, %v843
    %v908 = vmul.f32 %v810, %v843
    %v909 = vmul.f32 %v813, %v843
    %v910 = vmul.f32 %v818, %v843
    %v911 = vmul.f32 %v821, %v843
    %v912 = vmul.f32 %v826, %v843
    %v913 = vmul.f32 %v829, %v843
    %v914 = vmul.f32 %v834, %v843
    %v915 = vmul.f32 %v837, %v843
    %v916 = vlaneseq
    %v917 = vshrl.u32 %v916, 7
    %v918 = vsub.s32 0, %v917
    %v919 = vrot.slane %v145, %v918
    %v920 = vadd.f32 %v844, %v919
    %v921 = vadd.f32 %v845, %v919
    %v922 = vadd.f32 %v846, %v919
    %v923 = vadd.f32 %v847, %v919
    %v924 = vadd.f32 %v848, %v919
    %v925 = vadd.f32 %v849, %v919
    %v926 = vadd.f32 %v850, %v919
    %v927 = vadd.f32 %v851, %v919
    %v928 = vadd.f32 %v852, %v919
    %v929 = vadd.f32 %v853, %v919
    %v930 = vadd.f32 %v854, %v919
    %v931 = vadd.f32 %v855, %v919
    %v932 = vadd.f32 %v856, %v919
    %v933 = vadd.f32 %v857, %v919
    %v934 = vadd.f32 %v858, %v919
    %v935 = vadd.f32 %v859, %v919
    %v936 = vadd.f32 %v860, %v919
    %v937 = vadd.f32 %v861, %v919
    %v938 = vadd.f32 %v862, %v919
    %v939 = vadd.f32 %v863, %v919
    %v940 = vadd.f32 %v864, %v919
    %v941 = vadd.f32 %v865, %v919
    %v942 = vadd.f32 %v866, %v919
    %v943 = vadd.f32 %v867, %v919
    %v944 = vadd.f32 %v868, %v919
    %v945 = vadd.f32 %v869, %v919
    %v946 = vadd.f32 %v870, %v919
    %v947 = vadd.f32 %v871, %v919
    %v948 = vadd.f32 %v872, %v919
    %v949 = vadd.f32 %v873, %v919
    %v950 = vadd.f32 %v874, %v919
    %v951 = vadd.f32 %v875, %v919
    %v952 = vadd.f32 %v876, %v919
    %v953 = vadd.f32 %v877, %v919
    %v954 = vadd.f32 %v878, %v919
    %v955 = vadd.f32 %v879, %v919
    %v956 = vadd.f32 %v880, %v919
    %v957 = vadd.f32 %v881, %v919
    %v958 = vadd.f32 %v882, %v919
    %v959 = vadd.f32 %v883, %v919
    %v960 = vadd.f32 %v884, %v919
    %v961 = vadd.f32 %v885, %v919
    %v962 = vadd.f32 %v886, %v919
    %v963 = vadd.f32 %v887, %v919
    %v964 = vadd.f32 %v888, %v919
    %v965 = vadd.f32 %v889, %v919
    %v966 = vadd.f32 %v890, %v919
    %v967 = vadd.f32 %v891, %v919
    %v968 = vadd.f32 %v892, %v919
    %v969 = vadd.f32 %v893, %v919
    %v970 = vadd.f32 %v894, %v919
    %v971 = vadd.f32 %v895, %v919
    %v972 = vadd.f32 %v896, %v919
    %v973 = vadd.f32 %v897, %v919
    %v974 = vadd.f32 %v898, %v919
    %v975 = vadd.f32 %v899, %v919
    %v976 = vadd.f32 %v900, %v919
    %v977 = vadd.f32 %v901, %v919
    %v978 = vadd.f32 %v902, %v919
    %v979 = vadd.f32 %v903, %v919
    %v980 = vadd.f32 %v904, %v919
    %v981 = vadd.f32 %v905, %v919
    %v982 = vadd.f32 %v906, %v919
    %v983 = vadd.f32 %v907, %v919
    %v984 = vadd.f32 %v908, %v919
    %v985 = vadd.f32 %v909, %v919
    %v986 = vadd.f32 %v910, %v919
    %v987 = vadd.f32 %v911, %v919
    %v988 = vadd.f32 %v912, %v919
    %v989 = vadd.f32 %v913, %v919
    %v990 = vadd.f32 %v914, %v919
    %v991 = vadd.f32 %v915, %v919
    %v992 = vmax.f32 %v920, 0.0
    %v993 = vmax.f32 %v921, 0.0
    %v994 = vmax.f32 %v922, 0.0
    %v995 = vmax.f32 %v923, 0.0
    %v996 = vmax.f32 %v924, 0.0
    %v997 = vmax.f32 %v925, 0.0
    %v998 = vmax.f32 %v926, 0.0
    %v999 = vmax.f32 %v927, 0.0
    %v1000 = vmax.f32 %v928, 0.0
    %v1001 = vmax.f32 %v929, 0.0
    %v1002 = vmax.f32 %v930, 0.0
    %v1003 = vmax.f32 %v931, 0.0
    %v1004 = vmax.f32 %v932, 0.0
    %v1005 = vmax.f32 %v933, 0.0
    %v1006 = vmax.f32 %v934, 0.0
    %v1007 = vmax.f32 %v935, 0.0
    %v1008 = vmax.f32 %v936, 0.0
    %v1009 = vmax.f32 %v937, 0.0
    %v1010 = vmax.f32 %v938, 0.0
    %v1011 = vmax.f32 %v939, 0.0
    %v1012 = vmax.f32 %v940, 0.0
    %v1013 = vmax.f32 %v941, 0.0
    %v1014 = vmax.f32 %v942, 0.0
    %v1015 = vmax.f32 %v943, 0.0
    %v1016 = vmax.f32 %v944, 0.0
    %v1017 = vmax.f32 %v945, 0.0
    %v1018 = vmax.f32 %v946, 0.0
    %v1019 = vmax.f32 %v947, 0.0
    %v1020 = vmax.f32 %v948, 0.0
    %v1021 = vmax.f32 %v949, 0.0
    %v1022 = vmax.f32 %v950, 0.0
    %v1023 = vmax.f32 %v951, 0.0
    %v1024 = vmax.f32 %v952, 0.0
    %v1025 = vmax.f32 %v953, 0.0
    %v1026 = vmax.f32 %v954, 0.0
    %v1027 = vmax.f32 %v955, 0.0
    %v1028 = vmax.f32 %v956, 0.0
    %v1029 = vmax.f32 %v957, 0.0
    %v1030 = vmax.f32 %v958, 0.0
    %v1031 = vmax.f32 %v959, 0.0
    %v1032 = vmax.f32 %v960, 0.0
    %v1033 = vmax.f32 %v961, 0.0
    %v1034 = vmax.f32 %v962, 0.0
    %v1035 = vmax.f32 %v963, 0.0
    %v1036 = vmax.f32 %v964, 0.0
    %v1037 = vmax.f32 %v965, 0.0
    %v1038 = vmax.f32 %v966, 0.0
    %v1039 = vmax.f32 %v967, 0.0
    %v1040 = vmax.f32 %v968, 0.0
    %v1041 = vmax.f32 %v969, 0.0
    %v1042 = vmax.f32 %v970, 0.0
    %v1043 = vmax.f32 %v971, 0.0
    %v1044 = vmax.f32 %v972, 0.0
    %v1045 = vmax.f32 %v973, 0.0
    %v1046 = vmax.f32 %v974, 0.0
    %v1047 = vmax.f32 %v975, 0.0
    %v1048 = vmax.f32 %v976, 0.0
    %v1049 = vmax.f32 %v977, 0.0
    %v1050 = vmax.f32 %v978, 0.0
    %v1051 = vmax.f32 %v979, 0.0
    %v1052 = vmax.f32 %v980, 0.0
    %v1053 = vmax.f32 %v981, 0.0
    %v1054 = vmax.f32 %v982, 0.0
    %v1055 = vmax.f32 %v983, 0.0
    %v1056 = vmax.f32 %v984, 0.0
    %v1057 = vmax.f32 %v985, 0.0
    %v1058 = vmax.f32 %v986, 0.0
    %v1059 = vmax.f32 %v987, 0.0
    %v1060 = vmax.f32 %v988, 0.0
    %v1061 = vmax.f32 %v989, 0.0
    %v1062 = vmax.f32 %v990, 0.0
    %v1063 = vmax.f32 %v991, 0.0
    %v1064 = vpack.c.bf16 %v993, %v992
    %v1065 = vpack.c.bf16 %v995, %v994
    %v1066 = vpack.c.bf16 %v997, %v996
    %v1067 = vpack.c.bf16 %v999, %v998
    %v1068 = vpack.c.bf16 %v1001, %v1000
    %v1069 = vpack.c.bf16 %v1003, %v1002
    %v1070 = vpack.c.bf16 %v1005, %v1004
    %v1071 = vpack.c.bf16 %v1007, %v1006
    %v1072 = vpack.c.bf16 %v1009, %v1008
    %v1073 = vpack.c.bf16 %v1011, %v1010
    %v1074 = vpack.c.bf16 %v1013, %v1012
    %v1075 = vpack.c.bf16 %v1015, %v1014
    %v1076 = vpack.c.bf16 %v1017, %v1016
    %v1077 = vpack.c.bf16 %v1019, %v1018
    %v1078 = vpack.c.bf16 %v1021, %v1020
    %v1079 = vpack.c.bf16 %v1023, %v1022
    %v1080 = vpack.c.bf16 %v1025, %v1024
    %v1081 = vpack.c.bf16 %v1027, %v1026
    %v1082 = vpack.c.bf16 %v1029, %v1028
    %v1083 = vpack.c.bf16 %v1031, %v1030
    %v1084 = vpack.c.bf16 %v1033, %v1032
    %v1085 = vpack.c.bf16 %v1035, %v1034
    %v1086 = vpack.c.bf16 %v1037, %v1036
    %v1087 = vpack.c.bf16 %v1039, %v1038
    %v1088 = vpack.c.bf16 %v1041, %v1040
    %v1089 = vpack.c.bf16 %v1043, %v1042
    %v1090 = vpack.c.bf16 %v1045, %v1044
    %v1091 = vpack.c.bf16 %v1047, %v1046
    %v1092 = vpack.c.bf16 %v1049, %v1048
    %v1093 = vpack.c.bf16 %v1051, %v1050
    %v1094 = vpack.c.bf16 %v1053, %v1052
    %v1095 = vpack.c.bf16 %v1055, %v1054
    %v1096 = vpack.c.bf16 %v1057, %v1056
    %v1097 = vpack.c.bf16 %v1059, %v1058
    %v1098 = vpack.c.bf16 %v1061, %v1060
    %v1099 = vpack.c.bf16 %v1063, %v1062
    %v1136 = vunpack.c.l.b16 %v1064
    %v1137 = vunpack.c.h.b16 %v1064
    %v1138 = vunpack.c.l.b16 %v1065
    %v1139 = vunpack.c.h.b16 %v1065
    %v1140 = vunpack.c.l.b16 %v1066
    %v1141 = vunpack.c.h.b16 %v1066
    %v1142 = vunpack.c.l.b16 %v1067
    %v1143 = vunpack.c.h.b16 %v1067
    %v1144 = vunpack.c.l.b16 %v1068
    %v1145 = vunpack.c.h.b16 %v1068
    %v1146 = vunpack.c.l.b16 %v1069
    %v1147 = vunpack.c.h.b16 %v1069
    %v1148 = vunpack.c.l.b16 %v1070
    %v1149 = vunpack.c.h.b16 %v1070
    %v1150 = vunpack.c.l.b16 %v1071
    %v1151 = vunpack.c.h.b16 %v1071
    %v1152 = vunpack.c.l.b16 %v1072
    %v1153 = vunpack.c.h.b16 %v1072
    %v1154 = vunpack.c.l.b16 %v1073
    %v1155 = vunpack.c.h.b16 %v1073
    %v1156 = vunpack.c.l.b16 %v1074
    %v1157 = vunpack.c.h.b16 %v1074
    %v1158 = vunpack.c.l.b16 %v1075
    %v1159 = vunpack.c.h.b16 %v1075
    %v1160 = vunpack.c.l.b16 %v1076
    %v1161 = vunpack.c.h.b16 %v1076
    %v1162 = vunpack.c.l.b16 %v1077
    %v1163 = vunpack.c.h.b16 %v1077
    %v1164 = vunpack.c.l.b16 %v1078
    %v1165 = vunpack.c.h.b16 %v1078
    %v1166 = vunpack.c.l.b16 %v1079
    %v1167 = vunpack.c.h.b16 %v1079
    %v1168 = vunpack.c.l.b16 %v1080
    %v1169 = vunpack.c.h.b16 %v1080
    %v1170 = vunpack.c.l.b16 %v1081
    %v1171 = vunpack.c.h.b16 %v1081
    %v1172 = vunpack.c.l.b16 %v1082
    %v1173 = vunpack.c.h.b16 %v1082
    %v1174 = vunpack.c.l.b16 %v1083
    %v1175 = vunpack.c.h.b16 %v1083
    %v1176 = vunpack.c.l.b16 %v1084
    %v1177 = vunpack.c.h.b16 %v1084
    %v1178 = vunpack.c.l.b16 %v1085
    %v1179 = vunpack.c.h.b16 %v1085
    %v1180 = vunpack.c.l.b16 %v1086
    %v1181 = vunpack.c.h.b16 %v1086
    %v1182 = vunpack.c.l.b16 %v1087
    %v1183 = vunpack.c.h.b16 %v1087
    %v1184 = vunpack.c.l.b16 %v1088
    %v1185 = vunpack.c.h.b16 %v1088
    %v1186 = vunpack.c.l.b16 %v1089
    %v1187 = vunpack.c.h.b16 %v1089
    %v1188 = vunpack.c.l.b16 %v1090
    %v1189 = vunpack.c.h.b16 %v1090
    %v1190 = vunpack.c.l.b16 %v1091
    %v1191 = vunpack.c.h.b16 %v1091
    %v1192 = vunpack.c.l.b16 %v1092
    %v1193 = vunpack.c.h.b16 %v1092
    %v1194 = vunpack.c.l.b16 %v1093
    %v1195 = vunpack.c.h.b16 %v1093
    %v1196 = vunpack.c.l.b16 %v1094
    %v1197 = vunpack.c.h.b16 %v1094
    %v1198 = vunpack.c.l.b16 %v1095
    %v1199 = vunpack.c.h.b16 %v1095
    %v1200 = vunpack.c.l.b16 %v1096
    %v1201 = vunpack.c.h.b16 %v1096
    %v1202 = vunpack.c.l.b16 %v1097
    %v1203 = vunpack.c.h.b16 %v1097
    %v1204 = vunpack.c.l.b16 %v1098
    %v1205 = vunpack.c.h.b16 %v1098
    %v1206 = vunpack.c.l.b16 %v1099
    %v1207 = vunpack.c.h.b16 %v1099
    %v1208 = vpack.c.b16 %v1136, %v1136
    %v1209 = vpack.c.b16 %v1137, %v1137
    %v1210 = vpack.c.b16 %v1138, %v1138
    %v1211 = vpack.c.b16 %v1139, %v1139
    %v1212 = vpack.c.b16 %v1140, %v1140
    %v1213 = vpack.c.b16 %v1141, %v1141
    %v1214 = vpack.c.b16 %v1142, %v1142
    %v1215 = vpack.c.b16 %v1143, %v1143
    %v1216 = vpack.c.b16 %v1144, %v1144
    %v1217 = vpack.c.b16 %v1145, %v1145
    %v1218 = vpack.c.b16 %v1146, %v1146
    %v1219 = vpack.c.b16 %v1147, %v1147
    %v1220 = vpack.c.b16 %v1148, %v1148
    %v1221 = vpack.c.b16 %v1149, %v1149
    %v1222 = vpack.c.b16 %v1150, %v1150
    %v1223 = vpack.c.b16 %v1151, %v1151
    %v1224 = vpack.c.b16 %v1152, %v1152
    %v1225 = vpack.c.b16 %v1153, %v1153
    %v1226 = vpack.c.b16 %v1154, %v1154
    %v1227 = vpack.c.b16 %v1155, %v1155
    %v1228 = vpack.c.b16 %v1156, %v1156
    %v1229 = vpack.c.b16 %v1157, %v1157
    %v1230 = vpack.c.b16 %v1158, %v1158
    %v1231 = vpack.c.b16 %v1159, %v1159
    %v1232 = vpack.c.b16 %v1160, %v1160
    %v1233 = vpack.c.b16 %v1161, %v1161
    %v1234 = vpack.c.b16 %v1162, %v1162
    %v1235 = vpack.c.b16 %v1163, %v1163
    %v1236 = vpack.c.b16 %v1164, %v1164
    %v1237 = vpack.c.b16 %v1165, %v1165
    %v1238 = vpack.c.b16 %v1166, %v1166
    %v1239 = vpack.c.b16 %v1167, %v1167
    %v1240 = vpack.c.b16 %v1168, %v1168
    %v1241 = vpack.c.b16 %v1169, %v1169
    %v1242 = vpack.c.b16 %v1170, %v1170
    %v1243 = vpack.c.b16 %v1171, %v1171
    %v1244 = vpack.c.b16 %v1172, %v1172
    %v1245 = vpack.c.b16 %v1173, %v1173
    %v1246 = vpack.c.b16 %v1174, %v1174
    %v1247 = vpack.c.b16 %v1175, %v1175
    %v1248 = vpack.c.b16 %v1176, %v1176
    %v1249 = vpack.c.b16 %v1177, %v1177
    %v1250 = vpack.c.b16 %v1178, %v1178
    %v1251 = vpack.c.b16 %v1179, %v1179
    %v1252 = vpack.c.b16 %v1180, %v1180
    %v1253 = vpack.c.b16 %v1181, %v1181
    %v1254 = vpack.c.b16 %v1182, %v1182
    %v1255 = vpack.c.b16 %v1183, %v1183
    %v1256 = vpack.c.b16 %v1184, %v1184
    %v1257 = vpack.c.b16 %v1185, %v1185
    %v1258 = vpack.c.b16 %v1186, %v1186
    %v1259 = vpack.c.b16 %v1187, %v1187
    %v1260 = vpack.c.b16 %v1188, %v1188
    %v1261 = vpack.c.b16 %v1189, %v1189
    %v1262 = vpack.c.b16 %v1190, %v1190
    %v1263 = vpack.c.b16 %v1191, %v1191
    %v1264 = vpack.c.b16 %v1192, %v1192
    %v1265 = vpack.c.b16 %v1193, %v1193
    %v1266 = vpack.c.b16 %v1194, %v1194
    %v1267 = vpack.c.b16 %v1195, %v1195
    %v1268 = vpack.c.b16 %v1196, %v1196
    %v1269 = vpack.c.b16 %v1197, %v1197
    %v1270 = vpack.c.b16 %v1198, %v1198
    %v1271 = vpack.c.b16 %v1199, %v1199
    %v1272 = vpack.c.b16 %v1200, %v1200
    %v1273 = vpack.c.b16 %v1201, %v1201
    %v1274 = vpack.c.b16 %v1202, %v1202
    %v1275 = vpack.c.b16 %v1203, %v1203
    %v1276 = vpack.c.b16 %v1204, %v1204
    %v1277 = vpack.c.b16 %v1205, %v1205
    %v1278 = vpack.c.b16 %v1206, %v1206
    %v1279 = vpack.c.b16 %v1207, %v1207
    %vm1352 = vcmask 27648
    %1353 = vst.msk [vmem:[#allocation2] sm:$0xf] %vm1352, %v1208
    %1354 = vst.msk [vmem:[#allocation2 + $0x4] sm:$0xf] %vm1352, %v1209
    %1355 = vst.msk [vmem:[#allocation2 + $0xc] sm:$0xf] %vm1352, %v1210
    %1356 = vst.msk [vmem:[#allocation2 + $0x10] sm:$0xf] %vm1352, %v1211
    %1357 = vst.msk [vmem:[#allocation2 + $0x18] sm:$0xf] %vm1352, %v1212
    %1358 = vst.msk [vmem:[#allocation2 + $0x1c] sm:$0xf] %vm1352, %v1213
    %1359 = vst.msk [vmem:[#allocation2 + $0x24] sm:$0xf] %vm1352, %v1214
    %1360 = vst.msk [vmem:[#allocation2 + $0x28] sm:$0xf] %vm1352, %v1215
    %1361 = vst.msk [vmem:[#allocation2 + $0x30] sm:$0xf] %vm1352, %v1216
    %1362 = vst.msk [vmem:[#allocation2 + $0x34] sm:$0xf] %vm1352, %v1217
    %1363 = vst.msk [vmem:[#allocation2 + $0x3c] sm:$0xf] %vm1352, %v1218
    %1364 = vst.msk [vmem:[#allocation2 + $0x40] sm:$0xf] %vm1352, %v1219
    %1365 = vst.msk [vmem:[#allocation2 + $0x48] sm:$0xf] %vm1352, %v1220
    %1366 = vst.msk [vmem:[#allocation2 + $0x4c] sm:$0xf] %vm1352, %v1221
    %1367 = vst.msk [vmem:[#allocation2 + $0x54] sm:$0xf] %vm1352, %v1222
    %1368 = vst.msk [vmem:[#allocation2 + $0x58] sm:$0xf] %vm1352, %v1223
    %1369 = vst.msk [vmem:[#allocation2 + $0x60] sm:$0xf] %vm1352, %v1224
    %1370 = vst.msk [vmem:[#allocation2 + $0x64] sm:$0xf] %vm1352, %v1225
    %1371 = vst.msk [vmem:[#allocation2 + $0x6c] sm:$0xf] %vm1352, %v1226
    %1372 = vst.msk [vmem:[#allocation2 + $0x70] sm:$0xf] %vm1352, %v1227
    %1373 = vst.msk [vmem:[#allocation2 + $0x78] sm:$0xf] %vm1352, %v1228
    %1374 = vst.msk [vmem:[#allocation2 + $0x7c] sm:$0xf] %vm1352, %v1229
    %1375 = vst.msk [vmem:[#allocation2 + $0x84] sm:$0xf] %vm1352, %v1230
    %1376 = vst.msk [vmem:[#allocation2 + $0x88] sm:$0xf] %vm1352, %v1231
    %1377 = vst.msk [vmem:[#allocation2 + $0x90] sm:$0xf] %vm1352, %v1232
    %1378 = vst.msk [vmem:[#allocation2 + $0x94] sm:$0xf] %vm1352, %v1233
    %1379 = vst.msk [vmem:[#allocation2 + $0x9c] sm:$0xf] %vm1352, %v1234
    %1380 = vst.msk [vmem:[#allocation2 + $0xa0] sm:$0xf] %vm1352, %v1235
    %1381 = vst.msk [vmem:[#allocation2 + $0xa8] sm:$0xf] %vm1352, %v1236
    %1382 = vst.msk [vmem:[#allocation2 + $0xac] sm:$0xf] %vm1352, %v1237
    %1383 = vst.msk [vmem:[#allocation2 + $0xb4] sm:$0xf] %vm1352, %v1238
    %1384 = vst.msk [vmem:[#allocation2 + $0xb8] sm:$0xf] %vm1352, %v1239
    %1385 = vst.msk [vmem:[#allocation2 + $0xc0] sm:$0xf] %vm1352, %v1240
    %1386 = vst.msk [vmem:[#allocation2 + $0xc4] sm:$0xf] %vm1352, %v1241
    %1387 = vst.msk [vmem:[#allocation2 + $0xcc] sm:$0xf] %vm1352, %v1242
    %1388 = vst.msk [vmem:[#allocation2 + $0xd0] sm:$0xf] %vm1352, %v1243
    %1389 = vst.msk [vmem:[#allocation2 + $0xd8] sm:$0xf] %vm1352, %v1244
    %1390 = vst.msk [vmem:[#allocation2 + $0xdc] sm:$0xf] %vm1352, %v1245
    %1391 = vst.msk [vmem:[#allocation2 + $0xe4] sm:$0xf] %vm1352, %v1246
    %1392 = vst.msk [vmem:[#allocation2 + $0xe8] sm:$0xf] %vm1352, %v1247
    %1393 = vst.msk [vmem:[#allocation2 + $0xf0] sm:$0xf] %vm1352, %v1248
    %1394 = vst.msk [vmem:[#allocation2 + $0xf4] sm:$0xf] %vm1352, %v1249
    %1395 = vst.msk [vmem:[#allocation2 + $0xfc] sm:$0xf] %vm1352, %v1250
    %1396 = vst.msk [vmem:[#allocation2 + $0x100] sm:$0xf] %vm1352, %v1251
    %1397 = vst.msk [vmem:[#allocation2 + $0x108] sm:$0xf] %vm1352, %v1252
    %1398 = vst.msk [vmem:[#allocation2 + $0x10c] sm:$0xf] %vm1352, %v1253
    %1399 = vst.msk [vmem:[#allocation2 + $0x114] sm:$0xf] %vm1352, %v1254
    %1400 = vst.msk [vmem:[#allocation2 + $0x118] sm:$0xf] %vm1352, %v1255
    %1401 = vst.msk [vmem:[#allocation2 + $0x120] sm:$0xf] %vm1352, %v1256
    %1402 = vst.msk [vmem:[#allocation2 + $0x124] sm:$0xf] %vm1352, %v1257
    %1403 = vst.msk [vmem:[#allocation2 + $0x12c] sm:$0xf] %vm1352, %v1258
    %1404 = vst.msk [vmem:[#allocation2 + $0x130] sm:$0xf] %vm1352, %v1259
    %1405 = vst.msk [vmem:[#allocation2 + $0x138] sm:$0xf] %vm1352, %v1260
    %1406 = vst.msk [vmem:[#allocation2 + $0x13c] sm:$0xf] %vm1352, %v1261
    %1407 = vst.msk [vmem:[#allocation2 + $0x144] sm:$0xf] %vm1352, %v1262
    %1408 = vst.msk [vmem:[#allocation2 + $0x148] sm:$0xf] %vm1352, %v1263
    %1409 = vst.msk [vmem:[#allocation2 + $0x150] sm:$0xf] %vm1352, %v1264
    %1410 = vst.msk [vmem:[#allocation2 + $0x154] sm:$0xf] %vm1352, %v1265
    %1411 = vst.msk [vmem:[#allocation2 + $0x15c] sm:$0xf] %vm1352, %v1266
    %1412 = vst.msk [vmem:[#allocation2 + $0x160] sm:$0xf] %vm1352, %v1267
    %1413 = vst.msk [vmem:[#allocation2 + $0x168] sm:$0xf] %vm1352, %v1268
    %1414 = vst.msk [vmem:[#allocation2 + $0x16c] sm:$0xf] %vm1352, %v1269
    %1415 = vst.msk [vmem:[#allocation2 + $0x174] sm:$0xf] %vm1352, %v1270
    %1416 = vst.msk [vmem:[#allocation2 + $0x178] sm:$0xf] %vm1352, %v1271
    %1417 = vst.msk [vmem:[#allocation2 + $0x180] sm:$0xf] %vm1352, %v1272
    %1418 = vst.msk [vmem:[#allocation2 + $0x184] sm:$0xf] %vm1352, %v1273
    %1419 = vst.msk [vmem:[#allocation2 + $0x18c] sm:$0xf] %vm1352, %v1274
    %1420 = vst.msk [vmem:[#allocation2 + $0x190] sm:$0xf] %vm1352, %v1275
    %1421 = vst.msk [vmem:[#allocation2 + $0x198] sm:$0xf] %vm1352, %v1276
    %1422 = vst.msk [vmem:[#allocation2 + $0x19c] sm:$0xf] %vm1352, %v1277
    %1423 = vst.msk [vmem:[#allocation2 + $0x1a4] sm:$0xf] %vm1352, %v1278
    %1424 = vst.msk [vmem:[#allocation2 + $0x1a8] sm:$0xf] %vm1352, %v1279
    %1425 = vst.msk [vmem:[#allocation2 + $0x8] sm:$0xf] %vm1352, 0
    %1426 = vst.msk [vmem:[#allocation2 + $0x14] sm:$0xf] %vm1352, 0
    %1427 = vst.msk [vmem:[#allocation2 + $0x20] sm:$0xf] %vm1352, 0
    %1428 = vst.msk [vmem:[#allocation2 + $0x2c] sm:$0xf] %vm1352, 0
    %1429 = vst.msk [vmem:[#allocation2 + $0x38] sm:$0xf] %vm1352, 0
    %1430 = vst.msk [vmem:[#allocation2 + $0x44] sm:$0xf] %vm1352, 0
    %1431 = vst.msk [vmem:[#allocation2 + $0x50] sm:$0xf] %vm1352, 0
    %1432 = vst.msk [vmem:[#allocation2 + $0x5c] sm:$0xf] %vm1352, 0
    %1433 = vst.msk [vmem:[#allocation2 + $0x68] sm:$0xf] %vm1352, 0
    %1434 = vst.msk [vmem:[#allocation2 + $0x74] sm:$0xf] %vm1352, 0
    %1435 = vst.msk [vmem:[#allocation2 + $0x80] sm:$0xf] %vm1352, 0
    %1436 = vst.msk [vmem:[#allocation2 + $0x8c] sm:$0xf] %vm1352, 0
    %1437 = vst.msk [vmem:[#allocation2 + $0x98] sm:$0xf] %vm1352, 0
    %1438 = vst.msk [vmem:[#allocation2 + $0xa4] sm:$0xf] %vm1352, 0
    %1439 = vst.msk [vmem:[#allocation2 + $0xb0] sm:$0xf] %vm1352, 0
    %1440 = vst.msk [vmem:[#allocation2 + $0xbc] sm:$0xf] %vm1352, 0
    %1441 = vst.msk [vmem:[#allocation2 + $0xc8] sm:$0xf] %vm1352, 0
    %1442 = vst.msk [vmem:[#allocation2 + $0xd4] sm:$0xf] %vm1352, 0
    %1443 = vst.msk [vmem:[#allocation2 + $0xe0] sm:$0xf] %vm1352, 0
    %1444 = vst.msk [vmem:[#allocation2 + $0xec] sm:$0xf] %vm1352, 0
    %1445 = vst.msk [vmem:[#allocation2 + $0xf8] sm:$0xf] %vm1352, 0
    %1446 = vst.msk [vmem:[#allocation2 + $0x104] sm:$0xf] %vm1352, 0
    %1447 = vst.msk [vmem:[#allocation2 + $0x110] sm:$0xf] %vm1352, 0
    %1448 = vst.msk [vmem:[#allocation2 + $0x11c] sm:$0xf] %vm1352, 0
    %1449 = vst.msk [vmem:[#allocation2 + $0x128] sm:$0xf] %vm1352, 0
    %1450 = vst.msk [vmem:[#allocation2 + $0x134] sm:$0xf] %vm1352, 0
    %1451 = vst.msk [vmem:[#allocation2 + $0x140] sm:$0xf] %vm1352, 0
    %1452 = vst.msk [vmem:[#allocation2 + $0x14c] sm:$0xf] %vm1352, 0
    %1453 = vst.msk [vmem:[#allocation2 + $0x158] sm:$0xf] %vm1352, 0
    %1454 = vst.msk [vmem:[#allocation2 + $0x164] sm:$0xf] %vm1352, 0
    %1455 = vst.msk [vmem:[#allocation2 + $0x170] sm:$0xf] %vm1352, 0
    %1456 = vst.msk [vmem:[#allocation2 + $0x17c] sm:$0xf] %vm1352, 0
    %1457 = vst.msk [vmem:[#allocation2 + $0x188] sm:$0xf] %vm1352, 0
    %1458 = vst.msk [vmem:[#allocation2 + $0x194] sm:$0xf] %vm1352, 0
    %1459 = vst.msk [vmem:[#allocation2 + $0x1a0] sm:$0xf] %vm1352, 0
    %1460 = vst.msk [vmem:[#allocation2 + $0x1ac] sm:$0xf] %vm1352, 0
    %p1461 = scmp.eq.s32.totalorder 0, 0
    // Predicated region
    $region46: #{tpu_custom_call.1} parent=1 // pred_check
      %p1462 = pneg %p1461
    $region47: #{tpu_custom_call.1} parent=1 // pred_check_branch
      %1464 = sbr.rel (%p1462) target = $region49
    $region48: #{tpu_custom_call.1} parent=1 // pred_region
      %1465 = vst.msk [vmem:[#allocation2] sm:$0xf] %vm1352, 0
      %1466 = vst.msk [vmem:[#allocation2 + $0x4] sm:$0xf] %vm1352, 0
      %1467 = vst.msk [vmem:[#allocation2 + $0x8] sm:$0xf] %vm1352, 0
      %1468 = vst.msk [vmem:[#allocation2 + $0xd8] sm:$0xf] %vm1352, 0
      %1469 = vst.msk [vmem:[#allocation2 + $0xdc] sm:$0xf] %vm1352, 0
      %1470 = vst.msk [vmem:[#allocation2 + $0xe0] sm:$0xf] %vm1352, 0
      %s1471 = scalar_lea.vmem [#allocation2], 204
      %1472 = vst.msk [vmem:[%s1471] sm:$0xf] %vm1352, 0
      %1473 = vst.msk [vmem:[%s1471 + $0x4] sm:$0xf] %vm1352, 0
      %1474 = vst.msk [vmem:[%s1471 + $0x8] sm:$0xf] %vm1352, 0
      %1475 = vst.msk [vmem:[%s1471 + $0xd8] sm:$0xf] %vm1352, 0
      %1476 = vst.msk [vmem:[%s1471 + $0xdc] sm:$0xf] %vm1352, 0
      %1477 = vst.msk [vmem:[%s1471 + $0xe0] sm:$0xf] %vm1352, 0
    $region49: #{tpu_custom_call.1} parent=1 // pred_fallthru
      _
    %v1478 = vld [vmem:[#allocation2] sm:$0xf]
    %v1479 = vld [vmem:[#allocation2 + $0x4] sm:$0xf]
    %v1480 = vld [vmem:[#allocation2 + $0x8] sm:$0xf]
    %v1481 = vld [vmem:[#allocation2 + $0xc] sm:$0xf]
    %v1482 = vld [vmem:[#allocation2 + $0x10] sm:$0xf]
    %v1483 = vld [vmem:[#allocation2 + $0x14] sm:$0xf]
    %v1484 = vld [vmem:[#allocation2 + $0x18] sm:$0xf]
    %v1485 = vld [vmem:[#allocation2 + $0x1c] sm:$0xf]
    %v1486 = vld [vmem:[#allocation2 + $0x20] sm:$0xf]
    %v1487 = vld [vmem:[#allocation2 + $0x24] sm:$0xf]
    %v1488 = vld [vmem:[#allocation2 + $0x28] sm:$0xf]
    %v1489 = vld [vmem:[#allocation2 + $0x2c] sm:$0xf]
    %v1490 = vld [vmem:[#allocation2 + $0x30] sm:$0xf]
    %v1491 = vld [vmem:[#allocation2 + $0x34] sm:$0xf]
    %v1492 = vld [vmem:[#allocation2 + $0x38] sm:$0xf]
    %v1493 = vld [vmem:[#allocation2 + $0x3c] sm:$0xf]
    %v1494 = vld [vmem:[#allocation2 + $0x40] sm:$0xf]
    %v1495 = vld [vmem:[#allocation2 + $0x44] sm:$0xf]
    %v1496 = vld [vmem:[#allocation2 + $0x48] sm:$0xf]
    %v1497 = vld [vmem:[#allocation2 + $0x4c] sm:$0xf]
    %v1498 = vld [vmem:[#allocation2 + $0x50] sm:$0xf]
    %v1499 = vld [vmem:[#allocation2 + $0x54] sm:$0xf]
    %v1500 = vld [vmem:[#allocation2 + $0x58] sm:$0xf]
    %v1501 = vld [vmem:[#allocation2 + $0x5c] sm:$0xf]
    %v1502 = vld [vmem:[#allocation2 + $0x60] sm:$0xf]
    %v1503 = vld [vmem:[#allocation2 + $0x64] sm:$0xf]
    %v1504 = vld [vmem:[#allocation2 + $0x68] sm:$0xf]
    %v1505 = vld [vmem:[#allocation2 + $0x6c] sm:$0xf]
    %v1506 = vld [vmem:[#allocation2 + $0x70] sm:$0xf]
    %v1507 = vld [vmem:[#allocation2 + $0x74] sm:$0xf]
    %v1508 = vld [vmem:[#allocation2 + $0x78] sm:$0xf]
    %v1509 = vld [vmem:[#allocation2 + $0x7c] sm:$0xf]
    %v1510 = vld [vmem:[#allocation2 + $0x80] sm:$0xf]
    %v1511 = vld [vmem:[#allocation2 + $0x84] sm:$0xf]
    %v1512 = vld [vmem:[#allocation2 + $0x88] sm:$0xf]
    %v1513 = vld [vmem:[#allocation2 + $0x8c] sm:$0xf]
    %v1514 = vld [vmem:[#allocation2 + $0x90] sm:$0xf]
    %v1515 = vld [vmem:[#allocation2 + $0x94] sm:$0xf]
    %v1516 = vld [vmem:[#allocation2 + $0x98] sm:$0xf]
    %v1517 = vld [vmem:[#allocation2 + $0x9c] sm:$0xf]
    %v1518 = vld [vmem:[#allocation2 + $0xa0] sm:$0xf]
    %v1519 = vld [vmem:[#allocation2 + $0xa4] sm:$0xf]
    %v1520 = vld [vmem:[#allocation2 + $0xa8] sm:$0xf]
    %v1521 = vld [vmem:[#allocation2 + $0xac] sm:$0xf]
    %v1522 = vld [vmem:[#allocation2 + $0xb0] sm:$0xf]
    %v1523 = vld [vmem:[#allocation2 + $0xb4] sm:$0xf]
    %v1524 = vld [vmem:[#allocation2 + $0xb8] sm:$0xf]
    %v1525 = vld [vmem:[#allocation2 + $0xbc] sm:$0xf]
    %v1526 = vld [vmem:[#allocation2 + $0xd8] sm:$0xf]
    %v1527 = vld [vmem:[#allocation2 + $0xdc] sm:$0xf]
    %v1528 = vld [vmem:[#allocation2 + $0xe0] sm:$0xf]
    %v1529 = vld [vmem:[#allocation2 + $0xe4] sm:$0xf]
    %v1530 = vld [vmem:[#allocation2 + $0xe8] sm:$0xf]
    %v1531 = vld [vmem:[#allocation2 + $0xec] sm:$0xf]
    %v1532 = vld [vmem:[#allocation2 + $0xf0] sm:$0xf]
    %v1533 = vld [vmem:[#allocation2 + $0xf4] sm:$0xf]
    %v1534 = vld [vmem:[#allocation2 + $0xf8] sm:$0xf]
    %v1535 = vld [vmem:[#allocation2 + $0xfc] sm:$0xf]
    %v1536 = vld [vmem:[#allocation2 + $0x100] sm:$0xf]
    %v1537 = vld [vmem:[#allocation2 + $0x104] sm:$0xf]
    %v1538 = vld [vmem:[#allocation2 + $0x108] sm:$0xf]
    %v1539 = vld [vmem:[#allocation2 + $0x10c] sm:$0xf]
    %v1540 = vld [vmem:[#allocation2 + $0x110] sm:$0xf]
    %v1541 = vld [vmem:[#allocation2 + $0x114] sm:$0xf]
    %v1542 = vld [vmem:[#allocation2 + $0x118] sm:$0xf]
    %v1543 = vld [vmem:[#allocation2 + $0x11c] sm:$0xf]
    %v1544 = vld [vmem:[#allocation2 + $0x120] sm:$0xf]
    %v1545 = vld [vmem:[#allocation2 + $0x124] sm:$0xf]
    %v1546 = vld [vmem:[#allocation2 + $0x128] sm:$0xf]
    %v1547 = vld [vmem:[#allocation2 + $0x12c] sm:$0xf]
    %v1548 = vld [vmem:[#allocation2 + $0x130] sm:$0xf]
    %v1549 = vld [vmem:[#allocation2 + $0x134] sm:$0xf]
    %v1550 = vld [vmem:[#allocation2 + $0x138] sm:$0xf]
    %v1551 = vld [vmem:[#allocation2 + $0x13c] sm:$0xf]
    %v1552 = vld [vmem:[#allocation2 + $0x140] sm:$0xf]
    %v1553 = vld [vmem:[#allocation2 + $0x144] sm:$0xf]
    %v1554 = vld [vmem:[#allocation2 + $0x148] sm:$0xf]
    %v1555 = vld [vmem:[#allocation2 + $0x14c] sm:$0xf]
    %v1556 = vld [vmem:[#allocation2 + $0x150] sm:$0xf]
    %v1557 = vld [vmem:[#allocation2 + $0x154] sm:$0xf]
    %v1558 = vld [vmem:[#allocation2 + $0x158] sm:$0xf]
    %v1559 = vld [vmem:[#allocation2 + $0x15c] sm:$0xf]
    %v1560 = vld [vmem:[#allocation2 + $0x160] sm:$0xf]
    %v1561 = vld [vmem:[#allocation2 + $0x164] sm:$0xf]
    %v1562 = vld [vmem:[#allocation2 + $0x168] sm:$0xf]
    %v1563 = vld [vmem:[#allocation2 + $0x16c] sm:$0xf]
    %v1564 = vld [vmem:[#allocation2 + $0x170] sm:$0xf]
    %v1565 = vld [vmem:[#allocation2 + $0x174] sm:$0xf]
    %v1566 = vld [vmem:[#allocation2 + $0x178] sm:$0xf]
    %v1567 = vld [vmem:[#allocation2 + $0x17c] sm:$0xf]
    %v1568 = vld [vmem:[#allocation2 + $0x180] sm:$0xf]
    %v1569 = vld [vmem:[#allocation2 + $0x184] sm:$0xf]
    %v1570 = vld [vmem:[#allocation2 + $0x188] sm:$0xf]
    %v1571 = vld [vmem:[#allocation2 + $0x18c] sm:$0xf]
    %v1572 = vld [vmem:[#allocation2 + $0x190] sm:$0xf]
    %v1573 = vld [vmem:[#allocation2 + $0x194] sm:$0xf]
    %v1574 = vld [vmem:[%s4] sm:$0x3]
    %v1671 = vunpack.c.l.b16 %v1478
    %v1672 = vunpack.c.l.b16 %v1479
    %v1673 = vunpack.c.l.b16 %v1480
    %v1674 = vunpack.c.l.b16 %v1481
    %v1675 = vunpack.c.l.b16 %v1482
    %v1676 = vunpack.c.l.b16 %v1483
    %v1677 = vunpack.c.l.b16 %v1484
    %v1678 = vunpack.c.l.b16 %v1485
    %v1679 = vunpack.c.l.b16 %v1486
    %v1680 = vunpack.c.l.b16 %v1487
    %v1681 = vunpack.c.l.b16 %v1488
    %v1682 = vunpack.c.l.b16 %v1489
    %v1683 = vunpack.c.l.b16 %v1490
    %v1684 = vunpack.c.l.b16 %v1491
    %v1685 = vunpack.c.l.b16 %v1492
    %v1686 = vunpack.c.l.b16 %v1493
    %v1687 = vunpack.c.l.b16 %v1494
    %v1688 = vunpack.c.l.b16 %v1495
    %v1689 = vunpack.c.l.b16 %v1496
    %v1690 = vunpack.c.l.b16 %v1497
    %v1691 = vunpack.c.l.b16 %v1498
    %v1692 = vunpack.c.l.b16 %v1499
    %v1693 = vunpack.c.l.b16 %v1500
    %v1694 = vunpack.c.l.b16 %v1501
    %v1695 = vunpack.c.l.b16 %v1502
    %v1696 = vunpack.c.l.b16 %v1503
    %v1697 = vunpack.c.l.b16 %v1504
    %v1698 = vunpack.c.l.b16 %v1505
    %v1699 = vunpack.c.l.b16 %v1506
    %v1700 = vunpack.c.l.b16 %v1507
    %v1701 = vunpack.c.l.b16 %v1508
    %v1702 = vunpack.c.l.b16 %v1509
    %v1703 = vunpack.c.l.b16 %v1510
    %v1704 = vunpack.c.l.b16 %v1511
    %v1705 = vunpack.c.l.b16 %v1512
    %v1706 = vunpack.c.l.b16 %v1513
    %v1707 = vunpack.c.l.b16 %v1514
    %v1708 = vunpack.c.l.b16 %v1515
    %v1709 = vunpack.c.l.b16 %v1516
    %v1710 = vunpack.c.l.b16 %v1517
    %v1711 = vunpack.c.l.b16 %v1518
    %v1712 = vunpack.c.l.b16 %v1519
    %v1713 = vunpack.c.l.b16 %v1520
    %v1714 = vunpack.c.l.b16 %v1521
    %v1715 = vunpack.c.l.b16 %v1522
    %v1716 = vunpack.c.l.b16 %v1523
    %v1717 = vunpack.c.l.b16 %v1524
    %v1718 = vunpack.c.l.b16 %v1525
    %v1719 = vunpack.c.l.b16 %v1526
    %v1720 = vunpack.c.l.b16 %v1527
    %v1721 = vunpack.c.l.b16 %v1528
    %v1722 = vunpack.c.l.b16 %v1529
    %v1723 = vunpack.c.l.b16 %v1530
    %v1724 = vunpack.c.l.b16 %v1531
    %v1725 = vunpack.c.l.b16 %v1532
    %v1726 = vunpack.c.l.b16 %v1533
    %v1727 = vunpack.c.l.b16 %v1534
    %v1728 = vunpack.c.l.b16 %v1535
    %v1729 = vunpack.c.l.b16 %v1536
    %v1730 = vunpack.c.l.b16 %v1537
    %v1731 = vunpack.c.l.b16 %v1538
    %v1732 = vunpack.c.l.b16 %v1539
    %v1733 = vunpack.c.l.b16 %v1540
    %v1734 = vunpack.c.l.b16 %v1541
    %v1735 = vunpack.c.l.b16 %v1542
    %v1736 = vunpack.c.l.b16 %v1543
    %v1737 = vunpack.c.l.b16 %v1544
    %v1738 = vunpack.c.l.b16 %v1545
    %v1739 = vunpack.c.l.b16 %v1546
    %v1740 = vunpack.c.l.b16 %v1547
    %v1741 = vunpack.c.l.b16 %v1548
    %v1742 = vunpack.c.l.b16 %v1549
    %v1743 = vunpack.c.l.b16 %v1550
    %v1744 = vunpack.c.l.b16 %v1551
    %v1745 = vunpack.c.l.b16 %v1552
    %v1746 = vunpack.c.l.b16 %v1553
    %v1747 = vunpack.c.l.b16 %v1554
    %v1748 = vunpack.c.l.b16 %v1555
    %v1749 = vunpack.c.l.b16 %v1556
    %v1750 = vunpack.c.l.b16 %v1557
    %v1751 = vunpack.c.l.b16 %v1558
    %v1752 = vunpack.c.l.b16 %v1559
    %v1753 = vunpack.c.l.b16 %v1560
    %v1754 = vunpack.c.l.b16 %v1561
    %v1755 = vunpack.c.l.b16 %v1562
    %v1756 = vunpack.c.l.b16 %v1563
    %v1757 = vunpack.c.l.b16 %v1564
    %v1758 = vunpack.c.l.b16 %v1565
    %v1759 = vunpack.c.l.b16 %v1566
    %v1760 = vunpack.c.l.b16 %v1567
    %v1761 = vunpack.c.l.b16 %v1568
    %v1762 = vunpack.c.l.b16 %v1569
    %v1763 = vunpack.c.l.b16 %v1570
    %v1764 = vunpack.c.l.b16 %v1571
    %v1765 = vunpack.c.l.b16 %v1572
    %v1766 = vunpack.c.l.b16 %v1573
    %v1767 = vpack.c.b16 %v1672, %v1671
    %v1768 = vpack.c.b16 %v1674, %v1673
    %v1769 = vpack.c.b16 %v1676, %v1675
    %v1770 = vpack.c.b16 %v1678, %v1677
    %v1771 = vpack.c.b16 %v1680, %v1679
    %v1772 = vpack.c.b16 %v1682, %v1681
    %v1773 = vpack.c.b16 %v1684, %v1683
    %v1774 = vpack.c.b16 %v1686, %v1685
    %v1775 = vpack.c.b16 %v1688, %v1687
    %v1776 = vpack.c.b16 %v1690, %v1689
    %v1777 = vpack.c.b16 %v1692, %v1691
    %v1778 = vpack.c.b16 %v1694, %v1693
    %v1779 = vpack.c.b16 %v1696, %v1695
    %v1780 = vpack.c.b16 %v1698, %v1697
    %v1781 = vpack.c.b16 %v1700, %v1699
    %v1782 = vpack.c.b16 %v1702, %v1701
    %v1783 = vpack.c.b16 %v1704, %v1703
    %v1784 = vpack.c.b16 %v1706, %v1705
    %v1785 = vpack.c.b16 %v1708, %v1707
    %v1786 = vpack.c.b16 %v1710, %v1709
    %v1787 = vpack.c.b16 %v1712, %v1711
    %v1788 = vpack.c.b16 %v1714, %v1713
    %v1789 = vpack.c.b16 %v1716, %v1715
    %v1790 = vpack.c.b16 %v1718, %v1717
    %v1791 = vpack.c.b16 %v1720, %v1719
    %v1792 = vpack.c.b16 %v1722, %v1721
    %v1793 = vpack.c.b16 %v1724, %v1723
    %v1794 = vpack.c.b16 %v1726, %v1725
    %v1795 = vpack.c.b16 %v1728, %v1727
    %v1796 = vpack.c.b16 %v1730, %v1729
    %v1797 = vpack.c.b16 %v1732, %v1731
    %v1798 = vpack.c.b16 %v1734, %v1733
    %v1799 = vpack.c.b16 %v1736, %v1735
    %v1800 = vpack.c.b16 %v1738, %v1737
    %v1801 = vpack.c.b16 %v1740, %v1739
    %v1802 = vpack.c.b16 %v1742, %v1741
    %v1803 = vpack.c.b16 %v1744, %v1743
    %v1804 = vpack.c.b16 %v1746, %v1745
    %v1805 = vpack.c.b16 %v1748, %v1747
    %v1806 = vpack.c.b16 %v1750, %v1749
    %v1807 = vpack.c.b16 %v1752, %v1751
    %v1808 = vpack.c.b16 %v1754, %v1753
    %v1809 = vpack.c.b16 %v1756, %v1755
    %v1810 = vpack.c.b16 %v1758, %v1757
    %v1811 = vpack.c.b16 %v1760, %v1759
    %v1812 = vpack.c.b16 %v1762, %v1761
    %v1813 = vpack.c.b16 %v1764, %v1763
    %v1814 = vpack.c.b16 %v1766, %v1765
    %vm1815 = vcmask 31744
    %v1817 = vsel %vm1815, %v1767, 0
    %v1820 = vsel %vm1815, %v1768, 0
    %v1823 = vsel %vm1815, %v1769, 0
    %v1826 = vsel %vm1815, %v1770, 0
    %v1829 = vsel %vm1815, %v1771, 0
    %v1832 = vsel %vm1815, %v1772, 0
    %v1835 = vsel %vm1815, %v1773, 0
    %v1838 = vsel %vm1815, %v1774, 0
    %v1841 = vsel %vm1815, %v1775, 0
    %v1844 = vsel %vm1815, %v1776, 0
    %v1847 = vsel %vm1815, %v1777, 0
    %v1850 = vsel %vm1815, %v1778, 0
    %v1853 = vsel %vm1815, %v1779, 0
    %v1856 = vsel %vm1815, %v1780, 0
    %v1859 = vsel %vm1815, %v1781, 0
    %v1862 = vsel %vm1815, %v1782, 0
    %v1865 = vsel %vm1815, %v1783, 0
    %v1868 = vsel %vm1815, %v1784, 0
    %v1871 = vsel %vm1815, %v1785, 0
    %v1874 = vsel %vm1815, %v1786, 0
    %v1877 = vsel %vm1815, %v1787, 0
    %v1880 = vsel %vm1815, %v1788, 0
    %v1883 = vsel %vm1815, %v1789, 0
    %v1886 = vsel %vm1815, %v1790, 0
    %v1889 = vsel %vm1815, %v1791, 0
    %v1892 = vsel %vm1815, %v1792, 0
    %v1895 = vsel %vm1815, %v1793, 0
    %v1898 = vsel %vm1815, %v1794, 0
    %v1901 = vsel %vm1815, %v1795, 0
    %v1904 = vsel %vm1815, %v1796, 0
    %v1907 = vsel %vm1815, %v1797, 0
    %v1910 = vsel %vm1815, %v1798, 0
    %v1913 = vsel %vm1815, %v1799, 0
    %v1916 = vsel %vm1815, %v1800, 0
    %v1919 = vsel %vm1815, %v1801, 0
    %v1922 = vsel %vm1815, %v1802, 0
    %v1925 = vsel %vm1815, %v1803, 0
    %v1928 = vsel %vm1815, %v1804, 0
    %v1931 = vsel %vm1815, %v1805, 0
    %v1934 = vsel %vm1815, %v1806, 0
    %v1937 = vsel %vm1815, %v1807, 0
    %v1940 = vsel %vm1815, %v1808, 0
    %v1943 = vsel %vm1815, %v1809, 0
    %v1946 = vsel %vm1815, %v1810, 0
    %v1949 = vsel %vm1815, %v1811, 0
    %v1952 = vsel %vm1815, %v1812, 0
    %v1955 = vsel %vm1815, %v1813, 0
    %v1958 = vsel %vm1815, %v1814, 0
    %vm1960 = vcmask 1041408
    %v1962 = vsel %vm1960, %v1574, 0
    %1964 = vmatprep.subr.bf16.mxu0 0
    %1965 = vmatpush1.bf16.msra.mxu0 %v1962
    %1966 = vmatprep.subr.bf16.mxu0 0
    %1967 = vmatpush1.bf16.msra.mxu0 0
    %1968 = vmatprep.subr.bf16.mxu0 0
    %1969 = vmatpush1.bf16.msra.mxu0 0
    %1970 = vmatprep.subr.bf16.mxu0 0
    %1971 = vmatpush1.bf16.msra.mxu0 0
    %1972 = vmatprep.subr.bf16.mxu0 0
    %1973 = vmatpush1.bf16.msra.mxu0 0
    %1974 = vmatprep.subr.bf16.mxu0 0
    %1975 = vmatpush1.bf16.msra.mxu0 0
    %1976 = vmatprep.subr.bf16.mxu0 0
    %1977 = vmatpush1.bf16.msra.mxu0 0
    %1978 = vmatprep.subr.bf16.mxu0 0
    %1979 = vmatpush1.bf16.msra.mxu0 0
    %1980 = vmatprep.subr.bf16.mxu0 0
    %1981 = vmatpush1.bf16.msra.mxu0 0
    %1982 = vmatprep.subr.bf16.mxu0 0
    %1983 = vmatpush1.bf16.msra.mxu0 0
    %1984 = vmatprep.subr.bf16.mxu0 0
    %1985 = vmatpush1.bf16.msra.mxu0 0
    %1986 = vmatprep.subr.bf16.mxu0 0
    %1987 = vmatpush1.bf16.msra.mxu0 0
    %1988 = vmatprep.subr.bf16.mxu0 0
    %1989 = vmatpush1.bf16.msra.mxu0 0
    %1990 = vmatprep.subr.bf16.mxu0 0
    %1991 = vmatpush1.bf16.msra.mxu0 0
    %1992 = vmatprep.subr.bf16.mxu0 0
    %1993 = vmatpush1.bf16.msra.mxu0 0
    %1994 = vmatprep.subr.bf16.mxu0 0
    %1995 = vmatpush1.bf16.msra.mxu0 0
    %1996 = vmatprep.mubr.bf16.mxu0 0
    %1997 = vmatmul.mubr.bf16.gmra.mrb[0].mxu0 %v1817
    %v1998 = vpop.f32.mrb[0].mxu0
    %v1999 = vadd.f32 0.0, %v1998
    %v2000 = vpop.f32.mrb[0].mxu0
    %v2001 = vpop.f32.mrb[0].mxu0
    %v2002 = vadd.f32 0.0, %v2001
    %v2003 = vpop.f32.mrb[0].mxu0
    %2004 = vmatprep.mubr.bf16.mxu0 0
    %2005 = vmatmul.mubr.bf16.gmra.mrb[0].mxu0 %v1820
    %v2006 = vpop.f32.mrb[0].mxu0
    %v2007 = vadd.f32 0.0, %v2006
    %v2008 = vpop.f32.mrb[0].mxu0
    %v2009 = vpop.f32.mrb[0].mxu0
    %v2010 = vadd.f32 0.0, %v2009
    %v2011 = vpop.f32.mrb[0].mxu0
    %2012 = vmatprep.mubr.bf16.mxu0 0
    %2013 = vmatmul.mubr.bf16.gmra.mrb[0].mxu0 %v1823
    %v2014 = vpop.f32.mrb[0].mxu0
    %v2015 = vadd.f32 0.0, %v2014
    %v2016 = vpop.f32.mrb[0].mxu0
    %v2017 = vpop.f32.mrb[0].mxu0
    %v2018 = vadd.f32 0.0, %v2017
    %v2019 = vpop.f32.mrb[0].mxu0
    %2020 = vmatprep.mubr.bf16.mxu0 0
    %2021 = vmatmul.mubr.bf16.gmra.mrb[0].mxu0 %v1826
    %v2022 = vpop.f32.mrb[0].mxu0
    %v2023 = vadd.f32 0.0, %v2022
    %v2024 = vpop.f32.mrb[0].mxu0
    %v2025 = vpop.f32.mrb[0].mxu0
    %v2026 = vadd.f32 0.0, %v2025
    %v2027 = vpop.f32.mrb[0].mxu0
    %2028 = vmatprep.mubr.bf16.mxu0 0
    %2029 = vmatmul.mubr.bf16.gmra.mrb[0].mxu0 %v1829
    %v2030 = vpop.f32.mrb[0].mxu0
    %v2031 = vadd.f32 0.0, %v2030
    %v2032 = vpop.f32.mrb[0].mxu0
    %v2033 = vpop.f32.mrb[0].mxu0
    %v2034 = vadd.f32 0.0, %v2033
    %v2035 = vpop.f32.mrb[0].mxu0
    %2036 = vmatprep.mubr.bf16.mxu0 0
    %2037 = vmatmul.mubr.bf16.gmra.mrb[0].mxu0 %v1832
    %v2038 = vpop.f32.mrb[0].mxu0
    %v2039 = vadd.f32 0.0, %v2038
    %v2040 = vpop.f32.mrb[0].mxu0
    %v2041 = vpop.f32.mrb[0].mxu0
    %v2042 = vadd.f32 0.0, %v2041
    %v2043 = vpop.f32.mrb[0].mxu0
    %2044 = vmatprep.mubr.bf16.mxu0 0
    %2045 = vmatmul.mubr.bf16.gmra.mrb[0].mxu0 %v1835
    %v2046 = vpop.f32.mrb[0].mxu0
    %v2047 = vadd.f32 0.0, %v2046
    %v2048 = vpop.f32.mrb[0].mxu0
    %v2049 = vpop.f32.mrb[0].mxu0
    %v2050 = vadd.f32 0.0, %v2049
    %v2051 = vpop.f32.mrb[0].mxu0
    %2052 = vmatprep.mubr.bf16.mxu0 0
    %2053 = vmatmul.mubr.bf16.gmra.mrb[0].mxu0 %v1838
    %v2054 = vpop.f32.mrb[0].mxu0
    %v2055 = vadd.f32 0.0, %v2054
    %v2056 = vpop.f32.mrb[0].mxu0
    %v2057 = vpop.f32.mrb[0].mxu0
    %v2058 = vadd.f32 0.0, %v2057
    %v2059 = vpop.f32.mrb[0].mxu0
    %2060 = vmatprep.mubr.bf16.mxu0 0
    %2061 = vmatmul.mubr.bf16.gmra.mrb[0].mxu0 %v1841
    %v2062 = vpop.f32.mrb[0].mxu0
    %v2063 = vadd.f32 0.0, %v2062
    %v2064 = vpop.f32.mrb[0].mxu0
    %v2065 = vpop.f32.mrb[0].mxu0
    %v2066 = vadd.f32 0.0, %v2065
    %v2067 = vpop.f32.mrb[0].mxu0
    %2068 = vmatprep.mubr.bf16.mxu0 0
    %2069 = vmatmul.mubr.bf16.gmra.mrb[0].mxu0 %v1844
    %v2070 = vpop.f32.mrb[0].mxu0
    %v2071 = vadd.f32 0.0, %v2070
    %v2072 = vpop.f32.mrb[0].mxu0
    %v2073 = vpop.f32.mrb[0].mxu0
    %v2074 = vadd.f32 0.0, %v2073
    %v2075 = vpop.f32.mrb[0].mxu0
    %2076 = vmatprep.mubr.bf16.mxu0 0
    %2077 = vmatmul.mubr.bf16.gmra.mrb[0].mxu0 %v1847
    %v2078 = vpop.f32.mrb[0].mxu0
    %v2079 = vadd.f32 0.0, %v2078
    %v2080 = vpop.f32.mrb[0].mxu0
    %v2081 = vpop.f32.mrb[0].mxu0
    %v2082 = vadd.f32 0.0, %v2081
    %v2083 = vpop.f32.mrb[0].mxu0
    %2084 = vmatprep.mubr.bf16.mxu0 0
    %2085 = vmatmul.mubr.bf16.gmra.mrb[0].mxu0 %v1850
    %v2086 = vpop.f32.mrb[0].mxu0
    %v2087 = vadd.f32 0.0, %v2086
    %v2088 = vpop.f32.mrb[0].mxu0
    %v2089 = vpop.f32.mrb[0].mxu0
    %v2090 = vadd.f32 0.0, %v2089
    %v2091 = vpop.f32.mrb[0].mxu0
    %2092 = vmatprep.mubr.bf16.mxu0 0
    %2093 = vmatmul.mubr.bf16.gmra.mrb[0].mxu0 %v1853
    %v2094 = vpop.f32.mrb[0].mxu0
    %v2095 = vadd.f32 0.0, %v2094
    %v2096 = vpop.f32.mrb[0].mxu0
    %v2097 = vpop.f32.mrb[0].mxu0
    %v2098 = vadd.f32 0.0, %v2097
    %v2099 = vpop.f32.mrb[0].mxu0
    %2100 = vmatprep.mubr.bf16.mxu0 0
    %2101 = vmatmul.mubr.bf16.gmra.mrb[0].mxu0 %v1856
    %v2102 = vpop.f32.mrb[0].mxu0
    %v2103 = vadd.f32 0.0, %v2102
    %v2104 = vpop.f32.mrb[0].mxu0
    %v2105 = vpop.f32.mrb[0].mxu0
    %v2106 = vadd.f32 0.0, %v2105
    %v2107 = vpop.f32.mrb[0].mxu0
    %2108 = vmatprep.mubr.bf16.mxu0 0
    %2109 = vmatmul.mubr.bf16.gmra.mrb[0].mxu0 %v1859
    %v2110 = vpop.f32.mrb[0].mxu0
    %v2111 = vadd.f32 0.0, %v2110
    %v2112 = vpop.f32.mrb[0].mxu0
    %v2113 = vpop.f32.mrb[0].mxu0
    %v2114 = vadd.f32 0.0, %v2113
    %v2115 = vpop.f32.mrb[0].mxu0
    %2116 = vmatprep.mubr.bf16.mxu0 0
    %2117 = vmatmul.mubr.bf16.gmra.mrb[0].mxu0 %v1862
    %v2118 = vpop.f32.mrb[0].mxu0
    %v2119 = vadd.f32 0.0, %v2118
    %v2120 = vpop.f32.mrb[0].mxu0
    %v2121 = vpop.f32.mrb[0].mxu0
    %v2122 = vadd.f32 0.0, %v2121
    %v2123 = vpop.f32.mrb[0].mxu0
    %2124 = vmatprep.mubr.bf16.mxu0 0
    %2125 = vmatmul.mubr.bf16.gmra.mrb[0].mxu0 %v1865
    %v2126 = vpop.f32.mrb[0].mxu0
    %v2127 = vadd.f32 0.0, %v2126
    %v2128 = vpop.f32.mrb[0].mxu0
    %v2129 = vpop.f32.mrb[0].mxu0
    %v2130 = vadd.f32 0.0, %v2129
    %v2131 = vpop.f32.mrb[0].mxu0
    %2132 = vmatprep.mubr.bf16.mxu0 0
    %2133 = vmatmul.mubr.bf16.gmra.mrb[0].mxu0 %v1868
    %v2134 = vpop.f32.mrb[0].mxu0
    %v2135 = vadd.f32 0.0, %v2134
    %v2136 = vpop.f32.mrb[0].mxu0
    %v2137 = vpop.f32.mrb[0].mxu0
    %v2138 = vadd.f32 0.0, %v2137
    %v2139 = vpop.f32.mrb[0].mxu0
    %2140 = vmatprep.mubr.bf16.mxu0 0
    %2141 = vmatmul.mubr.bf16.gmra.mrb[0].mxu0 %v1871
    %v2142 = vpop.f32.mrb[0].mxu0
    %v2143 = vadd.f32 0.0, %v2142
    %v2144 = vpop.f32.mrb[0].mxu0
    %v2145 = vpop.f32.mrb[0].mxu0
    %v2146 = vadd.f32 0.0, %v2145
    %v2147 = vpop.f32.mrb[0].mxu0
    %2148 = vmatprep.mubr.bf16.mxu0 0
    %2149 = vmatmul.mubr.bf16.gmra.mrb[0].mxu0 %v1874
    %v2150 = vpop.f32.mrb[0].mxu0
    %v2151 = vadd.f32 0.0, %v2150
    %v2152 = vpop.f32.mrb[0].mxu0
    %v2153 = vpop.f32.mrb[0].mxu0
    %v2154 = vadd.f32 0.0, %v2153
    %v2155 = vpop.f32.mrb[0].mxu0
    %2156 = vmatprep.mubr.bf16.mxu0 0
    %2157 = vmatmul.mubr.bf16.gmra.mrb[0].mxu0 %v1877
    %v2158 = vpop.f32.mrb[0].mxu0
    %v2159 = vadd.f32 0.0, %v2158
    %v2160 = vpop.f32.mrb[0].mxu0
    %v2161 = vpop.f32.mrb[0].mxu0
    %v2162 = vadd.f32 0.0, %v2161
    %v2163 = vpop.f32.mrb[0].mxu0
    %2164 = vmatprep.mubr.bf16.mxu0 0
    %2165 = vmatmul.mubr.bf16.gmra.mrb[0].mxu0 %v1880
    %v2166 = vpop.f32.mrb[0].mxu0
    %v2167 = vadd.f32 0.0, %v2166
    %v2168 = vpop.f32.mrb[0].mxu0
    %v2169 = vpop.f32.mrb[0].mxu0
    %v2170 = vadd.f32 0.0, %v2169
    %v2171 = vpop.f32.mrb[0].mxu0
    %2172 = vmatprep.mubr.bf16.mxu0 0
    %2173 = vmatmul.mubr.bf16.gmra.mrb[0].mxu0 %v1883
    %v2174 = vpop.f32.mrb[0].mxu0
    %v2175 = vadd.f32 0.0, %v2174
    %v2176 = vpop.f32.mrb[0].mxu0
    %v2177 = vpop.f32.mrb[0].mxu0
    %v2178 = vadd.f32 0.0, %v2177
    %v2179 = vpop.f32.mrb[0].mxu0
    %2180 = vmatprep.mubr.bf16.mxu0 0
    %2181 = vmatmul.mubr.bf16.gmra.mrb[0].mxu0 %v1886
    %v2182 = vpop.f32.mrb[0].mxu0
    %v2183 = vadd.f32 0.0, %v2182
    %v2184 = vpop.f32.mrb[0].mxu0
    %v2185 = vpop.f32.mrb[0].mxu0
    %v2186 = vadd.f32 0.0, %v2185
    %v2187 = vpop.f32.mrb[0].mxu0
    %2188 = vmatprep.mubr.bf16.mxu0 0
    %2189 = vmatmul.mubr.bf16.gmra.mrb[0].mxu0 %v1889
    %v2190 = vpop.f32.mrb[0].mxu0
    %v2191 = vadd.f32 0.0, %v2190
    %v2192 = vpop.f32.mrb[0].mxu0
    %v2193 = vpop.f32.mrb[0].mxu0
    %v2194 = vadd.f32 0.0, %v2193
    %v2195 = vpop.f32.mrb[0].mxu0
    %2196 = vmatprep.mubr.bf16.mxu0 0
    %2197 = vmatmul.mubr.bf16.gmra.mrb[0].mxu0 %v1892
    %v2198 = vpop.f32.mrb[0].mxu0
    %v2199 = vadd.f32 0.0, %v2198
    %v2200 = vpop.f32.mrb[0].mxu0
    %v2201 = vpop.f32.mrb[0].mxu0
    %v2202 = vadd.f32 0.0, %v2201
    %v2203 = vpop.f32.mrb[0].mxu0
    %2204 = vmatprep.mubr.bf16.mxu0 0
    %2205 = vmatmul.mubr.bf16.gmra.mrb[0].mxu0 %v1895
    %v2206 = vpop.f32.mrb[0].mxu0
    %v2207 = vadd.f32 0.0, %v2206
    %v2208 = vpop.f32.mrb[0].mxu0
    %v2209 = vpop.f32.mrb[0].mxu0
    %v2210 = vadd.f32 0.0, %v2209
    %v2211 = vpop.f32.mrb[0].mxu0
    %2212 = vmatprep.mubr.bf16.mxu0 0
    %2213 = vmatmul.mubr.bf16.gmra.mrb[0].mxu0 %v1898
    %v2214 = vpop.f32.mrb[0].mxu0
    %v2215 = vadd.f32 0.0, %v2214
    %v2216 = vpop.f32.mrb[0].mxu0
    %v2217 = vpop.f32.mrb[0].mxu0
    %v2218 = vadd.f32 0.0, %v2217
    %v2219 = vpop.f32.mrb[0].mxu0
    %2220 = vmatprep.mubr.bf16.mxu0 0
    %2221 = vmatmul.mubr.bf16.gmra.mrb[0].mxu0 %v1901
    %v2222 = vpop.f32.mrb[0].mxu0
    %v2223 = vadd.f32 0.0, %v2222
    %v2224 = vpop.f32.mrb[0].mxu0
    %v2225 = vpop.f32.mrb[0].mxu0
    %v2226 = vadd.f32 0.0, %v2225
    %v2227 = vpop.f32.mrb[0].mxu0
    %2228 = vmatprep.mubr.bf16.mxu0 0
    %2229 = vmatmul.mubr.bf16.gmra.mrb[0].mxu0 %v1904
    %v2230 = vpop.f32.mrb[0].mxu0
    %v2231 = vadd.f32 0.0, %v2230
    %v2232 = vpop.f32.mrb[0].mxu0
    %v2233 = vpop.f32.mrb[0].mxu0
    %v2234 = vadd.f32 0.0, %v2233
    %v2235 = vpop.f32.mrb[0].mxu0
    %2236 = vmatprep.mubr.bf16.mxu0 0
    %2237 = vmatmul.mubr.bf16.gmra.mrb[0].mxu0 %v1907
    %v2238 = vpop.f32.mrb[0].mxu0
    %v2239 = vadd.f32 0.0, %v2238
    %v2240 = vpop.f32.mrb[0].mxu0
    %v2241 = vpop.f32.mrb[0].mxu0
    %v2242 = vadd.f32 0.0, %v2241
    %v2243 = vpop.f32.mrb[0].mxu0
    %2244 = vmatprep.mubr.bf16.mxu0 0
    %2245 = vmatmul.mubr.bf16.gmra.mrb[0].mxu0 %v1910
    %v2246 = vpop.f32.mrb[0].mxu0
    %v2247 = vadd.f32 0.0, %v2246
    %v2248 = vpop.f32.mrb[0].mxu0
    %v2249 = vpop.f32.mrb[0].mxu0
    %v2250 = vadd.f32 0.0, %v2249
    %v2251 = vpop.f32.mrb[0].mxu0
    %2252 = vmatprep.mubr.bf16.mxu0 0
    %2253 = vmatmul.mubr.bf16.gmra.mrb[0].mxu0 %v1913
    %v2254 = vpop.f32.mrb[0].mxu0
    %v2255 = vadd.f32 0.0, %v2254
    %v2256 = vpop.f32.mrb[0].mxu0
    %v2257 = vpop.f32.mrb[0].mxu0
    %v2258 = vadd.f32 0.0, %v2257
    %v2259 = vpop.f32.mrb[0].mxu0
    %2260 = vmatprep.mubr.bf16.mxu0 0
    %2261 = vmatmul.mubr.bf16.gmra.mrb[0].mxu0 %v1916
    %v2262 = vpop.f32.mrb[0].mxu0
    %v2263 = vadd.f32 0.0, %v2262
    %v2264 = vpop.f32.mrb[0].mxu0
    %v2265 = vpop.f32.mrb[0].mxu0
    %v2266 = vadd.f32 0.0, %v2265
    %v2267 = vpop.f32.mrb[0].mxu0
    %2268 = vmatprep.mubr.bf16.mxu0 0
    %2269 = vmatmul.mubr.bf16.gmra.mrb[0].mxu0 %v1919
    %v2270 = vpop.f32.mrb[0].mxu0
    %v2271 = vadd.f32 0.0, %v2270
    %v2272 = vpop.f32.mrb[0].mxu0
    %v2273 = vpop.f32.mrb[0].mxu0
    %v2274 = vadd.f32 0.0, %v2273
    %v2275 = vpop.f32.mrb[0].mxu0
    %2276 = vmatprep.mubr.bf16.mxu0 0
    %2277 = vmatmul.mubr.bf16.gmra.mrb[0].mxu0 %v1922
    %v2278 = vpop.f32.mrb[0].mxu0
    %v2279 = vadd.f32 0.0, %v2278
    %v2280 = vpop.f32.mrb[0].mxu0
    %v2281 = vpop.f32.mrb[0].mxu0
    %v2282 = vadd.f32 0.0, %v2281
    %v2283 = vpop.f32.mrb[0].mxu0
    %2284 = vmatprep.mubr.bf16.mxu0 0
    %2285 = vmatmul.mubr.bf16.gmra.mrb[0].mxu0 %v1925
    %v2286 = vpop.f32.mrb[0].mxu0
    %v2287 = vadd.f32 0.0, %v2286
    %v2288 = vpop.f32.mrb[0].mxu0
    %v2289 = vpop.f32.mrb[0].mxu0
    %v2290 = vadd.f32 0.0, %v2289
    %v2291 = vpop.f32.mrb[0].mxu0
    %2292 = vmatprep.mubr.bf16.mxu0 0
    %2293 = vmatmul.mubr.bf16.gmra.mrb[0].mxu0 %v1928
    %v2294 = vpop.f32.mrb[0].mxu0
    %v2295 = vadd.f32 0.0, %v2294
    %v2296 = vpop.f32.mrb[0].mxu0
    %v2297 = vpop.f32.mrb[0].mxu0
    %v2298 = vadd.f32 0.0, %v2297
    %v2299 = vpop.f32.mrb[0].mxu0
    %2300 = vmatprep.mubr.bf16.mxu0 0
    %2301 = vmatmul.mubr.bf16.gmra.mrb[0].mxu0 %v1931
    %v2302 = vpop.f32.mrb[0].mxu0
    %v2303 = vadd.f32 0.0, %v2302
    %v2304 = vpop.f32.mrb[0].mxu0
    %v2305 = vpop.f32.mrb[0].mxu0
    %v2306 = vadd.f32 0.0, %v2305
    %v2307 = vpop.f32.mrb[0].mxu0
    %2308 = vmatprep.mubr.bf16.mxu0 0
    %2309 = vmatmul.mubr.bf16.gmra.mrb[0].mxu0 %v1934
    %v2310 = vpop.f32.mrb[0].mxu0
    %v2311 = vadd.f32 0.0, %v2310
    %v2312 = vpop.f32.mrb[0].mxu0
    %v2313 = vpop.f32.mrb[0].mxu0
    %v2314 = vadd.f32 0.0, %v2313
    %v2315 = vpop.f32.mrb[0].mxu0
    %2316 = vmatprep.mubr.bf16.mxu0 0
    %2317 = vmatmul.mubr.bf16.gmra.mrb[0].mxu0 %v1937
    %v2318 = vpop.f32.mrb[0].mxu0
    %v2319 = vadd.f32 0.0, %v2318
    %v2320 = vpop.f32.mrb[0].mxu0
    %v2321 = vpop.f32.mrb[0].mxu0
    %v2322 = vadd.f32 0.0, %v2321
    %v2323 = vpop.f32.mrb[0].mxu0
    %2324 = vmatprep.mubr.bf16.mxu0 0
    %2325 = vmatmul.mubr.bf16.gmra.mrb[0].mxu0 %v1940
    %v2326 = vpop.f32.mrb[0].mxu0
    %v2327 = vadd.f32 0.0, %v2326
    %v2328 = vpop.f32.mrb[0].mxu0
    %v2329 = vpop.f32.mrb[0].mxu0
    %v2330 = vadd.f32 0.0, %v2329
    %v2331 = vpop.f32.mrb[0].mxu0
    %2332 = vmatprep.mubr.bf16.mxu0 0
    %2333 = vmatmul.mubr.bf16.gmra.mrb[0].mxu0 %v1943
    %v2334 = vpop.f32.mrb[0].mxu0
    %v2335 = vadd.f32 0.0, %v2334
    %v2336 = vpop.f32.mrb[0].mxu0
    %v2337 = vpop.f32.mrb[0].mxu0
    %v2338 = vadd.f32 0.0, %v2337
    %v2339 = vpop.f32.mrb[0].mxu0
    %2340 = vmatprep.mubr.bf16.mxu0 0
    %2341 = vmatmul.mubr.bf16.gmra.mrb[0].mxu0 %v1946
    %v2342 = vpop.f32.mrb[0].mxu0
    %v2343 = vadd.f32 0.0, %v2342
    %v2344 = vpop.f32.mrb[0].mxu0
    %v2345 = vpop.f32.mrb[0].mxu0
    %v2346 = vadd.f32 0.0, %v2345
    %v2347 = vpop.f32.mrb[0].mxu0
    %2348 = vmatprep.mubr.bf16.mxu0 0
    %2349 = vmatmul.mubr.bf16.gmra.mrb[0].mxu0 %v1949
    %v2350 = vpop.f32.mrb[0].mxu0
    %v2351 = vadd.f32 0.0, %v2350
    %v2352 = vpop.f32.mrb[0].mxu0
    %v2353 = vpop.f32.mrb[0].mxu0
    %v2354 = vadd.f32 0.0, %v2353
    %v2355 = vpop.f32.mrb[0].mxu0
    %2356 = vmatprep.mubr.bf16.mxu0 0
    %2357 = vmatmul.mubr.bf16.gmra.mrb[0].mxu0 %v1952
    %v2358 = vpop.f32.mrb[0].mxu0
    %v2359 = vadd.f32 0.0, %v2358
    %v2360 = vpop.f32.mrb[0].mxu0
    %v2361 = vpop.f32.mrb[0].mxu0
    %v2362 = vadd.f32 0.0, %v2361
    %v2363 = vpop.f32.mrb[0].mxu0
    %2364 = vmatprep.mubr.bf16.mxu0 0
    %2365 = vmatmul.mubr.bf16.gmra.mrb[0].mxu0 %v1955
    %v2366 = vpop.f32.mrb[0].mxu0
    %v2367 = vadd.f32 0.0, %v2366
    %v2368 = vpop.f32.mrb[0].mxu0
    %v2369 = vpop.f32.mrb[0].mxu0
    %v2370 = vadd.f32 0.0, %v2369
    %v2371 = vpop.f32.mrb[0].mxu0
    %2372 = vmatprep.mubr.bf16.mxu0 0
    %2373 = vmatmul.mubr.bf16.gmra.mrb[0].mxu0 %v1958
    %v2374 = vpop.f32.mrb[0].mxu0
    %v2375 = vadd.f32 0.0, %v2374
    %v2376 = vpop.f32.mrb[0].mxu0
    %v2377 = vpop.f32.mrb[0].mxu0
    %v2378 = vadd.f32 0.0, %v2377
    %v2379 = vpop.f32.mrb[0].mxu0
    %2380 = vdwg.mxu0
    %s2381 = scalar_lea.vmem %s4, 2
    %v2382 = vld [vmem:[%s2381] sm:$0x3]
    %v2384 = vsel %vm1960, %v2382, 0
    %2386 = vmatprep.subr.bf16.mxu0 0
    %2387 = vmatpush1.bf16.msra.mxu0 %v2384
    %2388 = vmatprep.subr.bf16.mxu0 0
    %2389 = vmatpush1.bf16.msra.mxu0 0
    %2390 = vmatprep.subr.bf16.mxu0 0
    %2391 = vmatpush1.bf16.msra.mxu0 0
    %2392 = vmatprep.subr.bf16.mxu0 0
    %2393 = vmatpush1.bf16.msra.mxu0 0
    %2394 = vmatprep.subr.bf16.mxu0 0
    %2395 = vmatpush1.bf16.msra.mxu0 0
    %2396 = vmatprep.subr.bf16.mxu0 0
    %2397 = vmatpush1.bf16.msra.mxu0 0
    %2398 = vmatprep.subr.bf16.mxu0 0
    %2399 = vmatpush1.bf16.msra.mxu0 0
    %2400 = vmatprep.subr.bf16.mxu0 0
    %2401 = vmatpush1.bf16.msra.mxu0 0
    %2402 = vmatprep.subr.bf16.mxu0 0
    %2403 = vmatpush1.bf16.msra.mxu0 0
    %2404 = vmatprep.subr.bf16.mxu0 0
    %2405 = vmatpush1.bf16.msra.mxu0 0
    %2406 = vmatprep.subr.bf16.mxu0 0
    %2407 = vmatpush1.bf16.msra.mxu0 0
    %2408 = vmatprep.subr.bf16.mxu0 0
    %2409 = vmatpush1.bf16.msra.mxu0 0
    %2410 = vmatprep.subr.bf16.mxu0 0
    %2411 = vmatpush1.bf16.msra.mxu0 0
    %2412 = vmatprep.subr.bf16.mxu0 0
    %2413 = vmatpush1.bf16.msra.mxu0 0
    %2414 = vmatprep.subr.bf16.mxu0 0
    %2415 = vmatpush1.bf16.msra.mxu0 0
    %2416 = vmatprep.subr.bf16.mxu0 0
    %2417 = vmatpush1.bf16.msra.mxu0 0
    %2418 = vmatprep.mubr.bf16.mxu0 0
    %2419 = vmatmul.mubr.bf16.gmra.mrb[0].mxu0 %v1817
    %v2420 = vpop.f32.mrb[0].mxu0
    %v2421 = vadd.f32 0.0, %v2420
    %v2422 = vpop.f32.mrb[0].mxu0
    %v2423 = vpop.f32.mrb[0].mxu0
    %v2424 = vadd.f32 0.0, %v2423
    %v2425 = vpop.f32.mrb[0].mxu0
    %2426 = vmatprep.mubr.bf16.mxu0 0
    %2427 = vmatmul.mubr.bf16.gmra.mrb[0].mxu0 %v1820
    %v2428 = vpop.f32.mrb[0].mxu0
    %v2429 = vadd.f32 0.0, %v2428
    %v2430 = vpop.f32.mrb[0].mxu0
    %v2431 = vpop.f32.mrb[0].mxu0
    %v2432 = vadd.f32 0.0, %v2431
    %v2433 = vpop.f32.mrb[0].mxu0
    %2434 = vmatprep.mubr.bf16.mxu0 0
    %2435 = vmatmul.mubr.bf16.gmra.mrb[0].mxu0 %v1823
    %v2436 = vpop.f32.mrb[0].mxu0
    %v2437 = vadd.f32 0.0, %v2436
    %v2438 = vpop.f32.mrb[0].mxu0
    %v2439 = vpop.f32.mrb[0].mxu0
    %v2440 = vadd.f32 0.0, %v2439
    %v2441 = vpop.f32.mrb[0].mxu0
    %2442 = vmatprep.mubr.bf16.mxu0 0
    %2443 = vmatmul.mubr.bf16.gmra.mrb[0].mxu0 %v1826
    %v2444 = vpop.f32.mrb[0].mxu0
    %v2445 = vadd.f32 0.0, %v2444
    %v2446 = vpop.f32.mrb[0].mxu0
    %v2447 = vpop.f32.mrb[0].mxu0
    %v2448 = vadd.f32 0.0, %v2447
    %v2449 = vpop.f32.mrb[0].mxu0
    %2450 = vmatprep.mubr.bf16.mxu0 0
    %2451 = vmatmul.mubr.bf16.gmra.mrb[0].mxu0 %v1829
    %v2452 = vpop.f32.mrb[0].mxu0
    %v2453 = vadd.f32 0.0, %v2452
    %v2454 = vpop.f32.mrb[0].mxu0
    %v2455 = vpop.f32.mrb[0].mxu0
    %v2456 = vadd.f32 0.0, %v2455
    %v2457 = vpop.f32.mrb[0].mxu0
    %2458 = vmatprep.mubr.bf16.mxu0 0
    %2459 = vmatmul.mubr.bf16.gmra.mrb[0].mxu0 %v1832
    %v2460 = vpop.f32.mrb[0].mxu0
    %v2461 = vadd.f32 0.0, %v2460
    %v2462 = vpop.f32.mrb[0].mxu0
    %v2463 = vpop.f32.mrb[0].mxu0
    %v2464 = vadd.f32 0.0, %v2463
    %v2465 = vpop.f32.mrb[0].mxu0
    %2466 = vmatprep.mubr.bf16.mxu0 0
    %2467 = vmatmul.mubr.bf16.gmra.mrb[0].mxu0 %v1835
    %v2468 = vpop.f32.mrb[0].mxu0
    %v2469 = vadd.f32 0.0, %v2468
    %v2470 = vpop.f32.mrb[0].mxu0
    %v2471 = vpop.f32.mrb[0].mxu0
    %v2472 = vadd.f32 0.0, %v2471
    %v2473 = vpop.f32.mrb[0].mxu0
    %2474 = vmatprep.mubr.bf16.mxu0 0
    %2475 = vmatmul.mubr.bf16.gmra.mrb[0].mxu0 %v1838
    %v2476 = vpop.f32.mrb[0].mxu0
    %v2477 = vadd.f32 0.0, %v2476
    %v2478 = vpop.f32.mrb[0].mxu0
    %v2479 = vpop.f32.mrb[0].mxu0
    %v2480 = vadd.f32 0.0, %v2479
    %v2481 = vpop.f32.mrb[0].mxu0
    %2482 = vmatprep.mubr.bf16.mxu0 0
    %2483 = vmatmul.mubr.bf16.gmra.mrb[0].mxu0 %v1841
    %v2484 = vpop.f32.mrb[0].mxu0
    %v2485 = vadd.f32 0.0, %v2484
    %v2486 = vpop.f32.mrb[0].mxu0
    %v2487 = vpop.f32.mrb[0].mxu0
    %v2488 = vadd.f32 0.0, %v2487
    %v2489 = vpop.f32.mrb[0].mxu0
    %2490 = vmatprep.mubr.bf16.mxu0 0
    %2491 = vmatmul.mubr.bf16.gmra.mrb[0].mxu0 %v1844
    %v2492 = vpop.f32.mrb[0].mxu0
    %v2493 = vadd.f32 0.0, %v2492
    %v2494 = vpop.f32.mrb[0].mxu0
    %v2495 = vpop.f32.mrb[0].mxu0
    %v2496 = vadd.f32 0.0, %v2495
    %v2497 = vpop.f32.mrb[0].mxu0
    %2498 = vmatprep.mubr.bf16.mxu0 0
    %2499 = vmatmul.mubr.bf16.gmra.mrb[0].mxu0 %v1847
    %v2500 = vpop.f32.mrb[0].mxu0
    %v2501 = vadd.f32 0.0, %v2500
    %v2502 = vpop.f32.mrb[0].mxu0
    %v2503 = vpop.f32.mrb[0].mxu0
    %v2504 = vadd.f32 0.0, %v2503
    %v2505 = vpop.f32.mrb[0].mxu0
    %2506 = vmatprep.mubr.bf16.mxu0 0
    %2507 = vmatmul.mubr.bf16.gmra.mrb[0].mxu0 %v1850
    %v2508 = vpop.f32.mrb[0].mxu0
    %v2509 = vadd.f32 0.0, %v2508
    %v2510 = vpop.f32.mrb[0].mxu0
    %v2511 = vpop.f32.mrb[0].mxu0
    %v2512 = vadd.f32 0.0, %v2511
    %v2513 = vpop.f32.mrb[0].mxu0
    %2514 = vmatprep.mubr.bf16.mxu0 0
    %2515 = vmatmul.mubr.bf16.gmra.mrb[0].mxu0 %v1853
    %v2516 = vpop.f32.mrb[0].mxu0
    %v2517 = vadd.f32 0.0, %v2516
    %v2518 = vpop.f32.mrb[0].mxu0
    %v2519 = vpop.f32.mrb[0].mxu0
    %v2520 = vadd.f32 0.0, %v2519
    %v2521 = vpop.f32.mrb[0].mxu0
    %2522 = vmatprep.mubr.bf16.mxu0 0
    %2523 = vmatmul.mubr.bf16.gmra.mrb[0].mxu0 %v1856
    %v2524 = vpop.f32.mrb[0].mxu0
    %v2525 = vadd.f32 0.0, %v2524
    %v2526 = vpop.f32.mrb[0].mxu0
    %v2527 = vpop.f32.mrb[0].mxu0
    %v2528 = vadd.f32 0.0, %v2527
    %v2529 = vpop.f32.mrb[0].mxu0
    %2530 = vmatprep.mubr.bf16.mxu0 0
    %2531 = vmatmul.mubr.bf16.gmra.mrb[0].mxu0 %v1859
    %v2532 = vpop.f32.mrb[0].mxu0
    %v2533 = vadd.f32 0.0, %v2532
    %v2534 = vpop.f32.mrb[0].mxu0
    %v2535 = vpop.f32.mrb[0].mxu0
    %v2536 = vadd.f32 0.0, %v2535
    %v2537 = vpop.f32.mrb[0].mxu0
    %2538 = vmatprep.mubr.bf16.mxu0 0
    %2539 = vmatmul.mubr.bf16.gmra.mrb[0].mxu0 %v1862
    %v2540 = vpop.f32.mrb[0].mxu0
    %v2541 = vadd.f32 0.0, %v2540
    %v2542 = vpop.f32.mrb[0].mxu0
    %v2543 = vpop.f32.mrb[0].mxu0
    %v2544 = vadd.f32 0.0, %v2543
    %v2545 = vpop.f32.mrb[0].mxu0
    %2546 = vmatprep.mubr.bf16.mxu0 0
    %2547 = vmatmul.mubr.bf16.gmra.mrb[0].mxu0 %v1865
    %v2548 = vpop.f32.mrb[0].mxu0
    %v2549 = vadd.f32 0.0, %v2548
    %v2550 = vpop.f32.mrb[0].mxu0
    %v2551 = vpop.f32.mrb[0].mxu0
    %v2552 = vadd.f32 0.0, %v2551
    %v2553 = vpop.f32.mrb[0].mxu0
    %2554 = vmatprep.mubr.bf16.mxu0 0
    %2555 = vmatmul.mubr.bf16.gmra.mrb[0].mxu0 %v1868
    %v2556 = vpop.f32.mrb[0].mxu0
    %v2557 = vadd.f32 0.0, %v2556
    %v2558 = vpop.f32.mrb[0].mxu0
    %v2559 = vpop.f32.mrb[0].mxu0
    %v2560 = vadd.f32 0.0, %v2559
    %v2561 = vpop.f32.mrb[0].mxu0
    %2562 = vmatprep.mubr.bf16.mxu0 0
    %2563 = vmatmul.mubr.bf16.gmra.mrb[0].mxu0 %v1871
    %v2564 = vpop.f32.mrb[0].mxu0
    %v2565 = vadd.f32 0.0, %v2564
    %v2566 = vpop.f32.mrb[0].mxu0
    %v2567 = vpop.f32.mrb[0].mxu0
    %v2568 = vadd.f32 0.0, %v2567
    %v2569 = vpop.f32.mrb[0].mxu0
    %2570 = vmatprep.mubr.bf16.mxu0 0
    %2571 = vmatmul.mubr.bf16.gmra.mrb[0].mxu0 %v1874
    %v2572 = vpop.f32.mrb[0].mxu0
    %v2573 = vadd.f32 0.0, %v2572
    %v2574 = vpop.f32.mrb[0].mxu0
    %v2575 = vpop.f32.mrb[0].mxu0
    %v2576 = vadd.f32 0.0, %v2575
    %v2577 = vpop.f32.mrb[0].mxu0
    %2578 = vmatprep.mubr.bf16.mxu0 0
    %2579 = vmatmul.mubr.bf16.gmra.mrb[0].mxu0 %v1877
    %v2580 = vpop.f32.mrb[0].mxu0
    %v2581 = vadd.f32 0.0, %v2580
    %v2582 = vpop.f32.mrb[0].mxu0
    %v2583 = vpop.f32.mrb[0].mxu0
    %v2584 = vadd.f32 0.0, %v2583
    %v2585 = vpop.f32.mrb[0].mxu0
    %2586 = vmatprep.mubr.bf16.mxu0 0
    %2587 = vmatmul.mubr.bf16.gmra.mrb[0].mxu0 %v1880
    %v2588 = vpop.f32.mrb[0].mxu0
    %v2589 = vadd.f32 0.0, %v2588
    %v2590 = vpop.f32.mrb[0].mxu0
    %v2591 = vpop.f32.mrb[0].mxu0
    %v2592 = vadd.f32 0.0, %v2591
    %v2593 = vpop.f32.mrb[0].mxu0
    %2594 = vmatprep.mubr.bf16.mxu0 0
    %2595 = vmatmul.mubr.bf16.gmra.mrb[0].mxu0 %v1883
    %v2596 = vpop.f32.mrb[0].mxu0
    %v2597 = vadd.f32 0.0, %v2596
    %v2598 = vpop.f32.mrb[0].mxu0
    %v2599 = vpop.f32.mrb[0].mxu0
    %v2600 = vadd.f32 0.0, %v2599
    %v2601 = vpop.f32.mrb[0].mxu0
    %2602 = vmatprep.mubr.bf16.mxu0 0
    %2603 = vmatmul.mubr.bf16.gmra.mrb[0].mxu0 %v1886
    %v2604 = vpop.f32.mrb[0].mxu0
    %v2605 = vadd.f32 0.0, %v2604
    %v2606 = vpop.f32.mrb[0].mxu0
    %v2607 = vpop.f32.mrb[0].mxu0
    %v2608 = vadd.f32 0.0, %v2607
    %v2609 = vpop.f32.mrb[0].mxu0
    %2610 = vmatprep.mubr.bf16.mxu0 0
    %2611 = vmatmul.mubr.bf16.gmra.mrb[0].mxu0 %v1889
    %v2612 = vpop.f32.mrb[0].mxu0
    %v2613 = vadd.f32 0.0, %v2612
    %v2614 = vpop.f32.mrb[0].mxu0
    %v2615 = vpop.f32.mrb[0].mxu0
    %v2616 = vadd.f32 0.0, %v2615
    %v2617 = vpop.f32.mrb[0].mxu0
    %2618 = vmatprep.mubr.bf16.mxu0 0
    %2619 = vmatmul.mubr.bf16.gmra.mrb[0].mxu0 %v1892
    %v2620 = vpop.f32.mrb[0].mxu0
    %v2621 = vadd.f32 0.0, %v2620
    %v2622 = vpop.f32.mrb[0].mxu0
    %v2623 = vpop.f32.mrb[0].mxu0
    %v2624 = vadd.f32 0.0, %v2623
    %v2625 = vpop.f32.mrb[0].mxu0
    %2626 = vmatprep.mubr.bf16.mxu0 0
    %2627 = vmatmul.mubr.bf16.gmra.mrb[0].mxu0 %v1895
    %v2628 = vpop.f32.mrb[0].mxu0
    %v2629 = vadd.f32 0.0, %v2628
    %v2630 = vpop.f32.mrb[0].mxu0
    %v2631 = vpop.f32.mrb[0].mxu0
    %v2632 = vadd.f32 0.0, %v2631
    %v2633 = vpop.f32.mrb[0].mxu0
    %2634 = vmatprep.mubr.bf16.mxu0 0
    %2635 = vmatmul.mubr.bf16.gmra.mrb[0].mxu0 %v1898
    %v2636 = vpop.f32.mrb[0].mxu0
    %v2637 = vadd.f32 0.0, %v2636
    %v2638 = vpop.f32.mrb[0].mxu0
    %v2639 = vpop.f32.mrb[0].mxu0
    %v2640 = vadd.f32 0.0, %v2639
    %v2641 = vpop.f32.mrb[0].mxu0
    %2642 = vmatprep.mubr.bf16.mxu0 0
    %2643 = vmatmul.mubr.bf16.gmra.mrb[0].mxu0 %v1901
    %v2644 = vpop.f32.mrb[0].mxu0
    %v2645 = vadd.f32 0.0, %v2644
    %v2646 = vpop.f32.mrb[0].mxu0
    %v2647 = vpop.f32.mrb[0].mxu0
    %v2648 = vadd.f32 0.0, %v2647
    %v2649 = vpop.f32.mrb[0].mxu0
    %2650 = vmatprep.mubr.bf16.mxu0 0
    %2651 = vmatmul.mubr.bf16.gmra.mrb[0].mxu0 %v1904
    %v2652 = vpop.f32.mrb[0].mxu0
    %v2653 = vadd.f32 0.0, %v2652
    %v2654 = vpop.f32.mrb[0].mxu0
    %v2655 = vpop.f32.mrb[0].mxu0
    %v2656 = vadd.f32 0.0, %v2655
    %v2657 = vpop.f32.mrb[0].mxu0
    %2658 = vmatprep.mubr.bf16.mxu0 0
    %2659 = vmatmul.mubr.bf16.gmra.mrb[0].mxu0 %v1907
    %v2660 = vpop.f32.mrb[0].mxu0
    %v2661 = vadd.f32 0.0, %v2660
    %v2662 = vpop.f32.mrb[0].mxu0
    %v2663 = vpop.f32.mrb[0].mxu0
    %v2664 = vadd.f32 0.0, %v2663
    %v2665 = vpop.f32.mrb[0].mxu0
    %2666 = vmatprep.mubr.bf16.mxu0 0
    %2667 = vmatmul.mubr.bf16.gmra.mrb[0].mxu0 %v1910
    %v2668 = vpop.f32.mrb[0].mxu0
    %v2669 = vadd.f32 0.0, %v2668
    %v2670 = vpop.f32.mrb[0].mxu0
    %v2671 = vpop.f32.mrb[0].mxu0
    %v2672 = vadd.f32 0.0, %v2671
    %v2673 = vpop.f32.mrb[0].mxu0
    %2674 = vmatprep.mubr.bf16.mxu0 0
    %2675 = vmatmul.mubr.bf16.gmra.mrb[0].mxu0 %v1913
    %v2676 = vpop.f32.mrb[0].mxu0
    %v2677 = vadd.f32 0.0, %v2676
    %v2678 = vpop.f32.mrb[0].mxu0
    %v2679 = vpop.f32.mrb[0].mxu0
    %v2680 = vadd.f32 0.0, %v2679
    %v2681 = vpop.f32.mrb[0].mxu0
    %2682 = vmatprep.mubr.bf16.mxu0 0
    %2683 = vmatmul.mubr.bf16.gmra.mrb[0].mxu0 %v1916
    %v2684 = vpop.f32.mrb[0].mxu0
    %v2685 = vadd.f32 0.0, %v2684
    %v2686 = vpop.f32.mrb[0].mxu0
    %v2687 = vpop.f32.mrb[0].mxu0
    %v2688 = vadd.f32 0.0, %v2687
    %v2689 = vpop.f32.mrb[0].mxu0
    %2690 = vmatprep.mubr.bf16.mxu0 0
    %2691 = vmatmul.mubr.bf16.gmra.mrb[0].mxu0 %v1919
    %v2692 = vpop.f32.mrb[0].mxu0
    %v2693 = vadd.f32 0.0, %v2692
    %v2694 = vpop.f32.mrb[0].mxu0
    %v2695 = vpop.f32.mrb[0].mxu0
    %v2696 = vadd.f32 0.0, %v2695
    %v2697 = vpop.f32.mrb[0].mxu0
    %2698 = vmatprep.mubr.bf16.mxu0 0
    %2699 = vmatmul.mubr.bf16.gmra.mrb[0].mxu0 %v1922
    %v2700 = vpop.f32.mrb[0].mxu0
    %v2701 = vadd.f32 0.0, %v2700
    %v2702 = vpop.f32.mrb[0].mxu0
    %v2703 = vpop.f32.mrb[0].mxu0
    %v2704 = vadd.f32 0.0, %v2703
    %v2705 = vpop.f32.mrb[0].mxu0
    %2706 = vmatprep.mubr.bf16.mxu0 0
    %2707 = vmatmul.mubr.bf16.gmra.mrb[0].mxu0 %v1925
    %v2708 = vpop.f32.mrb[0].mxu0
    %v2709 = vadd.f32 0.0, %v2708
    %v2710 = vpop.f32.mrb[0].mxu0
    %v2711 = vpop.f32.mrb[0].mxu0
    %v2712 = vadd.f32 0.0, %v2711
    %v2713 = vpop.f32.mrb[0].mxu0
    %2714 = vmatprep.mubr.bf16.mxu0 0
    %2715 = vmatmul.mubr.bf16.gmra.mrb[0].mxu0 %v1928
    %v2716 = vpop.f32.mrb[0].mxu0
    %v2717 = vadd.f32 0.0, %v2716
    %v2718 = vpop.f32.mrb[0].mxu0
    %v2719 = vpop.f32.mrb[0].mxu0
    %v2720 = vadd.f32 0.0, %v2719
    %v2721 = vpop.f32.mrb[0].mxu0
    %2722 = vmatprep.mubr.bf16.mxu0 0
    %2723 = vmatmul.mubr.bf16.gmra.mrb[0].mxu0 %v1931
    %v2724 = vpop.f32.mrb[0].mxu0
    %v2725 = vadd.f32 0.0, %v2724
    %v2726 = vpop.f32.mrb[0].mxu0
    %v2727 = vpop.f32.mrb[0].mxu0
    %v2728 = vadd.f32 0.0, %v2727
    %v2729 = vpop.f32.mrb[0].mxu0
    %2730 = vmatprep.mubr.bf16.mxu0 0
    %2731 = vmatmul.mubr.bf16.gmra.mrb[0].mxu0 %v1934
    %v2732 = vpop.f32.mrb[0].mxu0
    %v2733 = vadd.f32 0.0, %v2732
    %v2734 = vpop.f32.mrb[0].mxu0
    %v2735 = vpop.f32.mrb[0].mxu0
    %v2736 = vadd.f32 0.0, %v2735
    %v2737 = vpop.f32.mrb[0].mxu0
    %2738 = vmatprep.mubr.bf16.mxu0 0
    %2739 = vmatmul.mubr.bf16.gmra.mrb[0].mxu0 %v1937
    %v2740 = vpop.f32.mrb[0].mxu0
    %v2741 = vadd.f32 0.0, %v2740
    %v2742 = vpop.f32.mrb[0].mxu0
    %v2743 = vpop.f32.mrb[0].mxu0
    %v2744 = vadd.f32 0.0, %v2743
    %v2745 = vpop.f32.mrb[0].mxu0
    %2746 = vmatprep.mubr.bf16.mxu0 0
    %2747 = vmatmul.mubr.bf16.gmra.mrb[0].mxu0 %v1940
    %v2748 = vpop.f32.mrb[0].mxu0
    %v2749 = vadd.f32 0.0, %v2748
    %v2750 = vpop.f32.mrb[0].mxu0
    %v2751 = vpop.f32.mrb[0].mxu0
    %v2752 = vadd.f32 0.0, %v2751
    %v2753 = vpop.f32.mrb[0].mxu0
    %2754 = vmatprep.mubr.bf16.mxu0 0
    %2755 = vmatmul.mubr.bf16.gmra.mrb[0].mxu0 %v1943
    %v2756 = vpop.f32.mrb[0].mxu0
    %v2757 = vadd.f32 0.0, %v2756
    %v2758 = vpop.f32.mrb[0].mxu0
    %v2759 = vpop.f32.mrb[0].mxu0
    %v2760 = vadd.f32 0.0, %v2759
    %v2761 = vpop.f32.mrb[0].mxu0
    %2762 = vmatprep.mubr.bf16.mxu0 0
    %2763 = vmatmul.mubr.bf16.gmra.mrb[0].mxu0 %v1946
    %v2764 = vpop.f32.mrb[0].mxu0
    %v2765 = vadd.f32 0.0, %v2764
    %v2766 = vpop.f32.mrb[0].mxu0
    %v2767 = vpop.f32.mrb[0].mxu0
    %v2768 = vadd.f32 0.0, %v2767
    %v2769 = vpop.f32.mrb[0].mxu0
    %2770 = vmatprep.mubr.bf16.mxu0 0
    %2771 = vmatmul.mubr.bf16.gmra.mrb[0].mxu0 %v1949
    %v2772 = vpop.f32.mrb[0].mxu0
    %v2773 = vadd.f32 0.0, %v2772
    %v2774 = vpop.f32.mrb[0].mxu0
    %v2775 = vpop.f32.mrb[0].mxu0
    %v2776 = vadd.f32 0.0, %v2775
    %v2777 = vpop.f32.mrb[0].mxu0
    %2778 = vmatprep.mubr.bf16.mxu0 0
    %2779 = vmatmul.mubr.bf16.gmra.mrb[0].mxu0 %v1952
    %v2780 = vpop.f32.mrb[0].mxu0
    %v2781 = vadd.f32 0.0, %v2780
    %v2782 = vpop.f32.mrb[0].mxu0
    %v2783 = vpop.f32.mrb[0].mxu0
    %v2784 = vadd.f32 0.0, %v2783
    %v2785 = vpop.f32.mrb[0].mxu0
    %2786 = vmatprep.mubr.bf16.mxu0 0
    %2787 = vmatmul.mubr.bf16.gmra.mrb[0].mxu0 %v1955
    %v2788 = vpop.f32.mrb[0].mxu0
    %v2789 = vadd.f32 0.0, %v2788
    %v2790 = vpop.f32.mrb[0].mxu0
    %v2791 = vpop.f32.mrb[0].mxu0
    %v2792 = vadd.f32 0.0, %v2791
    %v2793 = vpop.f32.mrb[0].mxu0
    %2794 = vmatprep.mubr.bf16.mxu0 0
    %2795 = vmatmul.mubr.bf16.gmra.mrb[0].mxu0 %v1958
    %v2796 = vpop.f32.mrb[0].mxu0
    %v2797 = vadd.f32 0.0, %v2796
    %v2798 = vpop.f32.mrb[0].mxu0
    %v2799 = vpop.f32.mrb[0].mxu0
    %v2800 = vadd.f32 0.0, %v2799
    %v2801 = vpop.f32.mrb[0].mxu0
    %2802 = vdwg.mxu0
    %s2803 = scalar_lea.vmem %s4, 4
    %v2804 = vld [vmem:[%s2803] sm:$0x3]
    %v2806 = vsel %vm1960, %v2804, 0
    %2808 = vmatprep.subr.bf16.mxu0 0
    %2809 = vmatpush1.bf16.msra.mxu0 %v2806
    %2810 = vmatprep.subr.bf16.mxu0 0
    %2811 = vmatpush1.bf16.msra.mxu0 0
    %2812 = vmatprep.subr.bf16.mxu0 0
    %2813 = vmatpush1.bf16.msra.mxu0 0
    %2814 = vmatprep.subr.bf16.mxu0 0
    %2815 = vmatpush1.bf16.msra.mxu0 0
    %2816 = vmatprep.subr.bf16.mxu0 0
    %2817 = vmatpush1.bf16.msra.mxu0 0
    %2818 = vmatprep.subr.bf16.mxu0 0
    %2819 = vmatpush1.bf16.msra.mxu0 0
    %2820 = vmatprep.subr.bf16.mxu0 0
    %2821 = vmatpush1.bf16.msra.mxu0 0
    %2822 = vmatprep.subr.bf16.mxu0 0
    %2823 = vmatpush1.bf16.msra.mxu0 0
    %2824 = vmatprep.subr.bf16.mxu0 0
    %2825 = vmatpush1.bf16.msra.mxu0 0
    %2826 = vmatprep.subr.bf16.mxu0 0
    %2827 = vmatpush1.bf16.msra.mxu0 0
    %2828 = vmatprep.subr.bf16.mxu0 0
    %2829 = vmatpush1.bf16.msra.mxu0 0
    %2830 = vmatprep.subr.bf16.mxu0 0
    %2831 = vmatpush1.bf16.msra.mxu0 0
    %2832 = vmatprep.subr.bf16.mxu0 0
    %2833 = vmatpush1.bf16.msra.mxu0 0
    %2834 = vmatprep.subr.bf16.mxu0 0
    %2835 = vmatpush1.bf16.msra.mxu0 0
    %2836 = vmatprep.subr.bf16.mxu0 0
    %2837 = vmatpush1.bf16.msra.mxu0 0
    %2838 = vmatprep.subr.bf16.mxu0 0
    %2839 = vmatpush1.bf16.msra.mxu0 0
    %2840 = vmatprep.mubr.bf16.mxu0 0
    %2841 = vmatmul.mubr.bf16.gmra.mrb[0].mxu0 %v1817
    %v2842 = vpop.f32.mrb[0].mxu0
    %v2843 = vadd.f32 0.0, %v2842
    %v2844 = vpop.f32.mrb[0].mxu0
    %v2845 = vpop.f32.mrb[0].mxu0
    %v2846 = vadd.f32 0.0, %v2845
    %v2847 = vpop.f32.mrb[0].mxu0
    %2848 = vmatprep.mubr.bf16.mxu0 0
    %2849 = vmatmul.mubr.bf16.gmra.mrb[0].mxu0 %v1820
    %v2850 = vpop.f32.mrb[0].mxu0
    %v2851 = vadd.f32 0.0, %v2850
    %v2852 = vpop.f32.mrb[0].mxu0
    %v2853 = vpop.f32.mrb[0].mxu0
    %v2854 = vadd.f32 0.0, %v2853
    %v2855 = vpop.f32.mrb[0].mxu0
    %2856 = vmatprep.mubr.bf16.mxu0 0
    %2857 = vmatmul.mubr.bf16.gmra.mrb[0].mxu0 %v1823
    %v2858 = vpop.f32.mrb[0].mxu0
    %v2859 = vadd.f32 0.0, %v2858
    %v2860 = vpop.f32.mrb[0].mxu0
    %v2861 = vpop.f32.mrb[0].mxu0
    %v2862 = vadd.f32 0.0, %v2861
    %v2863 = vpop.f32.mrb[0].mxu0
    %2864 = vmatprep.mubr.bf16.mxu0 0
    %2865 = vmatmul.mubr.bf16.gmra.mrb[0].mxu0 %v1826
    %v2866 = vpop.f32.mrb[0].mxu0
    %v2867 = vadd.f32 0.0, %v2866
    %v2868 = vpop.f32.mrb[0].mxu0
    %v2869 = vpop.f32.mrb[0].mxu0
    %v2870 = vadd.f32 0.0, %v2869
    %v2871 = vpop.f32.mrb[0].mxu0
    %2872 = vmatprep.mubr.bf16.mxu0 0
    %2873 = vmatmul.mubr.bf16.gmra.mrb[0].mxu0 %v1829
    %v2874 = vpop.f32.mrb[0].mxu0
    %v2875 = vadd.f32 0.0, %v2874
    %v2876 = vpop.f32.mrb[0].mxu0
    %v2877 = vpop.f32.mrb[0].mxu0
    %v2878 = vadd.f32 0.0, %v2877
    %v2879 = vpop.f32.mrb[0].mxu0
    %2880 = vmatprep.mubr.bf16.mxu0 0
    %2881 = vmatmul.mubr.bf16.gmra.mrb[0].mxu0 %v1832
    %v2882 = vpop.f32.mrb[0].mxu0
    %v2883 = vadd.f32 0.0, %v2882
    %v2884 = vpop.f32.mrb[0].mxu0
    %v2885 = vpop.f32.mrb[0].mxu0
    %v2886 = vadd.f32 0.0, %v2885
    %v2887 = vpop.f32.mrb[0].mxu0
    %2888 = vmatprep.mubr.bf16.mxu0 0
    %2889 = vmatmul.mubr.bf16.gmra.mrb[0].mxu0 %v1835
    %v2890 = vpop.f32.mrb[0].mxu0
    %v2891 = vadd.f32 0.0, %v2890
    %v2892 = vpop.f32.mrb[0].mxu0
    %v2893 = vpop.f32.mrb[0].mxu0
    %v2894 = vadd.f32 0.0, %v2893
    %v2895 = vpop.f32.mrb[0].mxu0
    %2896 = vmatprep.mubr.bf16.mxu0 0
    %2897 = vmatmul.mubr.bf16.gmra.mrb[0].mxu0 %v1838
    %v2898 = vpop.f32.mrb[0].mxu0
    %v2899 = vadd.f32 0.0, %v2898
    %v2900 = vpop.f32.mrb[0].mxu0
    %v2901 = vpop.f32.mrb[0].mxu0
    %v2902 = vadd.f32 0.0, %v2901
    %v2903 = vpop.f32.mrb[0].mxu0
    %2904 = vmatprep.mubr.bf16.mxu0 0
    %2905 = vmatmul.mubr.bf16.gmra.mrb[0].mxu0 %v1841
    %v2906 = vpop.f32.mrb[0].mxu0
    %v2907 = vadd.f32 0.0, %v2906
    %v2908 = vpop.f32.mrb[0].mxu0
    %v2909 = vpop.f32.mrb[0].mxu0
    %v2910 = vadd.f32 0.0, %v2909
    %v2911 = vpop.f32.mrb[0].mxu0
    %2912 = vmatprep.mubr.bf16.mxu0 0
    %2913 = vmatmul.mubr.bf16.gmra.mrb[0].mxu0 %v1844
    %v2914 = vpop.f32.mrb[0].mxu0
    %v2915 = vadd.f32 0.0, %v2914
    %v2916 = vpop.f32.mrb[0].mxu0
    %v2917 = vpop.f32.mrb[0].mxu0
    %v2918 = vadd.f32 0.0, %v2917
    %v2919 = vpop.f32.mrb[0].mxu0
    %2920 = vmatprep.mubr.bf16.mxu0 0
    %2921 = vmatmul.mubr.bf16.gmra.mrb[0].mxu0 %v1847
    %v2922 = vpop.f32.mrb[0].mxu0
    %v2923 = vadd.f32 0.0, %v2922
    %v2924 = vpop.f32.mrb[0].mxu0
    %v2925 = vpop.f32.mrb[0].mxu0
    %v2926 = vadd.f32 0.0, %v2925
    %v2927 = vpop.f32.mrb[0].mxu0
    %2928 = vmatprep.mubr.bf16.mxu0 0
    %2929 = vmatmul.mubr.bf16.gmra.mrb[0].mxu0 %v1850
    %v2930 = vpop.f32.mrb[0].mxu0
    %v2931 = vadd.f32 0.0, %v2930
    %v2932 = vpop.f32.mrb[0].mxu0
    %v2933 = vpop.f32.mrb[0].mxu0
    %v2934 = vadd.f32 0.0, %v2933
    %v2935 = vpop.f32.mrb[0].mxu0
    %2936 = vmatprep.mubr.bf16.mxu0 0
    %2937 = vmatmul.mubr.bf16.gmra.mrb[0].mxu0 %v1853
    %v2938 = vpop.f32.mrb[0].mxu0
    %v2939 = vadd.f32 0.0, %v2938
    %v2940 = vpop.f32.mrb[0].mxu0
    %v2941 = vpop.f32.mrb[0].mxu0
    %v2942 = vadd.f32 0.0, %v2941
    %v2943 = vpop.f32.mrb[0].mxu0
    %2944 = vmatprep.mubr.bf16.mxu0 0
    %2945 = vmatmul.mubr.bf16.gmra.mrb[0].mxu0 %v1856
    %v2946 = vpop.f32.mrb[0].mxu0
    %v2947 = vadd.f32 0.0, %v2946
    %v2948 = vpop.f32.mrb[0].mxu0
    %v2949 = vpop.f32.mrb[0].mxu0
    %v2950 = vadd.f32 0.0, %v2949
    %v2951 = vpop.f32.mrb[0].mxu0
    %2952 = vmatprep.mubr.bf16.mxu0 0
    %2953 = vmatmul.mubr.bf16.gmra.mrb[0].mxu0 %v1859
    %v2954 = vpop.f32.mrb[0].mxu0
    %v2955 = vadd.f32 0.0, %v2954
    %v2956 = vpop.f32.mrb[0].mxu0
    %v2957 = vpop.f32.mrb[0].mxu0
    %v2958 = vadd.f32 0.0, %v2957
    %v2959 = vpop.f32.mrb[0].mxu0
    %2960 = vmatprep.mubr.bf16.mxu0 0
    %2961 = vmatmul.mubr.bf16.gmra.mrb[0].mxu0 %v1862
    %v2962 = vpop.f32.mrb[0].mxu0
    %v2963 = vadd.f32 0.0, %v2962
    %v2964 = vpop.f32.mrb[0].mxu0
    %v2965 = vpop.f32.mrb[0].mxu0
    %v2966 = vadd.f32 0.0, %v2965
    %v2967 = vpop.f32.mrb[0].mxu0
    %2968 = vmatprep.mubr.bf16.mxu0 0
    %2969 = vmatmul.mubr.bf16.gmra.mrb[0].mxu0 %v1865
    %v2970 = vpop.f32.mrb[0].mxu0
    %v2971 = vadd.f32 0.0, %v2970
    %v2972 = vpop.f32.mrb[0].mxu0
    %v2973 = vpop.f32.mrb[0].mxu0
    %v2974 = vadd.f32 0.0, %v2973
    %v2975 = vpop.f32.mrb[0].mxu0
    %2976 = vmatprep.mubr.bf16.mxu0 0
    %2977 = vmatmul.mubr.bf16.gmra.mrb[0].mxu0 %v1868
    %v2978 = vpop.f32.mrb[0].mxu0
    %v2979 = vadd.f32 0.0, %v2978
    %v2980 = vpop.f32.mrb[0].mxu0
    %v2981 = vpop.f32.mrb[0].mxu0
    %v2982 = vadd.f32 0.0, %v2981
    %v2983 = vpop.f32.mrb[0].mxu0
    %2984 = vmatprep.mubr.bf16.mxu0 0
    %2985 = vmatmul.mubr.bf16.gmra.mrb[0].mxu0 %v1871
    %v2986 = vpop.f32.mrb[0].mxu0
    %v2987 = vadd.f32 0.0, %v2986
    %v2988 = vpop.f32.mrb[0].mxu0
    %v2989 = vpop.f32.mrb[0].mxu0
    %v2990 = vadd.f32 0.0, %v2989
    %v2991 = vpop.f32.mrb[0].mxu0
    %2992 = vmatprep.mubr.bf16.mxu0 0
    %2993 = vmatmul.mubr.bf16.gmra.mrb[0].mxu0 %v1874
    %v2994 = vpop.f32.mrb[0].mxu0
    %v2995 = vadd.f32 0.0, %v2994
    %v2996 = vpop.f32.mrb[0].mxu0
    %v2997 = vpop.f32.mrb[0].mxu0
    %v2998 = vadd.f32 0.0, %v2997
    %v2999 = vpop.f32.mrb[0].mxu0
    %3000 = vmatprep.mubr.bf16.mxu0 0
    %3001 = vmatmul.mubr.bf16.gmra.mrb[0].mxu0 %v1877
    %v3002 = vpop.f32.mrb[0].mxu0
    %v3003 = vadd.f32 0.0, %v3002
    %v3004 = vpop.f32.mrb[0].mxu0
    %v3005 = vpop.f32.mrb[0].mxu0
    %v3006 = vadd.f32 0.0, %v3005
    %v3007 = vpop.f32.mrb[0].mxu0
    %3008 = vmatprep.mubr.bf16.mxu0 0
    %3009 = vmatmul.mubr.bf16.gmra.mrb[0].mxu0 %v1880
    %v3010 = vpop.f32.mrb[0].mxu0
    %v3011 = vadd.f32 0.0, %v3010
    %v3012 = vpop.f32.mrb[0].mxu0
    %v3013 = vpop.f32.mrb[0].mxu0
    %v3014 = vadd.f32 0.0, %v3013
    %v3015 = vpop.f32.mrb[0].mxu0
    %3016 = vmatprep.mubr.bf16.mxu0 0
    %3017 = vmatmul.mubr.bf16.gmra.mrb[0].mxu0 %v1883
    %v3018 = vpop.f32.mrb[0].mxu0
    %v3019 = vadd.f32 0.0, %v3018
    %v3020 = vpop.f32.mrb[0].mxu0
    %v3021 = vpop.f32.mrb[0].mxu0
    %v3022 = vadd.f32 0.0, %v3021
    %v3023 = vpop.f32.mrb[0].mxu0
    %3024 = vmatprep.mubr.bf16.mxu0 0
    %3025 = vmatmul.mubr.bf16.gmra.mrb[0].mxu0 %v1886
    %v3026 = vpop.f32.mrb[0].mxu0
    %v3027 = vadd.f32 0.0, %v3026
    %v3028 = vpop.f32.mrb[0].mxu0
    %v3029 = vpop.f32.mrb[0].mxu0
    %v3030 = vadd.f32 0.0, %v3029
    %v3031 = vpop.f32.mrb[0].mxu0
    %3032 = vmatprep.mubr.bf16.mxu0 0
    %3033 = vmatmul.mubr.bf16.gmra.mrb[0].mxu0 %v1889
    %v3034 = vpop.f32.mrb[0].mxu0
    %v3035 = vadd.f32 0.0, %v3034
    %v3036 = vpop.f32.mrb[0].mxu0
    %v3037 = vpop.f32.mrb[0].mxu0
    %v3038 = vadd.f32 0.0, %v3037
    %v3039 = vpop.f32.mrb[0].mxu0
    %3040 = vmatprep.mubr.bf16.mxu0 0
    %3041 = vmatmul.mubr.bf16.gmra.mrb[0].mxu0 %v1892
    %v3042 = vpop.f32.mrb[0].mxu0
    %v3043 = vadd.f32 0.0, %v3042
    %v3044 = vpop.f32.mrb[0].mxu0
    %v3045 = vpop.f32.mrb[0].mxu0
    %v3046 = vadd.f32 0.0, %v3045
    %v3047 = vpop.f32.mrb[0].mxu0
    %3048 = vmatprep.mubr.bf16.mxu0 0
    %3049 = vmatmul.mubr.bf16.gmra.mrb[0].mxu0 %v1895
    %v3050 = vpop.f32.mrb[0].mxu0
    %v3051 = vadd.f32 0.0, %v3050
    %v3052 = vpop.f32.mrb[0].mxu0
    %v3053 = vpop.f32.mrb[0].mxu0
    %v3054 = vadd.f32 0.0, %v3053
    %v3055 = vpop.f32.mrb[0].mxu0
    %3056 = vmatprep.mubr.bf16.mxu0 0
    %3057 = vmatmul.mubr.bf16.gmra.mrb[0].mxu0 %v1898
    %v3058 = vpop.f32.mrb[0].mxu0
    %v3059 = vadd.f32 0.0, %v3058
    %v3060 = vpop.f32.mrb[0].mxu0
    %v3061 = vpop.f32.mrb[0].mxu0
    %v3062 = vadd.f32 0.0, %v3061
    %v3063 = vpop.f32.mrb[0].mxu0
    %3064 = vmatprep.mubr.bf16.mxu0 0
    %3065 = vmatmul.mubr.bf16.gmra.mrb[0].mxu0 %v1901
    %v3066 = vpop.f32.mrb[0].mxu0
    %v3067 = vadd.f32 0.0, %v3066
    %v3068 = vpop.f32.mrb[0].mxu0
    %v3069 = vpop.f32.mrb[0].mxu0
    %v3070 = vadd.f32 0.0, %v3069
    %v3071 = vpop.f32.mrb[0].mxu0
    %3072 = vmatprep.mubr.bf16.mxu0 0
    %3073 = vmatmul.mubr.bf16.gmra.mrb[0].mxu0 %v1904
    %v3074 = vpop.f32.mrb[0].mxu0
    %v3075 = vadd.f32 0.0, %v3074
    %v3076 = vpop.f32.mrb[0].mxu0
    %v3077 = vpop.f32.mrb[0].mxu0
    %v3078 = vadd.f32 0.0, %v3077
    %v3079 = vpop.f32.mrb[0].mxu0
    %3080 = vmatprep.mubr.bf16.mxu0 0
    %3081 = vmatmul.mubr.bf16.gmra.mrb[0].mxu0 %v1907
    %v3082 = vpop.f32.mrb[0].mxu0
    %v3083 = vadd.f32 0.0, %v3082
    %v3084 = vpop.f32.mrb[0].mxu0
    %v3085 = vpop.f32.mrb[0].mxu0
    %v3086 = vadd.f32 0.0, %v3085
    %v3087 = vpop.f32.mrb[0].mxu0
    %3088 = vmatprep.mubr.bf16.mxu0 0
    %3089 = vmatmul.mubr.bf16.gmra.mrb[0].mxu0 %v1910
    %v3090 = vpop.f32.mrb[0].mxu0
    %v3091 = vadd.f32 0.0, %v3090
    %v3092 = vpop.f32.mrb[0].mxu0
    %v3093 = vpop.f32.mrb[0].mxu0
    %v3094 = vadd.f32 0.0, %v3093
    %v3095 = vpop.f32.mrb[0].mxu0
    %3096 = vmatprep.mubr.bf16.mxu0 0
    %3097 = vmatmul.mubr.bf16.gmra.mrb[0].mxu0 %v1913
    %v3098 = vpop.f32.mrb[0].mxu0
    %v3099 = vadd.f32 0.0, %v3098
    %v3100 = vpop.f32.mrb[0].mxu0
    %v3101 = vpop.f32.mrb[0].mxu0
    %v3102 = vadd.f32 0.0, %v3101
    %v3103 = vpop.f32.mrb[0].mxu0
    %3104 = vmatprep.mubr.bf16.mxu0 0
    %3105 = vmatmul.mubr.bf16.gmra.mrb[0].mxu0 %v1916
    %v3106 = vpop.f32.mrb[0].mxu0
    %v3107 = vadd.f32 0.0, %v3106
    %v3108 = vpop.f32.mrb[0].mxu0
    %v3109 = vpop.f32.mrb[0].mxu0
    %v3110 = vadd.f32 0.0, %v3109
    %v3111 = vpop.f32.mrb[0].mxu0
    %3112 = vmatprep.mubr.bf16.mxu0 0
    %3113 = vmatmul.mubr.bf16.gmra.mrb[0].mxu0 %v1919
    %v3114 = vpop.f32.mrb[0].mxu0
    %v3115 = vadd.f32 0.0, %v3114
    %v3116 = vpop.f32.mrb[0].mxu0
    %v3117 = vpop.f32.mrb[0].mxu0
    %v3118 = vadd.f32 0.0, %v3117
    %v3119 = vpop.f32.mrb[0].mxu0
    %3120 = vmatprep.mubr.bf16.mxu0 0
    %3121 = vmatmul.mubr.bf16.gmra.mrb[0].mxu0 %v1922
    %v3122 = vpop.f32.mrb[0].mxu0
    %v3123 = vadd.f32 0.0, %v3122
    %v3124 = vpop.f32.mrb[0].mxu0
    %v3125 = vpop.f32.mrb[0].mxu0
    %v3126 = vadd.f32 0.0, %v3125
    %v3127 = vpop.f32.mrb[0].mxu0
    %3128 = vmatprep.mubr.bf16.mxu0 0
    %3129 = vmatmul.mubr.bf16.gmra.mrb[0].mxu0 %v1925
    %v3130 = vpop.f32.mrb[0].mxu0
    %v3131 = vadd.f32 0.0, %v3130
    %v3132 = vpop.f32.mrb[0].mxu0
    %v3133 = vpop.f32.mrb[0].mxu0
    %v3134 = vadd.f32 0.0, %v3133
    %v3135 = vpop.f32.mrb[0].mxu0
    %3136 = vmatprep.mubr.bf16.mxu0 0
    %3137 = vmatmul.mubr.bf16.gmra.mrb[0].mxu0 %v1928
    %v3138 = vpop.f32.mrb[0].mxu0
    %v3139 = vadd.f32 0.0, %v3138
    %v3140 = vpop.f32.mrb[0].mxu0
    %v3141 = vpop.f32.mrb[0].mxu0
    %v3142 = vadd.f32 0.0, %v3141
    %v3143 = vpop.f32.mrb[0].mxu0
    %3144 = vmatprep.mubr.bf16.mxu0 0
    %3145 = vmatmul.mubr.bf16.gmra.mrb[0].mxu0 %v1931
    %v3146 = vpop.f32.mrb[0].mxu0
    %v3147 = vadd.f32 0.0, %v3146
    %v3148 = vpop.f32.mrb[0].mxu0
    %v3149 = vpop.f32.mrb[0].mxu0
    %v3150 = vadd.f32 0.0, %v3149
    %v3151 = vpop.f32.mrb[0].mxu0
    %3152 = vmatprep.mubr.bf16.mxu0 0
    %3153 = vmatmul.mubr.bf16.gmra.mrb[0].mxu0 %v1934
    %v3154 = vpop.f32.mrb[0].mxu0
    %v3155 = vadd.f32 0.0, %v3154
    %v3156 = vpop.f32.mrb[0].mxu0
    %v3157 = vpop.f32.mrb[0].mxu0
    %v3158 = vadd.f32 0.0, %v3157
    %v3159 = vpop.f32.mrb[0].mxu0
    %3160 = vmatprep.mubr.bf16.mxu0 0
    %3161 = vmatmul.mubr.bf16.gmra.mrb[0].mxu0 %v1937
    %v3162 = vpop.f32.mrb[0].mxu0
    %v3163 = vadd.f32 0.0, %v3162
    %v3164 = vpop.f32.mrb[0].mxu0
    %v3165 = vpop.f32.mrb[0].mxu0
    %v3166 = vadd.f32 0.0, %v3165
    %v3167 = vpop.f32.mrb[0].mxu0
    %3168 = vmatprep.mubr.bf16.mxu0 0
    %3169 = vmatmul.mubr.bf16.gmra.mrb[0].mxu0 %v1940
    %v3170 = vpop.f32.mrb[0].mxu0
    %v3171 = vadd.f32 0.0, %v3170
    %v3172 = vpop.f32.mrb[0].mxu0
    %v3173 = vpop.f32.mrb[0].mxu0
    %v3174 = vadd.f32 0.0, %v3173
    %v3175 = vpop.f32.mrb[0].mxu0
    %3176 = vmatprep.mubr.bf16.mxu0 0
    %3177 = vmatmul.mubr.bf16.gmra.mrb[0].mxu0 %v1943
    %v3178 = vpop.f32.mrb[0].mxu0
    %v3179 = vadd.f32 0.0, %v3178
    %v3180 = vpop.f32.mrb[0].mxu0
    %v3181 = vpop.f32.mrb[0].mxu0
    %v3182 = vadd.f32 0.0, %v3181
    %v3183 = vpop.f32.mrb[0].mxu0
    %3184 = vmatprep.mubr.bf16.mxu0 0
    %3185 = vmatmul.mubr.bf16.gmra.mrb[0].mxu0 %v1946
    %v3186 = vpop.f32.mrb[0].mxu0
    %v3187 = vadd.f32 0.0, %v3186
    %v3188 = vpop.f32.mrb[0].mxu0
    %v3189 = vpop.f32.mrb[0].mxu0
    %v3190 = vadd.f32 0.0, %v3189
    %v3191 = vpop.f32.mrb[0].mxu0
    %3192 = vmatprep.mubr.bf16.mxu0 0
    %3193 = vmatmul.mubr.bf16.gmra.mrb[0].mxu0 %v1949
    %v3194 = vpop.f32.mrb[0].mxu0
    %v3195 = vadd.f32 0.0, %v3194
    %v3196 = vpop.f32.mrb[0].mxu0
    %v3197 = vpop.f32.mrb[0].mxu0
    %v3198 = vadd.f32 0.0, %v3197
    %v3199 = vpop.f32.mrb[0].mxu0
    %3200 = vmatprep.mubr.bf16.mxu0 0
    %3201 = vmatmul.mubr.bf16.gmra.mrb[0].mxu0 %v1952
    %v3202 = vpop.f32.mrb[0].mxu0
    %v3203 = vadd.f32 0.0, %v3202
    %v3204 = vpop.f32.mrb[0].mxu0
    %v3205 = vpop.f32.mrb[0].mxu0
    %v3206 = vadd.f32 0.0, %v3205
    %v3207 = vpop.f32.mrb[0].mxu0
    %3208 = vmatprep.mubr.bf16.mxu0 0
    %3209 = vmatmul.mubr.bf16.gmra.mrb[0].mxu0 %v1955
    %v3210 = vpop.f32.mrb[0].mxu0
    %v3211 = vadd.f32 0.0, %v3210
    %v3212 = vpop.f32.mrb[0].mxu0
    %v3213 = vpop.f32.mrb[0].mxu0
    %v3214 = vadd.f32 0.0, %v3213
    %v3215 = vpop.f32.mrb[0].mxu0
    %3216 = vmatprep.mubr.bf16.mxu0 0
    %3217 = vmatmul.mubr.bf16.gmra.mrb[0].mxu0 %v1958
    %v3218 = vpop.f32.mrb[0].mxu0
    %v3219 = vadd.f32 0.0, %v3218
    %v3220 = vpop.f32.mrb[0].mxu0
    %v3221 = vpop.f32.mrb[0].mxu0
    %v3222 = vadd.f32 0.0, %v3221
    %v3223 = vpop.f32.mrb[0].mxu0
    %3224 = vdwg.mxu0
    %v3226 = vrot.slane %v2378, 7
    %vm3323 = vcmask 1040384
    %v3324 = vrot.slane %v1999, 7
    %v3325 = vrot.slane %v2002, 7
    %v3326 = vsel %vm3323, %v3324, %v3325
    %v3327 = vrot.slane %v2007, 7
    %v3328 = vsel %vm3323, %v3325, %v3327
    %v3329 = vrot.slane %v2010, 7
    %v3330 = vsel %vm3323, %v3327, %v3329
    %v3331 = vrot.slane %v2015, 7
    %v3332 = vsel %vm3323, %v3329, %v3331
    %v3333 = vrot.slane %v2018, 7
    %v3334 = vsel %vm3323, %v3331, %v3333
    %v3335 = vrot.slane %v2023, 7
    %v3336 = vsel %vm3323, %v3333, %v3335
    %v3337 = vrot.slane %v2026, 7
    %v3338 = vsel %vm3323, %v3335, %v3337
    %v3339 = vrot.slane %v2031, 7
    %v3340 = vsel %vm3323, %v3337, %v3339
    %v3341 = vrot.slane %v2034, 7
    %v3342 = vsel %vm3323, %v3339, %v3341
    %v3343 = vrot.slane %v2039, 7
    %v3344 = vsel %vm3323, %v3341, %v3343
    %v3345 = vrot.slane %v2042, 7
    %v3346 = vsel %vm3323, %v3343, %v3345
    %v3347 = vrot.slane %v2047, 7
    %v3348 = vsel %vm3323, %v3345, %v3347
    %v3349 = vrot.slane %v2050, 7
    %v3350 = vsel %vm3323, %v3347, %v3349
    %v3351 = vrot.slane %v2055, 7
    %v3352 = vsel %vm3323, %v3349, %v3351
    %v3353 = vrot.slane %v2058, 7
    %v3354 = vsel %vm3323, %v3351, %v3353
    %v3355 = vrot.slane %v2063, 7
    %v3356 = vsel %vm3323, %v3353, %v3355
    %v3357 = vrot.slane %v2066, 7
    %v3358 = vsel %vm3323, %v3355, %v3357
    %v3359 = vrot.slane %v2071, 7
    %v3360 = vsel %vm3323, %v3357, %v3359
    %v3361 = vrot.slane %v2074, 7
    %v3362 = vsel %vm3323, %v3359, %v3361
    %v3363 = vrot.slane %v2079, 7
    %v3364 = vsel %vm3323, %v3361, %v3363
    %v3365 = vrot.slane %v2082, 7
    %v3366 = vsel %vm3323, %v3363, %v3365
    %v3367 = vrot.slane %v2087, 7
    %v3368 = vsel %vm3323, %v3365, %v3367
    %v3369 = vrot.slane %v2090, 7
    %v3370 = vsel %vm3323, %v3367, %v3369
    %v3371 = vrot.slane %v2095, 7
    %v3372 = vsel %vm3323, %v3369, %v3371
    %v3373 = vrot.slane %v2098, 7
    %v3374 = vsel %vm3323, %v3371, %v3373
    %v3375 = vrot.slane %v2103, 7
    %v3376 = vsel %vm3323, %v3373, %v3375
    %v3377 = vrot.slane %v2106, 7
    %v3378 = vsel %vm3323, %v3375, %v3377
    %v3379 = vrot.slane %v2111, 7
    %v3380 = vsel %vm3323, %v3377, %v3379
    %v3381 = vrot.slane %v2114, 7
    %v3382 = vsel %vm3323, %v3379, %v3381
    %v3383 = vrot.slane %v2119, 7
    %v3384 = vsel %vm3323, %v3381, %v3383
    %v3385 = vrot.slane %v2122, 7
    %v3386 = vsel %vm3323, %v3383, %v3385
    %v3387 = vrot.slane %v2127, 7
    %v3388 = vsel %vm3323, %v3385, %v3387
    %v3389 = vrot.slane %v2130, 7
    %v3390 = vsel %vm3323, %v3387, %v3389
    %v3391 = vrot.slane %v2135, 7
    %v3392 = vsel %vm3323, %v3389, %v3391
    %v3393 = vrot.slane %v2138, 7
    %v3394 = vsel %vm3323, %v3391, %v3393
    %v3395 = vrot.slane %v2143, 7
    %v3396 = vsel %vm3323, %v3393, %v3395
    %v3397 = vrot.slane %v2146, 7
    %v3398 = vsel %vm3323, %v3395, %v3397
    %v3399 = vrot.slane %v2151, 7
    %v3400 = vsel %vm3323, %v3397, %v3399
    %v3401 = vrot.slane %v2154, 7
    %v3402 = vsel %vm3323, %v3399, %v3401
    %v3403 = vrot.slane %v2159, 7
    %v3404 = vsel %vm3323, %v3401, %v3403
    %v3405 = vrot.slane %v2162, 7
    %v3406 = vsel %vm3323, %v3403, %v3405
    %v3407 = vrot.slane %v2167, 7
    %v3408 = vsel %vm3323, %v3405, %v3407
    %v3409 = vrot.slane %v2170, 7
    %v3410 = vsel %vm3323, %v3407, %v3409
    %v3411 = vrot.slane %v2175, 7
    %v3412 = vsel %vm3323, %v3409, %v3411
    %v3413 = vrot.slane %v2178, 7
    %v3414 = vsel %vm3323, %v3411, %v3413
    %v3415 = vrot.slane %v2183, 7
    %v3416 = vsel %vm3323, %v3413, %v3415
    %v3417 = vrot.slane %v2186, 7
    %v3418 = vsel %vm3323, %v3415, %v3417
    %v3419 = vrot.slane %v2191, 7
    %v3420 = vsel %vm3323, %v3417, %v3419
    %v3421 = vrot.slane %v2194, 7
    %v3422 = vsel %vm3323, %v3419, %v3421
    %v3423 = vrot.slane %v2199, 7
    %v3424 = vsel %vm3323, %v3421, %v3423
    %v3425 = vrot.slane %v2202, 7
    %v3426 = vsel %vm3323, %v3423, %v3425
    %v3427 = vrot.slane %v2207, 7
    %v3428 = vsel %vm3323, %v3425, %v3427
    %v3429 = vrot.slane %v2210, 7
    %v3430 = vsel %vm3323, %v3427, %v3429
    %v3431 = vrot.slane %v2215, 7
    %v3432 = vsel %vm3323, %v3429, %v3431
    %v3433 = vrot.slane %v2218, 7
    %v3434 = vsel %vm3323, %v3431, %v3433
    %v3435 = vrot.slane %v2223, 7
    %v3436 = vsel %vm3323, %v3433, %v3435
    %v3437 = vrot.slane %v2226, 7
    %v3438 = vsel %vm3323, %v3435, %v3437
    %v3439 = vrot.slane %v2231, 7
    %v3440 = vsel %vm3323, %v3437, %v3439
    %v3441 = vrot.slane %v2234, 7
    %v3442 = vsel %vm3323, %v3439, %v3441
    %v3443 = vrot.slane %v2239, 7
    %v3444 = vsel %vm3323, %v3441, %v3443
    %v3445 = vrot.slane %v2242, 7
    %v3446 = vsel %vm3323, %v3443, %v3445
    %v3447 = vrot.slane %v2247, 7
    %v3448 = vsel %vm3323, %v3445, %v3447
    %v3449 = vrot.slane %v2250, 7
    %v3450 = vsel %vm3323, %v3447, %v3449
    %v3451 = vrot.slane %v2255, 7
    %v3452 = vsel %vm3323, %v3449, %v3451
    %v3453 = vrot.slane %v2258, 7
    %v3454 = vsel %vm3323, %v3451, %v3453
    %v3455 = vrot.slane %v2263, 7
    %v3456 = vsel %vm3323, %v3453, %v3455
    %v3457 = vrot.slane %v2266, 7
    %v3458 = vsel %vm3323, %v3455, %v3457
    %v3459 = vrot.slane %v2271, 7
    %v3460 = vsel %vm3323, %v3457, %v3459
    %v3461 = vrot.slane %v2274, 7
    %v3462 = vsel %vm3323, %v3459, %v3461
    %v3463 = vrot.slane %v2279, 7
    %v3464 = vsel %vm3323, %v3461, %v3463
    %v3465 = vrot.slane %v2282, 7
    %v3466 = vsel %vm3323, %v3463, %v3465
    %v3467 = vrot.slane %v2287, 7
    %v3468 = vsel %vm3323, %v3465, %v3467
    %v3469 = vrot.slane %v2290, 7
    %v3470 = vsel %vm3323, %v3467, %v3469
    %v3471 = vrot.slane %v2295, 7
    %v3472 = vsel %vm3323, %v3469, %v3471
    %v3473 = vrot.slane %v2298, 7
    %v3474 = vsel %vm3323, %v3471, %v3473
    %v3475 = vrot.slane %v2303, 7
    %v3476 = vsel %vm3323, %v3473, %v3475
    %v3477 = vrot.slane %v2306, 7
    %v3478 = vsel %vm3323, %v3475, %v3477
    %v3479 = vrot.slane %v2311, 7
    %v3480 = vsel %vm3323, %v3477, %v3479
    %v3481 = vrot.slane %v2314, 7
    %v3482 = vsel %vm3323, %v3479, %v3481
    %v3483 = vrot.slane %v2319, 7
    %v3484 = vsel %vm3323, %v3481, %v3483
    %v3485 = vrot.slane %v2322, 7
    %v3486 = vsel %vm3323, %v3483, %v3485
    %v3487 = vrot.slane %v2327, 7
    %v3488 = vsel %vm3323, %v3485, %v3487
    %v3489 = vrot.slane %v2330, 7
    %v3490 = vsel %vm3323, %v3487, %v3489
    %v3491 = vrot.slane %v2335, 7
    %v3492 = vsel %vm3323, %v3489, %v3491
    %v3493 = vrot.slane %v2338, 7
    %v3494 = vsel %vm3323, %v3491, %v3493
    %v3495 = vrot.slane %v2343, 7
    %v3496 = vsel %vm3323, %v3493, %v3495
    %v3497 = vrot.slane %v2346, 7
    %v3498 = vsel %vm3323, %v3495, %v3497
    %v3499 = vrot.slane %v2351, 7
    %v3500 = vsel %vm3323, %v3497, %v3499
    %v3501 = vrot.slane %v2354, 7
    %v3502 = vsel %vm3323, %v3499, %v3501
    %v3503 = vrot.slane %v2359, 7
    %v3504 = vsel %vm3323, %v3501, %v3503
    %v3505 = vrot.slane %v2362, 7
    %v3506 = vsel %vm3323, %v3503, %v3505
    %v3507 = vrot.slane %v2367, 7
    %v3508 = vsel %vm3323, %v3505, %v3507
    %v3509 = vrot.slane %v2370, 7
    %v3510 = vsel %vm3323, %v3507, %v3509
    %v3511 = vrot.slane %v2375, 7
    %v3512 = vsel %vm3323, %v3509, %v3511
    %v3513 = vsel %vm3323, %v3511, %v3226
    %v3610 = vsel %vm3323, %v3226, %v3324
    %v3611 = vadd.f32 %v3610, %v2421
    %v3612 = vadd.f32 %v3326, %v2424
    %v3613 = vadd.f32 %v3328, %v2429
    %v3614 = vadd.f32 %v3330, %v2432
    %v3615 = vadd.f32 %v3332, %v2437
    %v3616 = vadd.f32 %v3334, %v2440
    %v3617 = vadd.f32 %v3336, %v2445
    %v3618 = vadd.f32 %v3338, %v2448
    %v3619 = vadd.f32 %v3340, %v2453
    %v3620 = vadd.f32 %v3342, %v2456
    %v3621 = vadd.f32 %v3344, %v2461
    %v3622 = vadd.f32 %v3346, %v2464
    %v3623 = vadd.f32 %v3348, %v2469
    %v3624 = vadd.f32 %v3350, %v2472
    %v3625 = vadd.f32 %v3352, %v2477
    %v3626 = vadd.f32 %v3354, %v2480
    %v3627 = vadd.f32 %v3356, %v2485
    %v3628 = vadd.f32 %v3358, %v2488
    %v3629 = vadd.f32 %v3360, %v2493
    %v3630 = vadd.f32 %v3362, %v2496
    %v3631 = vadd.f32 %v3364, %v2501
    %v3632 = vadd.f32 %v3366, %v2504
    %v3633 = vadd.f32 %v3368, %v2509
    %v3634 = vadd.f32 %v3370, %v2512
    %v3635 = vadd.f32 %v3372, %v2517
    %v3636 = vadd.f32 %v3374, %v2520
    %v3637 = vadd.f32 %v3376, %v2525
    %v3638 = vadd.f32 %v3378, %v2528
    %v3639 = vadd.f32 %v3380, %v2533
    %v3640 = vadd.f32 %v3382, %v2536
    %v3641 = vadd.f32 %v3384, %v2541
    %v3642 = vadd.f32 %v3386, %v2544
    %v3643 = vadd.f32 %v3388, %v2549
    %v3644 = vadd.f32 %v3390, %v2552
    %v3645 = vadd.f32 %v3392, %v2557
    %v3646 = vadd.f32 %v3394, %v2560
    %v3647 = vadd.f32 %v3396, %v2565
    %v3648 = vadd.f32 %v3398, %v2568
    %v3649 = vadd.f32 %v3400, %v2573
    %v3650 = vadd.f32 %v3402, %v2576
    %v3651 = vadd.f32 %v3404, %v2581
    %v3652 = vadd.f32 %v3406, %v2584
    %v3653 = vadd.f32 %v3408, %v2589
    %v3654 = vadd.f32 %v3410, %v2592
    %v3655 = vadd.f32 %v3412, %v2597
    %v3656 = vadd.f32 %v3414, %v2600
    %v3657 = vadd.f32 %v3416, %v2605
    %v3658 = vadd.f32 %v3418, %v2608
    %v3659 = vadd.f32 %v3420, %v2613
    %v3660 = vadd.f32 %v3422, %v2616
    %v3661 = vadd.f32 %v3424, %v2621
    %v3662 = vadd.f32 %v3426, %v2624
    %v3663 = vadd.f32 %v3428, %v2629
    %v3664 = vadd.f32 %v3430, %v2632
    %v3665 = vadd.f32 %v3432, %v2637
    %v3666 = vadd.f32 %v3434, %v2640
    %v3667 = vadd.f32 %v3436, %v2645
    %v3668 = vadd.f32 %v3438, %v2648
    %v3669 = vadd.f32 %v3440, %v2653
    %v3670 = vadd.f32 %v3442, %v2656
    %v3671 = vadd.f32 %v3444, %v2661
    %v3672 = vadd.f32 %v3446, %v2664
    %v3673 = vadd.f32 %v3448, %v2669
    %v3674 = vadd.f32 %v3450, %v2672
    %v3675 = vadd.f32 %v3452, %v2677
    %v3676 = vadd.f32 %v3454, %v2680
    %v3677 = vadd.f32 %v3456, %v2685
    %v3678 = vadd.f32 %v3458, %v2688
    %v3679 = vadd.f32 %v3460, %v2693
    %v3680 = vadd.f32 %v3462, %v2696
    %v3681 = vadd.f32 %v3464, %v2701
    %v3682 = vadd.f32 %v3466, %v2704
    %v3683 = vadd.f32 %v3468, %v2709
    %v3684 = vadd.f32 %v3470, %v2712
    %v3685 = vadd.f32 %v3472, %v2717
    %v3686 = vadd.f32 %v3474, %v2720
    %v3687 = vadd.f32 %v3476, %v2725
    %v3688 = vadd.f32 %v3478, %v2728
    %v3689 = vadd.f32 %v3480, %v2733
    %v3690 = vadd.f32 %v3482, %v2736
    %v3691 = vadd.f32 %v3484, %v2741
    %v3692 = vadd.f32 %v3486, %v2744
    %v3693 = vadd.f32 %v3488, %v2749
    %v3694 = vadd.f32 %v3490, %v2752
    %v3695 = vadd.f32 %v3492, %v2757
    %v3696 = vadd.f32 %v3494, %v2760
    %v3697 = vadd.f32 %v3496, %v2765
    %v3698 = vadd.f32 %v3498, %v2768
    %v3699 = vadd.f32 %v3500, %v2773
    %v3700 = vadd.f32 %v3502, %v2776
    %v3701 = vadd.f32 %v3504, %v2781
    %v3702 = vadd.f32 %v3506, %v2784
    %v3703 = vadd.f32 %v3508, %v2789
    %v3704 = vadd.f32 %v3510, %v2792
    %v3705 = vadd.f32 %v3512, %v2797
    %v3706 = vadd.f32 %v3513, %v2800
    %vm3803 = vcmask 1046528
    %v3804 = vrot.slane %v2843, 1
    %v3805 = vrot.slane %v2846, 1
    %v3806 = vsel %vm3803, %v3804, %v3805
    %v3807 = vrot.slane %v2851, 1
    %v3808 = vsel %vm3803, %v3805, %v3807
    %v3809 = vrot.slane %v2854, 1
    %v3810 = vsel %vm3803, %v3807, %v3809
    %v3811 = vrot.slane %v2859, 1
    %v3812 = vsel %vm3803, %v3809, %v3811
    %v3813 = vrot.slane %v2862, 1
    %v3814 = vsel %vm3803, %v3811, %v3813
    %v3815 = vrot.slane %v2867, 1
    %v3816 = vsel %vm3803, %v3813, %v3815
    %v3817 = vrot.slane %v2870, 1
    %v3818 = vsel %vm3803, %v3815, %v3817
    %v3819 = vrot.slane %v2875, 1
    %v3820 = vsel %vm3803, %v3817, %v3819
    %v3821 = vrot.slane %v2878, 1
    %v3822 = vsel %vm3803, %v3819, %v3821
    %v3823 = vrot.slane %v2883, 1
    %v3824 = vsel %vm3803, %v3821, %v3823
    %v3825 = vrot.slane %v2886, 1
    %v3826 = vsel %vm3803, %v3823, %v3825
    %v3827 = vrot.slane %v2891, 1
    %v3828 = vsel %vm3803, %v3825, %v3827
    %v3829 = vrot.slane %v2894, 1
    %v3830 = vsel %vm3803, %v3827, %v3829
    %v3831 = vrot.slane %v2899, 1
    %v3832 = vsel %vm3803, %v3829, %v3831
    %v3833 = vrot.slane %v2902, 1
    %v3834 = vsel %vm3803, %v3831, %v3833
    %v3835 = vrot.slane %v2907, 1
    %v3836 = vsel %vm3803, %v3833, %v3835
    %v3837 = vrot.slane %v2910, 1
    %v3838 = vsel %vm3803, %v3835, %v3837
    %v3839 = vrot.slane %v2915, 1
    %v3840 = vsel %vm3803, %v3837, %v3839
    %v3841 = vrot.slane %v2918, 1
    %v3842 = vsel %vm3803, %v3839, %v3841
    %v3843 = vrot.slane %v2923, 1
    %v3844 = vsel %vm3803, %v3841, %v3843
    %v3845 = vrot.slane %v2926, 1
    %v3846 = vsel %vm3803, %v3843, %v3845
    %v3847 = vrot.slane %v2931, 1
    %v3848 = vsel %vm3803, %v3845, %v3847
    %v3849 = vrot.slane %v2934, 1
    %v3850 = vsel %vm3803, %v3847, %v3849
    %v3851 = vrot.slane %v2939, 1
    %v3852 = vsel %vm3803, %v3849, %v3851
    %v3853 = vrot.slane %v2942, 1
    %v3854 = vsel %vm3803, %v3851, %v3853
    %v3855 = vrot.slane %v2947, 1
    %v3856 = vsel %vm3803, %v3853, %v3855
    %v3857 = vrot.slane %v2950, 1
    %v3858 = vsel %vm3803, %v3855, %v3857
    %v3859 = vrot.slane %v2955, 1
    %v3860 = vsel %vm3803, %v3857, %v3859
    %v3861 = vrot.slane %v2958, 1
    %v3862 = vsel %vm3803, %v3859, %v3861
    %v3863 = vrot.slane %v2963, 1
    %v3864 = vsel %vm3803, %v3861, %v3863
    %v3865 = vrot.slane %v2966, 1
    %v3866 = vsel %vm3803, %v3863, %v3865
    %v3867 = vrot.slane %v2971, 1
    %v3868 = vsel %vm3803, %v3865, %v3867
    %v3869 = vrot.slane %v2974, 1
    %v3870 = vsel %vm3803, %v3867, %v3869
    %v3871 = vrot.slane %v2979, 1
    %v3872 = vsel %vm3803, %v3869, %v3871
    %v3873 = vrot.slane %v2982, 1
    %v3874 = vsel %vm3803, %v3871, %v3873
    %v3875 = vrot.slane %v2987, 1
    %v3876 = vsel %vm3803, %v3873, %v3875
    %v3877 = vrot.slane %v2990, 1
    %v3878 = vsel %vm3803, %v3875, %v3877
    %v3879 = vrot.slane %v2995, 1
    %v3880 = vsel %vm3803, %v3877, %v3879
    %v3881 = vrot.slane %v2998, 1
    %v3882 = vsel %vm3803, %v3879, %v3881
    %v3883 = vrot.slane %v3003, 1
    %v3884 = vsel %vm3803, %v3881, %v3883
    %v3885 = vrot.slane %v3006, 1
    %v3886 = vsel %vm3803, %v3883, %v3885
    %v3887 = vrot.slane %v3011, 1
    %v3888 = vsel %vm3803, %v3885, %v3887
    %v3889 = vrot.slane %v3014, 1
    %v3890 = vsel %vm3803, %v3887, %v3889
    %v3891 = vrot.slane %v3019, 1
    %v3892 = vsel %vm3803, %v3889, %v3891
    %v3893 = vrot.slane %v3022, 1
    %v3894 = vsel %vm3803, %v3891, %v3893
    %v3895 = vrot.slane %v3027, 1
    %v3896 = vsel %vm3803, %v3893, %v3895
    %v3897 = vrot.slane %v3030, 1
    %v3898 = vsel %vm3803, %v3895, %v3897
    %v3899 = vrot.slane %v3035, 1
    %v3900 = vsel %vm3803, %v3897, %v3899
    %v3901 = vrot.slane %v3038, 1
    %v3902 = vsel %vm3803, %v3899, %v3901
    %v3903 = vrot.slane %v3043, 1
    %v3904 = vsel %vm3803, %v3901, %v3903
    %v3905 = vrot.slane %v3046, 1
    %v3906 = vsel %vm3803, %v3903, %v3905
    %v3907 = vrot.slane %v3051, 1
    %v3908 = vsel %vm3803, %v3905, %v3907
    %v3909 = vrot.slane %v3054, 1
    %v3910 = vsel %vm3803, %v3907, %v3909
    %v3911 = vrot.slane %v3059, 1
    %v3912 = vsel %vm3803, %v3909, %v3911
    %v3913 = vrot.slane %v3062, 1
    %v3914 = vsel %vm3803, %v3911, %v3913
    %v3915 = vrot.slane %v3067, 1
    %v3916 = vsel %vm3803, %v3913, %v3915
    %v3917 = vrot.slane %v3070, 1
    %v3918 = vsel %vm3803, %v3915, %v3917
    %v3919 = vrot.slane %v3075, 1
    %v3920 = vsel %vm3803, %v3917, %v3919
    %v3921 = vrot.slane %v3078, 1
    %v3922 = vsel %vm3803, %v3919, %v3921
    %v3923 = vrot.slane %v3083, 1
    %v3924 = vsel %vm3803, %v3921, %v3923
    %v3925 = vrot.slane %v3086, 1
    %v3926 = vsel %vm3803, %v3923, %v3925
    %v3927 = vrot.slane %v3091, 1
    %v3928 = vsel %vm3803, %v3925, %v3927
    %v3929 = vrot.slane %v3094, 1
    %v3930 = vsel %vm3803, %v3927, %v3929
    %v3931 = vrot.slane %v3099, 1
    %v3932 = vsel %vm3803, %v3929, %v3931
    %v3933 = vrot.slane %v3102, 1
    %v3934 = vsel %vm3803, %v3931, %v3933
    %v3935 = vrot.slane %v3107, 1
    %v3936 = vsel %vm3803, %v3933, %v3935
    %v3937 = vrot.slane %v3110, 1
    %v3938 = vsel %vm3803, %v3935, %v3937
    %v3939 = vrot.slane %v3115, 1
    %v3940 = vsel %vm3803, %v3937, %v3939
    %v3941 = vrot.slane %v3118, 1
    %v3942 = vsel %vm3803, %v3939, %v3941
    %v3943 = vrot.slane %v3123, 1
    %v3944 = vsel %vm3803, %v3941, %v3943
    %v3945 = vrot.slane %v3126, 1
    %v3946 = vsel %vm3803, %v3943, %v3945
    %v3947 = vrot.slane %v3131, 1
    %v3948 = vsel %vm3803, %v3945, %v3947
    %v3949 = vrot.slane %v3134, 1
    %v3950 = vsel %vm3803, %v3947, %v3949
    %v3951 = vrot.slane %v3139, 1
    %v3952 = vsel %vm3803, %v3949, %v3951
    %v3953 = vrot.slane %v3142, 1
    %v3954 = vsel %vm3803, %v3951, %v3953
    %v3955 = vrot.slane %v3147, 1
    %v3956 = vsel %vm3803, %v3953, %v3955
    %v3957 = vrot.slane %v3150, 1
    %v3958 = vsel %vm3803, %v3955, %v3957
    %v3959 = vrot.slane %v3155, 1
    %v3960 = vsel %vm3803, %v3957, %v3959
    %v3961 = vrot.slane %v3158, 1
    %v3962 = vsel %vm3803, %v3959, %v3961
    %v3963 = vrot.slane %v3163, 1
    %v3964 = vsel %vm3803, %v3961, %v3963
    %v3965 = vrot.slane %v3166, 1
    %v3966 = vsel %vm3803, %v3963, %v3965
    %v3967 = vrot.slane %v3171, 1
    %v3968 = vsel %vm3803, %v3965, %v3967
    %v3969 = vrot.slane %v3174, 1
    %v3970 = vsel %vm3803, %v3967, %v3969
    %v3971 = vrot.slane %v3179, 1
    %v3972 = vsel %vm3803, %v3969, %v3971
    %v3973 = vrot.slane %v3182, 1
    %v3974 = vsel %vm3803, %v3971, %v3973
    %v3975 = vrot.slane %v3187, 1
    %v3976 = vsel %vm3803, %v3973, %v3975
    %v3977 = vrot.slane %v3190, 1
    %v3978 = vsel %vm3803, %v3975, %v3977
    %v3979 = vrot.slane %v3195, 1
    %v3980 = vsel %vm3803, %v3977, %v3979
    %v3981 = vrot.slane %v3198, 1
    %v3982 = vsel %vm3803, %v3979, %v3981
    %v3983 = vrot.slane %v3203, 1
    %v3984 = vsel %vm3803, %v3981, %v3983
    %v3985 = vrot.slane %v3206, 1
    %v3986 = vsel %vm3803, %v3983, %v3985
    %v3987 = vrot.slane %v3211, 1
    %v3988 = vsel %vm3803, %v3985, %v3987
    %v3989 = vrot.slane %v3214, 1
    %v3990 = vsel %vm3803, %v3987, %v3989
    %v3991 = vrot.slane %v3219, 1
    %v3992 = vsel %vm3803, %v3989, %v3991
    %v3993 = vrot.slane %v3222, 1
    %v3994 = vsel %vm3803, %v3991, %v3993
    %v4092 = vsel %vm3803, %v3993, %v3804
    %v4093 = vadd.f32 %v3611, %v3806
    %v4094 = vadd.f32 %v3612, %v3808
    %v4095 = vadd.f32 %v3613, %v3810
    %v4096 = vadd.f32 %v3614, %v3812
    %v4097 = vadd.f32 %v3615, %v3814
    %v4098 = vadd.f32 %v3616, %v3816
    %v4099 = vadd.f32 %v3617, %v3818
    %v4100 = vadd.f32 %v3618, %v3820
    %v4101 = vadd.f32 %v3619, %v3822
    %v4102 = vadd.f32 %v3620, %v3824
    %v4103 = vadd.f32 %v3621, %v3826
    %v4104 = vadd.f32 %v3622, %v3828
    %v4105 = vadd.f32 %v3623, %v3830
    %v4106 = vadd.f32 %v3624, %v3832
    %v4107 = vadd.f32 %v3625, %v3834
    %v4108 = vadd.f32 %v3626, %v3836
    %v4109 = vadd.f32 %v3627, %v3838
    %v4110 = vadd.f32 %v3628, %v3840
    %v4111 = vadd.f32 %v3629, %v3842
    %v4112 = vadd.f32 %v3630, %v3844
    %v4113 = vadd.f32 %v3631, %v3846
    %v4114 = vadd.f32 %v3632, %v3848
    %v4115 = vadd.f32 %v3633, %v3850
    %v4116 = vadd.f32 %v3634, %v3852
    %v4117 = vadd.f32 %v3635, %v3854
    %v4118 = vadd.f32 %v3636, %v3856
    %v4119 = vadd.f32 %v3637, %v3858
    %v4120 = vadd.f32 %v3638, %v3860
    %v4121 = vadd.f32 %v3639, %v3862
    %v4122 = vadd.f32 %v3640, %v3864
    %v4123 = vadd.f32 %v3641, %v3866
    %v4124 = vadd.f32 %v3642, %v3868
    %v4125 = vadd.f32 %v3643, %v3870
    %v4126 = vadd.f32 %v3644, %v3872
    %v4127 = vadd.f32 %v3645, %v3874
    %v4128 = vadd.f32 %v3646, %v3876
    %v4129 = vadd.f32 %v3647, %v3878
    %v4130 = vadd.f32 %v3648, %v3880
    %v4131 = vadd.f32 %v3649, %v3882
    %v4132 = vadd.f32 %v3650, %v3884
    %v4133 = vadd.f32 %v3651, %v3886
    %v4134 = vadd.f32 %v3652, %v3888
    %v4135 = vadd.f32 %v3653, %v3890
    %v4136 = vadd.f32 %v3654, %v3892
    %v4137 = vadd.f32 %v3655, %v3894
    %v4138 = vadd.f32 %v3656, %v3896
    %v4139 = vadd.f32 %v3657, %v3898
    %v4140 = vadd.f32 %v3658, %v3900
    %v4141 = vadd.f32 %v3659, %v3902
    %v4142 = vadd.f32 %v3660, %v3904
    %v4143 = vadd.f32 %v3661, %v3906
    %v4144 = vadd.f32 %v3662, %v3908
    %v4145 = vadd.f32 %v3663, %v3910
    %v4146 = vadd.f32 %v3664, %v3912
    %v4147 = vadd.f32 %v3665, %v3914
    %v4148 = vadd.f32 %v3666, %v3916
    %v4149 = vadd.f32 %v3667, %v3918
    %v4150 = vadd.f32 %v3668, %v3920
    %v4151 = vadd.f32 %v3669, %v3922
    %v4152 = vadd.f32 %v3670, %v3924
    %v4153 = vadd.f32 %v3671, %v3926
    %v4154 = vadd.f32 %v3672, %v3928
    %v4155 = vadd.f32 %v3673, %v3930
    %v4156 = vadd.f32 %v3674, %v3932
    %v4157 = vadd.f32 %v3675, %v3934
    %v4158 = vadd.f32 %v3676, %v3936
    %v4159 = vadd.f32 %v3677, %v3938
    %v4160 = vadd.f32 %v3678, %v3940
    %v4161 = vadd.f32 %v3679, %v3942
    %v4162 = vadd.f32 %v3680, %v3944
    %v4163 = vadd.f32 %v3681, %v3946
    %v4164 = vadd.f32 %v3682, %v3948
    %v4165 = vadd.f32 %v3683, %v3950
    %v4166 = vadd.f32 %v3684, %v3952
    %v4167 = vadd.f32 %v3685, %v3954
    %v4168 = vadd.f32 %v3686, %v3956
    %v4169 = vadd.f32 %v3687, %v3958
    %v4170 = vadd.f32 %v3688, %v3960
    %v4171 = vadd.f32 %v3689, %v3962
    %v4172 = vadd.f32 %v3690, %v3964
    %v4173 = vadd.f32 %v3691, %v3966
    %v4174 = vadd.f32 %v3692, %v3968
    %v4175 = vadd.f32 %v3693, %v3970
    %v4176 = vadd.f32 %v3694, %v3972
    %v4177 = vadd.f32 %v3695, %v3974
    %v4178 = vadd.f32 %v3696, %v3976
    %v4179 = vadd.f32 %v3697, %v3978
    %v4180 = vadd.f32 %v3698, %v3980
    %v4181 = vadd.f32 %v3699, %v3982
    %v4182 = vadd.f32 %v3700, %v3984
    %v4183 = vadd.f32 %v3701, %v3986
    %v4184 = vadd.f32 %v3702, %v3988
    %v4185 = vadd.f32 %v3703, %v3990
    %v4186 = vadd.f32 %v3704, %v3992
    %v4187 = vadd.f32 %v3705, %v3994
    %v4188 = vadd.f32 %v3706, %v4092
    %4189 = vst.msk [vmem:[#allocation3] sm:$0xff] %vm1815, %v4093
    %4190 = vst.msk [vmem:[#allocation3 + $0x8] sm:$0xff] %vm1815, %v4094
    %4191 = vst.msk [vmem:[#allocation3 + $0x10] sm:$0xff] %vm1815, %v4095
    %4192 = vst.msk [vmem:[#allocation3 + $0x18] sm:$0xff] %vm1815, %v4096
    %4193 = vst.msk [vmem:[#allocation3 + $0x20] sm:$0xff] %vm1815, %v4097
    %4194 = vst.msk [vmem:[#allocation3 + $0x28] sm:$0xff] %vm1815, %v4098
    %4195 = vst.msk [vmem:[#allocation3 + $0x30] sm:$0xff] %vm1815, %v4099
    %4196 = vst.msk [vmem:[#allocation3 + $0x38] sm:$0xff] %vm1815, %v4100
    %4197 = vst.msk [vmem:[#allocation3 + $0x40] sm:$0xff] %vm1815, %v4101
    %4198 = vst.msk [vmem:[#allocation3 + $0x48] sm:$0xff] %vm1815, %v4102
    %4199 = vst.msk [vmem:[#allocation3 + $0x50] sm:$0xff] %vm1815, %v4103
    %4200 = vst.msk [vmem:[#allocation3 + $0x58] sm:$0xff] %vm1815, %v4104
    %4201 = vst.msk [vmem:[#allocation3 + $0x60] sm:$0xff] %vm1815, %v4105
    %4202 = vst.msk [vmem:[#allocation3 + $0x68] sm:$0xff] %vm1815, %v4106
    %4203 = vst.msk [vmem:[#allocation3 + $0x70] sm:$0xff] %vm1815, %v4107
    %4204 = vst.msk [vmem:[#allocation3 + $0x78] sm:$0xff] %vm1815, %v4108
    %4205 = vst.msk [vmem:[#allocation3 + $0x80] sm:$0xff] %vm1815, %v4109
    %4206 = vst.msk [vmem:[#allocation3 + $0x88] sm:$0xff] %vm1815, %v4110
    %4207 = vst.msk [vmem:[#allocation3 + $0x90] sm:$0xff] %vm1815, %v4111
    %4208 = vst.msk [vmem:[#allocation3 + $0x98] sm:$0xff] %vm1815, %v4112
    %4209 = vst.msk [vmem:[#allocation3 + $0xa0] sm:$0xff] %vm1815, %v4113
    %4210 = vst.msk [vmem:[#allocation3 + $0xa8] sm:$0xff] %vm1815, %v4114
    %4211 = vst.msk [vmem:[#allocation3 + $0xb0] sm:$0xff] %vm1815, %v4115
    %4212 = vst.msk [vmem:[#allocation3 + $0xb8] sm:$0xff] %vm1815, %v4116
    %4213 = vst.msk [vmem:[#allocation3 + $0xc0] sm:$0xff] %vm1815, %v4117
    %4214 = vst.msk [vmem:[#allocation3 + $0xc8] sm:$0xff] %vm1815, %v4118
    %4215 = vst.msk [vmem:[#allocation3 + $0xd0] sm:$0xff] %vm1815, %v4119
    %4216 = vst.msk [vmem:[#allocation3 + $0xd8] sm:$0xff] %vm1815, %v4120
    %4217 = vst.msk [vmem:[#allocation3 + $0xe0] sm:$0xff] %vm1815, %v4121
    %4218 = vst.msk [vmem:[#allocation3 + $0xe8] sm:$0xff] %vm1815, %v4122
    %4219 = vst.msk [vmem:[#allocation3 + $0xf0] sm:$0xff] %vm1815, %v4123
    %4220 = vst.msk [vmem:[#allocation3 + $0xf8] sm:$0xff] %vm1815, %v4124
    %4221 = vst.msk [vmem:[#allocation3 + $0x100] sm:$0xff] %vm1815, %v4125
    %4222 = vst.msk [vmem:[#allocation3 + $0x108] sm:$0xff] %vm1815, %v4126
    %4223 = vst.msk [vmem:[#allocation3 + $0x110] sm:$0xff] %vm1815, %v4127
    %4224 = vst.msk [vmem:[#allocation3 + $0x118] sm:$0xff] %vm1815, %v4128
    %4225 = vst.msk [vmem:[#allocation3 + $0x120] sm:$0xff] %vm1815, %v4129
    %4226 = vst.msk [vmem:[#allocation3 + $0x128] sm:$0xff] %vm1815, %v4130
    %4227 = vst.msk [vmem:[#allocation3 + $0x130] sm:$0xff] %vm1815, %v4131
    %4228 = vst.msk [vmem:[#allocation3 + $0x138] sm:$0xff] %vm1815, %v4132
    %4229 = vst.msk [vmem:[#allocation3 + $0x140] sm:$0xff] %vm1815, %v4133
    %4230 = vst.msk [vmem:[#allocation3 + $0x148] sm:$0xff] %vm1815, %v4134
    %4231 = vst.msk [vmem:[#allocation3 + $0x150] sm:$0xff] %vm1815, %v4135
    %4232 = vst.msk [vmem:[#allocation3 + $0x158] sm:$0xff] %vm1815, %v4136
    %4233 = vst.msk [vmem:[#allocation3 + $0x160] sm:$0xff] %vm1815, %v4137
    %4234 = vst.msk [vmem:[#allocation3 + $0x168] sm:$0xff] %vm1815, %v4138
    %4235 = vst.msk [vmem:[#allocation3 + $0x170] sm:$0xff] %vm1815, %v4139
    %4236 = vst.msk [vmem:[#allocation3 + $0x178] sm:$0xff] %vm1815, %v4140
    %4237 = vst.msk [vmem:[#allocation3 + $0x180] sm:$0xff] %vm1815, %v4141
    %4238 = vst.msk [vmem:[#allocation3 + $0x188] sm:$0xff] %vm1815, %v4142
    %4239 = vst.msk [vmem:[#allocation3 + $0x190] sm:$0xff] %vm1815, %v4143
    %4240 = vst.msk [vmem:[#allocation3 + $0x198] sm:$0xff] %vm1815, %v4144
    %4241 = vst.msk [vmem:[#allocation3 + $0x1a0] sm:$0xff] %vm1815, %v4145
    %4242 = vst.msk [vmem:[#allocation3 + $0x1a8] sm:$0xff] %vm1815, %v4146
    %4243 = vst.msk [vmem:[#allocation3 + $0x1b0] sm:$0xff] %vm1815, %v4147
    %4244 = vst.msk [vmem:[#allocation3 + $0x1b8] sm:$0xff] %vm1815, %v4148
    %4245 = vst.msk [vmem:[#allocation3 + $0x1c0] sm:$0xff] %vm1815, %v4149
    %4246 = vst.msk [vmem:[#allocation3 + $0x1c8] sm:$0xff] %vm1815, %v4150
    %4247 = vst.msk [vmem:[#allocation3 + $0x1d0] sm:$0xff] %vm1815, %v4151
    %4248 = vst.msk [vmem:[#allocation3 + $0x1d8] sm:$0xff] %vm1815, %v4152
    %4249 = vst.msk [vmem:[#allocation3 + $0x1e0] sm:$0xff] %vm1815, %v4153
    %4250 = vst.msk [vmem:[#allocation3 + $0x1e8] sm:$0xff] %vm1815, %v4154
    %4251 = vst.msk [vmem:[#allocation3 + $0x1f0] sm:$0xff] %vm1815, %v4155
    %4252 = vst.msk [vmem:[#allocation3 + $0x1f8] sm:$0xff] %vm1815, %v4156
    %4253 = vst.msk [vmem:[#allocation3 + $0x200] sm:$0xff] %vm1815, %v4157
    %4254 = vst.msk [vmem:[#allocation3 + $0x208] sm:$0xff] %vm1815, %v4158
    %4255 = vst.msk [vmem:[#allocation3 + $0x210] sm:$0xff] %vm1815, %v4159
    %4256 = vst.msk [vmem:[#allocation3 + $0x218] sm:$0xff] %vm1815, %v4160
    %4257 = vst.msk [vmem:[#allocation3 + $0x220] sm:$0xff] %vm1815, %v4161
    %4258 = vst.msk [vmem:[#allocation3 + $0x228] sm:$0xff] %vm1815, %v4162
    %4259 = vst.msk [vmem:[#allocation3 + $0x230] sm:$0xff] %vm1815, %v4163
    %4260 = vst.msk [vmem:[#allocation3 + $0x238] sm:$0xff] %vm1815, %v4164
    %4261 = vst.msk [vmem:[#allocation3 + $0x240] sm:$0xff] %vm1815, %v4165
    %4262 = vst.msk [vmem:[#allocation3 + $0x248] sm:$0xff] %vm1815, %v4166
    %4263 = vst.msk [vmem:[#allocation3 + $0x250] sm:$0xff] %vm1815, %v4167
    %4264 = vst.msk [vmem:[#allocation3 + $0x258] sm:$0xff] %vm1815, %v4168
    %4265 = vst.msk [vmem:[#allocation3 + $0x260] sm:$0xff] %vm1815, %v4169
    %4266 = vst.msk [vmem:[#allocation3 + $0x268] sm:$0xff] %vm1815, %v4170
    %4267 = vst.msk [vmem:[#allocation3 + $0x270] sm:$0xff] %vm1815, %v4171
    %4268 = vst.msk [vmem:[#allocation3 + $0x278] sm:$0xff] %vm1815, %v4172
    %4269 = vst.msk [vmem:[#allocation3 + $0x280] sm:$0xff] %vm1815, %v4173
    %4270 = vst.msk [vmem:[#allocation3 + $0x288] sm:$0xff] %vm1815, %v4174
    %4271 = vst.msk [vmem:[#allocation3 + $0x290] sm:$0xff] %vm1815, %v4175
    %4272 = vst.msk [vmem:[#allocation3 + $0x298] sm:$0xff] %vm1815, %v4176
    %4273 = vst.msk [vmem:[#allocation3 + $0x2a0] sm:$0xff] %vm1815, %v4177
    %4274 = vst.msk [vmem:[#allocation3 + $0x2a8] sm:$0xff] %vm1815, %v4178
    %4275 = vst.msk [vmem:[#allocation3 + $0x2b0] sm:$0xff] %vm1815, %v4179
    %4276 = vst.msk [vmem:[#allocation3 + $0x2b8] sm:$0xff] %vm1815, %v4180
    %4277 = vst.msk [vmem:[#allocation3 + $0x2c0] sm:$0xff] %vm1815, %v4181
    %4278 = vst.msk [vmem:[#allocation3 + $0x2c8] sm:$0xff] %vm1815, %v4182
    %4279 = vst.msk [vmem:[#allocation3 + $0x2d0] sm:$0xff] %vm1815, %v4183
    %4280 = vst.msk [vmem:[#allocation3 + $0x2d8] sm:$0xff] %vm1815, %v4184
    %4281 = vst.msk [vmem:[#allocation3 + $0x2e0] sm:$0xff] %vm1815, %v4185
    %4282 = vst.msk [vmem:[#allocation3 + $0x2e8] sm:$0xff] %vm1815, %v4186
    %4283 = vst.msk [vmem:[#allocation3 + $0x2f0] sm:$0xff] %vm1815, %v4187
    %4284 = vst.msk [vmem:[#allocation3 + $0x2f8] sm:$0xff] %vm1815, %v4188
    %s4285 = scalar_lea.vmem [#allocation2], 12
    %v4286 = vld [vmem:[%s4285] sm:$0xf]
    %v4287 = vld [vmem:[%s4285 + $0x4] sm:$0xf]
    %v4288 = vld [vmem:[%s4285 + $0x8] sm:$0xf]
    %v4289 = vld [vmem:[%s4285 + $0xc] sm:$0xf]
    %v4290 = vld [vmem:[%s4285 + $0x10] sm:$0xf]
    %v4291 = vld [vmem:[%s4285 + $0x14] sm:$0xf]
    %v4292 = vld [vmem:[%s4285 + $0x18] sm:$0xf]
    %v4293 = vld [vmem:[%s4285 + $0x1c] sm:$0xf]
    %v4294 = vld [vmem:[%s4285 + $0x20] sm:$0xf]
    %v4295 = vld [vmem:[%s4285 + $0x24] sm:$0xf]
    %v4296 = vld [vmem:[%s4285 + $0x28] sm:$0xf]
    %v4297 = vld [vmem:[%s4285 + $0x2c] sm:$0xf]
    %v4298 = vld [vmem:[%s4285 + $0x30] sm:$0xf]
    %v4299 = vld [vmem:[%s4285 + $0x34] sm:$0xf]
    %v4300 = vld [vmem:[%s4285 + $0x38] sm:$0xf]
    %v4301 = vld [vmem:[%s4285 + $0x3c] sm:$0xf]
    %v4302 = vld [vmem:[%s4285 + $0x40] sm:$0xf]
    %v4303 = vld [vmem:[%s4285 + $0x44] sm:$0xf]
    %v4304 = vld [vmem:[%s4285 + $0x48] sm:$0xf]
    %v4305 = vld [vmem:[%s4285 + $0x4c] sm:$0xf]
    %v4306 = vld [vmem:[%s4285 + $0x50] sm:$0xf]
    %v4307 = vld [vmem:[%s4285 + $0x54] sm:$0xf]
    %v4308 = vld [vmem:[%s4285 + $0x58] sm:$0xf]
    %v4309 = vld [vmem:[%s4285 + $0x5c] sm:$0xf]
    %v4310 = vld [vmem:[%s4285 + $0x60] sm:$0xf]
    %v4311 = vld [vmem:[%s4285 + $0x64] sm:$0xf]
    %v4312 = vld [vmem:[%s4285 + $0x68] sm:$0xf]
    %v4313 = vld [vmem:[%s4285 + $0x6c] sm:$0xf]
    %v4314 = vld [vmem:[%s4285 + $0x70] sm:$0xf]
    %v4315 = vld [vmem:[%s4285 + $0x74] sm:$0xf]
    %v4316 = vld [vmem:[%s4285 + $0x78] sm:$0xf]
    %v4317 = vld [vmem:[%s4285 + $0x7c] sm:$0xf]
    %v4318 = vld [vmem:[%s4285 + $0x80] sm:$0xf]
    %v4319 = vld [vmem:[%s4285 + $0x84] sm:$0xf]
    %v4320 = vld [vmem:[%s4285 + $0x88] sm:$0xf]
    %v4321 = vld [vmem:[%s4285 + $0x8c] sm:$0xf]
    %v4322 = vld [vmem:[%s4285 + $0x90] sm:$0xf]
    %v4323 = vld [vmem:[%s4285 + $0x94] sm:$0xf]
    %v4324 = vld [vmem:[%s4285 + $0x98] sm:$0xf]
    %v4325 = vld [vmem:[%s4285 + $0x9c] sm:$0xf]
    %v4326 = vld [vmem:[%s4285 + $0xa0] sm:$0xf]
    %v4327 = vld [vmem:[%s4285 + $0xa4] sm:$0xf]
    %v4328 = vld [vmem:[%s4285 + $0xa8] sm:$0xf]
    %v4329 = vld [vmem:[%s4285 + $0xac] sm:$0xf]
    %v4330 = vld [vmem:[%s4285 + $0xb0] sm:$0xf]
    %v4331 = vld [vmem:[%s4285 + $0xb4] sm:$0xf]
    %v4332 = vld [vmem:[%s4285 + $0xb8] sm:$0xf]
    %v4333 = vld [vmem:[%s4285 + $0xbc] sm:$0xf]
    %v4334 = vld [vmem:[%s4285 + $0xd8] sm:$0xf]
    %v4335 = vld [vmem:[%s4285 + $0xdc] sm:$0xf]
    %v4336 = vld [vmem:[%s4285 + $0xe0] sm:$0xf]
    %v4337 = vld [vmem:[%s4285 + $0xe4] sm:$0xf]
    %v4338 = vld [vmem:[%s4285 + $0xe8] sm:$0xf]
    %v4339 = vld [vmem:[%s4285 + $0xec] sm:$0xf]
    %v4340 = vld [vmem:[%s4285 + $0xf0] sm:$0xf]
    %v4341 = vld [vmem:[%s4285 + $0xf4] sm:$0xf]
    %v4342 = vld [vmem:[%s4285 + $0xf8] sm:$0xf]
    %v4343 = vld [vmem:[%s4285 + $0xfc] sm:$0xf]
    %v4344 = vld [vmem:[%s4285 + $0x100] sm:$0xf]
    %v4345 = vld [vmem:[%s4285 + $0x104] sm:$0xf]
    %v4346 = vld [vmem:[%s4285 + $0x108] sm:$0xf]
    %v4347 = vld [vmem:[%s4285 + $0x10c] sm:$0xf]
    %v4348 = vld [vmem:[%s4285 + $0x110] sm:$0xf]
    %v4349 = vld [vmem:[%s4285 + $0x114] sm:$0xf]
    %v4350 = vld [vmem:[%s4285 + $0x118] sm:$0xf]
    %v4351 = vld [vmem:[%s4285 + $0x11c] sm:$0xf]
    %v4352 = vld [vmem:[%s4285 + $0x120] sm:$0xf]
    %v4353 = vld [vmem:[%s4285 + $0x124] sm:$0xf]
    %v4354 = vld [vmem:[%s4285 + $0x128] sm:$0xf]
    %v4355 = vld [vmem:[%s4285 + $0x12c] sm:$0xf]
    %v4356 = vld [vmem:[%s4285 + $0x130] sm:$0xf]
    %v4357 = vld [vmem:[%s4285 + $0x134] sm:$0xf]
    %v4358 = vld [vmem:[%s4285 + $0x138] sm:$0xf]
    %v4359 = vld [vmem:[%s4285 + $0x13c] sm:$0xf]
    %v4360 = vld [vmem:[%s4285 + $0x140] sm:$0xf]
    %v4361 = vld [vmem:[%s4285 + $0x144] sm:$0xf]
    %v4362 = vld [vmem:[%s4285 + $0x148] sm:$0xf]
    %v4363 = vld [vmem:[%s4285 + $0x14c] sm:$0xf]
    %v4364 = vld [vmem:[%s4285 + $0x150] sm:$0xf]
    %v4365 = vld [vmem:[%s4285 + $0x154] sm:$0xf]
    %v4366 = vld [vmem:[%s4285 + $0x158] sm:$0xf]
    %v4367 = vld [vmem:[%s4285 + $0x15c] sm:$0xf]
    %v4368 = vld [vmem:[%s4285 + $0x160] sm:$0xf]
    %v4369 = vld [vmem:[%s4285 + $0x164] sm:$0xf]
    %v4370 = vld [vmem:[%s4285 + $0x168] sm:$0xf]
    %v4371 = vld [vmem:[%s4285 + $0x16c] sm:$0xf]
    %v4372 = vld [vmem:[%s4285 + $0x170] sm:$0xf]
    %v4373 = vld [vmem:[%s4285 + $0x174] sm:$0xf]
    %v4374 = vld [vmem:[%s4285 + $0x178] sm:$0xf]
    %v4375 = vld [vmem:[%s4285 + $0x17c] sm:$0xf]
    %v4376 = vld [vmem:[%s4285 + $0x180] sm:$0xf]
    %v4377 = vld [vmem:[%s4285 + $0x184] sm:$0xf]
    %v4378 = vld [vmem:[%s4285 + $0x188] sm:$0xf]
    %v4379 = vld [vmem:[%s4285 + $0x18c] sm:$0xf]
    %v4380 = vld [vmem:[%s4285 + $0x190] sm:$0xf]
    %v4381 = vld [vmem:[%s4285 + $0x194] sm:$0xf]
    %s4382 = scalar_lea.vmem %s4, 6
    %v4383 = vld [vmem:[%s4382] sm:$0x3]
    %v4480 = vunpack.c.l.b16 %v4286
    %v4481 = vunpack.c.l.b16 %v4287
    %v4482 = vunpack.c.l.b16 %v4288
    %v4483 = vunpack.c.l.b16 %v4289
    %v4484 = vunpack.c.l.b16 %v4290
    %v4485 = vunpack.c.l.b16 %v4291
    %v4486 = vunpack.c.l.b16 %v4292
    %v4487 = vunpack.c.l.b16 %v4293
    %v4488 = vunpack.c.l.b16 %v4294
    %v4489 = vunpack.c.l.b16 %v4295
    %v4490 = vunpack.c.l.b16 %v4296
    %v4491 = vunpack.c.l.b16 %v4297
    %v4492 = vunpack.c.l.b16 %v4298
    %v4493 = vunpack.c.l.b16 %v4299
    %v4494 = vunpack.c.l.b16 %v4300
    %v4495 = vunpack.c.l.b16 %v4301
    %v4496 = vunpack.c.l.b16 %v4302
    %v4497 = vunpack.c.l.b16 %v4303
    %v4498 = vunpack.c.l.b16 %v4304
    %v4499 = vunpack.c.l.b16 %v4305
    %v4500 = vunpack.c.l.b16 %v4306
    %v4501 = vunpack.c.l.b16 %v4307
    %v4502 = vunpack.c.l.b16 %v4308
    %v4503 = vunpack.c.l.b16 %v4309
    %v4504 = vunpack.c.l.b16 %v4310
    %v4505 = vunpack.c.l.b16 %v4311
    %v4506 = vunpack.c.l.b16 %v4312
    %v4507 = vunpack.c.l.b16 %v4313
    %v4508 = vunpack.c.l.b16 %v4314
    %v4509 = vunpack.c.l.b16 %v4315
    %v4510 = vunpack.c.l.b16 %v4316
    %v4511 = vunpack.c.l.b16 %v4317
    %v4512 = vunpack.c.l.b16 %v4318
    %v4513 = vunpack.c.l.b16 %v4319
    %v4514 = vunpack.c.l.b16 %v4320
    %v4515 = vunpack.c.l.b16 %v4321
    %v4516 = vunpack.c.l.b16 %v4322
    %v4517 = vunpack.c.l.b16 %v4323
    %v4518 = vunpack.c.l.b16 %v4324
    %v4519 = vunpack.c.l.b16 %v4325
    %v4520 = vunpack.c.l.b16 %v4326
    %v4521 = vunpack.c.l.b16 %v4327
    %v4522 = vunpack.c.l.b16 %v4328
    %v4523 = vunpack.c.l.b16 %v4329
    %v4524 = vunpack.c.l.b16 %v4330
    %v4525 = vunpack.c.l.b16 %v4331
    %v4526 = vunpack.c.l.b16 %v4332
    %v4527 = vunpack.c.l.b16 %v4333
    %v4528 = vunpack.c.l.b16 %v4334
    %v4529 = vunpack.c.l.b16 %v4335
    %v4530 = vunpack.c.l.b16 %v4336
    %v4531 = vunpack.c.l.b16 %v4337
    %v4532 = vunpack.c.l.b16 %v4338
    %v4533 = vunpack.c.l.b16 %v4339
    %v4534 = vunpack.c.l.b16 %v4340
    %v4535 = vunpack.c.l.b16 %v4341
    %v4536 = vunpack.c.l.b16 %v4342
    %v4537 = vunpack.c.l.b16 %v4343
    %v4538 = vunpack.c.l.b16 %v4344
    %v4539 = vunpack.c.l.b16 %v4345
    %v4540 = vunpack.c.l.b16 %v4346
    %v4541 = vunpack.c.l.b16 %v4347
    %v4542 = vunpack.c.l.b16 %v4348
    %v4543 = vunpack.c.l.b16 %v4349
    %v4544 = vunpack.c.l.b16 %v4350
    %v4545 = vunpack.c.l.b16 %v4351
    %v4546 = vunpack.c.l.b16 %v4352
    %v4547 = vunpack.c.l.b16 %v4353
    %v4548 = vunpack.c.l.b16 %v4354
    %v4549 = vunpack.c.l.b16 %v4355
    %v4550 = vunpack.c.l.b16 %v4356
    %v4551 = vunpack.c.l.b16 %v4357
    %v4552 = vunpack.c.l.b16 %v4358
    %v4553 = vunpack.c.l.b16 %v4359
    %v4554 = vunpack.c.l.b16 %v4360
    %v4555 = vunpack.c.l.b16 %v4361
    %v4556 = vunpack.c.l.b16 %v4362
    %v4557 = vunpack.c.l.b16 %v4363
    %v4558 = vunpack.c.l.b16 %v4364
    %v4559 = vunpack.c.l.b16 %v4365
    %v4560 = vunpack.c.l.b16 %v4366
    %v4561 = vunpack.c.l.b16 %v4367
    %v4562 = vunpack.c.l.b16 %v4368
    %v4563 = vunpack.c.l.b16 %v4369
    %v4564 = vunpack.c.l.b16 %v4370
    %v4565 = vunpack.c.l.b16 %v4371
    %v4566 = vunpack.c.l.b16 %v4372
    %v4567 = vunpack.c.l.b16 %v4373
    %v4568 = vunpack.c.l.b16 %v4374
    %v4569 = vunpack.c.l.b16 %v4375
    %v4570 = vunpack.c.l.b16 %v4376
    %v4571 = vunpack.c.l.b16 %v4377
    %v4572 = vunpack.c.l.b16 %v4378
    %v4573 = vunpack.c.l.b16 %v4379
    %v4574 = vunpack.c.l.b16 %v4380
    %v4575 = vunpack.c.l.b16 %v4381
    %v4576 = vpack.c.b16 %v4481, %v4480
    %v4577 = vpack.c.b16 %v4483, %v4482
    %v4578 = vpack.c.b16 %v4485, %v4484
    %v4579 = vpack.c.b16 %v4487, %v4486
    %v4580 = vpack.c.b16 %v4489, %v4488
    %v4581 = vpack.c.b16 %v4491, %v4490
    %v4582 = vpack.c.b16 %v4493, %v4492
    %v4583 = vpack.c.b16 %v4495, %v4494
    %v4584 = vpack.c.b16 %v4497, %v4496
    %v4585 = vpack.c.b16 %v4499, %v4498
    %v4586 = vpack.c.b16 %v4501, %v4500
    %v4587 = vpack.c.b16 %v4503, %v4502
    %v4588 = vpack.c.b16 %v4505, %v4504
    %v4589 = vpack.c.b16 %v4507, %v4506
    %v4590 = vpack.c.b16 %v4509, %v4508
    %v4591 = vpack.c.b16 %v4511, %v4510
    %v4592 = vpack.c.b16 %v4513, %v4512
    %v4593 = vpack.c.b16 %v4515, %v4514
    %v4594 = vpack.c.b16 %v4517, %v4516
    %v4595 = vpack.c.b16 %v4519, %v4518
    %v4596 = vpack.c.b16 %v4521, %v4520
    %v4597 = vpack.c.b16 %v4523, %v4522
    %v4598 = vpack.c.b16 %v4525, %v4524
    %v4599 = vpack.c.b16 %v4527, %v4526
    %v4600 = vpack.c.b16 %v4529, %v4528
    %v4601 = vpack.c.b16 %v4531, %v4530
    %v4602 = vpack.c.b16 %v4533, %v4532
    %v4603 = vpack.c.b16 %v4535, %v4534
    %v4604 = vpack.c.b16 %v4537, %v4536
    %v4605 = vpack.c.b16 %v4539, %v4538
    %v4606 = vpack.c.b16 %v4541, %v4540
    %v4607 = vpack.c.b16 %v4543, %v4542
    %v4608 = vpack.c.b16 %v4545, %v4544
    %v4609 = vpack.c.b16 %v4547, %v4546
    %v4610 = vpack.c.b16 %v4549, %v4548
    %v4611 = vpack.c.b16 %v4551, %v4550
    %v4612 = vpack.c.b16 %v4553, %v4552
    %v4613 = vpack.c.b16 %v4555, %v4554
    %v4614 = vpack.c.b16 %v4557, %v4556
    %v4615 = vpack.c.b16 %v4559, %v4558
    %v4616 = vpack.c.b16 %v4561, %v4560
    %v4617 = vpack.c.b16 %v4563, %v4562
    %v4618 = vpack.c.b16 %v4565, %v4564
    %v4619 = vpack.c.b16 %v4567, %v4566
    %v4620 = vpack.c.b16 %v4569, %v4568
    %v4621 = vpack.c.b16 %v4571, %v4570
    %v4622 = vpack.c.b16 %v4573, %v4572
    %v4623 = vpack.c.b16 %v4575, %v4574
    %v4625 = vsel %vm1815, %v4576, 0
    %v4628 = vsel %vm1815, %v4577, 0
    %v4631 = vsel %vm1815, %v4578, 0
    %v4634 = vsel %vm1815, %v4579, 0
    %v4637 = vsel %vm1815, %v4580, 0
    %v4640 = vsel %vm1815, %v4581, 0
    %v4643 = vsel %vm1815, %v4582, 0
    %v4646 = vsel %vm1815, %v4583, 0
    %v4649 = vsel %vm1815, %v4584, 0
    %v4652 = vsel %vm1815, %v4585, 0
    %v4655 = vsel %vm1815, %v4586, 0
    %v4658 = vsel %vm1815, %v4587, 0
    %v4661 = vsel %vm1815, %v4588, 0
    %v4664 = vsel %vm1815, %v4589, 0
    %v4667 = vsel %vm1815, %v4590, 0
    %v4670 = vsel %vm1815, %v4591, 0
    %v4673 = vsel %vm1815, %v4592, 0
    %v4676 = vsel %vm1815, %v4593, 0
    %v4679 = vsel %vm1815, %v4594, 0
    %v4682 = vsel %vm1815, %v4595, 0
    %v4685 = vsel %vm1815, %v4596, 0
    %v4688 = vsel %vm1815, %v4597, 0
    %v4691 = vsel %vm1815, %v4598, 0
    %v4694 = vsel %vm1815, %v4599, 0
    %v4697 = vsel %vm1815, %v4600, 0
    %v4700 = vsel %vm1815, %v4601, 0
    %v4703 = vsel %vm1815, %v4602, 0
    %v4706 = vsel %vm1815, %v4603, 0
    %v4709 = vsel %vm1815, %v4604, 0
    %v4712 = vsel %vm1815, %v4605, 0
    %v4715 = vsel %vm1815, %v4606, 0
    %v4718 = vsel %vm1815, %v4607, 0
    %v4721 = vsel %vm1815, %v4608, 0
    %v4724 = vsel %vm1815, %v4609, 0
    %v4727 = vsel %vm1815, %v4610, 0
    %v4730 = vsel %vm1815, %v4611, 0
    %v4733 = vsel %vm1815, %v4612, 0
    %v4736 = vsel %vm1815, %v4613, 0
    %v4739 = vsel %vm1815, %v4614, 0
    %v4742 = vsel %vm1815, %v4615, 0
    %v4745 = vsel %vm1815, %v4616, 0
    %v4748 = vsel %vm1815, %v4617, 0
    %v4751 = vsel %vm1815, %v4618, 0
    %v4754 = vsel %vm1815, %v4619, 0
    %v4757 = vsel %vm1815, %v4620, 0
    %v4760 = vsel %vm1815, %v4621, 0
    %v4763 = vsel %vm1815, %v4622, 0
    %v4766 = vsel %vm1815, %v4623, 0
    %v4769 = vsel %vm1960, %v4383, 0
    %4771 = vmatprep.subr.bf16.mxu0 0
    %4772 = vmatpush1.bf16.msra.mxu0 %v4769
    %4773 = vmatprep.subr.bf16.mxu0 0
    %4774 = vmatpush1.bf16.msra.mxu0 0
    %4775 = vmatprep.subr.bf16.mxu0 0
    %4776 = vmatpush1.bf16.msra.mxu0 0
    %4777 = vmatprep.subr.bf16.mxu0 0
    %4778 = vmatpush1.bf16.msra.mxu0 0
    %4779 = vmatprep.subr.bf16.mxu0 0
    %4780 = vmatpush1.bf16.msra.mxu0 0
    %4781 = vmatprep.subr.bf16.mxu0 0
    %4782 = vmatpush1.bf16.msra.mxu0 0
    %4783 = vmatprep.subr.bf16.mxu0 0
    %4784 = vmatpush1.bf16.msra.mxu0 0
    %4785 = vmatprep.subr.bf16.mxu0 0
    %4786 = vmatpush1.bf16.msra.mxu0 0
    %4787 = vmatprep.subr.bf16.mxu0 0
    %4788 = vmatpush1.bf16.msra.mxu0 0
    %4789 = vmatprep.subr.bf16.mxu0 0
    %4790 = vmatpush1.bf16.msra.mxu0 0
    %4791 = vmatprep.subr.bf16.mxu0 0
    %4792 = vmatpush1.bf16.msra.mxu0 0
    %4793 = vmatprep.subr.bf16.mxu0 0
    %4794 = vmatpush1.bf16.msra.mxu0 0
    %4795 = vmatprep.subr.bf16.mxu0 0
    %4796 = vmatpush1.bf16.msra.mxu0 0
    %4797 = vmatprep.subr.bf16.mxu0 0
    %4798 = vmatpush1.bf16.msra.mxu0 0
    %4799 = vmatprep.subr.bf16.mxu0 0
    %4800 = vmatpush1.bf16.msra.mxu0 0
    %4801 = vmatprep.subr.bf16.mxu0 0
    %4802 = vmatpush1.bf16.msra.mxu0 0
    %4803 = vmatprep.mubr.bf16.mxu0 0
    %4804 = vmatmul.mubr.bf16.gmra.mrb[0].mxu0 %v4625
    %v4805 = vpop.f32.mrb[0].mxu0
    %v4806 = vadd.f32 0.0, %v4805
    %v4807 = vpop.f32.mrb[0].mxu0
    %v4808 = vpop.f32.mrb[0].mxu0
    %v4809 = vadd.f32 0.0, %v4808
    %v4810 = vpop.f32.mrb[0].mxu0
    %4811 = vmatprep.mubr.bf16.mxu0 0
    %4812 = vmatmul.mubr.bf16.gmra.mrb[0].mxu0 %v4628
    %v4813 = vpop.f32.mrb[0].mxu0
    %v4814 = vadd.f32 0.0, %v4813
    %v4815 = vpop.f32.mrb[0].mxu0
    %v4816 = vpop.f32.mrb[0].mxu0
    %v4817 = vadd.f32 0.0, %v4816
    %v4818 = vpop.f32.mrb[0].mxu0
    %4819 = vmatprep.mubr.bf16.mxu0 0
    %4820 = vmatmul.mubr.bf16.gmra.mrb[0].mxu0 %v4631
    %v4821 = vpop.f32.mrb[0].mxu0
    %v4822 = vadd.f32 0.0, %v4821
    %v4823 = vpop.f32.mrb[0].mxu0
    %v4824 = vpop.f32.mrb[0].mxu0
    %v4825 = vadd.f32 0.0, %v4824
    %v4826 = vpop.f32.mrb[0].mxu0
    %4827 = vmatprep.mubr.bf16.mxu0 0
    %4828 = vmatmul.mubr.bf16.gmra.mrb[0].mxu0 %v4634
    %v4829 = vpop.f32.mrb[0].mxu0
    %v4830 = vadd.f32 0.0, %v4829
    %v4831 = vpop.f32.mrb[0].mxu0
    %v4832 = vpop.f32.mrb[0].mxu0
    %v4833 = vadd.f32 0.0, %v4832
    %v4834 = vpop.f32.mrb[0].mxu0
    %4835 = vmatprep.mubr.bf16.mxu0 0
    %4836 = vmatmul.mubr.bf16.gmra.mrb[0].mxu0 %v4637
    %v4837 = vpop.f32.mrb[0].mxu0
    %v4838 = vadd.f32 0.0, %v4837
    %v4839 = vpop.f32.mrb[0].mxu0
    %v4840 = vpop.f32.mrb[0].mxu0
    %v4841 = vadd.f32 0.0, %v4840
    %v4842 = vpop.f32.mrb[0].mxu0
    %4843 = vmatprep.mubr.bf16.mxu0 0
    %4844 = vmatmul.mubr.bf16.gmra.mrb[0].mxu0 %v4640
    %v4845 = vpop.f32.mrb[0].mxu0
    %v4846 = vadd.f32 0.0, %v4845
    %v4847 = vpop.f32.mrb[0].mxu0
    %v4848 = vpop.f32.mrb[0].mxu0
    %v4849 = vadd.f32 0.0, %v4848
    %v4850 = vpop.f32.mrb[0].mxu0
    %4851 = vmatprep.mubr.bf16.mxu0 0
    %4852 = vmatmul.mubr.bf16.gmra.mrb[0].mxu0 %v4643
    %v4853 = vpop.f32.mrb[0].mxu0
    %v4854 = vadd.f32 0.0, %v4853
    %v4855 = vpop.f32.mrb[0].mxu0
    %v4856 = vpop.f32.mrb[0].mxu0
    %v4857 = vadd.f32 0.0, %v4856
    %v4858 = vpop.f32.mrb[0].mxu0
    %4859 = vmatprep.mubr.bf16.mxu0 0
    %4860 = vmatmul.mubr.bf16.gmra.mrb[0].mxu0 %v4646
    %v4861 = vpop.f32.mrb[0].mxu0
    %v4862 = vadd.f32 0.0, %v4861
    %v4863 = vpop.f32.mrb[0].mxu0
    %v4864 = vpop.f32.mrb[0].mxu0
    %v4865 = vadd.f32 0.0, %v4864
    %v4866 = vpop.f32.mrb[0].mxu0
    %4867 = vmatprep.mubr.bf16.mxu0 0
    %4868 = vmatmul.mubr.bf16.gmra.mrb[0].mxu0 %v4649
    %v4869 = vpop.f32.mrb[0].mxu0
    %v4870 = vadd.f32 0.0, %v4869
    %v4871 = vpop.f32.mrb[0].mxu0
    %v4872 = vpop.f32.mrb[0].mxu0
    %v4873 = vadd.f32 0.0, %v4872
    %v4874 = vpop.f32.mrb[0].mxu0
    %4875 = vmatprep.mubr.bf16.mxu0 0
    %4876 = vmatmul.mubr.bf16.gmra.mrb[0].mxu0 %v4652
    %v4877 = vpop.f32.mrb[0].mxu0
    %v4878 = vadd.f32 0.0, %v4877
    %v4879 = vpop.f32.mrb[0].mxu0
    %v4880 = vpop.f32.mrb[0].mxu0
    %v4881 = vadd.f32 0.0, %v4880
    %v4882 = vpop.f32.mrb[0].mxu0
    %4883 = vmatprep.mubr.bf16.mxu0 0
    %4884 = vmatmul.mubr.bf16.gmra.mrb[0].mxu0 %v4655
    %v4885 = vpop.f32.mrb[0].mxu0
    %v4886 = vadd.f32 0.0, %v4885
    %v4887 = vpop.f32.mrb[0].mxu0
    %v4888 = vpop.f32.mrb[0].mxu0
    %v4889 = vadd.f32 0.0, %v4888
    %v4890 = vpop.f32.mrb[0].mxu0
    %4891 = vmatprep.mubr.bf16.mxu0 0
    %4892 = vmatmul.mubr.bf16.gmra.mrb[0].mxu0 %v4658
    %v4893 = vpop.f32.mrb[0].mxu0
    %v4894 = vadd.f32 0.0, %v4893
    %v4895 = vpop.f32.mrb[0].mxu0
    %v4896 = vpop.f32.mrb[0].mxu0
    %v4897 = vadd.f32 0.0, %v4896
    %v4898 = vpop.f32.mrb[0].mxu0
    %4899 = vmatprep.mubr.bf16.mxu0 0
    %4900 = vmatmul.mubr.bf16.gmra.mrb[0].mxu0 %v4661
    %v4901 = vpop.f32.mrb[0].mxu0
    %v4902 = vadd.f32 0.0, %v4901
    %v4903 = vpop.f32.mrb[0].mxu0
    %v4904 = vpop.f32.mrb[0].mxu0
    %v4905 = vadd.f32 0.0, %v4904
    %v4906 = vpop.f32.mrb[0].mxu0
    %4907 = vmatprep.mubr.bf16.mxu0 0
    %4908 = vmatmul.mubr.bf16.gmra.mrb[0].mxu0 %v4664
    %v4909 = vpop.f32.mrb[0].mxu0
    %v4910 = vadd.f32 0.0, %v4909
    %v4911 = vpop.f32.mrb[0].mxu0
    %v4912 = vpop.f32.mrb[0].mxu0
    %v4913 = vadd.f32 0.0, %v4912
    %v4914 = vpop.f32.mrb[0].mxu0
    %4915 = vmatprep.mubr.bf16.mxu0 0
    %4916 = vmatmul.mubr.bf16.gmra.mrb[0].mxu0 %v4667
    %v4917 = vpop.f32.mrb[0].mxu0
    %v4918 = vadd.f32 0.0, %v4917
    %v4919 = vpop.f32.mrb[0].mxu0
    %v4920 = vpop.f32.mrb[0].mxu0
    %v4921 = vadd.f32 0.0, %v4920
    %v4922 = vpop.f32.mrb[0].mxu0
    %4923 = vmatprep.mubr.bf16.mxu0 0
    %4924 = vmatmul.mubr.bf16.gmra.mrb[0].mxu0 %v4670
    %v4925 = vpop.f32.mrb[0].mxu0
    %v4926 = vadd.f32 0.0, %v4925
    %v4927 = vpop.f32.mrb[0].mxu0
    %v4928 = vpop.f32.mrb[0].mxu0
    %v4929 = vadd.f32 0.0, %v4928
    %v4930 = vpop.f32.mrb[0].mxu0
    %4931 = vmatprep.mubr.bf16.mxu0 0
    %4932 = vmatmul.mubr.bf16.gmra.mrb[0].mxu0 %v4673
    %v4933 = vpop.f32.mrb[0].mxu0
    %v4934 = vadd.f32 0.0, %v4933
    %v4935 = vpop.f32.mrb[0].mxu0
    %v4936 = vpop.f32.mrb[0].mxu0
    %v4937 = vadd.f32 0.0, %v4936
    %v4938 = vpop.f32.mrb[0].mxu0
    %4939 = vmatprep.mubr.bf16.mxu0 0
    %4940 = vmatmul.mubr.bf16.gmra.mrb[0].mxu0 %v4676
    %v4941 = vpop.f32.mrb[0].mxu0
    %v4942 = vadd.f32 0.0, %v4941
    %v4943 = vpop.f32.mrb[0].mxu0
    %v4944 = vpop.f32.mrb[0].mxu0
    %v4945 = vadd.f32 0.0, %v4944
    %v4946 = vpop.f32.mrb[0].mxu0
    %4947 = vmatprep.mubr.bf16.mxu0 0
    %4948 = vmatmul.mubr.bf16.gmra.mrb[0].mxu0 %v4679
    %v4949 = vpop.f32.mrb[0].mxu0
    %v4950 = vadd.f32 0.0, %v4949
    %v4951 = vpop.f32.mrb[0].mxu0
    %v4952 = vpop.f32.mrb[0].mxu0
    %v4953 = vadd.f32 0.0, %v4952
    %v4954 = vpop.f32.mrb[0].mxu0
    %4955 = vmatprep.mubr.bf16.mxu0 0
    %4956 = vmatmul.mubr.bf16.gmra.mrb[0].mxu0 %v4682
    %v4957 = vpop.f32.mrb[0].mxu0
    %v4958 = vadd.f32 0.0, %v4957
    %v4959 = vpop.f32.mrb[0].mxu0
    %v4960 = vpop.f32.mrb[0].mxu0
    %v4961 = vadd.f32 0.0, %v4960
    %v4962 = vpop.f32.mrb[0].mxu0
    %4963 = vmatprep.mubr.bf16.mxu0 0
    %4964 = vmatmul.mubr.bf16.gmra.mrb[0].mxu0 %v4685
    %v4965 = vpop.f32.mrb[0].mxu0
    %v4966 = vadd.f32 0.0, %v4965
    %v4967 = vpop.f32.mrb[0].mxu0
    %v4968 = vpop.f32.mrb[0].mxu0
    %v4969 = vadd.f32 0.0, %v4968
    %v4970 = vpop.f32.mrb[0].mxu0
    %4971 = vmatprep.mubr.bf16.mxu0 0
    %4972 = vmatmul.mubr.bf16.gmra.mrb[0].mxu0 %v4688
    %v4973 = vpop.f32.mrb[0].mxu0
    %v4974 = vadd.f32 0.0, %v4973
    %v4975 = vpop.f32.mrb[0].mxu0
    %v4976 = vpop.f32.mrb[0].mxu0
    %v4977 = vadd.f32 0.0, %v4976
    %v4978 = vpop.f32.mrb[0].mxu0
    %4979 = vmatprep.mubr.bf16.mxu0 0
    %4980 = vmatmul.mubr.bf16.gmra.mrb[0].mxu0 %v4691
    %v4981 = vpop.f32.mrb[0].mxu0
    %v4982 = vadd.f32 0.0, %v4981
    %v4983 = vpop.f32.mrb[0].mxu0
    %v4984 = vpop.f32.mrb[0].mxu0
    %v4985 = vadd.f32 0.0, %v4984
    %v4986 = vpop.f32.mrb[0].mxu0
    %4987 = vmatprep.mubr.bf16.mxu0 0
    %4988 = vmatmul.mubr.bf16.gmra.mrb[0].mxu0 %v4694
    %v4989 = vpop.f32.mrb[0].mxu0
    %v4990 = vadd.f32 0.0, %v4989
    %v4991 = vpop.f32.mrb[0].mxu0
    %v4992 = vpop.f32.mrb[0].mxu0
    %v4993 = vadd.f32 0.0, %v4992
    %v4994 = vpop.f32.mrb[0].mxu0
    %4995 = vmatprep.mubr.bf16.mxu0 0
    %4996 = vmatmul.mubr.bf16.gmra.mrb[0].mxu0 %v4697
    %v4997 = vpop.f32.mrb[0].mxu0
    %v4998 = vadd.f32 0.0, %v4997
    %v4999 = vpop.f32.mrb[0].mxu0
    %v5000 = vpop.f32.mrb[0].mxu0
    %v5001 = vadd.f32 0.0, %v5000
    %v5002 = vpop.f32.mrb[0].mxu0
    %5003 = vmatprep.mubr.bf16.mxu0 0
    %5004 = vmatmul.mubr.bf16.gmra.mrb[0].mxu0 %v4700
    %v5005 = vpop.f32.mrb[0].mxu0
    %v5006 = vadd.f32 0.0, %v5005
    %v5007 = vpop.f32.mrb[0].mxu0
    %v5008 = vpop.f32.mrb[0].mxu0
    %v5009 = vadd.f32 0.0, %v5008
    %v5010 = vpop.f32.mrb[0].mxu0
    %5011 = vmatprep.mubr.bf16.mxu0 0
    %5012 = vmatmul.mubr.bf16.gmra.mrb[0].mxu0 %v4703
    %v5013 = vpop.f32.mrb[0].mxu0
    %v5014 = vadd.f32 0.0, %v5013
    %v5015 = vpop.f32.mrb[0].mxu0
    %v5016 = vpop.f32.mrb[0].mxu0
    %v5017 = vadd.f32 0.0, %v5016
    %v5018 = vpop.f32.mrb[0].mxu0
    %5019 = vmatprep.mubr.bf16.mxu0 0
    %5020 = vmatmul.mubr.bf16.gmra.mrb[0].mxu0 %v4706
    %v5021 = vpop.f32.mrb[0].mxu0
    %v5022 = vadd.f32 0.0, %v5021
    %v5023 = vpop.f32.mrb[0].mxu0
    %v5024 = vpop.f32.mrb[0].mxu0
    %v5025 = vadd.f32 0.0, %v5024
    %v5026 = vpop.f32.mrb[0].mxu0
    %5027 = vmatprep.mubr.bf16.mxu0 0
    %5028 = vmatmul.mubr.bf16.gmra.mrb[0].mxu0 %v4709
    %v5029 = vpop.f32.mrb[0].mxu0
    %v5030 = vadd.f32 0.0, %v5029
    %v5031 = vpop.f32.mrb[0].mxu0
    %v5032 = vpop.f32.mrb[0].mxu0
    %v5033 = vadd.f32 0.0, %v5032
    %v5034 = vpop.f32.mrb[0].mxu0
    %5035 = vmatprep.mubr.bf16.mxu0 0
    %5036 = vmatmul.mubr.bf16.gmra.mrb[0].mxu0 %v4712
    %v5037 = vpop.f32.mrb[0].mxu0
    %v5038 = vadd.f32 0.0, %v5037
    %v5039 = vpop.f32.mrb[0].mxu0
    %v5040 = vpop.f32.mrb[0].mxu0
    %v5041 = vadd.f32 0.0, %v5040
    %v5042 = vpop.f32.mrb[0].mxu0
    %5043 = vmatprep.mubr.bf16.mxu0 0
    %5044 = vmatmul.mubr.bf16.gmra.mrb[0].mxu0 %v4715
    %v5045 = vpop.f32.mrb[0].mxu0
    %v5046 = vadd.f32 0.0, %v5045
    %v5047 = vpop.f32.mrb[0].mxu0
    %v5048 = vpop.f32.mrb[0].mxu0
    %v5049 = vadd.f32 0.0, %v5048
    %v5050 = vpop.f32.mrb[0].mxu0
    %5051 = vmatprep.mubr.bf16.mxu0 0
    %5052 = vmatmul.mubr.bf16.gmra.mrb[0].mxu0 %v4718
    %v5053 = vpop.f32.mrb[0].mxu0
    %v5054 = vadd.f32 0.0, %v5053
    %v5055 = vpop.f32.mrb[0].mxu0
    %v5056 = vpop.f32.mrb[0].mxu0
    %v5057 = vadd.f32 0.0, %v5056
    %v5058 = vpop.f32.mrb[0].mxu0
    %5059 = vmatprep.mubr.bf16.mxu0 0
    %5060 = vmatmul.mubr.bf16.gmra.mrb[0].mxu0 %v4721
    %v5061 = vpop.f32.mrb[0].mxu0
    %v5062 = vadd.f32 0.0, %v5061
    %v5063 = vpop.f32.mrb[0].mxu0
    %v5064 = vpop.f32.mrb[0].mxu0
    %v5065 = vadd.f32 0.0, %v5064
    %v5066 = vpop.f32.mrb[0].mxu0
    %5067 = vmatprep.mubr.bf16.mxu0 0
    %5068 = vmatmul.mubr.bf16.gmra.mrb[0].mxu0 %v4724
    %v5069 = vpop.f32.mrb[0].mxu0
    %v5070 = vadd.f32 0.0, %v5069
    %v5071 = vpop.f32.mrb[0].mxu0
    %v5072 = vpop.f32.mrb[0].mxu0
    %v5073 = vadd.f32 0.0, %v5072
    %v5074 = vpop.f32.mrb[0].mxu0
    %5075 = vmatprep.mubr.bf16.mxu0 0
    %5076 = vmatmul.mubr.bf16.gmra.mrb[0].mxu0 %v4727
    %v5077 = vpop.f32.mrb[0].mxu0
    %v5078 = vadd.f32 0.0, %v5077
    %v5079 = vpop.f32.mrb[0].mxu0
    %v5080 = vpop.f32.mrb[0].mxu0
    %v5081 = vadd.f32 0.0, %v5080
    %v5082 = vpop.f32.mrb[0].mxu0
    %5083 = vmatprep.mubr.bf16.mxu0 0
    %5084 = vmatmul.mubr.bf16.gmra.mrb[0].mxu0 %v4730
    %v5085 = vpop.f32.mrb[0].mxu0
    %v5086 = vadd.f32 0.0, %v5085
    %v5087 = vpop.f32.mrb[0].mxu0
    %v5088 = vpop.f32.mrb[0].mxu0
    %v5089 = vadd.f32 0.0, %v5088
    %v5090 = vpop.f32.mrb[0].mxu0
    %5091 = vmatprep.mubr.bf16.mxu0 0
    %5092 = vmatmul.mubr.bf16.gmra.mrb[0].mxu0 %v4733
    %v5093 = vpop.f32.mrb[0].mxu0
    %v5094 = vadd.f32 0.0, %v5093
    %v5095 = vpop.f32.mrb[0].mxu0
    %v5096 = vpop.f32.mrb[0].mxu0
    %v5097 = vadd.f32 0.0, %v5096
    %v5098 = vpop.f32.mrb[0].mxu0
    %5099 = vmatprep.mubr.bf16.mxu0 0
    %5100 = vmatmul.mubr.bf16.gmra.mrb[0].mxu0 %v4736
    %v5101 = vpop.f32.mrb[0].mxu0
    %v5102 = vadd.f32 0.0, %v5101
    %v5103 = vpop.f32.mrb[0].mxu0
    %v5104 = vpop.f32.mrb[0].mxu0
    %v5105 = vadd.f32 0.0, %v5104
    %v5106 = vpop.f32.mrb[0].mxu0
    %5107 = vmatprep.mubr.bf16.mxu0 0
    %5108 = vmatmul.mubr.bf16.gmra.mrb[0].mxu0 %v4739
    %v5109 = vpop.f32.mrb[0].mxu0
    %v5110 = vadd.f32 0.0, %v5109
    %v5111 = vpop.f32.mrb[0].mxu0
    %v5112 = vpop.f32.mrb[0].mxu0
    %v5113 = vadd.f32 0.0, %v5112
    %v5114 = vpop.f32.mrb[0].mxu0
    %5115 = vmatprep.mubr.bf16.mxu0 0
    %5116 = vmatmul.mubr.bf16.gmra.mrb[0].mxu0 %v4742
    %v5117 = vpop.f32.mrb[0].mxu0
    %v5118 = vadd.f32 0.0, %v5117
    %v5119 = vpop.f32.mrb[0].mxu0
    %v5120 = vpop.f32.mrb[0].mxu0
    %v5121 = vadd.f32 0.0, %v5120
    %v5122 = vpop.f32.mrb[0].mxu0
    %5123 = vmatprep.mubr.bf16.mxu0 0
    %5124 = vmatmul.mubr.bf16.gmra.mrb[0].mxu0 %v4745
    %v5125 = vpop.f32.mrb[0].mxu0
    %v5126 = vadd.f32 0.0, %v5125
    %v5127 = vpop.f32.mrb[0].mxu0
    %v5128 = vpop.f32.mrb[0].mxu0
    %v5129 = vadd.f32 0.0, %v5128
    %v5130 = vpop.f32.mrb[0].mxu0
    %5131 = vmatprep.mubr.bf16.mxu0 0
    %5132 = vmatmul.mubr.bf16.gmra.mrb[0].mxu0 %v4748
    %v5133 = vpop.f32.mrb[0].mxu0
    %v5134 = vadd.f32 0.0, %v5133
    %v5135 = vpop.f32.mrb[0].mxu0
    %v5136 = vpop.f32.mrb[0].mxu0
    %v5137 = vadd.f32 0.0, %v5136
    %v5138 = vpop.f32.mrb[0].mxu0
    %5139 = vmatprep.mubr.bf16.mxu0 0
    %5140 = vmatmul.mubr.bf16.gmra.mrb[0].mxu0 %v4751
    %v5141 = vpop.f32.mrb[0].mxu0
    %v5142 = vadd.f32 0.0, %v5141
    %v5143 = vpop.f32.mrb[0].mxu0
    %v5144 = vpop.f32.mrb[0].mxu0
    %v5145 = vadd.f32 0.0, %v5144
    %v5146 = vpop.f32.mrb[0].mxu0
    %5147 = vmatprep.mubr.bf16.mxu0 0
    %5148 = vmatmul.mubr.bf16.gmra.mrb[0].mxu0 %v4754
    %v5149 = vpop.f32.mrb[0].mxu0
    %v5150 = vadd.f32 0.0, %v5149
    %v5151 = vpop.f32.mrb[0].mxu0
    %v5152 = vpop.f32.mrb[0].mxu0
    %v5153 = vadd.f32 0.0, %v5152
    %v5154 = vpop.f32.mrb[0].mxu0
    %5155 = vmatprep.mubr.bf16.mxu0 0
    %5156 = vmatmul.mubr.bf16.gmra.mrb[0].mxu0 %v4757
    %v5157 = vpop.f32.mrb[0].mxu0
    %v5158 = vadd.f32 0.0, %v5157
    %v5159 = vpop.f32.mrb[0].mxu0
    %v5160 = vpop.f32.mrb[0].mxu0
    %v5161 = vadd.f32 0.0, %v5160
    %v5162 = vpop.f32.mrb[0].mxu0
    %5163 = vmatprep.mubr.bf16.mxu0 0
    %5164 = vmatmul.mubr.bf16.gmra.mrb[0].mxu0 %v4760
    %v5165 = vpop.f32.mrb[0].mxu0
    %v5166 = vadd.f32 0.0, %v5165
    %v5167 = vpop.f32.mrb[0].mxu0
    %v5168 = vpop.f32.mrb[0].mxu0
    %v5169 = vadd.f32 0.0, %v5168
    %v5170 = vpop.f32.mrb[0].mxu0
    %5171 = vmatprep.mubr.bf16.mxu0 0
    %5172 = vmatmul.mubr.bf16.gmra.mrb[0].mxu0 %v4763
    %v5173 = vpop.f32.mrb[0].mxu0
    %v5174 = vadd.f32 0.0, %v5173
    %v5175 = vpop.f32.mrb[0].mxu0
    %v5176 = vpop.f32.mrb[0].mxu0
    %v5177 = vadd.f32 0.0, %v5176
    %v5178 = vpop.f32.mrb[0].mxu0
    %5179 = vmatprep.mubr.bf16.mxu0 0
    %5180 = vmatmul.mubr.bf16.gmra.mrb[0].mxu0 %v4766
    %v5181 = vpop.f32.mrb[0].mxu0
    %v5182 = vadd.f32 0.0, %v5181
    %v5183 = vpop.f32.mrb[0].mxu0
    %v5184 = vpop.f32.mrb[0].mxu0
    %v5185 = vadd.f32 0.0, %v5184
    %v5186 = vpop.f32.mrb[0].mxu0
    %5187 = vdwg.mxu0
    %s5188 = scalar_lea.vmem %s4, 8
    %v5189 = vld [vmem:[%s5188] sm:$0x3]
    %v5191 = vsel %vm1960, %v5189, 0
    %5193 = vmatprep.subr.bf16.mxu0 0
    %5194 = vmatpush1.bf16.msra.mxu0 %v5191
    %5195 = vmatprep.subr.bf16.mxu0 0
    %5196 = vmatpush1.bf16.msra.mxu0 0
    %5197 = vmatprep.subr.bf16.mxu0 0
    %5198 = vmatpush1.bf16.msra.mxu0 0
    %5199 = vmatprep.subr.bf16.mxu0 0
    %5200 = vmatpush1.bf16.msra.mxu0 0
    %5201 = vmatprep.subr.bf16.mxu0 0
    %5202 = vmatpush1.bf16.msra.mxu0 0
    %5203 = vmatprep.subr.bf16.mxu0 0
    %5204 = vmatpush1.bf16.msra.mxu0 0
    %5205 = vmatprep.subr.bf16.mxu0 0
    %5206 = vmatpush1.bf16.msra.mxu0 0
    %5207 = vmatprep.subr.bf16.mxu0 0
    %5208 = vmatpush1.bf16.msra.mxu0 0
    %5209 = vmatprep.subr.bf16.mxu0 0
    %5210 = vmatpush1.bf16.msra.mxu0 0
    %5211 = vmatprep.subr.bf16.mxu0 0
    %5212 = vmatpush1.bf16.msra.mxu0 0
    %5213 = vmatprep.subr.bf16.mxu0 0
    %5214 = vmatpush1.bf16.msra.mxu0 0
    %5215 = vmatprep.subr.bf16.mxu0 0
    %5216 = vmatpush1.bf16.msra.mxu0 0
    %5217 = vmatprep.subr.bf16.mxu0 0
    %5218 = vmatpush1.bf16.msra.mxu0 0
    %5219 = vmatprep.subr.bf16.mxu0 0
    %5220 = vmatpush1.bf16.msra.mxu0 0
    %5221 = vmatprep.subr.bf16.mxu0 0
    %5222 = vmatpush1.bf16.msra.mxu0 0
    %5223 = vmatprep.subr.bf16.mxu0 0
    %5224 = vmatpush1.bf16.msra.mxu0 0
    %5225 = vmatprep.mubr.bf16.mxu0 0
    %5226 = vmatmul.mubr.bf16.gmra.mrb[0].mxu0 %v4625
    %v5227 = vpop.f32.mrb[0].mxu0
    %v5228 = vadd.f32 0.0, %v5227
    %v5229 = vpop.f32.mrb[0].mxu0
    %v5230 = vpop.f32.mrb[0].mxu0
    %v5231 = vadd.f32 0.0, %v5230
    %v5232 = vpop.f32.mrb[0].mxu0
    %5233 = vmatprep.mubr.bf16.mxu0 0
    %5234 = vmatmul.mubr.bf16.gmra.mrb[0].mxu0 %v4628
    %v5235 = vpop.f32.mrb[0].mxu0
    %v5236 = vadd.f32 0.0, %v5235
    %v5237 = vpop.f32.mrb[0].mxu0
    %v5238 = vpop.f32.mrb[0].mxu0
    %v5239 = vadd.f32 0.0, %v5238
    %v5240 = vpop.f32.mrb[0].mxu0
    %5241 = vmatprep.mubr.bf16.mxu0 0
    %5242 = vmatmul.mubr.bf16.gmra.mrb[0].mxu0 %v4631
    %v5243 = vpop.f32.mrb[0].mxu0
    %v5244 = vadd.f32 0.0, %v5243
    %v5245 = vpop.f32.mrb[0].mxu0
    %v5246 = vpop.f32.mrb[0].mxu0
    %v5247 = vadd.f32 0.0, %v5246
    %v5248 = vpop.f32.mrb[0].mxu0
    %5249 = vmatprep.mubr.bf16.mxu0 0
    %5250 = vmatmul.mubr.bf16.gmra.mrb[0].mxu0 %v4634
    %v5251 = vpop.f32.mrb[0].mxu0
    %v5252 = vadd.f32 0.0, %v5251
    %v5253 = vpop.f32.mrb[0].mxu0
    %v5254 = vpop.f32.mrb[0].mxu0
    %v5255 = vadd.f32 0.0, %v5254
    %v5256 = vpop.f32.mrb[0].mxu0
    %5257 = vmatprep.mubr.bf16.mxu0 0
    %5258 = vmatmul.mubr.bf16.gmra.mrb[0].mxu0 %v4637
    %v5259 = vpop.f32.mrb[0].mxu0
    %v5260 = vadd.f32 0.0, %v5259
    %v5261 = vpop.f32.mrb[0].mxu0
    %v5262 = vpop.f32.mrb[0].mxu0
    %v5263 = vadd.f32 0.0, %v5262
    %v5264 = vpop.f32.mrb[0].mxu0
    %5265 = vmatprep.mubr.bf16.mxu0 0
    %5266 = vmatmul.mubr.bf16.gmra.mrb[0].mxu0 %v4640
    %v5267 = vpop.f32.mrb[0].mxu0
    %v5268 = vadd.f32 0.0, %v5267
    %v5269 = vpop.f32.mrb[0].mxu0
    %v5270 = vpop.f32.mrb[0].mxu0
    %v5271 = vadd.f32 0.0, %v5270
    %v5272 = vpop.f32.mrb[0].mxu0
    %5273 = vmatprep.mubr.bf16.mxu0 0
    %5274 = vmatmul.mubr.bf16.gmra.mrb[0].mxu0 %v4643
    %v5275 = vpop.f32.mrb[0].mxu0
    %v5276 = vadd.f32 0.0, %v5275
    %v5277 = vpop.f32.mrb[0].mxu0
    %v5278 = vpop.f32.mrb[0].mxu0
    %v5279 = vadd.f32 0.0, %v5278
    %v5280 = vpop.f32.mrb[0].mxu0
    %5281 = vmatprep.mubr.bf16.mxu0 0
    %5282 = vmatmul.mubr.bf16.gmra.mrb[0].mxu0 %v4646
    %v5283 = vpop.f32.mrb[0].mxu0
    %v5284 = vadd.f32 0.0, %v5283
    %v5285 = vpop.f32.mrb[0].mxu0
    %v5286 = vpop.f32.mrb[0].mxu0
    %v5287 = vadd.f32 0.0, %v5286
    %v5288 = vpop.f32.mrb[0].mxu0
    %5289 = vmatprep.mubr.bf16.mxu0 0
    %5290 = vmatmul.mubr.bf16.gmra.mrb[0].mxu0 %v4649
    %v5291 = vpop.f32.mrb[0].mxu0
    %v5292 = vadd.f32 0.0, %v5291
    %v5293 = vpop.f32.mrb[0].mxu0
    %v5294 = vpop.f32.mrb[0].mxu0
    %v5295 = vadd.f32 0.0, %v5294
    %v5296 = vpop.f32.mrb[0].mxu0
    %5297 = vmatprep.mubr.bf16.mxu0 0
    %5298 = vmatmul.mubr.bf16.gmra.mrb[0].mxu0 %v4652
    %v5299 = vpop.f32.mrb[0].mxu0
    %v5300 = vadd.f32 0.0, %v5299
    %v5301 = vpop.f32.mrb[0].mxu0
    %v5302 = vpop.f32.mrb[0].mxu0
    %v5303 = vadd.f32 0.0, %v5302
    %v5304 = vpop.f32.mrb[0].mxu0
    %5305 = vmatprep.mubr.bf16.mxu0 0
    %5306 = vmatmul.mubr.bf16.gmra.mrb[0].mxu0 %v4655
    %v5307 = vpop.f32.mrb[0].mxu0
    %v5308 = vadd.f32 0.0, %v5307
    %v5309 = vpop.f32.mrb[0].mxu0
    %v5310 = vpop.f32.mrb[0].mxu0
    %v5311 = vadd.f32 0.0, %v5310
    %v5312 = vpop.f32.mrb[0].mxu0
    %5313 = vmatprep.mubr.bf16.mxu0 0
    %5314 = vmatmul.mubr.bf16.gmra.mrb[0].mxu0 %v4658
    %v5315 = vpop.f32.mrb[0].mxu0
    %v5316 = vadd.f32 0.0, %v5315
    %v5317 = vpop.f32.mrb[0].mxu0
    %v5318 = vpop.f32.mrb[0].mxu0
    %v5319 = vadd.f32 0.0, %v5318
    %v5320 = vpop.f32.mrb[0].mxu0
    %5321 = vmatprep.mubr.bf16.mxu0 0
    %5322 = vmatmul.mubr.bf16.gmra.mrb[0].mxu0 %v4661
    %v5323 = vpop.f32.mrb[0].mxu0
    %v5324 = vadd.f32 0.0, %v5323
    %v5325 = vpop.f32.mrb[0].mxu0
    %v5326 = vpop.f32.mrb[0].mxu0
    %v5327 = vadd.f32 0.0, %v5326
    %v5328 = vpop.f32.mrb[0].mxu0
    %5329 = vmatprep.mubr.bf16.mxu0 0
    %5330 = vmatmul.mubr.bf16.gmra.mrb[0].mxu0 %v4664
    %v5331 = vpop.f32.mrb[0].mxu0
    %v5332 = vadd.f32 0.0, %v5331
    %v5333 = vpop.f32.mrb[0].mxu0
    %v5334 = vpop.f32.mrb[0].mxu0
    %v5335 = vadd.f32 0.0, %v5334
    %v5336 = vpop.f32.mrb[0].mxu0
    %5337 = vmatprep.mubr.bf16.mxu0 0
    %5338 = vmatmul.mubr.bf16.gmra.mrb[0].mxu0 %v4667
    %v5339 = vpop.f32.mrb[0].mxu0
    %v5340 = vadd.f32 0.0, %v5339
    %v5341 = vpop.f32.mrb[0].mxu0
    %v5342 = vpop.f32.mrb[0].mxu0
    %v5343 = vadd.f32 0.0, %v5342
    %v5344 = vpop.f32.mrb[0].mxu0
    %5345 = vmatprep.mubr.bf16.mxu0 0
    %5346 = vmatmul.mubr.bf16.gmra.mrb[0].mxu0 %v4670
    %v5347 = vpop.f32.mrb[0].mxu0
    %v5348 = vadd.f32 0.0, %v5347
    %v5349 = vpop.f32.mrb[0].mxu0
    %v5350 = vpop.f32.mrb[0].mxu0
    %v5351 = vadd.f32 0.0, %v5350
    %v5352 = vpop.f32.mrb[0].mxu0
    %5353 = vmatprep.mubr.bf16.mxu0 0
    %5354 = vmatmul.mubr.bf16.gmra.mrb[0].mxu0 %v4673
    %v5355 = vpop.f32.mrb[0].mxu0
    %v5356 = vadd.f32 0.0, %v5355
    %v5357 = vpop.f32.mrb[0].mxu0
    %v5358 = vpop.f32.mrb[0].mxu0
    %v5359 = vadd.f32 0.0, %v5358
    %v5360 = vpop.f32.mrb[0].mxu0
    %5361 = vmatprep.mubr.bf16.mxu0 0
    %5362 = vmatmul.mubr.bf16.gmra.mrb[0].mxu0 %v4676
    %v5363 = vpop.f32.mrb[0].mxu0
    %v5364 = vadd.f32 0.0, %v5363
    %v5365 = vpop.f32.mrb[0].mxu0
    %v5366 = vpop.f32.mrb[0].mxu0
    %v5367 = vadd.f32 0.0, %v5366
    %v5368 = vpop.f32.mrb[0].mxu0
    %5369 = vmatprep.mubr.bf16.mxu0 0
    %5370 = vmatmul.mubr.bf16.gmra.mrb[0].mxu0 %v4679
    %v5371 = vpop.f32.mrb[0].mxu0
    %v5372 = vadd.f32 0.0, %v5371
    %v5373 = vpop.f32.mrb[0].mxu0
    %v5374 = vpop.f32.mrb[0].mxu0
    %v5375 = vadd.f32 0.0, %v5374
    %v5376 = vpop.f32.mrb[0].mxu0
    %5377 = vmatprep.mubr.bf16.mxu0 0
    %5378 = vmatmul.mubr.bf16.gmra.mrb[0].mxu0 %v4682
    %v5379 = vpop.f32.mrb[0].mxu0
    %v5380 = vadd.f32 0.0, %v5379
    %v5381 = vpop.f32.mrb[0].mxu0
    %v5382 = vpop.f32.mrb[0].mxu0
    %v5383 = vadd.f32 0.0, %v5382
    %v5384 = vpop.f32.mrb[0].mxu0
    %5385 = vmatprep.mubr.bf16.mxu0 0
    %5386 = vmatmul.mubr.bf16.gmra.mrb[0].mxu0 %v4685
    %v5387 = vpop.f32.mrb[0].mxu0
    %v5388 = vadd.f32 0.0, %v5387
    %v5389 = vpop.f32.mrb[0].mxu0
    %v5390 = vpop.f32.mrb[0].mxu0
    %v5391 = vadd.f32 0.0, %v5390
    %v5392 = vpop.f32.mrb[0].mxu0
    %5393 = vmatprep.mubr.bf16.mxu0 0
    %5394 = vmatmul.mubr.bf16.gmra.mrb[0].mxu0 %v4688
    %v5395 = vpop.f32.mrb[0].mxu0
    %v5396 = vadd.f32 0.0, %v5395
    %v5397 = vpop.f32.mrb[0].mxu0
    %v5398 = vpop.f32.mrb[0].mxu0
    %v5399 = vadd.f32 0.0, %v5398
    %v5400 = vpop.f32.mrb[0].mxu0
    %5401 = vmatprep.mubr.bf16.mxu0 0
    %5402 = vmatmul.mubr.bf16.gmra.mrb[0].mxu0 %v4691
    %v5403 = vpop.f32.mrb[0].mxu0
    %v5404 = vadd.f32 0.0, %v5403
    %v5405 = vpop.f32.mrb[0].mxu0
    %v5406 = vpop.f32.mrb[0].mxu0
    %v5407 = vadd.f32 0.0, %v5406
    %v5408 = vpop.f32.mrb[0].mxu0
    %5409 = vmatprep.mubr.bf16.mxu0 0
    %5410 = vmatmul.mubr.bf16.gmra.mrb[0].mxu0 %v4694
    %v5411 = vpop.f32.mrb[0].mxu0
    %v5412 = vadd.f32 0.0, %v5411
    %v5413 = vpop.f32.mrb[0].mxu0
    %v5414 = vpop.f32.mrb[0].mxu0
    %v5415 = vadd.f32 0.0, %v5414
    %v5416 = vpop.f32.mrb[0].mxu0
    %5417 = vmatprep.mubr.bf16.mxu0 0
    %5418 = vmatmul.mubr.bf16.gmra.mrb[0].mxu0 %v4697
    %v5419 = vpop.f32.mrb[0].mxu0
    %v5420 = vadd.f32 0.0, %v5419
    %v5421 = vpop.f32.mrb[0].mxu0
    %v5422 = vpop.f32.mrb[0].mxu0
    %v5423 = vadd.f32 0.0, %v5422
    %v5424 = vpop.f32.mrb[0].mxu0
    %5425 = vmatprep.mubr.bf16.mxu0 0
    %5426 = vmatmul.mubr.bf16.gmra.mrb[0].mxu0 %v4700
    %v5427 = vpop.f32.mrb[0].mxu0
    %v5428 = vadd.f32 0.0, %v5427
    %v5429 = vpop.f32.mrb[0].mxu0
    %v5430 = vpop.f32.mrb[0].mxu0
    %v5431 = vadd.f32 0.0, %v5430
    %v5432 = vpop.f32.mrb[0].mxu0
    %5433 = vmatprep.mubr.bf16.mxu0 0
    %5434 = vmatmul.mubr.bf16.gmra.mrb[0].mxu0 %v4703
    %v5435 = vpop.f32.mrb[0].mxu0
    %v5436 = vadd.f32 0.0, %v5435
    %v5437 = vpop.f32.mrb[0].mxu0
    %v5438 = vpop.f32.mrb[0].mxu0
    %v5439 = vadd.f32 0.0, %v5438
    %v5440 = vpop.f32.mrb[0].mxu0
    %5441 = vmatprep.mubr.bf16.mxu0 0
    %5442 = vmatmul.mubr.bf16.gmra.mrb[0].mxu0 %v4706
    %v5443 = vpop.f32.mrb[0].mxu0
    %v5444 = vadd.f32 0.0, %v5443
    %v5445 = vpop.f32.mrb[0].mxu0
    %v5446 = vpop.f32.mrb[0].mxu0
    %v5447 = vadd.f32 0.0, %v5446
    %v5448 = vpop.f32.mrb[0].mxu0
    %5449 = vmatprep.mubr.bf16.mxu0 0
    %5450 = vmatmul.mubr.bf16.gmra.mrb[0].mxu0 %v4709
    %v5451 = vpop.f32.mrb[0].mxu0
    %v5452 = vadd.f32 0.0, %v5451
    %v5453 = vpop.f32.mrb[0].mxu0
    %v5454 = vpop.f32.mrb[0].mxu0
    %v5455 = vadd.f32 0.0, %v5454
    %v5456 = vpop.f32.mrb[0].mxu0
    %5457 = vmatprep.mubr.bf16.mxu0 0
    %5458 = vmatmul.mubr.bf16.gmra.mrb[0].mxu0 %v4712
    %v5459 = vpop.f32.mrb[0].mxu0
    %v5460 = vadd.f32 0.0, %v5459
    %v5461 = vpop.f32.mrb[0].mxu0
    %v5462 = vpop.f32.mrb[0].mxu0
    %v5463 = vadd.f32 0.0, %v5462
    %v5464 = vpop.f32.mrb[0].mxu0
    %5465 = vmatprep.mubr.bf16.mxu0 0
    %5466 = vmatmul.mubr.bf16.gmra.mrb[0].mxu0 %v4715
    %v5467 = vpop.f32.mrb[0].mxu0
    %v5468 = vadd.f32 0.0, %v5467
    %v5469 = vpop.f32.mrb[0].mxu0
    %v5470 = vpop.f32.mrb[0].mxu0
    %v5471 = vadd.f32 0.0, %v5470
    %v5472 = vpop.f32.mrb[0].mxu0
    %5473 = vmatprep.mubr.bf16.mxu0 0
    %5474 = vmatmul.mubr.bf16.gmra.mrb[0].mxu0 %v4718
    %v5475 = vpop.f32.mrb[0].mxu0
    %v5476 = vadd.f32 0.0, %v5475
    %v5477 = vpop.f32.mrb[0].mxu0
    %v5478 = vpop.f32.mrb[0].mxu0
    %v5479 = vadd.f32 0.0, %v5478
    %v5480 = vpop.f32.mrb[0].mxu0
    %5481 = vmatprep.mubr.bf16.mxu0 0
    %5482 = vmatmul.mubr.bf16.gmra.mrb[0].mxu0 %v4721
    %v5483 = vpop.f32.mrb[0].mxu0
    %v5484 = vadd.f32 0.0, %v5483
    %v5485 = vpop.f32.mrb[0].mxu0
    %v5486 = vpop.f32.mrb[0].mxu0
    %v5487 = vadd.f32 0.0, %v5486
    %v5488 = vpop.f32.mrb[0].mxu0
    %5489 = vmatprep.mubr.bf16.mxu0 0
    %5490 = vmatmul.mubr.bf16.gmra.mrb[0].mxu0 %v4724
    %v5491 = vpop.f32.mrb[0].mxu0
    %v5492 = vadd.f32 0.0, %v5491
    %v5493 = vpop.f32.mrb[0].mxu0
    %v5494 = vpop.f32.mrb[0].mxu0
    %v5495 = vadd.f32 0.0, %v5494
    %v5496 = vpop.f32.mrb[0].mxu0
    %5497 = vmatprep.mubr.bf16.mxu0 0
    %5498 = vmatmul.mubr.bf16.gmra.mrb[0].mxu0 %v4727
    %v5499 = vpop.f32.mrb[0].mxu0
    %v5500 = vadd.f32 0.0, %v5499
    %v5501 = vpop.f32.mrb[0].mxu0
    %v5502 = vpop.f32.mrb[0].mxu0
    %v5503 = vadd.f32 0.0, %v5502
    %v5504 = vpop.f32.mrb[0].mxu0
    %5505 = vmatprep.mubr.bf16.mxu0 0
    %5506 = vmatmul.mubr.bf16.gmra.mrb[0].mxu0 %v4730
    %v5507 = vpop.f32.mrb[0].mxu0
    %v5508 = vadd.f32 0.0, %v5507
    %v5509 = vpop.f32.mrb[0].mxu0
    %v5510 = vpop.f32.mrb[0].mxu0
    %v5511 = vadd.f32 0.0, %v5510
    %v5512 = vpop.f32.mrb[0].mxu0
    %5513 = vmatprep.mubr.bf16.mxu0 0
    %5514 = vmatmul.mubr.bf16.gmra.mrb[0].mxu0 %v4733
    %v5515 = vpop.f32.mrb[0].mxu0
    %v5516 = vadd.f32 0.0, %v5515
    %v5517 = vpop.f32.mrb[0].mxu0
    %v5518 = vpop.f32.mrb[0].mxu0
    %v5519 = vadd.f32 0.0, %v5518
    %v5520 = vpop.f32.mrb[0].mxu0
    %5521 = vmatprep.mubr.bf16.mxu0 0
    %5522 = vmatmul.mubr.bf16.gmra.mrb[0].mxu0 %v4736
    %v5523 = vpop.f32.mrb[0].mxu0
    %v5524 = vadd.f32 0.0, %v5523
    %v5525 = vpop.f32.mrb[0].mxu0
    %v5526 = vpop.f32.mrb[0].mxu0
    %v5527 = vadd.f32 0.0, %v5526
    %v5528 = vpop.f32.mrb[0].mxu0
    %5529 = vmatprep.mubr.bf16.mxu0 0
    %5530 = vmatmul.mubr.bf16.gmra.mrb[0].mxu0 %v4739
    %v5531 = vpop.f32.mrb[0].mxu0
    %v5532 = vadd.f32 0.0, %v5531
    %v5533 = vpop.f32.mrb[0].mxu0
    %v5534 = vpop.f32.mrb[0].mxu0
    %v5535 = vadd.f32 0.0, %v5534
    %v5536 = vpop.f32.mrb[0].mxu0
    %5537 = vmatprep.mubr.bf16.mxu0 0
    %5538 = vmatmul.mubr.bf16.gmra.mrb[0].mxu0 %v4742
    %v5539 = vpop.f32.mrb[0].mxu0
    %v5540 = vadd.f32 0.0, %v5539
    %v5541 = vpop.f32.mrb[0].mxu0
    %v5542 = vpop.f32.mrb[0].mxu0
    %v5543 = vadd.f32 0.0, %v5542
    %v5544 = vpop.f32.mrb[0].mxu0
    %5545 = vmatprep.mubr.bf16.mxu0 0
    %5546 = vmatmul.mubr.bf16.gmra.mrb[0].mxu0 %v4745
    %v5547 = vpop.f32.mrb[0].mxu0
    %v5548 = vadd.f32 0.0, %v5547
    %v5549 = vpop.f32.mrb[0].mxu0
    %v5550 = vpop.f32.mrb[0].mxu0
    %v5551 = vadd.f32 0.0, %v5550
    %v5552 = vpop.f32.mrb[0].mxu0
    %5553 = vmatprep.mubr.bf16.mxu0 0
    %5554 = vmatmul.mubr.bf16.gmra.mrb[0].mxu0 %v4748
    %v5555 = vpop.f32.mrb[0].mxu0
    %v5556 = vadd.f32 0.0, %v5555
    %v5557 = vpop.f32.mrb[0].mxu0
    %v5558 = vpop.f32.mrb[0].mxu0
    %v5559 = vadd.f32 0.0, %v5558
    %v5560 = vpop.f32.mrb[0].mxu0
    %5561 = vmatprep.mubr.bf16.mxu0 0
    %5562 = vmatmul.mubr.bf16.gmra.mrb[0].mxu0 %v4751
    %v5563 = vpop.f32.mrb[0].mxu0
    %v5564 = vadd.f32 0.0, %v5563
    %v5565 = vpop.f32.mrb[0].mxu0
    %v5566 = vpop.f32.mrb[0].mxu0
    %v5567 = vadd.f32 0.0, %v5566
    %v5568 = vpop.f32.mrb[0].mxu0
    %5569 = vmatprep.mubr.bf16.mxu0 0
    %5570 = vmatmul.mubr.bf16.gmra.mrb[0].mxu0 %v4754
    %v5571 = vpop.f32.mrb[0].mxu0
    %v5572 = vadd.f32 0.0, %v5571
    %v5573 = vpop.f32.mrb[0].mxu0
    %v5574 = vpop.f32.mrb[0].mxu0
    %v5575 = vadd.f32 0.0, %v5574
    %v5576 = vpop.f32.mrb[0].mxu0
    %5577 = vmatprep.mubr.bf16.mxu0 0
    %5578 = vmatmul.mubr.bf16.gmra.mrb[0].mxu0 %v4757
    %v5579 = vpop.f32.mrb[0].mxu0
    %v5580 = vadd.f32 0.0, %v5579
    %v5581 = vpop.f32.mrb[0].mxu0
    %v5582 = vpop.f32.mrb[0].mxu0
    %v5583 = vadd.f32 0.0, %v5582
    %v5584 = vpop.f32.mrb[0].mxu0
    %5585 = vmatprep.mubr.bf16.mxu0 0
    %5586 = vmatmul.mubr.bf16.gmra.mrb[0].mxu0 %v4760
    %v5587 = vpop.f32.mrb[0].mxu0
    %v5588 = vadd.f32 0.0, %v5587
    %v5589 = vpop.f32.mrb[0].mxu0
    %v5590 = vpop.f32.mrb[0].mxu0
    %v5591 = vadd.f32 0.0, %v5590
    %v5592 = vpop.f32.mrb[0].mxu0
    %5593 = vmatprep.mubr.bf16.mxu0 0
    %5594 = vmatmul.mubr.bf16.gmra.mrb[0].mxu0 %v4763
    %v5595 = vpop.f32.mrb[0].mxu0
    %v5596 = vadd.f32 0.0, %v5595
    %v5597 = vpop.f32.mrb[0].mxu0
    %v5598 = vpop.f32.mrb[0].mxu0
    %v5599 = vadd.f32 0.0, %v5598
    %v5600 = vpop.f32.mrb[0].mxu0
    %5601 = vmatprep.mubr.bf16.mxu0 0
    %5602 = vmatmul.mubr.bf16.gmra.mrb[0].mxu0 %v4766
    %v5603 = vpop.f32.mrb[0].mxu0
    %v5604 = vadd.f32 0.0, %v5603
    %v5605 = vpop.f32.mrb[0].mxu0
    %v5606 = vpop.f32.mrb[0].mxu0
    %v5607 = vadd.f32 0.0, %v5606
    %v5608 = vpop.f32.mrb[0].mxu0
    %5609 = vdwg.mxu0
    %s5610 = scalar_lea.vmem %s4, 10
    %v5611 = vld [vmem:[%s5610] sm:$0x3]
    %v5613 = vsel %vm1960, %v5611, 0
    %5615 = vmatprep.subr.bf16.mxu0 0
    %5616 = vmatpush1.bf16.msra.mxu0 %v5613
    %5617 = vmatprep.subr.bf16.mxu0 0
    %5618 = vmatpush1.bf16.msra.mxu0 0
    %5619 = vmatprep.subr.bf16.mxu0 0
    %5620 = vmatpush1.bf16.msra.mxu0 0
    %5621 = vmatprep.subr.bf16.mxu0 0
    %5622 = vmatpush1.bf16.msra.mxu0 0
    %5623 = vmatprep.subr.bf16.mxu0 0
    %5624 = vmatpush1.bf16.msra.mxu0 0
    %5625 = vmatprep.subr.bf16.mxu0 0
    %5626 = vmatpush1.bf16.msra.mxu0 0
    %5627 = vmatprep.subr.bf16.mxu0 0
    %5628 = vmatpush1.bf16.msra.mxu0 0
    %5629 = vmatprep.subr.bf16.mxu0 0
    %5630 = vmatpush1.bf16.msra.mxu0 0
    %5631 = vmatprep.subr.bf16.mxu0 0
    %5632 = vmatpush1.bf16.msra.mxu0 0
    %5633 = vmatprep.subr.bf16.mxu0 0
    %5634 = vmatpush1.bf16.msra.mxu0 0
    %5635 = vmatprep.subr.bf16.mxu0 0
    %5636 = vmatpush1.bf16.msra.mxu0 0
    %5637 = vmatprep.subr.bf16.mxu0 0
    %5638 = vmatpush1.bf16.msra.mxu0 0
    %5639 = vmatprep.subr.bf16.mxu0 0
    %5640 = vmatpush1.bf16.msra.mxu0 0
    %5641 = vmatprep.subr.bf16.mxu0 0
    %5642 = vmatpush1.bf16.msra.mxu0 0
    %5643 = vmatprep.subr.bf16.mxu0 0
    %5644 = vmatpush1.bf16.msra.mxu0 0
    %5645 = vmatprep.subr.bf16.mxu0 0
    %5646 = vmatpush1.bf16.msra.mxu0 0
    %5647 = vmatprep.mubr.bf16.mxu0 0
    %5648 = vmatmul.mubr.bf16.gmra.mrb[0].mxu0 %v4625
    %v5649 = vpop.f32.mrb[0].mxu0
    %v5650 = vadd.f32 0.0, %v5649
    %v5651 = vpop.f32.mrb[0].mxu0
    %v5652 = vpop.f32.mrb[0].mxu0
    %v5653 = vadd.f32 0.0, %v5652
    %v5654 = vpop.f32.mrb[0].mxu0
    %5655 = vmatprep.mubr.bf16.mxu0 0
    %5656 = vmatmul.mubr.bf16.gmra.mrb[0].mxu0 %v4628
    %v5657 = vpop.f32.mrb[0].mxu0
    %v5658 = vadd.f32 0.0, %v5657
    %v5659 = vpop.f32.mrb[0].mxu0
    %v5660 = vpop.f32.mrb[0].mxu0
    %v5661 = vadd.f32 0.0, %v5660
    %v5662 = vpop.f32.mrb[0].mxu0
    %5663 = vmatprep.mubr.bf16.mxu0 0
    %5664 = vmatmul.mubr.bf16.gmra.mrb[0].mxu0 %v4631
    %v5665 = vpop.f32.mrb[0].mxu0
    %v5666 = vadd.f32 0.0, %v5665
    %v5667 = vpop.f32.mrb[0].mxu0
    %v5668 = vpop.f32.mrb[0].mxu0
    %v5669 = vadd.f32 0.0, %v5668
    %v5670 = vpop.f32.mrb[0].mxu0
    %5671 = vmatprep.mubr.bf16.mxu0 0
    %5672 = vmatmul.mubr.bf16.gmra.mrb[0].mxu0 %v4634
    %v5673 = vpop.f32.mrb[0].mxu0
    %v5674 = vadd.f32 0.0, %v5673
    %v5675 = vpop.f32.mrb[0].mxu0
    %v5676 = vpop.f32.mrb[0].mxu0
    %v5677 = vadd.f32 0.0, %v5676
    %v5678 = vpop.f32.mrb[0].mxu0
    %5679 = vmatprep.mubr.bf16.mxu0 0
    %5680 = vmatmul.mubr.bf16.gmra.mrb[0].mxu0 %v4637
    %v5681 = vpop.f32.mrb[0].mxu0
    %v5682 = vadd.f32 0.0, %v5681
    %v5683 = vpop.f32.mrb[0].mxu0
    %v5684 = vpop.f32.mrb[0].mxu0
    %v5685 = vadd.f32 0.0, %v5684
    %v5686 = vpop.f32.mrb[0].mxu0
    %5687 = vmatprep.mubr.bf16.mxu0 0
    %5688 = vmatmul.mubr.bf16.gmra.mrb[0].mxu0 %v4640
    %v5689 = vpop.f32.mrb[0].mxu0
    %v5690 = vadd.f32 0.0, %v5689
    %v5691 = vpop.f32.mrb[0].mxu0
    %v5692 = vpop.f32.mrb[0].mxu0
    %v5693 = vadd.f32 0.0, %v5692
    %v5694 = vpop.f32.mrb[0].mxu0
    %5695 = vmatprep.mubr.bf16.mxu0 0
    %5696 = vmatmul.mubr.bf16.gmra.mrb[0].mxu0 %v4643
    %v5697 = vpop.f32.mrb[0].mxu0
    %v5698 = vadd.f32 0.0, %v5697
    %v5699 = vpop.f32.mrb[0].mxu0
    %v5700 = vpop.f32.mrb[0].mxu0
    %v5701 = vadd.f32 0.0, %v5700
    %v5702 = vpop.f32.mrb[0].mxu0
    %5703 = vmatprep.mubr.bf16.mxu0 0
    %5704 = vmatmul.mubr.bf16.gmra.mrb[0].mxu0 %v4646
    %v5705 = vpop.f32.mrb[0].mxu0
    %v5706 = vadd.f32 0.0, %v5705
    %v5707 = vpop.f32.mrb[0].mxu0
    %v5708 = vpop.f32.mrb[0].mxu0
    %v5709 = vadd.f32 0.0, %v5708
    %v5710 = vpop.f32.mrb[0].mxu0
    %5711 = vmatprep.mubr.bf16.mxu0 0
    %5712 = vmatmul.mubr.bf16.gmra.mrb[0].mxu0 %v4649
    %v5713 = vpop.f32.mrb[0].mxu0
    %v5714 = vadd.f32 0.0, %v5713
    %v5715 = vpop.f32.mrb[0].mxu0
    %v5716 = vpop.f32.mrb[0].mxu0
    %v5717 = vadd.f32 0.0, %v5716
    %v5718 = vpop.f32.mrb[0].mxu0
    %5719 = vmatprep.mubr.bf16.mxu0 0
    %5720 = vmatmul.mubr.bf16.gmra.mrb[0].mxu0 %v4652
    %v5721 = vpop.f32.mrb[0].mxu0
    %v5722 = vadd.f32 0.0, %v5721
    %v5723 = vpop.f32.mrb[0].mxu0
    %v5724 = vpop.f32.mrb[0].mxu0
    %v5725 = vadd.f32 0.0, %v5724
    %v5726 = vpop.f32.mrb[0].mxu0
    %5727 = vmatprep.mubr.bf16.mxu0 0
    %5728 = vmatmul.mubr.bf16.gmra.mrb[0].mxu0 %v4655
    %v5729 = vpop.f32.mrb[0].mxu0
    %v5730 = vadd.f32 0.0, %v5729
    %v5731 = vpop.f32.mrb[0].mxu0
    %v5732 = vpop.f32.mrb[0].mxu0
    %v5733 = vadd.f32 0.0, %v5732
    %v5734 = vpop.f32.mrb[0].mxu0
    %5735 = vmatprep.mubr.bf16.mxu0 0
    %5736 = vmatmul.mubr.bf16.gmra.mrb[0].mxu0 %v4658
    %v5737 = vpop.f32.mrb[0].mxu0
    %v5738 = vadd.f32 0.0, %v5737
    %v5739 = vpop.f32.mrb[0].mxu0
    %v5740 = vpop.f32.mrb[0].mxu0
    %v5741 = vadd.f32 0.0, %v5740
    %v5742 = vpop.f32.mrb[0].mxu0
    %5743 = vmatprep.mubr.bf16.mxu0 0
    %5744 = vmatmul.mubr.bf16.gmra.mrb[0].mxu0 %v4661
    %v5745 = vpop.f32.mrb[0].mxu0
    %v5746 = vadd.f32 0.0, %v5745
    %v5747 = vpop.f32.mrb[0].mxu0
    %v5748 = vpop.f32.mrb[0].mxu0
    %v5749 = vadd.f32 0.0, %v5748
    %v5750 = vpop.f32.mrb[0].mxu0
    %5751 = vmatprep.mubr.bf16.mxu0 0
    %5752 = vmatmul.mubr.bf16.gmra.mrb[0].mxu0 %v4664
    %v5753 = vpop.f32.mrb[0].mxu0
    %v5754 = vadd.f32 0.0, %v5753
    %v5755 = vpop.f32.mrb[0].mxu0
    %v5756 = vpop.f32.mrb[0].mxu0
    %v5757 = vadd.f32 0.0, %v5756
    %v5758 = vpop.f32.mrb[0].mxu0
    %5759 = vmatprep.mubr.bf16.mxu0 0
    %5760 = vmatmul.mubr.bf16.gmra.mrb[0].mxu0 %v4667
    %v5761 = vpop.f32.mrb[0].mxu0
    %v5762 = vadd.f32 0.0, %v5761
    %v5763 = vpop.f32.mrb[0].mxu0
    %v5764 = vpop.f32.mrb[0].mxu0
    %v5765 = vadd.f32 0.0, %v5764
    %v5766 = vpop.f32.mrb[0].mxu0
    %5767 = vmatprep.mubr.bf16.mxu0 0
    %5768 = vmatmul.mubr.bf16.gmra.mrb[0].mxu0 %v4670
    %v5769 = vpop.f32.mrb[0].mxu0
    %v5770 = vadd.f32 0.0, %v5769
    %v5771 = vpop.f32.mrb[0].mxu0
    %v5772 = vpop.f32.mrb[0].mxu0
    %v5773 = vadd.f32 0.0, %v5772
    %v5774 = vpop.f32.mrb[0].mxu0
    %5775 = vmatprep.mubr.bf16.mxu0 0
    %5776 = vmatmul.mubr.bf16.gmra.mrb[0].mxu0 %v4673
    %v5777 = vpop.f32.mrb[0].mxu0
    %v5778 = vadd.f32 0.0, %v5777
    %v5779 = vpop.f32.mrb[0].mxu0
    %v5780 = vpop.f32.mrb[0].mxu0
    %v5781 = vadd.f32 0.0, %v5780
    %v5782 = vpop.f32.mrb[0].mxu0
    %5783 = vmatprep.mubr.bf16.mxu0 0
    %5784 = vmatmul.mubr.bf16.gmra.mrb[0].mxu0 %v4676
    %v5785 = vpop.f32.mrb[0].mxu0
    %v5786 = vadd.f32 0.0, %v5785
    %v5787 = vpop.f32.mrb[0].mxu0
    %v5788 = vpop.f32.mrb[0].mxu0
    %v5789 = vadd.f32 0.0, %v5788
    %v5790 = vpop.f32.mrb[0].mxu0
    %5791 = vmatprep.mubr.bf16.mxu0 0
    %5792 = vmatmul.mubr.bf16.gmra.mrb[0].mxu0 %v4679
    %v5793 = vpop.f32.mrb[0].mxu0
    %v5794 = vadd.f32 0.0, %v5793
    %v5795 = vpop.f32.mrb[0].mxu0
    %v5796 = vpop.f32.mrb[0].mxu0
    %v5797 = vadd.f32 0.0, %v5796
    %v5798 = vpop.f32.mrb[0].mxu0
    %5799 = vmatprep.mubr.bf16.mxu0 0
    %5800 = vmatmul.mubr.bf16.gmra.mrb[0].mxu0 %v4682
    %v5801 = vpop.f32.mrb[0].mxu0
    %v5802 = vadd.f32 0.0, %v5801
    %v5803 = vpop.f32.mrb[0].mxu0
    %v5804 = vpop.f32.mrb[0].mxu0
    %v5805 = vadd.f32 0.0, %v5804
    %v5806 = vpop.f32.mrb[0].mxu0
    %5807 = vmatprep.mubr.bf16.mxu0 0
    %5808 = vmatmul.mubr.bf16.gmra.mrb[0].mxu0 %v4685
    %v5809 = vpop.f32.mrb[0].mxu0
    %v5810 = vadd.f32 0.0, %v5809
    %v5811 = vpop.f32.mrb[0].mxu0
    %v5812 = vpop.f32.mrb[0].mxu0
    %v5813 = vadd.f32 0.0, %v5812
    %v5814 = vpop.f32.mrb[0].mxu0
    %5815 = vmatprep.mubr.bf16.mxu0 0
    %5816 = vmatmul.mubr.bf16.gmra.mrb[0].mxu0 %v4688
    %v5817 = vpop.f32.mrb[0].mxu0
    %v5818 = vadd.f32 0.0, %v5817
    %v5819 = vpop.f32.mrb[0].mxu0
    %v5820 = vpop.f32.mrb[0].mxu0
    %v5821 = vadd.f32 0.0, %v5820
    %v5822 = vpop.f32.mrb[0].mxu0
    %5823 = vmatprep.mubr.bf16.mxu0 0
    %5824 = vmatmul.mubr.bf16.gmra.mrb[0].mxu0 %v4691
    %v5825 = vpop.f32.mrb[0].mxu0
    %v5826 = vadd.f32 0.0, %v5825
    %v5827 = vpop.f32.mrb[0].mxu0
    %v5828 = vpop.f32.mrb[0].mxu0
    %v5829 = vadd.f32 0.0, %v5828
    %v5830 = vpop.f32.mrb[0].mxu0
    %5831 = vmatprep.mubr.bf16.mxu0 0
    %5832 = vmatmul.mubr.bf16.gmra.mrb[0].mxu0 %v4694
    %v5833 = vpop.f32.mrb[0].mxu0
    %v5834 = vadd.f32 0.0, %v5833
    %v5835 = vpop.f32.mrb[0].mxu0
    %v5836 = vpop.f32.mrb[0].mxu0
    %v5837 = vadd.f32 0.0, %v5836
    %v5838 = vpop.f32.mrb[0].mxu0
    %5839 = vmatprep.mubr.bf16.mxu0 0
    %5840 = vmatmul.mubr.bf16.gmra.mrb[0].mxu0 %v4697
    %v5841 = vpop.f32.mrb[0].mxu0
    %v5842 = vadd.f32 0.0, %v5841
    %v5843 = vpop.f32.mrb[0].mxu0
    %v5844 = vpop.f32.mrb[0].mxu0
    %v5845 = vadd.f32 0.0, %v5844
    %v5846 = vpop.f32.mrb[0].mxu0
    %5847 = vmatprep.mubr.bf16.mxu0 0
    %5848 = vmatmul.mubr.bf16.gmra.mrb[0].mxu0 %v4700
    %v5849 = vpop.f32.mrb[0].mxu0
    %v5850 = vadd.f32 0.0, %v5849
    %v5851 = vpop.f32.mrb[0].mxu0
    %v5852 = vpop.f32.mrb[0].mxu0
    %v5853 = vadd.f32 0.0, %v5852
    %v5854 = vpop.f32.mrb[0].mxu0
    %5855 = vmatprep.mubr.bf16.mxu0 0
    %5856 = vmatmul.mubr.bf16.gmra.mrb[0].mxu0 %v4703
    %v5857 = vpop.f32.mrb[0].mxu0
    %v5858 = vadd.f32 0.0, %v5857
    %v5859 = vpop.f32.mrb[0].mxu0
    %v5860 = vpop.f32.mrb[0].mxu0
    %v5861 = vadd.f32 0.0, %v5860
    %v5862 = vpop.f32.mrb[0].mxu0
    %5863 = vmatprep.mubr.bf16.mxu0 0
    %5864 = vmatmul.mubr.bf16.gmra.mrb[0].mxu0 %v4706
    %v5865 = vpop.f32.mrb[0].mxu0
    %v5866 = vadd.f32 0.0, %v5865
    %v5867 = vpop.f32.mrb[0].mxu0
    %v5868 = vpop.f32.mrb[0].mxu0
    %v5869 = vadd.f32 0.0, %v5868
    %v5870 = vpop.f32.mrb[0].mxu0
    %5871 = vmatprep.mubr.bf16.mxu0 0
    %5872 = vmatmul.mubr.bf16.gmra.mrb[0].mxu0 %v4709
    %v5873 = vpop.f32.mrb[0].mxu0
    %v5874 = vadd.f32 0.0, %v5873
    %v5875 = vpop.f32.mrb[0].mxu0
    %v5876 = vpop.f32.mrb[0].mxu0
    %v5877 = vadd.f32 0.0, %v5876
    %v5878 = vpop.f32.mrb[0].mxu0
    %5879 = vmatprep.mubr.bf16.mxu0 0
    %5880 = vmatmul.mubr.bf16.gmra.mrb[0].mxu0 %v4712
    %v5881 = vpop.f32.mrb[0].mxu0
    %v5882 = vadd.f32 0.0, %v5881
    %v5883 = vpop.f32.mrb[0].mxu0
    %v5884 = vpop.f32.mrb[0].mxu0
    %v5885 = vadd.f32 0.0, %v5884
    %v5886 = vpop.f32.mrb[0].mxu0
    %5887 = vmatprep.mubr.bf16.mxu0 0
    %5888 = vmatmul.mubr.bf16.gmra.mrb[0].mxu0 %v4715
    %v5889 = vpop.f32.mrb[0].mxu0
    %v5890 = vadd.f32 0.0, %v5889
    %v5891 = vpop.f32.mrb[0].mxu0
    %v5892 = vpop.f32.mrb[0].mxu0
    %v5893 = vadd.f32 0.0, %v5892
    %v5894 = vpop.f32.mrb[0].mxu0
    %5895 = vmatprep.mubr.bf16.mxu0 0
    %5896 = vmatmul.mubr.bf16.gmra.mrb[0].mxu0 %v4718
    %v5897 = vpop.f32.mrb[0].mxu0
    %v5898 = vadd.f32 0.0, %v5897
    %v5899 = vpop.f32.mrb[0].mxu0
    %v5900 = vpop.f32.mrb[0].mxu0
    %v5901 = vadd.f32 0.0, %v5900
    %v5902 = vpop.f32.mrb[0].mxu0
    %5903 = vmatprep.mubr.bf16.mxu0 0
    %5904 = vmatmul.mubr.bf16.gmra.mrb[0].mxu0 %v4721
    %v5905 = vpop.f32.mrb[0].mxu0
    %v5906 = vadd.f32 0.0, %v5905
    %v5907 = vpop.f32.mrb[0].mxu0
    %v5908 = vpop.f32.mrb[0].mxu0
    %v5909 = vadd.f32 0.0, %v5908
    %v5910 = vpop.f32.mrb[0].mxu0
    %5911 = vmatprep.mubr.bf16.mxu0 0
    %5912 = vmatmul.mubr.bf16.gmra.mrb[0].mxu0 %v4724
    %v5913 = vpop.f32.mrb[0].mxu0
    %v5914 = vadd.f32 0.0, %v5913
    %v5915 = vpop.f32.mrb[0].mxu0
    %v5916 = vpop.f32.mrb[0].mxu0
    %v5917 = vadd.f32 0.0, %v5916
    %v5918 = vpop.f32.mrb[0].mxu0
    %5919 = vmatprep.mubr.bf16.mxu0 0
    %5920 = vmatmul.mubr.bf16.gmra.mrb[0].mxu0 %v4727
    %v5921 = vpop.f32.mrb[0].mxu0
    %v5922 = vadd.f32 0.0, %v5921
    %v5923 = vpop.f32.mrb[0].mxu0
    %v5924 = vpop.f32.mrb[0].mxu0
    %v5925 = vadd.f32 0.0, %v5924
    %v5926 = vpop.f32.mrb[0].mxu0
    %5927 = vmatprep.mubr.bf16.mxu0 0
    %5928 = vmatmul.mubr.bf16.gmra.mrb[0].mxu0 %v4730
    %v5929 = vpop.f32.mrb[0].mxu0
    %v5930 = vadd.f32 0.0, %v5929
    %v5931 = vpop.f32.mrb[0].mxu0
    %v5932 = vpop.f32.mrb[0].mxu0
    %v5933 = vadd.f32 0.0, %v5932
    %v5934 = vpop.f32.mrb[0].mxu0
    %5935 = vmatprep.mubr.bf16.mxu0 0
    %5936 = vmatmul.mubr.bf16.gmra.mrb[0].mxu0 %v4733
    %v5937 = vpop.f32.mrb[0].mxu0
    %v5938 = vadd.f32 0.0, %v5937
    %v5939 = vpop.f32.mrb[0].mxu0
    %v5940 = vpop.f32.mrb[0].mxu0
    %v5941 = vadd.f32 0.0, %v5940
    %v5942 = vpop.f32.mrb[0].mxu0
    %5943 = vmatprep.mubr.bf16.mxu0 0
    %5944 = vmatmul.mubr.bf16.gmra.mrb[0].mxu0 %v4736
    %v5945 = vpop.f32.mrb[0].mxu0
    %v5946 = vadd.f32 0.0, %v5945
    %v5947 = vpop.f32.mrb[0].mxu0
    %v5948 = vpop.f32.mrb[0].mxu0
    %v5949 = vadd.f32 0.0, %v5948
    %v5950 = vpop.f32.mrb[0].mxu0
    %5951 = vmatprep.mubr.bf16.mxu0 0
    %5952 = vmatmul.mubr.bf16.gmra.mrb[0].mxu0 %v4739
    %v5953 = vpop.f32.mrb[0].mxu0
    %v5954 = vadd.f32 0.0, %v5953
    %v5955 = vpop.f32.mrb[0].mxu0
    %v5956 = vpop.f32.mrb[0].mxu0
    %v5957 = vadd.f32 0.0, %v5956
    %v5958 = vpop.f32.mrb[0].mxu0
    %5959 = vmatprep.mubr.bf16.mxu0 0
    %5960 = vmatmul.mubr.bf16.gmra.mrb[0].mxu0 %v4742
    %v5961 = vpop.f32.mrb[0].mxu0
    %v5962 = vadd.f32 0.0, %v5961
    %v5963 = vpop.f32.mrb[0].mxu0
    %v5964 = vpop.f32.mrb[0].mxu0
    %v5965 = vadd.f32 0.0, %v5964
    %v5966 = vpop.f32.mrb[0].mxu0
    %5967 = vmatprep.mubr.bf16.mxu0 0
    %5968 = vmatmul.mubr.bf16.gmra.mrb[0].mxu0 %v4745
    %v5969 = vpop.f32.mrb[0].mxu0
    %v5970 = vadd.f32 0.0, %v5969
    %v5971 = vpop.f32.mrb[0].mxu0
    %v5972 = vpop.f32.mrb[0].mxu0
    %v5973 = vadd.f32 0.0, %v5972
    %v5974 = vpop.f32.mrb[0].mxu0
    %5975 = vmatprep.mubr.bf16.mxu0 0
    %5976 = vmatmul.mubr.bf16.gmra.mrb[0].mxu0 %v4748
    %v5977 = vpop.f32.mrb[0].mxu0
    %v5978 = vadd.f32 0.0, %v5977
    %v5979 = vpop.f32.mrb[0].mxu0
    %v5980 = vpop.f32.mrb[0].mxu0
    %v5981 = vadd.f32 0.0, %v5980
    %v5982 = vpop.f32.mrb[0].mxu0
    %5983 = vmatprep.mubr.bf16.mxu0 0
    %5984 = vmatmul.mubr.bf16.gmra.mrb[0].mxu0 %v4751
    %v5985 = vpop.f32.mrb[0].mxu0
    %v5986 = vadd.f32 0.0, %v5985
    %v5987 = vpop.f32.mrb[0].mxu0
    %v5988 = vpop.f32.mrb[0].mxu0
    %v5989 = vadd.f32 0.0, %v5988
    %v5990 = vpop.f32.mrb[0].mxu0
    %5991 = vmatprep.mubr.bf16.mxu0 0
    %5992 = vmatmul.mubr.bf16.gmra.mrb[0].mxu0 %v4754
    %v5993 = vpop.f32.mrb[0].mxu0
    %v5994 = vadd.f32 0.0, %v5993
    %v5995 = vpop.f32.mrb[0].mxu0
    %v5996 = vpop.f32.mrb[0].mxu0
    %v5997 = vadd.f32 0.0, %v5996
    %v5998 = vpop.f32.mrb[0].mxu0
    %5999 = vmatprep.mubr.bf16.mxu0 0
    %6000 = vmatmul.mubr.bf16.gmra.mrb[0].mxu0 %v4757
    %v6001 = vpop.f32.mrb[0].mxu0
    %v6002 = vadd.f32 0.0, %v6001
    %v6003 = vpop.f32.mrb[0].mxu0
    %v6004 = vpop.f32.mrb[0].mxu0
    %v6005 = vadd.f32 0.0, %v6004
    %v6006 = vpop.f32.mrb[0].mxu0
    %6007 = vmatprep.mubr.bf16.mxu0 0
    %6008 = vmatmul.mubr.bf16.gmra.mrb[0].mxu0 %v4760
    %v6009 = vpop.f32.mrb[0].mxu0
    %v6010 = vadd.f32 0.0, %v6009
    %v6011 = vpop.f32.mrb[0].mxu0
    %v6012 = vpop.f32.mrb[0].mxu0
    %v6013 = vadd.f32 0.0, %v6012
    %v6014 = vpop.f32.mrb[0].mxu0
    %6015 = vmatprep.mubr.bf16.mxu0 0
    %6016 = vmatmul.mubr.bf16.gmra.mrb[0].mxu0 %v4763
    %v6017 = vpop.f32.mrb[0].mxu0
    %v6018 = vadd.f32 0.0, %v6017
    %v6019 = vpop.f32.mrb[0].mxu0
    %v6020 = vpop.f32.mrb[0].mxu0
    %v6021 = vadd.f32 0.0, %v6020
    %v6022 = vpop.f32.mrb[0].mxu0
    %6023 = vmatprep.mubr.bf16.mxu0 0
    %6024 = vmatmul.mubr.bf16.gmra.mrb[0].mxu0 %v4766
    %v6025 = vpop.f32.mrb[0].mxu0
    %v6026 = vadd.f32 0.0, %v6025
    %v6027 = vpop.f32.mrb[0].mxu0
    %v6028 = vpop.f32.mrb[0].mxu0
    %v6029 = vadd.f32 0.0, %v6028
    %v6030 = vpop.f32.mrb[0].mxu0
    %6031 = vdwg.mxu0
    %v6033 = vrot.slane %v5185, 7
    %v6130 = vrot.slane %v4806, 7
    %v6131 = vrot.slane %v4809, 7
    %v6132 = vsel %vm3323, %v6130, %v6131
    %v6133 = vrot.slane %v4814, 7
    %v6134 = vsel %vm3323, %v6131, %v6133
    %v6135 = vrot.slane %v4817, 7
    %v6136 = vsel %vm3323, %v6133, %v6135
    %v6137 = vrot.slane %v4822, 7
    %v6138 = vsel %vm3323, %v6135, %v6137
    %v6139 = vrot.slane %v4825, 7
    %v6140 = vsel %vm3323, %v6137, %v6139
    %v6141 = vrot.slane %v4830, 7
    %v6142 = vsel %vm3323, %v6139, %v6141
    %v6143 = vrot.slane %v4833, 7
    %v6144 = vsel %vm3323, %v6141, %v6143
    %v6145 = vrot.slane %v4838, 7
    %v6146 = vsel %vm3323, %v6143, %v6145
    %v6147 = vrot.slane %v4841, 7
    %v6148 = vsel %vm3323, %v6145, %v6147
    %v6149 = vrot.slane %v4846, 7
    %v6150 = vsel %vm3323, %v6147, %v6149
    %v6151 = vrot.slane %v4849, 7
    %v6152 = vsel %vm3323, %v6149, %v6151
    %v6153 = vrot.slane %v4854, 7
    %v6154 = vsel %vm3323, %v6151, %v6153
    %v6155 = vrot.slane %v4857, 7
    %v6156 = vsel %vm3323, %v6153, %v6155
    %v6157 = vrot.slane %v4862, 7
    %v6158 = vsel %vm3323, %v6155, %v6157
    %v6159 = vrot.slane %v4865, 7
    %v6160 = vsel %vm3323, %v6157, %v6159
    %v6161 = vrot.slane %v4870, 7
    %v6162 = vsel %vm3323, %v6159, %v6161
    %v6163 = vrot.slane %v4873, 7
    %v6164 = vsel %vm3323, %v6161, %v6163
    %v6165 = vrot.slane %v4878, 7
    %v6166 = vsel %vm3323, %v6163, %v6165
    %v6167 = vrot.slane %v4881, 7
    %v6168 = vsel %vm3323, %v6165, %v6167
    %v6169 = vrot.slane %v4886, 7
    %v6170 = vsel %vm3323, %v6167, %v6169
    %v6171 = vrot.slane %v4889, 7
    %v6172 = vsel %vm3323, %v6169, %v6171
    %v6173 = vrot.slane %v4894, 7
    %v6174 = vsel %vm3323, %v6171, %v6173
    %v6175 = vrot.slane %v4897, 7
    %v6176 = vsel %vm3323, %v6173, %v6175
    %v6177 = vrot.slane %v4902, 7
    %v6178 = vsel %vm3323, %v6175, %v6177
    %v6179 = vrot.slane %v4905, 7
    %v6180 = vsel %vm3323, %v6177, %v6179
    %v6181 = vrot.slane %v4910, 7
    %v6182 = vsel %vm3323, %v6179, %v6181
    %v6183 = vrot.slane %v4913, 7
    %v6184 = vsel %vm3323, %v6181, %v6183
    %v6185 = vrot.slane %v4918, 7
    %v6186 = vsel %vm3323, %v6183, %v6185
    %v6187 = vrot.slane %v4921, 7
    %v6188 = vsel %vm3323, %v6185, %v6187
    %v6189 = vrot.slane %v4926, 7
    %v6190 = vsel %vm3323, %v6187, %v6189
    %v6191 = vrot.slane %v4929, 7
    %v6192 = vsel %vm3323, %v6189, %v6191
    %v6193 = vrot.slane %v4934, 7
    %v6194 = vsel %vm3323, %v6191, %v6193
    %v6195 = vrot.slane %v4937, 7
    %v6196 = vsel %vm3323, %v6193, %v6195
    %v6197 = vrot.slane %v4942, 7
    %v6198 = vsel %vm3323, %v6195, %v6197
    %v6199 = vrot.slane %v4945, 7
    %v6200 = vsel %vm3323, %v6197, %v6199
    %v6201 = vrot.slane %v4950, 7
    %v6202 = vsel %vm3323, %v6199, %v6201
    %v6203 = vrot.slane %v4953, 7
    %v6204 = vsel %vm3323, %v6201, %v6203
    %v6205 = vrot.slane %v4958, 7
    %v6206 = vsel %vm3323, %v6203, %v6205
    %v6207 = vrot.slane %v4961, 7
    %v6208 = vsel %vm3323, %v6205, %v6207
    %v6209 = vrot.slane %v4966, 7
    %v6210 = vsel %vm3323, %v6207, %v6209
    %v6211 = vrot.slane %v4969, 7
    %v6212 = vsel %vm3323, %v6209, %v6211
    %v6213 = vrot.slane %v4974, 7
    %v6214 = vsel %vm3323, %v6211, %v6213
    %v6215 = vrot.slane %v4977, 7
    %v6216 = vsel %vm3323, %v6213, %v6215
    %v6217 = vrot.slane %v4982, 7
    %v6218 = vsel %vm3323, %v6215, %v6217
    %v6219 = vrot.slane %v4985, 7
    %v6220 = vsel %vm3323, %v6217, %v6219
    %v6221 = vrot.slane %v4990, 7
    %v6222 = vsel %vm3323, %v6219, %v6221
    %v6223 = vrot.slane %v4993, 7
    %v6224 = vsel %vm3323, %v6221, %v6223
    %v6225 = vrot.slane %v4998, 7
    %v6226 = vsel %vm3323, %v6223, %v6225
    %v6227 = vrot.slane %v5001, 7
    %v6228 = vsel %vm3323, %v6225, %v6227
    %v6229 = vrot.slane %v5006, 7
    %v6230 = vsel %vm3323, %v6227, %v6229
    %v6231 = vrot.slane %v5009, 7
    %v6232 = vsel %vm3323, %v6229, %v6231
    %v6233 = vrot.slane %v5014, 7
    %v6234 = vsel %vm3323, %v6231, %v6233
    %v6235 = vrot.slane %v5017, 7
    %v6236 = vsel %vm3323, %v6233, %v6235
    %v6237 = vrot.slane %v5022, 7
    %v6238 = vsel %vm3323, %v6235, %v6237
    %v6239 = vrot.slane %v5025, 7
    %v6240 = vsel %vm3323, %v6237, %v6239
    %v6241 = vrot.slane %v5030, 7
    %v6242 = vsel %vm3323, %v6239, %v6241
    %v6243 = vrot.slane %v5033, 7
    %v6244 = vsel %vm3323, %v6241, %v6243
    %v6245 = vrot.slane %v5038, 7
    %v6246 = vsel %vm3323, %v6243, %v6245
    %v6247 = vrot.slane %v5041, 7
    %v6248 = vsel %vm3323, %v6245, %v6247
    %v6249 = vrot.slane %v5046, 7
    %v6250 = vsel %vm3323, %v6247, %v6249
    %v6251 = vrot.slane %v5049, 7
    %v6252 = vsel %vm3323, %v6249, %v6251
    %v6253 = vrot.slane %v5054, 7
    %v6254 = vsel %vm3323, %v6251, %v6253
    %v6255 = vrot.slane %v5057, 7
    %v6256 = vsel %vm3323, %v6253, %v6255
    %v6257 = vrot.slane %v5062, 7
    %v6258 = vsel %vm3323, %v6255, %v6257
    %v6259 = vrot.slane %v5065, 7
    %v6260 = vsel %vm3323, %v6257, %v6259
    %v6261 = vrot.slane %v5070, 7
    %v6262 = vsel %vm3323, %v6259, %v6261
    %v6263 = vrot.slane %v5073, 7
    %v6264 = vsel %vm3323, %v6261, %v6263
    %v6265 = vrot.slane %v5078, 7
    %v6266 = vsel %vm3323, %v6263, %v6265
    %v6267 = vrot.slane %v5081, 7
    %v6268 = vsel %vm3323, %v6265, %v6267
    %v6269 = vrot.slane %v5086, 7
    %v6270 = vsel %vm3323, %v6267, %v6269
    %v6271 = vrot.slane %v5089, 7
    %v6272 = vsel %vm3323, %v6269, %v6271
    %v6273 = vrot.slane %v5094, 7
    %v6274 = vsel %vm3323, %v6271, %v6273
    %v6275 = vrot.slane %v5097, 7
    %v6276 = vsel %vm3323, %v6273, %v6275
    %v6277 = vrot.slane %v5102, 7
    %v6278 = vsel %vm3323, %v6275, %v6277
    %v6279 = vrot.slane %v5105, 7
    %v6280 = vsel %vm3323, %v6277, %v6279
    %v6281 = vrot.slane %v5110, 7
    %v6282 = vsel %vm3323, %v6279, %v6281
    %v6283 = vrot.slane %v5113, 7
    %v6284 = vsel %vm3323, %v6281, %v6283
    %v6285 = vrot.slane %v5118, 7
    %v6286 = vsel %vm3323, %v6283, %v6285
    %v6287 = vrot.slane %v5121, 7
    %v6288 = vsel %vm3323, %v6285, %v6287
    %v6289 = vrot.slane %v5126, 7
    %v6290 = vsel %vm3323, %v6287, %v6289
    %v6291 = vrot.slane %v5129, 7
    %v6292 = vsel %vm3323, %v6289, %v6291
    %v6293 = vrot.slane %v5134, 7
    %v6294 = vsel %vm3323, %v6291, %v6293
    %v6295 = vrot.slane %v5137, 7
    %v6296 = vsel %vm3323, %v6293, %v6295
    %v6297 = vrot.slane %v5142, 7
    %v6298 = vsel %vm3323, %v6295, %v6297
    %v6299 = vrot.slane %v5145, 7
    %v6300 = vsel %vm3323, %v6297, %v6299
    %v6301 = vrot.slane %v5150, 7
    %v6302 = vsel %vm3323, %v6299, %v6301
    %v6303 = vrot.slane %v5153, 7
    %v6304 = vsel %vm3323, %v6301, %v6303
    %v6305 = vrot.slane %v5158, 7
    %v6306 = vsel %vm3323, %v6303, %v6305
    %v6307 = vrot.slane %v5161, 7
    %v6308 = vsel %vm3323, %v6305, %v6307
    %v6309 = vrot.slane %v5166, 7
    %v6310 = vsel %vm3323, %v6307, %v6309
    %v6311 = vrot.slane %v5169, 7
    %v6312 = vsel %vm3323, %v6309, %v6311
    %v6313 = vrot.slane %v5174, 7
    %v6314 = vsel %vm3323, %v6311, %v6313
    %v6315 = vrot.slane %v5177, 7
    %v6316 = vsel %vm3323, %v6313, %v6315
    %v6317 = vrot.slane %v5182, 7
    %v6318 = vsel %vm3323, %v6315, %v6317
    %v6319 = vsel %vm3323, %v6317, %v6033
    %v6416 = vsel %vm3323, %v6033, %v6130
    %v6417 = vadd.f32 %v6416, %v5228
    %v6418 = vadd.f32 %v6132, %v5231
    %v6419 = vadd.f32 %v6134, %v5236
    %v6420 = vadd.f32 %v6136, %v5239
    %v6421 = vadd.f32 %v6138, %v5244
    %v6422 = vadd.f32 %v6140, %v5247
    %v6423 = vadd.f32 %v6142, %v5252
    %v6424 = vadd.f32 %v6144, %v5255
    %v6425 = vadd.f32 %v6146, %v5260
    %v6426 = vadd.f32 %v6148, %v5263
    %v6427 = vadd.f32 %v6150, %v5268
    %v6428 = vadd.f32 %v6152, %v5271
    %v6429 = vadd.f32 %v6154, %v5276
    %v6430 = vadd.f32 %v6156, %v5279
    %v6431 = vadd.f32 %v6158, %v5284
    %v6432 = vadd.f32 %v6160, %v5287
    %v6433 = vadd.f32 %v6162, %v5292
    %v6434 = vadd.f32 %v6164, %v5295
    %v6435 = vadd.f32 %v6166, %v5300
    %v6436 = vadd.f32 %v6168, %v5303
    %v6437 = vadd.f32 %v6170, %v5308
    %v6438 = vadd.f32 %v6172, %v5311
    %v6439 = vadd.f32 %v6174, %v5316
    %v6440 = vadd.f32 %v6176, %v5319
    %v6441 = vadd.f32 %v6178, %v5324
    %v6442 = vadd.f32 %v6180, %v5327
    %v6443 = vadd.f32 %v6182, %v5332
    %v6444 = vadd.f32 %v6184, %v5335
    %v6445 = vadd.f32 %v6186, %v5340
    %v6446 = vadd.f32 %v6188, %v5343
    %v6447 = vadd.f32 %v6190, %v5348
    %v6448 = vadd.f32 %v6192, %v5351
    %v6449 = vadd.f32 %v6194, %v5356
    %v6450 = vadd.f32 %v6196, %v5359
    %v6451 = vadd.f32 %v6198, %v5364
    %v6452 = vadd.f32 %v6200, %v5367
    %v6453 = vadd.f32 %v6202, %v5372
    %v6454 = vadd.f32 %v6204, %v5375
    %v6455 = vadd.f32 %v6206, %v5380
    %v6456 = vadd.f32 %v6208, %v5383
    %v6457 = vadd.f32 %v6210, %v5388
    %v6458 = vadd.f32 %v6212, %v5391
    %v6459 = vadd.f32 %v6214, %v5396
    %v6460 = vadd.f32 %v6216, %v5399
    %v6461 = vadd.f32 %v6218, %v5404
    %v6462 = vadd.f32 %v6220, %v5407
    %v6463 = vadd.f32 %v6222, %v5412
    %v6464 = vadd.f32 %v6224, %v5415
    %v6465 = vadd.f32 %v6226, %v5420
    %v6466 = vadd.f32 %v6228, %v5423
    %v6467 = vadd.f32 %v6230, %v5428
    %v6468 = vadd.f32 %v6232, %v5431
    %v6469 = vadd.f32 %v6234, %v5436
    %v6470 = vadd.f32 %v6236, %v5439
    %v6471 = vadd.f32 %v6238, %v5444
    %v6472 = vadd.f32 %v6240, %v5447
    %v6473 = vadd.f32 %v6242, %v5452
    %v6474 = vadd.f32 %v6244, %v5455
    %v6475 = vadd.f32 %v6246, %v5460
    %v6476 = vadd.f32 %v6248, %v5463
    %v6477 = vadd.f32 %v6250, %v5468
    %v6478 = vadd.f32 %v6252, %v5471
    %v6479 = vadd.f32 %v6254, %v5476
    %v6480 = vadd.f32 %v6256, %v5479
    %v6481 = vadd.f32 %v6258, %v5484
    %v6482 = vadd.f32 %v6260, %v5487
    %v6483 = vadd.f32 %v6262, %v5492
    %v6484 = vadd.f32 %v6264, %v5495
    %v6485 = vadd.f32 %v6266, %v5500
    %v6486 = vadd.f32 %v6268, %v5503
    %v6487 = vadd.f32 %v6270, %v5508
    %v6488 = vadd.f32 %v6272, %v5511
    %v6489 = vadd.f32 %v6274, %v5516
    %v6490 = vadd.f32 %v6276, %v5519
    %v6491 = vadd.f32 %v6278, %v5524
    %v6492 = vadd.f32 %v6280, %v5527
    %v6493 = vadd.f32 %v6282, %v5532
    %v6494 = vadd.f32 %v6284, %v5535
    %v6495 = vadd.f32 %v6286, %v5540
    %v6496 = vadd.f32 %v6288, %v5543
    %v6497 = vadd.f32 %v6290, %v5548
    %v6498 = vadd.f32 %v6292, %v5551
    %v6499 = vadd.f32 %v6294, %v5556
    %v6500 = vadd.f32 %v6296, %v5559
    %v6501 = vadd.f32 %v6298, %v5564
    %v6502 = vadd.f32 %v6300, %v5567
    %v6503 = vadd.f32 %v6302, %v5572
    %v6504 = vadd.f32 %v6304, %v5575
    %v6505 = vadd.f32 %v6306, %v5580
    %v6506 = vadd.f32 %v6308, %v5583
    %v6507 = vadd.f32 %v6310, %v5588
    %v6508 = vadd.f32 %v6312, %v5591
    %v6509 = vadd.f32 %v6314, %v5596
    %v6510 = vadd.f32 %v6316, %v5599
    %v6511 = vadd.f32 %v6318, %v5604
    %v6512 = vadd.f32 %v6319, %v5607
    %v6609 = vrot.slane %v5650, 1
    %v6610 = vrot.slane %v5653, 1
    %v6611 = vsel %vm3803, %v6609, %v6610
    %v6612 = vrot.slane %v5658, 1
    %v6613 = vsel %vm3803, %v6610, %v6612
    %v6614 = vrot.slane %v5661, 1
    %v6615 = vsel %vm3803, %v6612, %v6614
    %v6616 = vrot.slane %v5666, 1
    %v6617 = vsel %vm3803, %v6614, %v6616
    %v6618 = vrot.slane %v5669, 1
    %v6619 = vsel %vm3803, %v6616, %v6618
    %v6620 = vrot.slane %v5674, 1
    %v6621 = vsel %vm3803, %v6618, %v6620
    %v6622 = vrot.slane %v5677, 1
    %v6623 = vsel %vm3803, %v6620, %v6622
    %v6624 = vrot.slane %v5682, 1
    %v6625 = vsel %vm3803, %v6622, %v6624
    %v6626 = vrot.slane %v5685, 1
    %v6627 = vsel %vm3803, %v6624, %v6626
    %v6628 = vrot.slane %v5690, 1
    %v6629 = vsel %vm3803, %v6626, %v6628
    %v6630 = vrot.slane %v5693, 1
    %v6631 = vsel %vm3803, %v6628, %v6630
    %v6632 = vrot.slane %v5698, 1
    %v6633 = vsel %vm3803, %v6630, %v6632
    %v6634 = vrot.slane %v5701, 1
    %v6635 = vsel %vm3803, %v6632, %v6634
    %v6636 = vrot.slane %v5706, 1
    %v6637 = vsel %vm3803, %v6634, %v6636
    %v6638 = vrot.slane %v5709, 1
    %v6639 = vsel %vm3803, %v6636, %v6638
    %v6640 = vrot.slane %v5714, 1
    %v6641 = vsel %vm3803, %v6638, %v6640
    %v6642 = vrot.slane %v5717, 1
    %v6643 = vsel %vm3803, %v6640, %v6642
    %v6644 = vrot.slane %v5722, 1
    %v6645 = vsel %vm3803, %v6642, %v6644
    %v6646 = vrot.slane %v5725, 1
    %v6647 = vsel %vm3803, %v6644, %v6646
    %v6648 = vrot.slane %v5730, 1
    %v6649 = vsel %vm3803, %v6646, %v6648
    %v6650 = vrot.slane %v5733, 1
    %v6651 = vsel %vm3803, %v6648, %v6650
    %v6652 = vrot.slane %v5738, 1
    %v6653 = vsel %vm3803, %v6650, %v6652
    %v6654 = vrot.slane %v5741, 1
    %v6655 = vsel %vm3803, %v6652, %v6654
    %v6656 = vrot.slane %v5746, 1
    %v6657 = vsel %vm3803, %v6654, %v6656
    %v6658 = vrot.slane %v5749, 1
    %v6659 = vsel %vm3803, %v6656, %v6658
    %v6660 = vrot.slane %v5754, 1
    %v6661 = vsel %vm3803, %v6658, %v6660
    %v6662 = vrot.slane %v5757, 1
    %v6663 = vsel %vm3803, %v6660, %v6662
    %v6664 = vrot.slane %v5762, 1
    %v6665 = vsel %vm3803, %v6662, %v6664
    %v6666 = vrot.slane %v5765, 1
    %v6667 = vsel %vm3803, %v6664, %v6666
    %v6668 = vrot.slane %v5770, 1
    %v6669 = vsel %vm3803, %v6666, %v6668
    %v6670 = vrot.slane %v5773, 1
    %v6671 = vsel %vm3803, %v6668, %v6670
    %v6672 = vrot.slane %v5778, 1
    %v6673 = vsel %vm3803, %v6670, %v6672
    %v6674 = vrot.slane %v5781, 1
    %v6675 = vsel %vm3803, %v6672, %v6674
    %v6676 = vrot.slane %v5786, 1
    %v6677 = vsel %vm3803, %v6674, %v6676
    %v6678 = vrot.slane %v5789, 1
    %v6679 = vsel %vm3803, %v6676, %v6678
    %v6680 = vrot.slane %v5794, 1
    %v6681 = vsel %vm3803, %v6678, %v6680
    %v6682 = vrot.slane %v5797, 1
    %v6683 = vsel %vm3803, %v6680, %v6682
    %v6684 = vrot.slane %v5802, 1
    %v6685 = vsel %vm3803, %v6682, %v6684
    %v6686 = vrot.slane %v5805, 1
    %v6687 = vsel %vm3803, %v6684, %v6686
    %v6688 = vrot.slane %v5810, 1
    %v6689 = vsel %vm3803, %v6686, %v6688
    %v6690 = vrot.slane %v5813, 1
    %v6691 = vsel %vm3803, %v6688, %v6690
    %v6692 = vrot.slane %v5818, 1
    %v6693 = vsel %vm3803, %v6690, %v6692
    %v6694 = vrot.slane %v5821, 1
    %v6695 = vsel %vm3803, %v6692, %v6694
    %v6696 = vrot.slane %v5826, 1
    %v6697 = vsel %vm3803, %v6694, %v6696
    %v6698 = vrot.slane %v5829, 1
    %v6699 = vsel %vm3803, %v6696, %v6698
    %v6700 = vrot.slane %v5834, 1
    %v6701 = vsel %vm3803, %v6698, %v6700
    %v6702 = vrot.slane %v5837, 1
    %v6703 = vsel %vm3803, %v6700, %v6702
    %v6704 = vrot.slane %v5842, 1
    %v6705 = vsel %vm3803, %v6702, %v6704
    %v6706 = vrot.slane %v5845, 1
    %v6707 = vsel %vm3803, %v6704, %v6706
    %v6708 = vrot.slane %v5850, 1
    %v6709 = vsel %vm3803, %v6706, %v6708
    %v6710 = vrot.slane %v5853, 1
    %v6711 = vsel %vm3803, %v6708, %v6710
    %v6712 = vrot.slane %v5858, 1
    %v6713 = vsel %vm3803, %v6710, %v6712
    %v6714 = vrot.slane %v5861, 1
    %v6715 = vsel %vm3803, %v6712, %v6714
    %v6716 = vrot.slane %v5866, 1
    %v6717 = vsel %vm3803, %v6714, %v6716
    %v6718 = vrot.slane %v5869, 1
    %v6719 = vsel %vm3803, %v6716, %v6718
    %v6720 = vrot.slane %v5874, 1
    %v6721 = vsel %vm3803, %v6718, %v6720
    %v6722 = vrot.slane %v5877, 1
    %v6723 = vsel %vm3803, %v6720, %v6722
    %v6724 = vrot.slane %v5882, 1
    %v6725 = vsel %vm3803, %v6722, %v6724
    %v6726 = vrot.slane %v5885, 1
    %v6727 = vsel %vm3803, %v6724, %v6726
    %v6728 = vrot.slane %v5890, 1
    %v6729 = vsel %vm3803, %v6726, %v6728
    %v6730 = vrot.slane %v5893, 1
    %v6731 = vsel %vm3803, %v6728, %v6730
    %v6732 = vrot.slane %v5898, 1
    %v6733 = vsel %vm3803, %v6730, %v6732
    %v6734 = vrot.slane %v5901, 1
    %v6735 = vsel %vm3803, %v6732, %v6734
    %v6736 = vrot.slane %v5906, 1
    %v6737 = vsel %vm3803, %v6734, %v6736
    %v6738 = vrot.slane %v5909, 1
    %v6739 = vsel %vm3803, %v6736, %v6738
    %v6740 = vrot.slane %v5914, 1
    %v6741 = vsel %vm3803, %v6738, %v6740
    %v6742 = vrot.slane %v5917, 1
    %v6743 = vsel %vm3803, %v6740, %v6742
    %v6744 = vrot.slane %v5922, 1
    %v6745 = vsel %vm3803, %v6742, %v6744
    %v6746 = vrot.slane %v5925, 1
    %v6747 = vsel %vm3803, %v6744, %v6746
    %v6748 = vrot.slane %v5930, 1
    %v6749 = vsel %vm3803, %v6746, %v6748
    %v6750 = vrot.slane %v5933, 1
    %v6751 = vsel %vm3803, %v6748, %v6750
    %v6752 = vrot.slane %v5938, 1
    %v6753 = vsel %vm3803, %v6750, %v6752
    %v6754 = vrot.slane %v5941, 1
    %v6755 = vsel %vm3803, %v6752, %v6754
    %v6756 = vrot.slane %v5946, 1
    %v6757 = vsel %vm3803, %v6754, %v6756
    %v6758 = vrot.slane %v5949, 1
    %v6759 = vsel %vm3803, %v6756, %v6758
    %v6760 = vrot.slane %v5954, 1
    %v6761 = vsel %vm3803, %v6758, %v6760
    %v6762 = vrot.slane %v5957, 1
    %v6763 = vsel %vm3803, %v6760, %v6762
    %v6764 = vrot.slane %v5962, 1
    %v6765 = vsel %vm3803, %v6762, %v6764
    %v6766 = vrot.slane %v5965, 1
    %v6767 = vsel %vm3803, %v6764, %v6766
    %v6768 = vrot.slane %v5970, 1
    %v6769 = vsel %vm3803, %v6766, %v6768
    %v6770 = vrot.slane %v5973, 1
    %v6771 = vsel %vm3803, %v6768, %v6770
    %v6772 = vrot.slane %v5978, 1
    %v6773 = vsel %vm3803, %v6770, %v6772
    %v6774 = vrot.slane %v5981, 1
    %v6775 = vsel %vm3803, %v6772, %v6774
    %v6776 = vrot.slane %v5986, 1
    %v6777 = vsel %vm3803, %v6774, %v6776
    %v6778 = vrot.slane %v5989, 1
    %v6779 = vsel %vm3803, %v6776, %v6778
    %v6780 = vrot.slane %v5994, 1
    %v6781 = vsel %vm3803, %v6778, %v6780
    %v6782 = vrot.slane %v5997, 1
    %v6783 = vsel %vm3803, %v6780, %v6782
    %v6784 = vrot.slane %v6002, 1
    %v6785 = vsel %vm3803, %v6782, %v6784
    %v6786 = vrot.slane %v6005, 1
    %v6787 = vsel %vm3803, %v6784, %v6786
    %v6788 = vrot.slane %v6010, 1
    %v6789 = vsel %vm3803, %v6786, %v6788
    %v6790 = vrot.slane %v6013, 1
    %v6791 = vsel %vm3803, %v6788, %v6790
    %v6792 = vrot.slane %v6018, 1
    %v6793 = vsel %vm3803, %v6790, %v6792
    %v6794 = vrot.slane %v6021, 1
    %v6795 = vsel %vm3803, %v6792, %v6794
    %v6796 = vrot.slane %v6026, 1
    %v6797 = vsel %vm3803, %v6794, %v6796
    %v6798 = vrot.slane %v6029, 1
    %v6799 = vsel %vm3803, %v6796, %v6798
    %v6897 = vsel %vm3803, %v6798, %v6609
    %v6898 = vadd.f32 %v6417, %v6611
    %v6899 = vadd.f32 %v6418, %v6613
    %v6900 = vadd.f32 %v6419, %v6615
    %v6901 = vadd.f32 %v6420, %v6617
    %v6902 = vadd.f32 %v6421, %v6619
    %v6903 = vadd.f32 %v6422, %v6621
    %v6904 = vadd.f32 %v6423, %v6623
    %v6905 = vadd.f32 %v6424, %v6625
    %v6906 = vadd.f32 %v6425, %v6627
    %v6907 = vadd.f32 %v6426, %v6629
    %v6908 = vadd.f32 %v6427, %v6631
    %v6909 = vadd.f32 %v6428, %v6633
    %v6910 = vadd.f32 %v6429, %v6635
    %v6911 = vadd.f32 %v6430, %v6637
    %v6912 = vadd.f32 %v6431, %v6639
    %v6913 = vadd.f32 %v6432, %v6641
    %v6914 = vadd.f32 %v6433, %v6643
    %v6915 = vadd.f32 %v6434, %v6645
    %v6916 = vadd.f32 %v6435, %v6647
    %v6917 = vadd.f32 %v6436, %v6649
    %v6918 = vadd.f32 %v6437, %v6651
    %v6919 = vadd.f32 %v6438, %v6653
    %v6920 = vadd.f32 %v6439, %v6655
    %v6921 = vadd.f32 %v6440, %v6657
    %v6922 = vadd.f32 %v6441, %v6659
    %v6923 = vadd.f32 %v6442, %v6661
    %v6924 = vadd.f32 %v6443, %v6663
    %v6925 = vadd.f32 %v6444, %v6665
    %v6926 = vadd.f32 %v6445, %v6667
    %v6927 = vadd.f32 %v6446, %v6669
    %v6928 = vadd.f32 %v6447, %v6671
    %v6929 = vadd.f32 %v6448, %v6673
    %v6930 = vadd.f32 %v6449, %v6675
    %v6931 = vadd.f32 %v6450, %v6677
    %v6932 = vadd.f32 %v6451, %v6679
    %v6933 = vadd.f32 %v6452, %v6681
    %v6934 = vadd.f32 %v6453, %v6683
    %v6935 = vadd.f32 %v6454, %v6685
    %v6936 = vadd.f32 %v6455, %v6687
    %v6937 = vadd.f32 %v6456, %v6689
    %v6938 = vadd.f32 %v6457, %v6691
    %v6939 = vadd.f32 %v6458, %v6693
    %v6940 = vadd.f32 %v6459, %v6695
    %v6941 = vadd.f32 %v6460, %v6697
    %v6942 = vadd.f32 %v6461, %v6699
    %v6943 = vadd.f32 %v6462, %v6701
    %v6944 = vadd.f32 %v6463, %v6703
    %v6945 = vadd.f32 %v6464, %v6705
    %v6946 = vadd.f32 %v6465, %v6707
    %v6947 = vadd.f32 %v6466, %v6709
    %v6948 = vadd.f32 %v6467, %v6711
    %v6949 = vadd.f32 %v6468, %v6713
    %v6950 = vadd.f32 %v6469, %v6715
    %v6951 = vadd.f32 %v6470, %v6717
    %v6952 = vadd.f32 %v6471, %v6719
    %v6953 = vadd.f32 %v6472, %v6721
    %v6954 = vadd.f32 %v6473, %v6723
    %v6955 = vadd.f32 %v6474, %v6725
    %v6956 = vadd.f32 %v6475, %v6727
    %v6957 = vadd.f32 %v6476, %v6729
    %v6958 = vadd.f32 %v6477, %v6731
    %v6959 = vadd.f32 %v6478, %v6733
    %v6960 = vadd.f32 %v6479, %v6735
    %v6961 = vadd.f32 %v6480, %v6737
    %v6962 = vadd.f32 %v6481, %v6739
    %v6963 = vadd.f32 %v6482, %v6741
    %v6964 = vadd.f32 %v6483, %v6743
    %v6965 = vadd.f32 %v6484, %v6745
    %v6966 = vadd.f32 %v6485, %v6747
    %v6967 = vadd.f32 %v6486, %v6749
    %v6968 = vadd.f32 %v6487, %v6751
    %v6969 = vadd.f32 %v6488, %v6753
    %v6970 = vadd.f32 %v6489, %v6755
    %v6971 = vadd.f32 %v6490, %v6757
    %v6972 = vadd.f32 %v6491, %v6759
    %v6973 = vadd.f32 %v6492, %v6761
    %v6974 = vadd.f32 %v6493, %v6763
    %v6975 = vadd.f32 %v6494, %v6765
    %v6976 = vadd.f32 %v6495, %v6767
    %v6977 = vadd.f32 %v6496, %v6769
    %v6978 = vadd.f32 %v6497, %v6771
    %v6979 = vadd.f32 %v6498, %v6773
    %v6980 = vadd.f32 %v6499, %v6775
    %v6981 = vadd.f32 %v6500, %v6777
    %v6982 = vadd.f32 %v6501, %v6779
    %v6983 = vadd.f32 %v6502, %v6781
    %v6984 = vadd.f32 %v6503, %v6783
    %v6985 = vadd.f32 %v6504, %v6785
    %v6986 = vadd.f32 %v6505, %v6787
    %v6987 = vadd.f32 %v6506, %v6789
    %v6988 = vadd.f32 %v6507, %v6791
    %v6989 = vadd.f32 %v6508, %v6793
    %v6990 = vadd.f32 %v6509, %v6795
    %v6991 = vadd.f32 %v6510, %v6797
    %v6992 = vadd.f32 %v6511, %v6799
    %v6993 = vadd.f32 %v6512, %v6897
    %v6994 = vld [vmem:[#allocation3] sm:$0xff]
    %v6995 = vld [vmem:[#allocation3 + $0x8] sm:$0xff]
    %v6996 = vld [vmem:[#allocation3 + $0x10] sm:$0xff]
    %v6997 = vld [vmem:[#allocation3 + $0x18] sm:$0xff]
    %v6998 = vld [vmem:[#allocation3 + $0x20] sm:$0xff]
    %v6999 = vld [vmem:[#allocation3 + $0x28] sm:$0xff]
    %v7000 = vld [vmem:[#allocation3 + $0x30] sm:$0xff]
    %v7001 = vld [vmem:[#allocation3 + $0x38] sm:$0xff]
    %v7002 = vld [vmem:[#allocation3 + $0x40] sm:$0xff]
    %v7003 = vld [vmem:[#allocation3 + $0x48] sm:$0xff]
    %v7004 = vld [vmem:[#allocation3 + $0x50] sm:$0xff]
    %v7005 = vld [vmem:[#allocation3 + $0x58] sm:$0xff]
    %v7006 = vld [vmem:[#allocation3 + $0x60] sm:$0xff]
    %v7007 = vld [vmem:[#allocation3 + $0x68] sm:$0xff]
    %v7008 = vld [vmem:[#allocation3 + $0x70] sm:$0xff]
    %v7009 = vld [vmem:[#allocation3 + $0x78] sm:$0xff]
    %v7010 = vld [vmem:[#allocation3 + $0x80] sm:$0xff]
    %v7011 = vld [vmem:[#allocation3 + $0x88] sm:$0xff]
    %v7012 = vld [vmem:[#allocation3 + $0x90] sm:$0xff]
    %v7013 = vld [vmem:[#allocation3 + $0x98] sm:$0xff]
    %v7014 = vld [vmem:[#allocation3 + $0xa0] sm:$0xff]
    %v7015 = vld [vmem:[#allocation3 + $0xa8] sm:$0xff]
    %v7016 = vld [vmem:[#allocation3 + $0xb0] sm:$0xff]
    %v7017 = vld [vmem:[#allocation3 + $0xb8] sm:$0xff]
    %v7018 = vld [vmem:[#allocation3 + $0xc0] sm:$0xff]
    %v7019 = vld [vmem:[#allocation3 + $0xc8] sm:$0xff]
    %v7020 = vld [vmem:[#allocation3 + $0xd0] sm:$0xff]
    %v7021 = vld [vmem:[#allocation3 + $0xd8] sm:$0xff]
    %v7022 = vld [vmem:[#allocation3 + $0xe0] sm:$0xff]
    %v7023 = vld [vmem:[#allocation3 + $0xe8] sm:$0xff]
    %v7024 = vld [vmem:[#allocation3 + $0xf0] sm:$0xff]
    %v7025 = vld [vmem:[#allocation3 + $0xf8] sm:$0xff]
    %v7026 = vld [vmem:[#allocation3 + $0x100] sm:$0xff]
    %v7027 = vld [vmem:[#allocation3 + $0x108] sm:$0xff]
    %v7028 = vld [vmem:[#allocation3 + $0x110] sm:$0xff]
    %v7029 = vld [vmem:[#allocation3 + $0x118] sm:$0xff]
    %v7030 = vld [vmem:[#allocation3 + $0x120] sm:$0xff]
    %v7031 = vld [vmem:[#allocation3 + $0x128] sm:$0xff]
    %v7032 = vld [vmem:[#allocation3 + $0x130] sm:$0xff]
    %v7033 = vld [vmem:[#allocation3 + $0x138] sm:$0xff]
    %v7034 = vld [vmem:[#allocation3 + $0x140] sm:$0xff]
    %v7035 = vld [vmem:[#allocation3 + $0x148] sm:$0xff]
    %v7036 = vld [vmem:[#allocation3 + $0x150] sm:$0xff]
    %v7037 = vld [vmem:[#allocation3 + $0x158] sm:$0xff]
    %v7038 = vld [vmem:[#allocation3 + $0x160] sm:$0xff]
    %v7039 = vld [vmem:[#allocation3 + $0x168] sm:$0xff]
    %v7040 = vld [vmem:[#allocation3 + $0x170] sm:$0xff]
    %v7041 = vld [vmem:[#allocation3 + $0x178] sm:$0xff]
    %v7042 = vld [vmem:[#allocation3 + $0x180] sm:$0xff]
    %v7043 = vld [vmem:[#allocation3 + $0x188] sm:$0xff]
    %v7044 = vld [vmem:[#allocation3 + $0x190] sm:$0xff]
    %v7045 = vld [vmem:[#allocation3 + $0x198] sm:$0xff]
    %v7046 = vld [vmem:[#allocation3 + $0x1a0] sm:$0xff]
    %v7047 = vld [vmem:[#allocation3 + $0x1a8] sm:$0xff]
    %v7048 = vld [vmem:[#allocation3 + $0x1b0] sm:$0xff]
    %v7049 = vld [vmem:[#allocation3 + $0x1b8] sm:$0xff]
    %v7050 = vld [vmem:[#allocation3 + $0x1c0] sm:$0xff]
    %v7051 = vld [vmem:[#allocation3 + $0x1c8] sm:$0xff]
    %v7052 = vld [vmem:[#allocation3 + $0x1d0] sm:$0xff]
    %v7053 = vld [vmem:[#allocation3 + $0x1d8] sm:$0xff]
    %v7054 = vld [vmem:[#allocation3 + $0x1e0] sm:$0xff]
    %v7055 = vld [vmem:[#allocation3 + $0x1e8] sm:$0xff]
    %v7056 = vld [vmem:[#allocation3 + $0x1f0] sm:$0xff]
    %v7057 = vld [vmem:[#allocation3 + $0x1f8] sm:$0xff]
    %v7058 = vld [vmem:[#allocation3 + $0x200] sm:$0xff]
    %v7059 = vld [vmem:[#allocation3 + $0x208] sm:$0xff]
    %v7060 = vld [vmem:[#allocation3 + $0x210] sm:$0xff]
    %v7061 = vld [vmem:[#allocation3 + $0x218] sm:$0xff]
    %v7062 = vld [vmem:[#allocation3 + $0x220] sm:$0xff]
    %v7063 = vld [vmem:[#allocation3 + $0x228] sm:$0xff]
    %v7064 = vld [vmem:[#allocation3 + $0x230] sm:$0xff]
    %v7065 = vld [vmem:[#allocation3 + $0x238] sm:$0xff]
    %v7066 = vld [vmem:[#allocation3 + $0x240] sm:$0xff]
    %v7067 = vld [vmem:[#allocation3 + $0x248] sm:$0xff]
    %v7068 = vld [vmem:[#allocation3 + $0x250] sm:$0xff]
    %v7069 = vld [vmem:[#allocation3 + $0x258] sm:$0xff]
    %v7070 = vld [vmem:[#allocation3 + $0x260] sm:$0xff]
    %v7071 = vld [vmem:[#allocation3 + $0x268] sm:$0xff]
    %v7072 = vld [vmem:[#allocation3 + $0x270] sm:$0xff]
    %v7073 = vld [vmem:[#allocation3 + $0x278] sm:$0xff]
    %v7074 = vld [vmem:[#allocation3 + $0x280] sm:$0xff]
    %v7075 = vld [vmem:[#allocation3 + $0x288] sm:$0xff]
    %v7076 = vld [vmem:[#allocation3 + $0x290] sm:$0xff]
    %v7077 = vld [vmem:[#allocation3 + $0x298] sm:$0xff]
    %v7078 = vld [vmem:[#allocation3 + $0x2a0] sm:$0xff]
    %v7079 = vld [vmem:[#allocation3 + $0x2a8] sm:$0xff]
    %v7080 = vld [vmem:[#allocation3 + $0x2b0] sm:$0xff]
    %v7081 = vld [vmem:[#allocation3 + $0x2b8] sm:$0xff]
    %v7082 = vld [vmem:[#allocation3 + $0x2c0] sm:$0xff]
    %v7083 = vld [vmem:[#allocation3 + $0x2c8] sm:$0xff]
    %v7084 = vld [vmem:[#allocation3 + $0x2d0] sm:$0xff]
    %v7085 = vld [vmem:[#allocation3 + $0x2d8] sm:$0xff]
    %v7086 = vld [vmem:[#allocation3 + $0x2e0] sm:$0xff]
    %v7087 = vld [vmem:[#allocation3 + $0x2e8] sm:$0xff]
    %v7088 = vld [vmem:[#allocation3 + $0x2f0] sm:$0xff]
    %v7089 = vld [vmem:[#allocation3 + $0x2f8] sm:$0xff]
    %v7090 = vadd.f32 %v6994, %v6898
    %v7091 = vadd.f32 %v6995, %v6899
    %v7092 = vadd.f32 %v6996, %v6900
    %v7093 = vadd.f32 %v6997, %v6901
    %v7094 = vadd.f32 %v6998, %v6902
    %v7095 = vadd.f32 %v6999, %v6903
    %v7096 = vadd.f32 %v7000, %v6904
    %v7097 = vadd.f32 %v7001, %v6905
    %v7098 = vadd.f32 %v7002, %v6906
    %v7099 = vadd.f32 %v7003, %v6907
    %v7100 = vadd.f32 %v7004, %v6908
    %v7101 = vadd.f32 %v7005, %v6909
    %v7102 = vadd.f32 %v7006, %v6910
    %v7103 = vadd.f32 %v7007, %v6911
    %v7104 = vadd.f32 %v7008, %v6912
    %v7105 = vadd.f32 %v7009, %v6913
    %v7106 = vadd.f32 %v7010, %v6914
    %v7107 = vadd.f32 %v7011, %v6915
    %v7108 = vadd.f32 %v7012, %v6916
    %v7109 = vadd.f32 %v7013, %v6917
    %v7110 = vadd.f32 %v7014, %v6918
    %v7111 = vadd.f32 %v7015, %v6919
    %v7112 = vadd.f32 %v7016, %v6920
    %v7113 = vadd.f32 %v7017, %v6921
    %v7114 = vadd.f32 %v7018, %v6922
    %v7115 = vadd.f32 %v7019, %v6923
    %v7116 = vadd.f32 %v7020, %v6924
    %v7117 = vadd.f32 %v7021, %v6925
    %v7118 = vadd.f32 %v7022, %v6926
    %v7119 = vadd.f32 %v7023, %v6927
    %v7120 = vadd.f32 %v7024, %v6928
    %v7121 = vadd.f32 %v7025, %v6929
    %v7122 = vadd.f32 %v7026, %v6930
    %v7123 = vadd.f32 %v7027, %v6931
    %v7124 = vadd.f32 %v7028, %v6932
    %v7125 = vadd.f32 %v7029, %v6933
    %v7126 = vadd.f32 %v7030, %v6934
    %v7127 = vadd.f32 %v7031, %v6935
    %v7128 = vadd.f32 %v7032, %v6936
    %v7129 = vadd.f32 %v7033, %v6937
    %v7130 = vadd.f32 %v7034, %v6938
    %v7131 = vadd.f32 %v7035, %v6939
    %v7132 = vadd.f32 %v7036, %v6940
    %v7133 = vadd.f32 %v7037, %v6941
    %v7134 = vadd.f32 %v7038, %v6942
    %v7135 = vadd.f32 %v7039, %v6943
    %v7136 = vadd.f32 %v7040, %v6944
    %v7137 = vadd.f32 %v7041, %v6945
    %v7138 = vadd.f32 %v7042, %v6946
    %v7139 = vadd.f32 %v7043, %v6947
    %v7140 = vadd.f32 %v7044, %v6948
    %v7141 = vadd.f32 %v7045, %v6949
    %v7142 = vadd.f32 %v7046, %v6950
    %v7143 = vadd.f32 %v7047, %v6951
    %v7144 = vadd.f32 %v7048, %v6952
    %v7145 = vadd.f32 %v7049, %v6953
    %v7146 = vadd.f32 %v7050, %v6954
    %v7147 = vadd.f32 %v7051, %v6955
    %v7148 = vadd.f32 %v7052, %v6956
    %v7149 = vadd.f32 %v7053, %v6957
    %v7150 = vadd.f32 %v7054, %v6958
    %v7151 = vadd.f32 %v7055, %v6959
    %v7152 = vadd.f32 %v7056, %v6960
    %v7153 = vadd.f32 %v7057, %v6961
    %v7154 = vadd.f32 %v7058, %v6962
    %v7155 = vadd.f32 %v7059, %v6963
    %v7156 = vadd.f32 %v7060, %v6964
    %v7157 = vadd.f32 %v7061, %v6965
    %v7158 = vadd.f32 %v7062, %v6966
    %v7159 = vadd.f32 %v7063, %v6967
    %v7160 = vadd.f32 %v7064, %v6968
    %v7161 = vadd.f32 %v7065, %v6969
    %v7162 = vadd.f32 %v7066, %v6970
    %v7163 = vadd.f32 %v7067, %v6971
    %v7164 = vadd.f32 %v7068, %v6972
    %v7165 = vadd.f32 %v7069, %v6973
    %v7166 = vadd.f32 %v7070, %v6974
    %v7167 = vadd.f32 %v7071, %v6975
    %v7168 = vadd.f32 %v7072, %v6976
    %v7169 = vadd.f32 %v7073, %v6977
    %v7170 = vadd.f32 %v7074, %v6978
    %v7171 = vadd.f32 %v7075, %v6979
    %v7172 = vadd.f32 %v7076, %v6980
    %v7173 = vadd.f32 %v7077, %v6981
    %v7174 = vadd.f32 %v7078, %v6982
    %v7175 = vadd.f32 %v7079, %v6983
    %v7176 = vadd.f32 %v7080, %v6984
    %v7177 = vadd.f32 %v7081, %v6985
    %v7178 = vadd.f32 %v7082, %v6986
    %v7179 = vadd.f32 %v7083, %v6987
    %v7180 = vadd.f32 %v7084, %v6988
    %v7181 = vadd.f32 %v7085, %v6989
    %v7182 = vadd.f32 %v7086, %v6990
    %v7183 = vadd.f32 %v7087, %v6991
    %v7184 = vadd.f32 %v7088, %v6992
    %v7185 = vadd.f32 %v7089, %v6993
    %7186 = vst.msk [vmem:[#allocation3] sm:$0xff] %vm1815, %v7090
    %7187 = vst.msk [vmem:[#allocation3 + $0x8] sm:$0xff] %vm1815, %v7091
    %7188 = vst.msk [vmem:[#allocation3 + $0x10] sm:$0xff] %vm1815, %v7092
    %7189 = vst.msk [vmem:[#allocation3 + $0x18] sm:$0xff] %vm1815, %v7093
    %7190 = vst.msk [vmem:[#allocation3 + $0x20] sm:$0xff] %vm1815, %v7094
    %7191 = vst.msk [vmem:[#allocation3 + $0x28] sm:$0xff] %vm1815, %v7095
    %7192 = vst.msk [vmem:[#allocation3 + $0x30] sm:$0xff] %vm1815, %v7096
    %7193 = vst.msk [vmem:[#allocation3 + $0x38] sm:$0xff] %vm1815, %v7097
    %7194 = vst.msk [vmem:[#allocation3 + $0x40] sm:$0xff] %vm1815, %v7098
    %7195 = vst.msk [vmem:[#allocation3 + $0x48] sm:$0xff] %vm1815, %v7099
    %7196 = vst.msk [vmem:[#allocation3 + $0x50] sm:$0xff] %vm1815, %v7100
    %7197 = vst.msk [vmem:[#allocation3 + $0x58] sm:$0xff] %vm1815, %v7101
    %7198 = vst.msk [vmem:[#allocation3 + $0x60] sm:$0xff] %vm1815, %v7102
    %7199 = vst.msk [vmem:[#allocation3 + $0x68] sm:$0xff] %vm1815, %v7103
    %7200 = vst.msk [vmem:[#allocation3 + $0x70] sm:$0xff] %vm1815, %v7104
    %7201 = vst.msk [vmem:[#allocation3 + $0x78] sm:$0xff] %vm1815, %v7105
    %7202 = vst.msk [vmem:[#allocation3 + $0x80] sm:$0xff] %vm1815, %v7106
    %7203 = vst.msk [vmem:[#allocation3 + $0x88] sm:$0xff] %vm1815, %v7107
    %7204 = vst.msk [vmem:[#allocation3 + $0x90] sm:$0xff] %vm1815, %v7108
    %7205 = vst.msk [vmem:[#allocation3 + $0x98] sm:$0xff] %vm1815, %v7109
    %7206 = vst.msk [vmem:[#allocation3 + $0xa0] sm:$0xff] %vm1815, %v7110
    %7207 = vst.msk [vmem:[#allocation3 + $0xa8] sm:$0xff] %vm1815, %v7111
    %7208 = vst.msk [vmem:[#allocation3 + $0xb0] sm:$0xff] %vm1815, %v7112
    %7209 = vst.msk [vmem:[#allocation3 + $0xb8] sm:$0xff] %vm1815, %v7113
    %7210 = vst.msk [vmem:[#allocation3 + $0xc0] sm:$0xff] %vm1815, %v7114
    %7211 = vst.msk [vmem:[#allocation3 + $0xc8] sm:$0xff] %vm1815, %v7115
    %7212 = vst.msk [vmem:[#allocation3 + $0xd0] sm:$0xff] %vm1815, %v7116
    %7213 = vst.msk [vmem:[#allocation3 + $0xd8] sm:$0xff] %vm1815, %v7117
    %7214 = vst.msk [vmem:[#allocation3 + $0xe0] sm:$0xff] %vm1815, %v7118
    %7215 = vst.msk [vmem:[#allocation3 + $0xe8] sm:$0xff] %vm1815, %v7119
    %7216 = vst.msk [vmem:[#allocation3 + $0xf0] sm:$0xff] %vm1815, %v7120
    %7217 = vst.msk [vmem:[#allocation3 + $0xf8] sm:$0xff] %vm1815, %v7121
    %7218 = vst.msk [vmem:[#allocation3 + $0x100] sm:$0xff] %vm1815, %v7122
    %7219 = vst.msk [vmem:[#allocation3 + $0x108] sm:$0xff] %vm1815, %v7123
    %7220 = vst.msk [vmem:[#allocation3 + $0x110] sm:$0xff] %vm1815, %v7124
    %7221 = vst.msk [vmem:[#allocation3 + $0x118] sm:$0xff] %vm1815, %v7125
    %7222 = vst.msk [vmem:[#allocation3 + $0x120] sm:$0xff] %vm1815, %v7126
    %7223 = vst.msk [vmem:[#allocation3 + $0x128] sm:$0xff] %vm1815, %v7127
    %7224 = vst.msk [vmem:[#allocation3 + $0x130] sm:$0xff] %vm1815, %v7128
    %7225 = vst.msk [vmem:[#allocation3 + $0x138] sm:$0xff] %vm1815, %v7129
    %7226 = vst.msk [vmem:[#allocation3 + $0x140] sm:$0xff] %vm1815, %v7130
    %7227 = vst.msk [vmem:[#allocation3 + $0x148] sm:$0xff] %vm1815, %v7131
    %7228 = vst.msk [vmem:[#allocation3 + $0x150] sm:$0xff] %vm1815, %v7132
    %7229 = vst.msk [vmem:[#allocation3 + $0x158] sm:$0xff] %vm1815, %v7133
    %7230 = vst.msk [vmem:[#allocation3 + $0x160] sm:$0xff] %vm1815, %v7134
    %7231 = vst.msk [vmem:[#allocation3 + $0x168] sm:$0xff] %vm1815, %v7135
    %7232 = vst.msk [vmem:[#allocation3 + $0x170] sm:$0xff] %vm1815, %v7136
    %7233 = vst.msk [vmem:[#allocation3 + $0x178] sm:$0xff] %vm1815, %v7137
    %7234 = vst.msk [vmem:[#allocation3 + $0x180] sm:$0xff] %vm1815, %v7138
    %7235 = vst.msk [vmem:[#allocation3 + $0x188] sm:$0xff] %vm1815, %v7139
    %7236 = vst.msk [vmem:[#allocation3 + $0x190] sm:$0xff] %vm1815, %v7140
    %7237 = vst.msk [vmem:[#allocation3 + $0x198] sm:$0xff] %vm1815, %v7141
    %7238 = vst.msk [vmem:[#allocation3 + $0x1a0] sm:$0xff] %vm1815, %v7142
    %7239 = vst.msk [vmem:[#allocation3 + $0x1a8] sm:$0xff] %vm1815, %v7143
    %7240 = vst.msk [vmem:[#allocation3 + $0x1b0] sm:$0xff] %vm1815, %v7144
    %7241 = vst.msk [vmem:[#allocation3 + $0x1b8] sm:$0xff] %vm1815, %v7145
    %7242 = vst.msk [vmem:[#allocation3 + $0x1c0] sm:$0xff] %vm1815, %v7146
    %7243 = vst.msk [vmem:[#allocation3 + $0x1c8] sm:$0xff] %vm1815, %v7147
    %7244 = vst.msk [vmem:[#allocation3 + $0x1d0] sm:$0xff] %vm1815, %v7148
    %7245 = vst.msk [vmem:[#allocation3 + $0x1d8] sm:$0xff] %vm1815, %v7149
    %7246 = vst.msk [vmem:[#allocation3 + $0x1e0] sm:$0xff] %vm1815, %v7150
    %7247 = vst.msk [vmem:[#allocation3 + $0x1e8] sm:$0xff] %vm1815, %v7151
    %7248 = vst.msk [vmem:[#allocation3 + $0x1f0] sm:$0xff] %vm1815, %v7152
    %7249 = vst.msk [vmem:[#allocation3 + $0x1f8] sm:$0xff] %vm1815, %v7153
    %7250 = vst.msk [vmem:[#allocation3 + $0x200] sm:$0xff] %vm1815, %v7154
    %7251 = vst.msk [vmem:[#allocation3 + $0x208] sm:$0xff] %vm1815, %v7155
    %7252 = vst.msk [vmem:[#allocation3 + $0x210] sm:$0xff] %vm1815, %v7156
    %7253 = vst.msk [vmem:[#allocation3 + $0x218] sm:$0xff] %vm1815, %v7157
    %7254 = vst.msk [vmem:[#allocation3 + $0x220] sm:$0xff] %vm1815, %v7158
    %7255 = vst.msk [vmem:[#allocation3 + $0x228] sm:$0xff] %vm1815, %v7159
    %7256 = vst.msk [vmem:[#allocation3 + $0x230] sm:$0xff] %vm1815, %v7160
    %7257 = vst.msk [vmem:[#allocation3 + $0x238] sm:$0xff] %vm1815, %v7161
    %7258 = vst.msk [vmem:[#allocation3 + $0x240] sm:$0xff] %vm1815, %v7162
    %7259 = vst.msk [vmem:[#allocation3 + $0x248] sm:$0xff] %vm1815, %v7163
    %7260 = vst.msk [vmem:[#allocation3 + $0x250] sm:$0xff] %vm1815, %v7164
    %7261 = vst.msk [vmem:[#allocation3 + $0x258] sm:$0xff] %vm1815, %v7165
    %7262 = vst.msk [vmem:[#allocation3 + $0x260] sm:$0xff] %vm1815, %v7166
    %7263 = vst.msk [vmem:[#allocation3 + $0x268] sm:$0xff] %vm1815, %v7167
    %7264 = vst.msk [vmem:[#allocation3 + $0x270] sm:$0xff] %vm1815, %v7168
    %7265 = vst.msk [vmem:[#allocation3 + $0x278] sm:$0xff] %vm1815, %v7169
    %7266 = vst.msk [vmem:[#allocation3 + $0x280] sm:$0xff] %vm1815, %v7170
    %7267 = vst.msk [vmem:[#allocation3 + $0x288] sm:$0xff] %vm1815, %v7171
    %7268 = vst.msk [vmem:[#allocation3 + $0x290] sm:$0xff] %vm1815, %v7172
    %7269 = vst.msk [vmem:[#allocation3 + $0x298] sm:$0xff] %vm1815, %v7173
    %7270 = vst.msk [vmem:[#allocation3 + $0x2a0] sm:$0xff] %vm1815, %v7174
    %7271 = vst.msk [vmem:[#allocation3 + $0x2a8] sm:$0xff] %vm1815, %v7175
    %7272 = vst.msk [vmem:[#allocation3 + $0x2b0] sm:$0xff] %vm1815, %v7176
    %7273 = vst.msk [vmem:[#allocation3 + $0x2b8] sm:$0xff] %vm1815, %v7177
    %7274 = vst.msk [vmem:[#allocation3 + $0x2c0] sm:$0xff] %vm1815, %v7178
    %7275 = vst.msk [vmem:[#allocation3 + $0x2c8] sm:$0xff] %vm1815, %v7179
    %7276 = vst.msk [vmem:[#allocation3 + $0x2d0] sm:$0xff] %vm1815, %v7180
    %7277 = vst.msk [vmem:[#allocation3 + $0x2d8] sm:$0xff] %vm1815, %v7181
    %7278 = vst.msk [vmem:[#allocation3 + $0x2e0] sm:$0xff] %vm1815, %v7182
    %7279 = vst.msk [vmem:[#allocation3 + $0x2e8] sm:$0xff] %vm1815, %v7183
    %7280 = vst.msk [vmem:[#allocation3 + $0x2f0] sm:$0xff] %vm1815, %v7184
    %7281 = vst.msk [vmem:[#allocation3 + $0x2f8] sm:$0xff] %vm1815, %v7185
    %s7282 = scalar_lea.vmem [#allocation2], 24
    %v7283 = vld [vmem:[%s7282] sm:$0xf]
    %v7284 = vld [vmem:[%s7282 + $0x4] sm:$0xf]
    %v7285 = vld [vmem:[%s7282 + $0x8] sm:$0xf]
    %v7286 = vld [vmem:[%s7282 + $0xc] sm:$0xf]
    %v7287 = vld [vmem:[%s7282 + $0x10] sm:$0xf]
    %v7288 = vld [vmem:[%s7282 + $0x14] sm:$0xf]
    %v7289 = vld [vmem:[%s7282 + $0x18] sm:$0xf]
    %v7290 = vld [vmem:[%s7282 + $0x1c] sm:$0xf]
    %v7291 = vld [vmem:[%s7282 + $0x20] sm:$0xf]
    %v7292 = vld [vmem:[%s7282 + $0x24] sm:$0xf]
    %v7293 = vld [vmem:[%s7282 + $0x28] sm:$0xf]
    %v7294 = vld [vmem:[%s7282 + $0x2c] sm:$0xf]
    %v7295 = vld [vmem:[%s7282 + $0x30] sm:$0xf]
    %v7296 = vld [vmem:[%s7282 + $0x34] sm:$0xf]
    %v7297 = vld [vmem:[%s7282 + $0x38] sm:$0xf]
    %v7298 = vld [vmem:[%s7282 + $0x3c] sm:$0xf]
    %v7299 = vld [vmem:[%s7282 + $0x40] sm:$0xf]
    %v7300 = vld [vmem:[%s7282 + $0x44] sm:$0xf]
    %v7301 = vld [vmem:[%s7282 + $0x48] sm:$0xf]
    %v7302 = vld [vmem:[%s7282 + $0x4c] sm:$0xf]
    %v7303 = vld [vmem:[%s7282 + $0x50] sm:$0xf]
    %v7304 = vld [vmem:[%s7282 + $0x54] sm:$0xf]
    %v7305 = vld [vmem:[%s7282 + $0x58] sm:$0xf]
    %v7306 = vld [vmem:[%s7282 + $0x5c] sm:$0xf]
    %v7307 = vld [vmem:[%s7282 + $0x60] sm:$0xf]
    %v7308 = vld [vmem:[%s7282 + $0x64] sm:$0xf]
    %v7309 = vld [vmem:[%s7282 + $0x68] sm:$0xf]
    %v7310 = vld [vmem:[%s7282 + $0x6c] sm:$0xf]
    %v7311 = vld [vmem:[%s7282 + $0x70] sm:$0xf]
    %v7312 = vld [vmem:[%s7282 + $0x74] sm:$0xf]
    %v7313 = vld [vmem:[%s7282 + $0x78] sm:$0xf]
    %v7314 = vld [vmem:[%s7282 + $0x7c] sm:$0xf]
    %v7315 = vld [vmem:[%s7282 + $0x80] sm:$0xf]
    %v7316 = vld [vmem:[%s7282 + $0x84] sm:$0xf]
    %v7317 = vld [vmem:[%s7282 + $0x88] sm:$0xf]
    %v7318 = vld [vmem:[%s7282 + $0x8c] sm:$0xf]
    %v7319 = vld [vmem:[%s7282 + $0x90] sm:$0xf]
    %v7320 = vld [vmem:[%s7282 + $0x94] sm:$0xf]
    %v7321 = vld [vmem:[%s7282 + $0x98] sm:$0xf]
    %v7322 = vld [vmem:[%s7282 + $0x9c] sm:$0xf]
    %v7323 = vld [vmem:[%s7282 + $0xa0] sm:$0xf]
    %v7324 = vld [vmem:[%s7282 + $0xa4] sm:$0xf]
    %v7325 = vld [vmem:[%s7282 + $0xa8] sm:$0xf]
    %v7326 = vld [vmem:[%s7282 + $0xac] sm:$0xf]
    %v7327 = vld [vmem:[%s7282 + $0xb0] sm:$0xf]
    %v7328 = vld [vmem:[%s7282 + $0xb4] sm:$0xf]
    %v7329 = vld [vmem:[%s7282 + $0xb8] sm:$0xf]
    %v7330 = vld [vmem:[%s7282 + $0xbc] sm:$0xf]
    %v7331 = vld [vmem:[%s7282 + $0xd8] sm:$0xf]
    %v7332 = vld [vmem:[%s7282 + $0xdc] sm:$0xf]
    %v7333 = vld [vmem:[%s7282 + $0xe0] sm:$0xf]
    %v7334 = vld [vmem:[%s7282 + $0xe4] sm:$0xf]
    %v7335 = vld [vmem:[%s7282 + $0xe8] sm:$0xf]
    %v7336 = vld [vmem:[%s7282 + $0xec] sm:$0xf]
    %v7337 = vld [vmem:[%s7282 + $0xf0] sm:$0xf]
    %v7338 = vld [vmem:[%s7282 + $0xf4] sm:$0xf]
    %v7339 = vld [vmem:[%s7282 + $0xf8] sm:$0xf]
    %v7340 = vld [vmem:[%s7282 + $0xfc] sm:$0xf]
    %v7341 = vld [vmem:[%s7282 + $0x100] sm:$0xf]
    %v7342 = vld [vmem:[%s7282 + $0x104] sm:$0xf]
    %v7343 = vld [vmem:[%s7282 + $0x108] sm:$0xf]
    %v7344 = vld [vmem:[%s7282 + $0x10c] sm:$0xf]
    %v7345 = vld [vmem:[%s7282 + $0x110] sm:$0xf]
    %v7346 = vld [vmem:[%s7282 + $0x114] sm:$0xf]
    %v7347 = vld [vmem:[%s7282 + $0x118] sm:$0xf]
    %v7348 = vld [vmem:[%s7282 + $0x11c] sm:$0xf]
    %v7349 = vld [vmem:[%s7282 + $0x120] sm:$0xf]
    %v7350 = vld [vmem:[%s7282 + $0x124] sm:$0xf]
    %v7351 = vld [vmem:[%s7282 + $0x128] sm:$0xf]
    %v7352 = vld [vmem:[%s7282 + $0x12c] sm:$0xf]
    %v7353 = vld [vmem:[%s7282 + $0x130] sm:$0xf]
    %v7354 = vld [vmem:[%s7282 + $0x134] sm:$0xf]
    %v7355 = vld [vmem:[%s7282 + $0x138] sm:$0xf]
    %v7356 = vld [vmem:[%s7282 + $0x13c] sm:$0xf]
    %v7357 = vld [vmem:[%s7282 + $0x140] sm:$0xf]
    %v7358 = vld [vmem:[%s7282 + $0x144] sm:$0xf]
    %v7359 = vld [vmem:[%s7282 + $0x148] sm:$0xf]
    %v7360 = vld [vmem:[%s7282 + $0x14c] sm:$0xf]
    %v7361 = vld [vmem:[%s7282 + $0x150] sm:$0xf]
    %v7362 = vld [vmem:[%s7282 + $0x154] sm:$0xf]
    %v7363 = vld [vmem:[%s7282 + $0x158] sm:$0xf]
    %v7364 = vld [vmem:[%s7282 + $0x15c] sm:$0xf]
    %v7365 = vld [vmem:[%s7282 + $0x160] sm:$0xf]
    %v7366 = vld [vmem:[%s7282 + $0x164] sm:$0xf]
    %v7367 = vld [vmem:[%s7282 + $0x168] sm:$0xf]
    %v7368 = vld [vmem:[%s7282 + $0x16c] sm:$0xf]
    %v7369 = vld [vmem:[%s7282 + $0x170] sm:$0xf]
    %v7370 = vld [vmem:[%s7282 + $0x174] sm:$0xf]
    %v7371 = vld [vmem:[%s7282 + $0x178] sm:$0xf]
    %v7372 = vld [vmem:[%s7282 + $0x17c] sm:$0xf]
    %v7373 = vld [vmem:[%s7282 + $0x180] sm:$0xf]
    %v7374 = vld [vmem:[%s7282 + $0x184] sm:$0xf]
    %v7375 = vld [vmem:[%s7282 + $0x188] sm:$0xf]
    %v7376 = vld [vmem:[%s7282 + $0x18c] sm:$0xf]
    %v7377 = vld [vmem:[%s7282 + $0x190] sm:$0xf]
    %v7378 = vld [vmem:[%s7282 + $0x194] sm:$0xf]
    %s7379 = scalar_lea.vmem %s4, 12
    %v7380 = vld [vmem:[%s7379] sm:$0x3]
    %v7477 = vunpack.c.l.b16 %v7283
    %v7478 = vunpack.c.l.b16 %v7284
    %v7479 = vunpack.c.l.b16 %v7285
    %v7480 = vunpack.c.l.b16 %v7286
    %v7481 = vunpack.c.l.b16 %v7287
    %v7482 = vunpack.c.l.b16 %v7288
    %v7483 = vunpack.c.l.b16 %v7289
    %v7484 = vunpack.c.l.b16 %v7290
    %v7485 = vunpack.c.l.b16 %v7291
    %v7486 = vunpack.c.l.b16 %v7292
    %v7487 = vunpack.c.l.b16 %v7293
    %v7488 = vunpack.c.l.b16 %v7294
    %v7489 = vunpack.c.l.b16 %v7295
    %v7490 = vunpack.c.l.b16 %v7296
    %v7491 = vunpack.c.l.b16 %v7297
    %v7492 = vunpack.c.l.b16 %v7298
    %v7493 = vunpack.c.l.b16 %v7299
    %v7494 = vunpack.c.l.b16 %v7300
    %v7495 = vunpack.c.l.b16 %v7301
    %v7496 = vunpack.c.l.b16 %v7302
    %v7497 = vunpack.c.l.b16 %v7303
    %v7498 = vunpack.c.l.b16 %v7304
    %v7499 = vunpack.c.l.b16 %v7305
    %v7500 = vunpack.c.l.b16 %v7306
    %v7501 = vunpack.c.l.b16 %v7307
    %v7502 = vunpack.c.l.b16 %v7308
    %v7503 = vunpack.c.l.b16 %v7309
    %v7504 = vunpack.c.l.b16 %v7310
    %v7505 = vunpack.c.l.b16 %v7311
    %v7506 = vunpack.c.l.b16 %v7312
    %v7507 = vunpack.c.l.b16 %v7313
    %v7508 = vunpack.c.l.b16 %v7314
    %v7509 = vunpack.c.l.b16 %v7315
    %v7510 = vunpack.c.l.b16 %v7316
    %v7511 = vunpack.c.l.b16 %v7317
    %v7512 = vunpack.c.l.b16 %v7318
    %v7513 = vunpack.c.l.b16 %v7319
    %v7514 = vunpack.c.l.b16 %v7320
    %v7515 = vunpack.c.l.b16 %v7321
    %v7516 = vunpack.c.l.b16 %v7322
    %v7517 = vunpack.c.l.b16 %v7323
    %v7518 = vunpack.c.l.b16 %v7324
    %v7519 = vunpack.c.l.b16 %v7325
    %v7520 = vunpack.c.l.b16 %v7326
    %v7521 = vunpack.c.l.b16 %v7327
    %v7522 = vunpack.c.l.b16 %v7328
    %v7523 = vunpack.c.l.b16 %v7329
    %v7524 = vunpack.c.l.b16 %v7330
    %v7525 = vunpack.c.l.b16 %v7331
    %v7526 = vunpack.c.l.b16 %v7332
    %v7527 = vunpack.c.l.b16 %v7333
    %v7528 = vunpack.c.l.b16 %v7334
    %v7529 = vunpack.c.l.b16 %v7335
    %v7530 = vunpack.c.l.b16 %v7336
    %v7531 = vunpack.c.l.b16 %v7337
    %v7532 = vunpack.c.l.b16 %v7338
    %v7533 = vunpack.c.l.b16 %v7339
    %v7534 = vunpack.c.l.b16 %v7340
    %v7535 = vunpack.c.l.b16 %v7341
    %v7536 = vunpack.c.l.b16 %v7342
    %v7537 = vunpack.c.l.b16 %v7343
    %v7538 = vunpack.c.l.b16 %v7344
    %v7539 = vunpack.c.l.b16 %v7345
    %v7540 = vunpack.c.l.b16 %v7346
    %v7541 = vunpack.c.l.b16 %v7347
    %v7542 = vunpack.c.l.b16 %v7348
    %v7543 = vunpack.c.l.b16 %v7349
    %v7544 = vunpack.c.l.b16 %v7350
    %v7545 = vunpack.c.l.b16 %v7351
    %v7546 = vunpack.c.l.b16 %v7352
    %v7547 = vunpack.c.l.b16 %v7353
    %v7548 = vunpack.c.l.b16 %v7354
    %v7549 = vunpack.c.l.b16 %v7355
    %v7550 = vunpack.c.l.b16 %v7356
    %v7551 = vunpack.c.l.b16 %v7357
    %v7552 = vunpack.c.l.b16 %v7358
    %v7553 = vunpack.c.l.b16 %v7359
    %v7554 = vunpack.c.l.b16 %v7360
    %v7555 = vunpack.c.l.b16 %v7361
    %v7556 = vunpack.c.l.b16 %v7362
    %v7557 = vunpack.c.l.b16 %v7363
    %v7558 = vunpack.c.l.b16 %v7364
    %v7559 = vunpack.c.l.b16 %v7365
    %v7560 = vunpack.c.l.b16 %v7366
    %v7561 = vunpack.c.l.b16 %v7367
    %v7562 = vunpack.c.l.b16 %v7368
    %v7563 = vunpack.c.l.b16 %v7369
    %v7564 = vunpack.c.l.b16 %v7370
    %v7565 = vunpack.c.l.b16 %v7371
    %v7566 = vunpack.c.l.b16 %v7372
    %v7567 = vunpack.c.l.b16 %v7373
    %v7568 = vunpack.c.l.b16 %v7374
    %v7569 = vunpack.c.l.b16 %v7375
    %v7570 = vunpack.c.l.b16 %v7376
    %v7571 = vunpack.c.l.b16 %v7377
    %v7572 = vunpack.c.l.b16 %v7378
    %v7573 = vpack.c.b16 %v7478, %v7477
    %v7574 = vpack.c.b16 %v7480, %v7479
    %v7575 = vpack.c.b16 %v7482, %v7481
    %v7576 = vpack.c.b16 %v7484, %v7483
    %v7577 = vpack.c.b16 %v7486, %v7485
    %v7578 = vpack.c.b16 %v7488, %v7487
    %v7579 = vpack.c.b16 %v7490, %v7489
    %v7580 = vpack.c.b16 %v7492, %v7491
    %v7581 = vpack.c.b16 %v7494, %v7493
    %v7582 = vpack.c.b16 %v7496, %v7495
    %v7583 = vpack.c.b16 %v7498, %v7497
    %v7584 = vpack.c.b16 %v7500, %v7499
    %v7585 = vpack.c.b16 %v7502, %v7501
    %v7586 = vpack.c.b16 %v7504, %v7503
    %v7587 = vpack.c.b16 %v7506, %v7505
    %v7588 = vpack.c.b16 %v7508, %v7507
    %v7589 = vpack.c.b16 %v7510, %v7509
    %v7590 = vpack.c.b16 %v7512, %v7511
    %v7591 = vpack.c.b16 %v7514, %v7513
    %v7592 = vpack.c.b16 %v7516, %v7515
    %v7593 = vpack.c.b16 %v7518, %v7517
    %v7594 = vpack.c.b16 %v7520, %v7519
    %v7595 = vpack.c.b16 %v7522, %v7521
    %v7596 = vpack.c.b16 %v7524, %v7523
    %v7597 = vpack.c.b16 %v7526, %v7525
    %v7598 = vpack.c.b16 %v7528, %v7527
    %v7599 = vpack.c.b16 %v7530, %v7529
    %v7600 = vpack.c.b16 %v7532, %v7531
    %v7601 = vpack.c.b16 %v7534, %v7533
    %v7602 = vpack.c.b16 %v7536, %v7535
    %v7603 = vpack.c.b16 %v7538, %v7537
    %v7604 = vpack.c.b16 %v7540, %v7539
    %v7605 = vpack.c.b16 %v7542, %v7541
    %v7606 = vpack.c.b16 %v7544, %v7543
    %v7607 = vpack.c.b16 %v7546, %v7545
    %v7608 = vpack.c.b16 %v7548, %v7547
    %v7609 = vpack.c.b16 %v7550, %v7549
    %v7610 = vpack.c.b16 %v7552, %v7551
    %v7611 = vpack.c.b16 %v7554, %v7553
    %v7612 = vpack.c.b16 %v7556, %v7555
    %v7613 = vpack.c.b16 %v7558, %v7557
    %v7614 = vpack.c.b16 %v7560, %v7559
    %v7615 = vpack.c.b16 %v7562, %v7561
    %v7616 = vpack.c.b16 %v7564, %v7563
    %v7617 = vpack.c.b16 %v7566, %v7565
    %v7618 = vpack.c.b16 %v7568, %v7567
    %v7619 = vpack.c.b16 %v7570, %v7569
    %v7620 = vpack.c.b16 %v7572, %v7571
    %v7622 = vsel %vm1815, %v7573, 0
    %v7625 = vsel %vm1815, %v7574, 0
    %v7628 = vsel %vm1815, %v7575, 0
    %v7631 = vsel %vm1815, %v7576, 0
    %v7634 = vsel %vm1815, %v7577, 0
    %v7637 = vsel %vm1815, %v7578, 0
    %v7640 = vsel %vm1815, %v7579, 0
    %v7643 = vsel %vm1815, %v7580, 0
    %v7646 = vsel %vm1815, %v7581, 0
    %v7649 = vsel %vm1815, %v7582, 0
    %v7652 = vsel %vm1815, %v7583, 0
    %v7655 = vsel %vm1815, %v7584, 0
    %v7658 = vsel %vm1815, %v7585, 0
    %v7661 = vsel %vm1815, %v7586, 0
    %v7664 = vsel %vm1815, %v7587, 0
    %v7667 = vsel %vm1815, %v7588, 0
    %v7670 = vsel %vm1815, %v7589, 0
    %v7673 = vsel %vm1815, %v7590, 0
    %v7676 = vsel %vm1815, %v7591, 0
    %v7679 = vsel %vm1815, %v7592, 0
    %v7682 = vsel %vm1815, %v7593, 0
    %v7685 = vsel %vm1815, %v7594, 0
    %v7688 = vsel %vm1815, %v7595, 0
    %v7691 = vsel %vm1815, %v7596, 0
    %v7694 = vsel %vm1815, %v7597, 0
    %v7697 = vsel %vm1815, %v7598, 0
    %v7700 = vsel %vm1815, %v7599, 0
    %v7703 = vsel %vm1815, %v7600, 0
    %v7706 = vsel %vm1815, %v7601, 0
    %v7709 = vsel %vm1815, %v7602, 0
    %v7712 = vsel %vm1815, %v7603, 0
    %v7715 = vsel %vm1815, %v7604, 0
    %v7718 = vsel %vm1815, %v7605, 0
    %v7721 = vsel %vm1815, %v7606, 0
    %v7724 = vsel %vm1815, %v7607, 0
    %v7727 = vsel %vm1815, %v7608, 0
    %v7730 = vsel %vm1815, %v7609, 0
    %v7733 = vsel %vm1815, %v7610, 0
    %v7736 = vsel %vm1815, %v7611, 0
    %v7739 = vsel %vm1815, %v7612, 0
    %v7742 = vsel %vm1815, %v7613, 0
    %v7745 = vsel %vm1815, %v7614, 0
    %v7748 = vsel %vm1815, %v7615, 0
    %v7751 = vsel %vm1815, %v7616, 0
    %v7754 = vsel %vm1815, %v7617, 0
    %v7757 = vsel %vm1815, %v7618, 0
    %v7760 = vsel %vm1815, %v7619, 0
    %v7763 = vsel %vm1815, %v7620, 0
    %v7766 = vsel %vm1960, %v7380, 0
    %7768 = vmatprep.subr.bf16.mxu0 0
    %7769 = vmatpush1.bf16.msra.mxu0 %v7766
    %7770 = vmatprep.subr.bf16.mxu0 0
    %7771 = vmatpush1.bf16.msra.mxu0 0
    %7772 = vmatprep.subr.bf16.mxu0 0
    %7773 = vmatpush1.bf16.msra.mxu0 0
    %7774 = vmatprep.subr.bf16.mxu0 0
    %7775 = vmatpush1.bf16.msra.mxu0 0
    %7776 = vmatprep.subr.bf16.mxu0 0
    %7777 = vmatpush1.bf16.msra.mxu0 0
    %7778 = vmatprep.subr.bf16.mxu0 0
    %7779 = vmatpush1.bf16.msra.mxu0 0
    %7780 = vmatprep.subr.bf16.mxu0 0
    %7781 = vmatpush1.bf16.msra.mxu0 0
    %7782 = vmatprep.subr.bf16.mxu0 0
    %7783 = vmatpush1.bf16.msra.mxu0 0
    %7784 = vmatprep.subr.bf16.mxu0 0
    %7785 = vmatpush1.bf16.msra.mxu0 0
    %7786 = vmatprep.subr.bf16.mxu0 0
    %7787 = vmatpush1.bf16.msra.mxu0 0
    %7788 = vmatprep.subr.bf16.mxu0 0
    %7789 = vmatpush1.bf16.msra.mxu0 0
    %7790 = vmatprep.subr.bf16.mxu0 0
    %7791 = vmatpush1.bf16.msra.mxu0 0
    %7792 = vmatprep.subr.bf16.mxu0 0
    %7793 = vmatpush1.bf16.msra.mxu0 0
    %7794 = vmatprep.subr.bf16.mxu0 0
    %7795 = vmatpush1.bf16.msra.mxu0 0
    %7796 = vmatprep.subr.bf16.mxu0 0
    %7797 = vmatpush1.bf16.msra.mxu0 0
    %7798 = vmatprep.subr.bf16.mxu0 0
    %7799 = vmatpush1.bf16.msra.mxu0 0
    %7800 = vmatprep.mubr.bf16.mxu0 0
    %7801 = vmatmul.mubr.bf16.gmra.mrb[0].mxu0 %v7622
    %v7802 = vpop.f32.mrb[0].mxu0
    %v7803 = vadd.f32 0.0, %v7802
    %v7804 = vpop.f32.mrb[0].mxu0
    %v7805 = vpop.f32.mrb[0].mxu0
    %v7806 = vadd.f32 0.0, %v7805
    %v7807 = vpop.f32.mrb[0].mxu0
    %7808 = vmatprep.mubr.bf16.mxu0 0
    %7809 = vmatmul.mubr.bf16.gmra.mrb[0].mxu0 %v7625
    %v7810 = vpop.f32.mrb[0].mxu0
    %v7811 = vadd.f32 0.0, %v7810
    %v7812 = vpop.f32.mrb[0].mxu0
    %v7813 = vpop.f32.mrb[0].mxu0
    %v7814 = vadd.f32 0.0, %v7813
    %v7815 = vpop.f32.mrb[0].mxu0
    %7816 = vmatprep.mubr.bf16.mxu0 0
    %7817 = vmatmul.mubr.bf16.gmra.mrb[0].mxu0 %v7628
    %v7818 = vpop.f32.mrb[0].mxu0
    %v7819 = vadd.f32 0.0, %v7818
    %v7820 = vpop.f32.mrb[0].mxu0
    %v7821 = vpop.f32.mrb[0].mxu0
    %v7822 = vadd.f32 0.0, %v7821
    %v7823 = vpop.f32.mrb[0].mxu0
    %7824 = vmatprep.mubr.bf16.mxu0 0
    %7825 = vmatmul.mubr.bf16.gmra.mrb[0].mxu0 %v7631
    %v7826 = vpop.f32.mrb[0].mxu0
    %v7827 = vadd.f32 0.0, %v7826
    %v7828 = vpop.f32.mrb[0].mxu0
    %v7829 = vpop.f32.mrb[0].mxu0
    %v7830 = vadd.f32 0.0, %v7829
    %v7831 = vpop.f32.mrb[0].mxu0
    %7832 = vmatprep.mubr.bf16.mxu0 0
    %7833 = vmatmul.mubr.bf16.gmra.mrb[0].mxu0 %v7634
    %v7834 = vpop.f32.mrb[0].mxu0
    %v7835 = vadd.f32 0.0, %v7834
    %v7836 = vpop.f32.mrb[0].mxu0
    %v7837 = vpop.f32.mrb[0].mxu0
    %v7838 = vadd.f32 0.0, %v7837
    %v7839 = vpop.f32.mrb[0].mxu0
    %7840 = vmatprep.mubr.bf16.mxu0 0
    %7841 = vmatmul.mubr.bf16.gmra.mrb[0].mxu0 %v7637
    %v7842 = vpop.f32.mrb[0].mxu0
    %v7843 = vadd.f32 0.0, %v7842
    %v7844 = vpop.f32.mrb[0].mxu0
    %v7845 = vpop.f32.mrb[0].mxu0
    %v7846 = vadd.f32 0.0, %v7845
    %v7847 = vpop.f32.mrb[0].mxu0
    %7848 = vmatprep.mubr.bf16.mxu0 0
    %7849 = vmatmul.mubr.bf16.gmra.mrb[0].mxu0 %v7640
    %v7850 = vpop.f32.mrb[0].mxu0
    %v7851 = vadd.f32 0.0, %v7850
    %v7852 = vpop.f32.mrb[0].mxu0
    %v7853 = vpop.f32.mrb[0].mxu0
    %v7854 = vadd.f32 0.0, %v7853
    %v7855 = vpop.f32.mrb[0].mxu0
    %7856 = vmatprep.mubr.bf16.mxu0 0
    %7857 = vmatmul.mubr.bf16.gmra.mrb[0].mxu0 %v7643
    %v7858 = vpop.f32.mrb[0].mxu0
    %v7859 = vadd.f32 0.0, %v7858
    %v7860 = vpop.f32.mrb[0].mxu0
    %v7861 = vpop.f32.mrb[0].mxu0
    %v7862 = vadd.f32 0.0, %v7861
    %v7863 = vpop.f32.mrb[0].mxu0
    %7864 = vmatprep.mubr.bf16.mxu0 0
    %7865 = vmatmul.mubr.bf16.gmra.mrb[0].mxu0 %v7646
    %v7866 = vpop.f32.mrb[0].mxu0
    %v7867 = vadd.f32 0.0, %v7866
    %v7868 = vpop.f32.mrb[0].mxu0
    %v7869 = vpop.f32.mrb[0].mxu0
    %v7870 = vadd.f32 0.0, %v7869
    %v7871 = vpop.f32.mrb[0].mxu0
    %7872 = vmatprep.mubr.bf16.mxu0 0
    %7873 = vmatmul.mubr.bf16.gmra.mrb[0].mxu0 %v7649
    %v7874 = vpop.f32.mrb[0].mxu0
    %v7875 = vadd.f32 0.0, %v7874
    %v7876 = vpop.f32.mrb[0].mxu0
    %v7877 = vpop.f32.mrb[0].mxu0
    %v7878 = vadd.f32 0.0, %v7877
    %v7879 = vpop.f32.mrb[0].mxu0
    %7880 = vmatprep.mubr.bf16.mxu0 0
    %7881 = vmatmul.mubr.bf16.gmra.mrb[0].mxu0 %v7652
    %v7882 = vpop.f32.mrb[0].mxu0
    %v7883 = vadd.f32 0.0, %v7882
    %v7884 = vpop.f32.mrb[0].mxu0
    %v7885 = vpop.f32.mrb[0].mxu0
    %v7886 = vadd.f32 0.0, %v7885
    %v7887 = vpop.f32.mrb[0].mxu0
    %7888 = vmatprep.mubr.bf16.mxu0 0
    %7889 = vmatmul.mubr.bf16.gmra.mrb[0].mxu0 %v7655
    %v7890 = vpop.f32.mrb[0].mxu0
    %v7891 = vadd.f32 0.0, %v7890
    %v7892 = vpop.f32.mrb[0].mxu0
    %v7893 = vpop.f32.mrb[0].mxu0
    %v7894 = vadd.f32 0.0, %v7893
    %v7895 = vpop.f32.mrb[0].mxu0
    %7896 = vmatprep.mubr.bf16.mxu0 0
    %7897 = vmatmul.mubr.bf16.gmra.mrb[0].mxu0 %v7658
    %v7898 = vpop.f32.mrb[0].mxu0
    %v7899 = vadd.f32 0.0, %v7898
    %v7900 = vpop.f32.mrb[0].mxu0
    %v7901 = vpop.f32.mrb[0].mxu0
    %v7902 = vadd.f32 0.0, %v7901
    %v7903 = vpop.f32.mrb[0].mxu0
    %7904 = vmatprep.mubr.bf16.mxu0 0
    %7905 = vmatmul.mubr.bf16.gmra.mrb[0].mxu0 %v7661
    %v7906 = vpop.f32.mrb[0].mxu0
    %v7907 = vadd.f32 0.0, %v7906
    %v7908 = vpop.f32.mrb[0].mxu0
    %v7909 = vpop.f32.mrb[0].mxu0
    %v7910 = vadd.f32 0.0, %v7909
    %v7911 = vpop.f32.mrb[0].mxu0
    %7912 = vmatprep.mubr.bf16.mxu0 0
    %7913 = vmatmul.mubr.bf16.gmra.mrb[0].mxu0 %v7664
    %v7914 = vpop.f32.mrb[0].mxu0
    %v7915 = vadd.f32 0.0, %v7914
    %v7916 = vpop.f32.mrb[0].mxu0
    %v7917 = vpop.f32.mrb[0].mxu0
    %v7918 = vadd.f32 0.0, %v7917
    %v7919 = vpop.f32.mrb[0].mxu0
    %7920 = vmatprep.mubr.bf16.mxu0 0
    %7921 = vmatmul.mubr.bf16.gmra.mrb[0].mxu0 %v7667
    %v7922 = vpop.f32.mrb[0].mxu0
    %v7923 = vadd.f32 0.0, %v7922
    %v7924 = vpop.f32.mrb[0].mxu0
    %v7925 = vpop.f32.mrb[0].mxu0
    %v7926 = vadd.f32 0.0, %v7925
    %v7927 = vpop.f32.mrb[0].mxu0
    %7928 = vmatprep.mubr.bf16.mxu0 0
    %7929 = vmatmul.mubr.bf16.gmra.mrb[0].mxu0 %v7670
    %v7930 = vpop.f32.mrb[0].mxu0
    %v7931 = vadd.f32 0.0, %v7930
    %v7932 = vpop.f32.mrb[0].mxu0
    %v7933 = vpop.f32.mrb[0].mxu0
    %v7934 = vadd.f32 0.0, %v7933
    %v7935 = vpop.f32.mrb[0].mxu0
    %7936 = vmatprep.mubr.bf16.mxu0 0
    %7937 = vmatmul.mubr.bf16.gmra.mrb[0].mxu0 %v7673
    %v7938 = vpop.f32.mrb[0].mxu0
    %v7939 = vadd.f32 0.0, %v7938
    %v7940 = vpop.f32.mrb[0].mxu0
    %v7941 = vpop.f32.mrb[0].mxu0
    %v7942 = vadd.f32 0.0, %v7941
    %v7943 = vpop.f32.mrb[0].mxu0
    %7944 = vmatprep.mubr.bf16.mxu0 0
    %7945 = vmatmul.mubr.bf16.gmra.mrb[0].mxu0 %v7676
    %v7946 = vpop.f32.mrb[0].mxu0
    %v7947 = vadd.f32 0.0, %v7946
    %v7948 = vpop.f32.mrb[0].mxu0
    %v7949 = vpop.f32.mrb[0].mxu0
    %v7950 = vadd.f32 0.0, %v7949
    %v7951 = vpop.f32.mrb[0].mxu0
    %7952 = vmatprep.mubr.bf16.mxu0 0
    %7953 = vmatmul.mubr.bf16.gmra.mrb[0].mxu0 %v7679
    %v7954 = vpop.f32.mrb[0].mxu0
    %v7955 = vadd.f32 0.0, %v7954
    %v7956 = vpop.f32.mrb[0].mxu0
    %v7957 = vpop.f32.mrb[0].mxu0
    %v7958 = vadd.f32 0.0, %v7957
    %v7959 = vpop.f32.mrb[0].mxu0
    %7960 = vmatprep.mubr.bf16.mxu0 0
    %7961 = vmatmul.mubr.bf16.gmra.mrb[0].mxu0 %v7682
    %v7962 = vpop.f32.mrb[0].mxu0
    %v7963 = vadd.f32 0.0, %v7962
    %v7964 = vpop.f32.mrb[0].mxu0
    %v7965 = vpop.f32.mrb[0].mxu0
    %v7966 = vadd.f32 0.0, %v7965
    %v7967 = vpop.f32.mrb[0].mxu0
    %7968 = vmatprep.mubr.bf16.mxu0 0
    %7969 = vmatmul.mubr.bf16.gmra.mrb[0].mxu0 %v7685
    %v7970 = vpop.f32.mrb[0].mxu0
    %v7971 = vadd.f32 0.0, %v7970
    %v7972 = vpop.f32.mrb[0].mxu0
    %v7973 = vpop.f32.mrb[0].mxu0
    %v7974 = vadd.f32 0.0, %v7973
    %v7975 = vpop.f32.mrb[0].mxu0
    %7976 = vmatprep.mubr.bf16.mxu0 0
    %7977 = vmatmul.mubr.bf16.gmra.mrb[0].mxu0 %v7688
    %v7978 = vpop.f32.mrb[0].mxu0
    %v7979 = vadd.f32 0.0, %v7978
    %v7980 = vpop.f32.mrb[0].mxu0
    %v7981 = vpop.f32.mrb[0].mxu0
    %v7982 = vadd.f32 0.0, %v7981
    %v7983 = vpop.f32.mrb[0].mxu0
    %7984 = vmatprep.mubr.bf16.mxu0 0
    %7985 = vmatmul.mubr.bf16.gmra.mrb[0].mxu0 %v7691
    %v7986 = vpop.f32.mrb[0].mxu0
    %v7987 = vadd.f32 0.0, %v7986
    %v7988 = vpop.f32.mrb[0].mxu0
    %v7989 = vpop.f32.mrb[0].mxu0
    %v7990 = vadd.f32 0.0, %v7989
    %v7991 = vpop.f32.mrb[0].mxu0
    %7992 = vmatprep.mubr.bf16.mxu0 0
    %7993 = vmatmul.mubr.bf16.gmra.mrb[0].mxu0 %v7694
    %v7994 = vpop.f32.mrb[0].mxu0
    %v7995 = vadd.f32 0.0, %v7994
    %v7996 = vpop.f32.mrb[0].mxu0
    %v7997 = vpop.f32.mrb[0].mxu0
    %v7998 = vadd.f32 0.0, %v7997
    %v7999 = vpop.f32.mrb[0].mxu0
    %8000 = vmatprep.mubr.bf16.mxu0 0
    %8001 = vmatmul.mubr.bf16.gmra.mrb[0].mxu0 %v7697
    %v8002 = vpop.f32.mrb[0].mxu0
    %v8003 = vadd.f32 0.0, %v8002
    %v8004 = vpop.f32.mrb[0].mxu0
    %v8005 = vpop.f32.mrb[0].mxu0
    %v8006 = vadd.f32 0.0, %v8005
    %v8007 = vpop.f32.mrb[0].mxu0
    %8008 = vmatprep.mubr.bf16.mxu0 0
    %8009 = vmatmul.mubr.bf16.gmra.mrb[0].mxu0 %v7700
    %v8010 = vpop.f32.mrb[0].mxu0
    %v8011 = vadd.f32 0.0, %v8010
    %v8012 = vpop.f32.mrb[0].mxu0
    %v8013 = vpop.f32.mrb[0].mxu0
    %v8014 = vadd.f32 0.0, %v8013
    %v8015 = vpop.f32.mrb[0].mxu0
    %8016 = vmatprep.mubr.bf16.mxu0 0
    %8017 = vmatmul.mubr.bf16.gmra.mrb[0].mxu0 %v7703
    %v8018 = vpop.f32.mrb[0].mxu0
    %v8019 = vadd.f32 0.0, %v8018
    %v8020 = vpop.f32.mrb[0].mxu0
    %v8021 = vpop.f32.mrb[0].mxu0
    %v8022 = vadd.f32 0.0, %v8021
    %v8023 = vpop.f32.mrb[0].mxu0
    %8024 = vmatprep.mubr.bf16.mxu0 0
    %8025 = vmatmul.mubr.bf16.gmra.mrb[0].mxu0 %v7706
    %v8026 = vpop.f32.mrb[0].mxu0
    %v8027 = vadd.f32 0.0, %v8026
    %v8028 = vpop.f32.mrb[0].mxu0
    %v8029 = vpop.f32.mrb[0].mxu0
    %v8030 = vadd.f32 0.0, %v8029
    %v8031 = vpop.f32.mrb[0].mxu0
    %8032 = vmatprep.mubr.bf16.mxu0 0
    %8033 = vmatmul.mubr.bf16.gmra.mrb[0].mxu0 %v7709
    %v8034 = vpop.f32.mrb[0].mxu0
    %v8035 = vadd.f32 0.0, %v8034
    %v8036 = vpop.f32.mrb[0].mxu0
    %v8037 = vpop.f32.mrb[0].mxu0
    %v8038 = vadd.f32 0.0, %v8037
    %v8039 = vpop.f32.mrb[0].mxu0
    %8040 = vmatprep.mubr.bf16.mxu0 0
    %8041 = vmatmul.mubr.bf16.gmra.mrb[0].mxu0 %v7712
    %v8042 = vpop.f32.mrb[0].mxu0
    %v8043 = vadd.f32 0.0, %v8042
    %v8044 = vpop.f32.mrb[0].mxu0
    %v8045 = vpop.f32.mrb[0].mxu0
    %v8046 = vadd.f32 0.0, %v8045
    %v8047 = vpop.f32.mrb[0].mxu0
    %8048 = vmatprep.mubr.bf16.mxu0 0
    %8049 = vmatmul.mubr.bf16.gmra.mrb[0].mxu0 %v7715
    %v8050 = vpop.f32.mrb[0].mxu0
    %v8051 = vadd.f32 0.0, %v8050
    %v8052 = vpop.f32.mrb[0].mxu0
    %v8053 = vpop.f32.mrb[0].mxu0
    %v8054 = vadd.f32 0.0, %v8053
    %v8055 = vpop.f32.mrb[0].mxu0
    %8056 = vmatprep.mubr.bf16.mxu0 0
    %8057 = vmatmul.mubr.bf16.gmra.mrb[0].mxu0 %v7718
    %v8058 = vpop.f32.mrb[0].mxu0
    %v8059 = vadd.f32 0.0, %v8058
    %v8060 = vpop.f32.mrb[0].mxu0
    %v8061 = vpop.f32.mrb[0].mxu0
    %v8062 = vadd.f32 0.0, %v8061
    %v8063 = vpop.f32.mrb[0].mxu0
    %8064 = vmatprep.mubr.bf16.mxu0 0
    %8065 = vmatmul.mubr.bf16.gmra.mrb[0].mxu0 %v7721
    %v8066 = vpop.f32.mrb[0].mxu0
    %v8067 = vadd.f32 0.0, %v8066
    %v8068 = vpop.f32.mrb[0].mxu0
    %v8069 = vpop.f32.mrb[0].mxu0
    %v8070 = vadd.f32 0.0, %v8069
    %v8071 = vpop.f32.mrb[0].mxu0
    %8072 = vmatprep.mubr.bf16.mxu0 0
    %8073 = vmatmul.mubr.bf16.gmra.mrb[0].mxu0 %v7724
    %v8074 = vpop.f32.mrb[0].mxu0
    %v8075 = vadd.f32 0.0, %v8074
    %v8076 = vpop.f32.mrb[0].mxu0
    %v8077 = vpop.f32.mrb[0].mxu0
    %v8078 = vadd.f32 0.0, %v8077
    %v8079 = vpop.f32.mrb[0].mxu0
    %8080 = vmatprep.mubr.bf16.mxu0 0
    %8081 = vmatmul.mubr.bf16.gmra.mrb[0].mxu0 %v7727
    %v8082 = vpop.f32.mrb[0].mxu0
    %v8083 = vadd.f32 0.0, %v8082
    %v8084 = vpop.f32.mrb[0].mxu0
    %v8085 = vpop.f32.mrb[0].mxu0
    %v8086 = vadd.f32 0.0, %v8085
    %v8087 = vpop.f32.mrb[0].mxu0
    %8088 = vmatprep.mubr.bf16.mxu0 0
    %8089 = vmatmul.mubr.bf16.gmra.mrb[0].mxu0 %v7730
    %v8090 = vpop.f32.mrb[0].mxu0
    %v8091 = vadd.f32 0.0, %v8090
    %v8092 = vpop.f32.mrb[0].mxu0
    %v8093 = vpop.f32.mrb[0].mxu0
    %v8094 = vadd.f32 0.0, %v8093
    %v8095 = vpop.f32.mrb[0].mxu0
    %8096 = vmatprep.mubr.bf16.mxu0 0
    %8097 = vmatmul.mubr.bf16.gmra.mrb[0].mxu0 %v7733
    %v8098 = vpop.f32.mrb[0].mxu0
    %v8099 = vadd.f32 0.0, %v8098
    %v8100 = vpop.f32.mrb[0].mxu0
    %v8101 = vpop.f32.mrb[0].mxu0
    %v8102 = vadd.f32 0.0, %v8101
    %v8103 = vpop.f32.mrb[0].mxu0
    %8104 = vmatprep.mubr.bf16.mxu0 0
    %8105 = vmatmul.mubr.bf16.gmra.mrb[0].mxu0 %v7736
    %v8106 = vpop.f32.mrb[0].mxu0
    %v8107 = vadd.f32 0.0, %v8106
    %v8108 = vpop.f32.mrb[0].mxu0
    %v8109 = vpop.f32.mrb[0].mxu0
    %v8110 = vadd.f32 0.0, %v8109
    %v8111 = vpop.f32.mrb[0].mxu0
    %8112 = vmatprep.mubr.bf16.mxu0 0
    %8113 = vmatmul.mubr.bf16.gmra.mrb[0].mxu0 %v7739
    %v8114 = vpop.f32.mrb[0].mxu0
    %v8115 = vadd.f32 0.0, %v8114
    %v8116 = vpop.f32.mrb[0].mxu0
    %v8117 = vpop.f32.mrb[0].mxu0
    %v8118 = vadd.f32 0.0, %v8117
    %v8119 = vpop.f32.mrb[0].mxu0
    %8120 = vmatprep.mubr.bf16.mxu0 0
    %8121 = vmatmul.mubr.bf16.gmra.mrb[0].mxu0 %v7742
    %v8122 = vpop.f32.mrb[0].mxu0
    %v8123 = vadd.f32 0.0, %v8122
    %v8124 = vpop.f32.mrb[0].mxu0
    %v8125 = vpop.f32.mrb[0].mxu0
    %v8126 = vadd.f32 0.0, %v8125
    %v8127 = vpop.f32.mrb[0].mxu0
    %8128 = vmatprep.mubr.bf16.mxu0 0
    %8129 = vmatmul.mubr.bf16.gmra.mrb[0].mxu0 %v7745
    %v8130 = vpop.f32.mrb[0].mxu0
    %v8131 = vadd.f32 0.0, %v8130
    %v8132 = vpop.f32.mrb[0].mxu0
    %v8133 = vpop.f32.mrb[0].mxu0
    %v8134 = vadd.f32 0.0, %v8133
    %v8135 = vpop.f32.mrb[0].mxu0
    %8136 = vmatprep.mubr.bf16.mxu0 0
    %8137 = vmatmul.mubr.bf16.gmra.mrb[0].mxu0 %v7748
    %v8138 = vpop.f32.mrb[0].mxu0
    %v8139 = vadd.f32 0.0, %v8138
    %v8140 = vpop.f32.mrb[0].mxu0
    %v8141 = vpop.f32.mrb[0].mxu0
    %v8142 = vadd.f32 0.0, %v8141
    %v8143 = vpop.f32.mrb[0].mxu0
    %8144 = vmatprep.mubr.bf16.mxu0 0
    %8145 = vmatmul.mubr.bf16.gmra.mrb[0].mxu0 %v7751
    %v8146 = vpop.f32.mrb[0].mxu0
    %v8147 = vadd.f32 0.0, %v8146
    %v8148 = vpop.f32.mrb[0].mxu0
    %v8149 = vpop.f32.mrb[0].mxu0
    %v8150 = vadd.f32 0.0, %v8149
    %v8151 = vpop.f32.mrb[0].mxu0
    %8152 = vmatprep.mubr.bf16.mxu0 0
    %8153 = vmatmul.mubr.bf16.gmra.mrb[0].mxu0 %v7754
    %v8154 = vpop.f32.mrb[0].mxu0
    %v8155 = vadd.f32 0.0, %v8154
    %v8156 = vpop.f32.mrb[0].mxu0
    %v8157 = vpop.f32.mrb[0].mxu0
    %v8158 = vadd.f32 0.0, %v8157
    %v8159 = vpop.f32.mrb[0].mxu0
    %8160 = vmatprep.mubr.bf16.mxu0 0
    %8161 = vmatmul.mubr.bf16.gmra.mrb[0].mxu0 %v7757
    %v8162 = vpop.f32.mrb[0].mxu0
    %v8163 = vadd.f32 0.0, %v8162
    %v8164 = vpop.f32.mrb[0].mxu0
    %v8165 = vpop.f32.mrb[0].mxu0
    %v8166 = vadd.f32 0.0, %v8165
    %v8167 = vpop.f32.mrb[0].mxu0
    %8168 = vmatprep.mubr.bf16.mxu0 0
    %8169 = vmatmul.mubr.bf16.gmra.mrb[0].mxu0 %v7760
    %v8170 = vpop.f32.mrb[0].mxu0
    %v8171 = vadd.f32 0.0, %v8170
    %v8172 = vpop.f32.mrb[0].mxu0
    %v8173 = vpop.f32.mrb[0].mxu0
    %v8174 = vadd.f32 0.0, %v8173
    %v8175 = vpop.f32.mrb[0].mxu0
    %8176 = vmatprep.mubr.bf16.mxu0 0
    %8177 = vmatmul.mubr.bf16.gmra.mrb[0].mxu0 %v7763
    %v8178 = vpop.f32.mrb[0].mxu0
    %v8179 = vadd.f32 0.0, %v8178
    %v8180 = vpop.f32.mrb[0].mxu0
    %v8181 = vpop.f32.mrb[0].mxu0
    %v8182 = vadd.f32 0.0, %v8181
    %v8183 = vpop.f32.mrb[0].mxu0
    %8184 = vdwg.mxu0
    %s8185 = scalar_lea.vmem %s4, 14
    %v8186 = vld [vmem:[%s8185] sm:$0x3]
    %v8188 = vsel %vm1960, %v8186, 0
    %8190 = vmatprep.subr.bf16.mxu0 0
    %8191 = vmatpush1.bf16.msra.mxu0 %v8188
    %8192 = vmatprep.subr.bf16.mxu0 0
    %8193 = vmatpush1.bf16.msra.mxu0 0
    %8194 = vmatprep.subr.bf16.mxu0 0
    %8195 = vmatpush1.bf16.msra.mxu0 0
    %8196 = vmatprep.subr.bf16.mxu0 0
    %8197 = vmatpush1.bf16.msra.mxu0 0
    %8198 = vmatprep.subr.bf16.mxu0 0
    %8199 = vmatpush1.bf16.msra.mxu0 0
    %8200 = vmatprep.subr.bf16.mxu0 0
    %8201 = vmatpush1.bf16.msra.mxu0 0
    %8202 = vmatprep.subr.bf16.mxu0 0
    %8203 = vmatpush1.bf16.msra.mxu0 0
    %8204 = vmatprep.subr.bf16.mxu0 0
    %8205 = vmatpush1.bf16.msra.mxu0 0
    %8206 = vmatprep.subr.bf16.mxu0 0
    %8207 = vmatpush1.bf16.msra.mxu0 0
    %8208 = vmatprep.subr.bf16.mxu0 0
    %8209 = vmatpush1.bf16.msra.mxu0 0
    %8210 = vmatprep.subr.bf16.mxu0 0
    %8211 = vmatpush1.bf16.msra.mxu0 0
    %8212 = vmatprep.subr.bf16.mxu0 0
    %8213 = vmatpush1.bf16.msra.mxu0 0
    %8214 = vmatprep.subr.bf16.mxu0 0
    %8215 = vmatpush1.bf16.msra.mxu0 0
    %8216 = vmatprep.subr.bf16.mxu0 0
    %8217 = vmatpush1.bf16.msra.mxu0 0
    %8218 = vmatprep.subr.bf16.mxu0 0
    %8219 = vmatpush1.bf16.msra.mxu0 0
    %8220 = vmatprep.subr.bf16.mxu0 0
    %8221 = vmatpush1.bf16.msra.mxu0 0
    %8222 = vmatprep.mubr.bf16.mxu0 0
    %8223 = vmatmul.mubr.bf16.gmra.mrb[0].mxu0 %v7622
    %v8224 = vpop.f32.mrb[0].mxu0
    %v8225 = vadd.f32 0.0, %v8224
    %v8226 = vpop.f32.mrb[0].mxu0
    %v8227 = vpop.f32.mrb[0].mxu0
    %v8228 = vadd.f32 0.0, %v8227
    %v8229 = vpop.f32.mrb[0].mxu0
    %8230 = vmatprep.mubr.bf16.mxu0 0
    %8231 = vmatmul.mubr.bf16.gmra.mrb[0].mxu0 %v7625
    %v8232 = vpop.f32.mrb[0].mxu0
    %v8233 = vadd.f32 0.0, %v8232
    %v8234 = vpop.f32.mrb[0].mxu0
    %v8235 = vpop.f32.mrb[0].mxu0
    %v8236 = vadd.f32 0.0, %v8235
    %v8237 = vpop.f32.mrb[0].mxu0
    %8238 = vmatprep.mubr.bf16.mxu0 0
    %8239 = vmatmul.mubr.bf16.gmra.mrb[0].mxu0 %v7628
    %v8240 = vpop.f32.mrb[0].mxu0
    %v8241 = vadd.f32 0.0, %v8240
    %v8242 = vpop.f32.mrb[0].mxu0
    %v8243 = vpop.f32.mrb[0].mxu0
    %v8244 = vadd.f32 0.0, %v8243
    %v8245 = vpop.f32.mrb[0].mxu0
    %8246 = vmatprep.mubr.bf16.mxu0 0
    %8247 = vmatmul.mubr.bf16.gmra.mrb[0].mxu0 %v7631
    %v8248 = vpop.f32.mrb[0].mxu0
    %v8249 = vadd.f32 0.0, %v8248
    %v8250 = vpop.f32.mrb[0].mxu0
    %v8251 = vpop.f32.mrb[0].mxu0
    %v8252 = vadd.f32 0.0, %v8251
    %v8253 = vpop.f32.mrb[0].mxu0
    %8254 = vmatprep.mubr.bf16.mxu0 0
    %8255 = vmatmul.mubr.bf16.gmra.mrb[0].mxu0 %v7634
    %v8256 = vpop.f32.mrb[0].mxu0
    %v8257 = vadd.f32 0.0, %v8256
    %v8258 = vpop.f32.mrb[0].mxu0
    %v8259 = vpop.f32.mrb[0].mxu0
    %v8260 = vadd.f32 0.0, %v8259
    %v8261 = vpop.f32.mrb[0].mxu0
    %8262 = vmatprep.mubr.bf16.mxu0 0
    %8263 = vmatmul.mubr.bf16.gmra.mrb[0].mxu0 %v7637
    %v8264 = vpop.f32.mrb[0].mxu0
    %v8265 = vadd.f32 0.0, %v8264
    %v8266 = vpop.f32.mrb[0].mxu0
    %v8267 = vpop.f32.mrb[0].mxu0
    %v8268 = vadd.f32 0.0, %v8267
    %v8269 = vpop.f32.mrb[0].mxu0
    %8270 = vmatprep.mubr.bf16.mxu0 0
    %8271 = vmatmul.mubr.bf16.gmra.mrb[0].mxu0 %v7640
    %v8272 = vpop.f32.mrb[0].mxu0
    %v8273 = vadd.f32 0.0, %v8272
    %v8274 = vpop.f32.mrb[0].mxu0
    %v8275 = vpop.f32.mrb[0].mxu0
    %v8276 = vadd.f32 0.0, %v8275
    %v8277 = vpop.f32.mrb[0].mxu0
    %8278 = vmatprep.mubr.bf16.mxu0 0
    %8279 = vmatmul.mubr.bf16.gmra.mrb[0].mxu0 %v7643
    %v8280 = vpop.f32.mrb[0].mxu0
    %v8281 = vadd.f32 0.0, %v8280
    %v8282 = vpop.f32.mrb[0].mxu0
    %v8283 = vpop.f32.mrb[0].mxu0
    %v8284 = vadd.f32 0.0, %v8283
    %v8285 = vpop.f32.mrb[0].mxu0
    %8286 = vmatprep.mubr.bf16.mxu0 0
    %8287 = vmatmul.mubr.bf16.gmra.mrb[0].mxu0 %v7646
    %v8288 = vpop.f32.mrb[0].mxu0
    %v8289 = vadd.f32 0.0, %v8288
    %v8290 = vpop.f32.mrb[0].mxu0
    %v8291 = vpop.f32.mrb[0].mxu0
    %v8292 = vadd.f32 0.0, %v8291
    %v8293 = vpop.f32.mrb[0].mxu0
    %8294 = vmatprep.mubr.bf16.mxu0 0
    %8295 = vmatmul.mubr.bf16.gmra.mrb[0].mxu0 %v7649
    %v8296 = vpop.f32.mrb[0].mxu0
    %v8297 = vadd.f32 0.0, %v8296
    %v8298 = vpop.f32.mrb[0].mxu0
    %v8299 = vpop.f32.mrb[0].mxu0
    %v8300 = vadd.f32 0.0, %v8299
    %v8301 = vpop.f32.mrb[0].mxu0
    %8302 = vmatprep.mubr.bf16.mxu0 0
    %8303 = vmatmul.mubr.bf16.gmra.mrb[0].mxu0 %v7652
    %v8304 = vpop.f32.mrb[0].mxu0
    %v8305 = vadd.f32 0.0, %v8304
    %v8306 = vpop.f32.mrb[0].mxu0
    %v8307 = vpop.f32.mrb[0].mxu0
    %v8308 = vadd.f32 0.0, %v8307
    %v8309 = vpop.f32.mrb[0].mxu0
    %8310 = vmatprep.mubr.bf16.mxu0 0
    %8311 = vmatmul.mubr.bf16.gmra.mrb[0].mxu0 %v7655
    %v8312 = vpop.f32.mrb[0].mxu0
    %v8313 = vadd.f32 0.0, %v8312
    %v8314 = vpop.f32.mrb[0].mxu0
    %v8315 = vpop.f32.mrb[0].mxu0
    %v8316 = vadd.f32 0.0, %v8315
    %v8317 = vpop.f32.mrb[0].mxu0
    %8318 = vmatprep.mubr.bf16.mxu0 0
    %8319 = vmatmul.mubr.bf16.gmra.mrb[0].mxu0 %v7658
    %v8320 = vpop.f32.mrb[0].mxu0
    %v8321 = vadd.f32 0.0, %v8320
    %v8322 = vpop.f32.mrb[0].mxu0
    %v8323 = vpop.f32.mrb[0].mxu0
    %v8324 = vadd.f32 0.0, %v8323
    %v8325 = vpop.f32.mrb[0].mxu0
    %8326 = vmatprep.mubr.bf16.mxu0 0
    %8327 = vmatmul.mubr.bf16.gmra.mrb[0].mxu0 %v7661
    %v8328 = vpop.f32.mrb[0].mxu0
    %v8329 = vadd.f32 0.0, %v8328
    %v8330 = vpop.f32.mrb[0].mxu0
    %v8331 = vpop.f32.mrb[0].mxu0
    %v8332 = vadd.f32 0.0, %v8331
    %v8333 = vpop.f32.mrb[0].mxu0
    %8334 = vmatprep.mubr.bf16.mxu0 0
    %8335 = vmatmul.mubr.bf16.gmra.mrb[0].mxu0 %v7664
    %v8336 = vpop.f32.mrb[0].mxu0
    %v8337 = vadd.f32 0.0, %v8336
    %v8338 = vpop.f32.mrb[0].mxu0
    %v8339 = vpop.f32.mrb[0].mxu0
    %v8340 = vadd.f32 0.0, %v8339
    %v8341 = vpop.f32.mrb[0].mxu0
    %8342 = vmatprep.mubr.bf16.mxu0 0
    %8343 = vmatmul.mubr.bf16.gmra.mrb[0].mxu0 %v7667
    %v8344 = vpop.f32.mrb[0].mxu0
    %v8345 = vadd.f32 0.0, %v8344
    %v8346 = vpop.f32.mrb[0].mxu0
    %v8347 = vpop.f32.mrb[0].mxu0
    %v8348 = vadd.f32 0.0, %v8347
    %v8349 = vpop.f32.mrb[0].mxu0
    %8350 = vmatprep.mubr.bf16.mxu0 0
    %8351 = vmatmul.mubr.bf16.gmra.mrb[0].mxu0 %v7670
    %v8352 = vpop.f32.mrb[0].mxu0
    %v8353 = vadd.f32 0.0, %v8352
    %v8354 = vpop.f32.mrb[0].mxu0
    %v8355 = vpop.f32.mrb[0].mxu0
    %v8356 = vadd.f32 0.0, %v8355
    %v8357 = vpop.f32.mrb[0].mxu0
    %8358 = vmatprep.mubr.bf16.mxu0 0
    %8359 = vmatmul.mubr.bf16.gmra.mrb[0].mxu0 %v7673
    %v8360 = vpop.f32.mrb[0].mxu0
    %v8361 = vadd.f32 0.0, %v8360
    %v8362 = vpop.f32.mrb[0].mxu0
    %v8363 = vpop.f32.mrb[0].mxu0
    %v8364 = vadd.f32 0.0, %v8363
    %v8365 = vpop.f32.mrb[0].mxu0
    %8366 = vmatprep.mubr.bf16.mxu0 0
    %8367 = vmatmul.mubr.bf16.gmra.mrb[0].mxu0 %v7676
    %v8368 = vpop.f32.mrb[0].mxu0
    %v8369 = vadd.f32 0.0, %v8368
    %v8370 = vpop.f32.mrb[0].mxu0
    %v8371 = vpop.f32.mrb[0].mxu0
    %v8372 = vadd.f32 0.0, %v8371
    %v8373 = vpop.f32.mrb[0].mxu0
    %8374 = vmatprep.mubr.bf16.mxu0 0
    %8375 = vmatmul.mubr.bf16.gmra.mrb[0].mxu0 %v7679
    %v8376 = vpop.f32.mrb[0].mxu0
    %v8377 = vadd.f32 0.0, %v8376
    %v8378 = vpop.f32.mrb[0].mxu0
    %v8379 = vpop.f32.mrb[0].mxu0
    %v8380 = vadd.f32 0.0, %v8379
    %v8381 = vpop.f32.mrb[0].mxu0
    %8382 = vmatprep.mubr.bf16.mxu0 0
    %8383 = vmatmul.mubr.bf16.gmra.mrb[0].mxu0 %v7682
    %v8384 = vpop.f32.mrb[0].mxu0
    %v8385 = vadd.f32 0.0, %v8384
    %v8386 = vpop.f32.mrb[0].mxu0
    %v8387 = vpop.f32.mrb[0].mxu0
    %v8388 = vadd.f32 0.0, %v8387
    %v8389 = vpop.f32.mrb[0].mxu0
    %8390 = vmatprep.mubr.bf16.mxu0 0
    %8391 = vmatmul.mubr.bf16.gmra.mrb[0].mxu0 %v7685
    %v8392 = vpop.f32.mrb[0].mxu0
    %v8393 = vadd.f32 0.0, %v8392
    %v8394 = vpop.f32.mrb[0].mxu0
    %v8395 = vpop.f32.mrb[0].mxu0
    %v8396 = vadd.f32 0.0, %v8395
    %v8397 = vpop.f32.mrb[0].mxu0
    %8398 = vmatprep.mubr.bf16.mxu0 0
    %8399 = vmatmul.mubr.bf16.gmra.mrb[0].mxu0 %v7688
    %v8400 = vpop.f32.mrb[0].mxu0
    %v8401 = vadd.f32 0.0, %v8400
    %v8402 = vpop.f32.mrb[0].mxu0
    %v8403 = vpop.f32.mrb[0].mxu0
    %v8404 = vadd.f32 0.0, %v8403
    %v8405 = vpop.f32.mrb[0].mxu0
    %8406 = vmatprep.mubr.bf16.mxu0 0
    %8407 = vmatmul.mubr.bf16.gmra.mrb[0].mxu0 %v7691
    %v8408 = vpop.f32.mrb[0].mxu0
    %v8409 = vadd.f32 0.0, %v8408
    %v8410 = vpop.f32.mrb[0].mxu0
    %v8411 = vpop.f32.mrb[0].mxu0
    %v8412 = vadd.f32 0.0, %v8411
    %v8413 = vpop.f32.mrb[0].mxu0
    %8414 = vmatprep.mubr.bf16.mxu0 0
    %8415 = vmatmul.mubr.bf16.gmra.mrb[0].mxu0 %v7694
    %v8416 = vpop.f32.mrb[0].mxu0
    %v8417 = vadd.f32 0.0, %v8416
    %v8418 = vpop.f32.mrb[0].mxu0
    %v8419 = vpop.f32.mrb[0].mxu0
    %v8420 = vadd.f32 0.0, %v8419
    %v8421 = vpop.f32.mrb[0].mxu0
    %8422 = vmatprep.mubr.bf16.mxu0 0
    %8423 = vmatmul.mubr.bf16.gmra.mrb[0].mxu0 %v7697
    %v8424 = vpop.f32.mrb[0].mxu0
    %v8425 = vadd.f32 0.0, %v8424
    %v8426 = vpop.f32.mrb[0].mxu0
    %v8427 = vpop.f32.mrb[0].mxu0
    %v8428 = vadd.f32 0.0, %v8427
    %v8429 = vpop.f32.mrb[0].mxu0
    %8430 = vmatprep.mubr.bf16.mxu0 0
    %8431 = vmatmul.mubr.bf16.gmra.mrb[0].mxu0 %v7700
    %v8432 = vpop.f32.mrb[0].mxu0
    %v8433 = vadd.f32 0.0, %v8432
    %v8434 = vpop.f32.mrb[0].mxu0
    %v8435 = vpop.f32.mrb[0].mxu0
    %v8436 = vadd.f32 0.0, %v8435
    %v8437 = vpop.f32.mrb[0].mxu0
    %8438 = vmatprep.mubr.bf16.mxu0 0
    %8439 = vmatmul.mubr.bf16.gmra.mrb[0].mxu0 %v7703
    %v8440 = vpop.f32.mrb[0].mxu0
    %v8441 = vadd.f32 0.0, %v8440
    %v8442 = vpop.f32.mrb[0].mxu0
    %v8443 = vpop.f32.mrb[0].mxu0
    %v8444 = vadd.f32 0.0, %v8443
    %v8445 = vpop.f32.mrb[0].mxu0
    %8446 = vmatprep.mubr.bf16.mxu0 0
    %8447 = vmatmul.mubr.bf16.gmra.mrb[0].mxu0 %v7706
    %v8448 = vpop.f32.mrb[0].mxu0
    %v8449 = vadd.f32 0.0, %v8448
    %v8450 = vpop.f32.mrb[0].mxu0
    %v8451 = vpop.f32.mrb[0].mxu0
    %v8452 = vadd.f32 0.0, %v8451
    %v8453 = vpop.f32.mrb[0].mxu0
    %8454 = vmatprep.mubr.bf16.mxu0 0
    %8455 = vmatmul.mubr.bf16.gmra.mrb[0].mxu0 %v7709
    %v8456 = vpop.f32.mrb[0].mxu0
    %v8457 = vadd.f32 0.0, %v8456
    %v8458 = vpop.f32.mrb[0].mxu0
    %v8459 = vpop.f32.mrb[0].mxu0
    %v8460 = vadd.f32 0.0, %v8459
    %v8461 = vpop.f32.mrb[0].mxu0
    %8462 = vmatprep.mubr.bf16.mxu0 0
    %8463 = vmatmul.mubr.bf16.gmra.mrb[0].mxu0 %v7712
    %v8464 = vpop.f32.mrb[0].mxu0
    %v8465 = vadd.f32 0.0, %v8464
    %v8466 = vpop.f32.mrb[0].mxu0
    %v8467 = vpop.f32.mrb[0].mxu0
    %v8468 = vadd.f32 0.0, %v8467
    %v8469 = vpop.f32.mrb[0].mxu0
    %8470 = vmatprep.mubr.bf16.mxu0 0
    %8471 = vmatmul.mubr.bf16.gmra.mrb[0].mxu0 %v7715
    %v8472 = vpop.f32.mrb[0].mxu0
    %v8473 = vadd.f32 0.0, %v8472
    %v8474 = vpop.f32.mrb[0].mxu0
    %v8475 = vpop.f32.mrb[0].mxu0
    %v8476 = vadd.f32 0.0, %v8475
    %v8477 = vpop.f32.mrb[0].mxu0
    %8478 = vmatprep.mubr.bf16.mxu0 0
    %8479 = vmatmul.mubr.bf16.gmra.mrb[0].mxu0 %v7718
    %v8480 = vpop.f32.mrb[0].mxu0
    %v8481 = vadd.f32 0.0, %v8480
    %v8482 = vpop.f32.mrb[0].mxu0
    %v8483 = vpop.f32.mrb[0].mxu0
    %v8484 = vadd.f32 0.0, %v8483
    %v8485 = vpop.f32.mrb[0].mxu0
    %8486 = vmatprep.mubr.bf16.mxu0 0
    %8487 = vmatmul.mubr.bf16.gmra.mrb[0].mxu0 %v7721
    %v8488 = vpop.f32.mrb[0].mxu0
    %v8489 = vadd.f32 0.0, %v8488
    %v8490 = vpop.f32.mrb[0].mxu0
    %v8491 = vpop.f32.mrb[0].mxu0
    %v8492 = vadd.f32 0.0, %v8491
    %v8493 = vpop.f32.mrb[0].mxu0
    %8494 = vmatprep.mubr.bf16.mxu0 0
    %8495 = vmatmul.mubr.bf16.gmra.mrb[0].mxu0 %v7724
    %v8496 = vpop.f32.mrb[0].mxu0
    %v8497 = vadd.f32 0.0, %v8496
    %v8498 = vpop.f32.mrb[0].mxu0
    %v8499 = vpop.f32.mrb[0].mxu0
    %v8500 = vadd.f32 0.0, %v8499
    %v8501 = vpop.f32.mrb[0].mxu0
    %8502 = vmatprep.mubr.bf16.mxu0 0
    %8503 = vmatmul.mubr.bf16.gmra.mrb[0].mxu0 %v7727
    %v8504 = vpop.f32.mrb[0].mxu0
    %v8505 = vadd.f32 0.0, %v8504
    %v8506 = vpop.f32.mrb[0].mxu0
    %v8507 = vpop.f32.mrb[0].mxu0
    %v8508 = vadd.f32 0.0, %v8507
    %v8509 = vpop.f32.mrb[0].mxu0
    %8510 = vmatprep.mubr.bf16.mxu0 0
    %8511 = vmatmul.mubr.bf16.gmra.mrb[0].mxu0 %v7730
    %v8512 = vpop.f32.mrb[0].mxu0
    %v8513 = vadd.f32 0.0, %v8512
    %v8514 = vpop.f32.mrb[0].mxu0
    %v8515 = vpop.f32.mrb[0].mxu0
    %v8516 = vadd.f32 0.0, %v8515
    %v8517 = vpop.f32.mrb[0].mxu0
    %8518 = vmatprep.mubr.bf16.mxu0 0
    %8519 = vmatmul.mubr.bf16.gmra.mrb[0].mxu0 %v7733
    %v8520 = vpop.f32.mrb[0].mxu0
    %v8521 = vadd.f32 0.0, %v8520
    %v8522 = vpop.f32.mrb[0].mxu0
    %v8523 = vpop.f32.mrb[0].mxu0
    %v8524 = vadd.f32 0.0, %v8523
    %v8525 = vpop.f32.mrb[0].mxu0
    %8526 = vmatprep.mubr.bf16.mxu0 0
    %8527 = vmatmul.mubr.bf16.gmra.mrb[0].mxu0 %v7736
    %v8528 = vpop.f32.mrb[0].mxu0
    %v8529 = vadd.f32 0.0, %v8528
    %v8530 = vpop.f32.mrb[0].mxu0
    %v8531 = vpop.f32.mrb[0].mxu0
    %v8532 = vadd.f32 0.0, %v8531
    %v8533 = vpop.f32.mrb[0].mxu0
    %8534 = vmatprep.mubr.bf16.mxu0 0
    %8535 = vmatmul.mubr.bf16.gmra.mrb[0].mxu0 %v7739
    %v8536 = vpop.f32.mrb[0].mxu0
    %v8537 = vadd.f32 0.0, %v8536
    %v8538 = vpop.f32.mrb[0].mxu0
    %v8539 = vpop.f32.mrb[0].mxu0
    %v8540 = vadd.f32 0.0, %v8539
    %v8541 = vpop.f32.mrb[0].mxu0
    %8542 = vmatprep.mubr.bf16.mxu0 0
    %8543 = vmatmul.mubr.bf16.gmra.mrb[0].mxu0 %v7742
    %v8544 = vpop.f32.mrb[0].mxu0
    %v8545 = vadd.f32 0.0, %v8544
    %v8546 = vpop.f32.mrb[0].mxu0
    %v8547 = vpop.f32.mrb[0].mxu0
    %v8548 = vadd.f32 0.0, %v8547
    %v8549 = vpop.f32.mrb[0].mxu0
    %8550 = vmatprep.mubr.bf16.mxu0 0
    %8551 = vmatmul.mubr.bf16.gmra.mrb[0].mxu0 %v7745
    %v8552 = vpop.f32.mrb[0].mxu0
    %v8553 = vadd.f32 0.0, %v8552
    %v8554 = vpop.f32.mrb[0].mxu0
    %v8555 = vpop.f32.mrb[0].mxu0
    %v8556 = vadd.f32 0.0, %v8555
    %v8557 = vpop.f32.mrb[0].mxu0
    %8558 = vmatprep.mubr.bf16.mxu0 0
    %8559 = vmatmul.mubr.bf16.gmra.mrb[0].mxu0 %v7748
    %v8560 = vpop.f32.mrb[0].mxu0
    %v8561 = vadd.f32 0.0, %v8560
    %v8562 = vpop.f32.mrb[0].mxu0
    %v8563 = vpop.f32.mrb[0].mxu0
    %v8564 = vadd.f32 0.0, %v8563
    %v8565 = vpop.f32.mrb[0].mxu0
    %8566 = vmatprep.mubr.bf16.mxu0 0
    %8567 = vmatmul.mubr.bf16.gmra.mrb[0].mxu0 %v7751
    %v8568 = vpop.f32.mrb[0].mxu0
    %v8569 = vadd.f32 0.0, %v8568
    %v8570 = vpop.f32.mrb[0].mxu0
    %v8571 = vpop.f32.mrb[0].mxu0
    %v8572 = vadd.f32 0.0, %v8571
    %v8573 = vpop.f32.mrb[0].mxu0
    %8574 = vmatprep.mubr.bf16.mxu0 0
    %8575 = vmatmul.mubr.bf16.gmra.mrb[0].mxu0 %v7754
    %v8576 = vpop.f32.mrb[0].mxu0
    %v8577 = vadd.f32 0.0, %v8576
    %v8578 = vpop.f32.mrb[0].mxu0
    %v8579 = vpop.f32.mrb[0].mxu0
    %v8580 = vadd.f32 0.0, %v8579
    %v8581 = vpop.f32.mrb[0].mxu0
    %8582 = vmatprep.mubr.bf16.mxu0 0
    %8583 = vmatmul.mubr.bf16.gmra.mrb[0].mxu0 %v7757
    %v8584 = vpop.f32.mrb[0].mxu0
    %v8585 = vadd.f32 0.0, %v8584
    %v8586 = vpop.f32.mrb[0].mxu0
    %v8587 = vpop.f32.mrb[0].mxu0
    %v8588 = vadd.f32 0.0, %v8587
    %v8589 = vpop.f32.mrb[0].mxu0
    %8590 = vmatprep.mubr.bf16.mxu0 0
    %8591 = vmatmul.mubr.bf16.gmra.mrb[0].mxu0 %v7760
    %v8592 = vpop.f32.mrb[0].mxu0
    %v8593 = vadd.f32 0.0, %v8592
    %v8594 = vpop.f32.mrb[0].mxu0
    %v8595 = vpop.f32.mrb[0].mxu0
    %v8596 = vadd.f32 0.0, %v8595
    %v8597 = vpop.f32.mrb[0].mxu0
    %8598 = vmatprep.mubr.bf16.mxu0 0
    %8599 = vmatmul.mubr.bf16.gmra.mrb[0].mxu0 %v7763
    %v8600 = vpop.f32.mrb[0].mxu0
    %v8601 = vadd.f32 0.0, %v8600
    %v8602 = vpop.f32.mrb[0].mxu0
    %v8603 = vpop.f32.mrb[0].mxu0
    %v8604 = vadd.f32 0.0, %v8603
    %v8605 = vpop.f32.mrb[0].mxu0
    %8606 = vdwg.mxu0
    %s8607 = scalar_lea.vmem %s4, 16
    %v8608 = vld [vmem:[%s8607] sm:$0x3]
    %v8610 = vsel %vm1960, %v8608, 0
    %8612 = vmatprep.subr.bf16.mxu0 0
    %8613 = vmatpush1.bf16.msra.mxu0 %v8610
    %8614 = vmatprep.subr.bf16.mxu0 0
    %8615 = vmatpush1.bf16.msra.mxu0 0
    %8616 = vmatprep.subr.bf16.mxu0 0
    %8617 = vmatpush1.bf16.msra.mxu0 0
    %8618 = vmatprep.subr.bf16.mxu0 0
    %8619 = vmatpush1.bf16.msra.mxu0 0
    %8620 = vmatprep.subr.bf16.mxu0 0
    %8621 = vmatpush1.bf16.msra.mxu0 0
    %8622 = vmatprep.subr.bf16.mxu0 0
    %8623 = vmatpush1.bf16.msra.mxu0 0
    %8624 = vmatprep.subr.bf16.mxu0 0
    %8625 = vmatpush1.bf16.msra.mxu0 0
    %8626 = vmatprep.subr.bf16.mxu0 0
    %8627 = vmatpush1.bf16.msra.mxu0 0
    %8628 = vmatprep.subr.bf16.mxu0 0
    %8629 = vmatpush1.bf16.msra.mxu0 0
    %8630 = vmatprep.subr.bf16.mxu0 0
    %8631 = vmatpush1.bf16.msra.mxu0 0
    %8632 = vmatprep.subr.bf16.mxu0 0
    %8633 = vmatpush1.bf16.msra.mxu0 0
    %8634 = vmatprep.subr.bf16.mxu0 0
    %8635 = vmatpush1.bf16.msra.mxu0 0
    %8636 = vmatprep.subr.bf16.mxu0 0
    %8637 = vmatpush1.bf16.msra.mxu0 0
    %8638 = vmatprep.subr.bf16.mxu0 0
    %8639 = vmatpush1.bf16.msra.mxu0 0
    %8640 = vmatprep.subr.bf16.mxu0 0
    %8641 = vmatpush1.bf16.msra.mxu0 0
    %8642 = vmatprep.subr.bf16.mxu0 0
    %8643 = vmatpush1.bf16.msra.mxu0 0
    %8644 = vmatprep.mubr.bf16.mxu0 0
    %8645 = vmatmul.mubr.bf16.gmra.mrb[0].mxu0 %v7622
    %v8646 = vpop.f32.mrb[0].mxu0
    %v8647 = vadd.f32 0.0, %v8646
    %v8648 = vpop.f32.mrb[0].mxu0
    %v8649 = vpop.f32.mrb[0].mxu0
    %v8650 = vadd.f32 0.0, %v8649
    %v8651 = vpop.f32.mrb[0].mxu0
    %8652 = vmatprep.mubr.bf16.mxu0 0
    %8653 = vmatmul.mubr.bf16.gmra.mrb[0].mxu0 %v7625
    %v8654 = vpop.f32.mrb[0].mxu0
    %v8655 = vadd.f32 0.0, %v8654
    %v8656 = vpop.f32.mrb[0].mxu0
    %v8657 = vpop.f32.mrb[0].mxu0
    %v8658 = vadd.f32 0.0, %v8657
    %v8659 = vpop.f32.mrb[0].mxu0
    %8660 = vmatprep.mubr.bf16.mxu0 0
    %8661 = vmatmul.mubr.bf16.gmra.mrb[0].mxu0 %v7628
    %v8662 = vpop.f32.mrb[0].mxu0
    %v8663 = vadd.f32 0.0, %v8662
    %v8664 = vpop.f32.mrb[0].mxu0
    %v8665 = vpop.f32.mrb[0].mxu0
    %v8666 = vadd.f32 0.0, %v8665
    %v8667 = vpop.f32.mrb[0].mxu0
    %8668 = vmatprep.mubr.bf16.mxu0 0
    %8669 = vmatmul.mubr.bf16.gmra.mrb[0].mxu0 %v7631
    %v8670 = vpop.f32.mrb[0].mxu0
    %v8671 = vadd.f32 0.0, %v8670
    %v8672 = vpop.f32.mrb[0].mxu0
    %v8673 = vpop.f32.mrb[0].mxu0
    %v8674 = vadd.f32 0.0, %v8673
    %v8675 = vpop.f32.mrb[0].mxu0
    %8676 = vmatprep.mubr.bf16.mxu0 0
    %8677 = vmatmul.mubr.bf16.gmra.mrb[0].mxu0 %v7634
    %v8678 = vpop.f32.mrb[0].mxu0
    %v8679 = vadd.f32 0.0, %v8678
    %v8680 = vpop.f32.mrb[0].mxu0
    %v8681 = vpop.f32.mrb[0].mxu0
    %v8682 = vadd.f32 0.0, %v8681
    %v8683 = vpop.f32.mrb[0].mxu0
    %8684 = vmatprep.mubr.bf16.mxu0 0
    %8685 = vmatmul.mubr.bf16.gmra.mrb[0].mxu0 %v7637
    %v8686 = vpop.f32.mrb[0].mxu0
    %v8687 = vadd.f32 0.0, %v8686
    %v8688 = vpop.f32.mrb[0].mxu0
    %v8689 = vpop.f32.mrb[0].mxu0
    %v8690 = vadd.f32 0.0, %v8689
    %v8691 = vpop.f32.mrb[0].mxu0
    %8692 = vmatprep.mubr.bf16.mxu0 0
    %8693 = vmatmul.mubr.bf16.gmra.mrb[0].mxu0 %v7640
    %v8694 = vpop.f32.mrb[0].mxu0
    %v8695 = vadd.f32 0.0, %v8694
    %v8696 = vpop.f32.mrb[0].mxu0
    %v8697 = vpop.f32.mrb[0].mxu0
    %v8698 = vadd.f32 0.0, %v8697
    %v8699 = vpop.f32.mrb[0].mxu0
    %8700 = vmatprep.mubr.bf16.mxu0 0
    %8701 = vmatmul.mubr.bf16.gmra.mrb[0].mxu0 %v7643
    %v8702 = vpop.f32.mrb[0].mxu0
    %v8703 = vadd.f32 0.0, %v8702
    %v8704 = vpop.f32.mrb[0].mxu0
    %v8705 = vpop.f32.mrb[0].mxu0
    %v8706 = vadd.f32 0.0, %v8705
    %v8707 = vpop.f32.mrb[0].mxu0
    %8708 = vmatprep.mubr.bf16.mxu0 0
    %8709 = vmatmul.mubr.bf16.gmra.mrb[0].mxu0 %v7646
    %v8710 = vpop.f32.mrb[0].mxu0
    %v8711 = vadd.f32 0.0, %v8710
    %v8712 = vpop.f32.mrb[0].mxu0
    %v8713 = vpop.f32.mrb[0].mxu0
    %v8714 = vadd.f32 0.0, %v8713
    %v8715 = vpop.f32.mrb[0].mxu0
    %8716 = vmatprep.mubr.bf16.mxu0 0
    %8717 = vmatmul.mubr.bf16.gmra.mrb[0].mxu0 %v7649
    %v8718 = vpop.f32.mrb[0].mxu0
    %v8719 = vadd.f32 0.0, %v8718
    %v8720 = vpop.f32.mrb[0].mxu0
    %v8721 = vpop.f32.mrb[0].mxu0
    %v8722 = vadd.f32 0.0, %v8721
    %v8723 = vpop.f32.mrb[0].mxu0
    %8724 = vmatprep.mubr.bf16.mxu0 0
    %8725 = vmatmul.mubr.bf16.gmra.mrb[0].mxu0 %v7652
    %v8726 = vpop.f32.mrb[0].mxu0
    %v8727 = vadd.f32 0.0, %v8726
    %v8728 = vpop.f32.mrb[0].mxu0
    %v8729 = vpop.f32.mrb[0].mxu0
    %v8730 = vadd.f32 0.0, %v8729
    %v8731 = vpop.f32.mrb[0].mxu0
    %8732 = vmatprep.mubr.bf16.mxu0 0
    %8733 = vmatmul.mubr.bf16.gmra.mrb[0].mxu0 %v7655
    %v8734 = vpop.f32.mrb[0].mxu0
    %v8735 = vadd.f32 0.0, %v8734
    %v8736 = vpop.f32.mrb[0].mxu0
    %v8737 = vpop.f32.mrb[0].mxu0
    %v8738 = vadd.f32 0.0, %v8737
    %v8739 = vpop.f32.mrb[0].mxu0
    %8740 = vmatprep.mubr.bf16.mxu0 0
    %8741 = vmatmul.mubr.bf16.gmra.mrb[0].mxu0 %v7658
    %v8742 = vpop.f32.mrb[0].mxu0
    %v8743 = vadd.f32 0.0, %v8742
    %v8744 = vpop.f32.mrb[0].mxu0
    %v8745 = vpop.f32.mrb[0].mxu0
    %v8746 = vadd.f32 0.0, %v8745
    %v8747 = vpop.f32.mrb[0].mxu0
    %8748 = vmatprep.mubr.bf16.mxu0 0
    %8749 = vmatmul.mubr.bf16.gmra.mrb[0].mxu0 %v7661
    %v8750 = vpop.f32.mrb[0].mxu0
    %v8751 = vadd.f32 0.0, %v8750
    %v8752 = vpop.f32.mrb[0].mxu0
    %v8753 = vpop.f32.mrb[0].mxu0
    %v8754 = vadd.f32 0.0, %v8753
    %v8755 = vpop.f32.mrb[0].mxu0
    %8756 = vmatprep.mubr.bf16.mxu0 0
    %8757 = vmatmul.mubr.bf16.gmra.mrb[0].mxu0 %v7664
    %v8758 = vpop.f32.mrb[0].mxu0
    %v8759 = vadd.f32 0.0, %v8758
    %v8760 = vpop.f32.mrb[0].mxu0
    %v8761 = vpop.f32.mrb[0].mxu0
    %v8762 = vadd.f32 0.0, %v8761
    %v8763 = vpop.f32.mrb[0].mxu0
    %8764 = vmatprep.mubr.bf16.mxu0 0
    %8765 = vmatmul.mubr.bf16.gmra.mrb[0].mxu0 %v7667
    %v8766 = vpop.f32.mrb[0].mxu0
    %v8767 = vadd.f32 0.0, %v8766
    %v8768 = vpop.f32.mrb[0].mxu0
    %v8769 = vpop.f32.mrb[0].mxu0
    %v8770 = vadd.f32 0.0, %v8769
    %v8771 = vpop.f32.mrb[0].mxu0
    %8772 = vmatprep.mubr.bf16.mxu0 0
    %8773 = vmatmul.mubr.bf16.gmra.mrb[0].mxu0 %v7670
    %v8774 = vpop.f32.mrb[0].mxu0
    %v8775 = vadd.f32 0.0, %v8774
    %v8776 = vpop.f32.mrb[0].mxu0
    %v8777 = vpop.f32.mrb[0].mxu0
    %v8778 = vadd.f32 0.0, %v8777
    %v8779 = vpop.f32.mrb[0].mxu0
    %8780 = vmatprep.mubr.bf16.mxu0 0
    %8781 = vmatmul.mubr.bf16.gmra.mrb[0].mxu0 %v7673
    %v8782 = vpop.f32.mrb[0].mxu0
    %v8783 = vadd.f32 0.0, %v8782
    %v8784 = vpop.f32.mrb[0].mxu0
    %v8785 = vpop.f32.mrb[0].mxu0
    %v8786 = vadd.f32 0.0, %v8785
    %v8787 = vpop.f32.mrb[0].mxu0
    %8788 = vmatprep.mubr.bf16.mxu0 0
    %8789 = vmatmul.mubr.bf16.gmra.mrb[0].mxu0 %v7676
    %v8790 = vpop.f32.mrb[0].mxu0
    %v8791 = vadd.f32 0.0, %v8790
    %v8792 = vpop.f32.mrb[0].mxu0
    %v8793 = vpop.f32.mrb[0].mxu0
    %v8794 = vadd.f32 0.0, %v8793
    %v8795 = vpop.f32.mrb[0].mxu0
    %8796 = vmatprep.mubr.bf16.mxu0 0
    %8797 = vmatmul.mubr.bf16.gmra.mrb[0].mxu0 %v7679
    %v8798 = vpop.f32.mrb[0].mxu0
    %v8799 = vadd.f32 0.0, %v8798
    %v8800 = vpop.f32.mrb[0].mxu0
    %v8801 = vpop.f32.mrb[0].mxu0
    %v8802 = vadd.f32 0.0, %v8801
    %v8803 = vpop.f32.mrb[0].mxu0
    %8804 = vmatprep.mubr.bf16.mxu0 0
    %8805 = vmatmul.mubr.bf16.gmra.mrb[0].mxu0 %v7682
    %v8806 = vpop.f32.mrb[0].mxu0
    %v8807 = vadd.f32 0.0, %v8806
    %v8808 = vpop.f32.mrb[0].mxu0
    %v8809 = vpop.f32.mrb[0].mxu0
    %v8810 = vadd.f32 0.0, %v8809
    %v8811 = vpop.f32.mrb[0].mxu0
    %8812 = vmatprep.mubr.bf16.mxu0 0
    %8813 = vmatmul.mubr.bf16.gmra.mrb[0].mxu0 %v7685
    %v8814 = vpop.f32.mrb[0].mxu0
    %v8815 = vadd.f32 0.0, %v8814
    %v8816 = vpop.f32.mrb[0].mxu0
    %v8817 = vpop.f32.mrb[0].mxu0
    %v8818 = vadd.f32 0.0, %v8817
    %v8819 = vpop.f32.mrb[0].mxu0
    %8820 = vmatprep.mubr.bf16.mxu0 0
    %8821 = vmatmul.mubr.bf16.gmra.mrb[0].mxu0 %v7688
    %v8822 = vpop.f32.mrb[0].mxu0
    %v8823 = vadd.f32 0.0, %v8822
    %v8824 = vpop.f32.mrb[0].mxu0
    %v8825 = vpop.f32.mrb[0].mxu0
    %v8826 = vadd.f32 0.0, %v8825
    %v8827 = vpop.f32.mrb[0].mxu0
    %8828 = vmatprep.mubr.bf16.mxu0 0
    %8829 = vmatmul.mubr.bf16.gmra.mrb[0].mxu0 %v7691
    %v8830 = vpop.f32.mrb[0].mxu0
    %v8831 = vadd.f32 0.0, %v8830
    %v8832 = vpop.f32.mrb[0].mxu0
    %v8833 = vpop.f32.mrb[0].mxu0
    %v8834 = vadd.f32 0.0, %v8833
    %v8835 = vpop.f32.mrb[0].mxu0
    %8836 = vmatprep.mubr.bf16.mxu0 0
    %8837 = vmatmul.mubr.bf16.gmra.mrb[0].mxu0 %v7694
    %v8838 = vpop.f32.mrb[0].mxu0
    %v8839 = vadd.f32 0.0, %v8838
    %v8840 = vpop.f32.mrb[0].mxu0
    %v8841 = vpop.f32.mrb[0].mxu0
    %v8842 = vadd.f32 0.0, %v8841
    %v8843 = vpop.f32.mrb[0].mxu0
    %8844 = vmatprep.mubr.bf16.mxu0 0
    %8845 = vmatmul.mubr.bf16.gmra.mrb[0].mxu0 %v7697
    %v8846 = vpop.f32.mrb[0].mxu0
    %v8847 = vadd.f32 0.0, %v8846
    %v8848 = vpop.f32.mrb[0].mxu0
    %v8849 = vpop.f32.mrb[0].mxu0
    %v8850 = vadd.f32 0.0, %v8849
    %v8851 = vpop.f32.mrb[0].mxu0
    %8852 = vmatprep.mubr.bf16.mxu0 0
    %8853 = vmatmul.mubr.bf16.gmra.mrb[0].mxu0 %v7700
    %v8854 = vpop.f32.mrb[0].mxu0
    %v8855 = vadd.f32 0.0, %v8854
    %v8856 = vpop.f32.mrb[0].mxu0
    %v8857 = vpop.f32.mrb[0].mxu0
    %v8858 = vadd.f32 0.0, %v8857
    %v8859 = vpop.f32.mrb[0].mxu0
    %8860 = vmatprep.mubr.bf16.mxu0 0
    %8861 = vmatmul.mubr.bf16.gmra.mrb[0].mxu0 %v7703
    %v8862 = vpop.f32.mrb[0].mxu0
    %v8863 = vadd.f32 0.0, %v8862
    %v8864 = vpop.f32.mrb[0].mxu0
    %v8865 = vpop.f32.mrb[0].mxu0
    %v8866 = vadd.f32 0.0, %v8865
    %v8867 = vpop.f32.mrb[0].mxu0
    %8868 = vmatprep.mubr.bf16.mxu0 0
    %8869 = vmatmul.mubr.bf16.gmra.mrb[0].mxu0 %v7706
    %v8870 = vpop.f32.mrb[0].mxu0
    %v8871 = vadd.f32 0.0, %v8870
    %v8872 = vpop.f32.mrb[0].mxu0
    %v8873 = vpop.f32.mrb[0].mxu0
    %v8874 = vadd.f32 0.0, %v8873
    %v8875 = vpop.f32.mrb[0].mxu0
    %8876 = vmatprep.mubr.bf16.mxu0 0
    %8877 = vmatmul.mubr.bf16.gmra.mrb[0].mxu0 %v7709
    %v8878 = vpop.f32.mrb[0].mxu0
    %v8879 = vadd.f32 0.0, %v8878
    %v8880 = vpop.f32.mrb[0].mxu0
    %v8881 = vpop.f32.mrb[0].mxu0
    %v8882 = vadd.f32 0.0, %v8881
    %v8883 = vpop.f32.mrb[0].mxu0
    %8884 = vmatprep.mubr.bf16.mxu0 0
    %8885 = vmatmul.mubr.bf16.gmra.mrb[0].mxu0 %v7712
    %v8886 = vpop.f32.mrb[0].mxu0
    %v8887 = vadd.f32 0.0, %v8886
    %v8888 = vpop.f32.mrb[0].mxu0
    %v8889 = vpop.f32.mrb[0].mxu0
    %v8890 = vadd.f32 0.0, %v8889
    %v8891 = vpop.f32.mrb[0].mxu0
    %8892 = vmatprep.mubr.bf16.mxu0 0
    %8893 = vmatmul.mubr.bf16.gmra.mrb[0].mxu0 %v7715
    %v8894 = vpop.f32.mrb[0].mxu0
    %v8895 = vadd.f32 0.0, %v8894
    %v8896 = vpop.f32.mrb[0].mxu0
    %v8897 = vpop.f32.mrb[0].mxu0
    %v8898 = vadd.f32 0.0, %v8897
    %v8899 = vpop.f32.mrb[0].mxu0
    %8900 = vmatprep.mubr.bf16.mxu0 0
    %8901 = vmatmul.mubr.bf16.gmra.mrb[0].mxu0 %v7718
    %v8902 = vpop.f32.mrb[0].mxu0
    %v8903 = vadd.f32 0.0, %v8902
    %v8904 = vpop.f32.mrb[0].mxu0
    %v8905 = vpop.f32.mrb[0].mxu0
    %v8906 = vadd.f32 0.0, %v8905
    %v8907 = vpop.f32.mrb[0].mxu0
    %8908 = vmatprep.mubr.bf16.mxu0 0
    %8909 = vmatmul.mubr.bf16.gmra.mrb[0].mxu0 %v7721
    %v8910 = vpop.f32.mrb[0].mxu0
    %v8911 = vadd.f32 0.0, %v8910
    %v8912 = vpop.f32.mrb[0].mxu0
    %v8913 = vpop.f32.mrb[0].mxu0
    %v8914 = vadd.f32 0.0, %v8913
    %v8915 = vpop.f32.mrb[0].mxu0
    %8916 = vmatprep.mubr.bf16.mxu0 0
    %8917 = vmatmul.mubr.bf16.gmra.mrb[0].mxu0 %v7724
    %v8918 = vpop.f32.mrb[0].mxu0
    %v8919 = vadd.f32 0.0, %v8918
    %v8920 = vpop.f32.mrb[0].mxu0
    %v8921 = vpop.f32.mrb[0].mxu0
    %v8922 = vadd.f32 0.0, %v8921
    %v8923 = vpop.f32.mrb[0].mxu0
    %8924 = vmatprep.mubr.bf16.mxu0 0
    %8925 = vmatmul.mubr.bf16.gmra.mrb[0].mxu0 %v7727
    %v8926 = vpop.f32.mrb[0].mxu0
    %v8927 = vadd.f32 0.0, %v8926
    %v8928 = vpop.f32.mrb[0].mxu0
    %v8929 = vpop.f32.mrb[0].mxu0
    %v8930 = vadd.f32 0.0, %v8929
    %v8931 = vpop.f32.mrb[0].mxu0
    %8932 = vmatprep.mubr.bf16.mxu0 0
    %8933 = vmatmul.mubr.bf16.gmra.mrb[0].mxu0 %v7730
    %v8934 = vpop.f32.mrb[0].mxu0
    %v8935 = vadd.f32 0.0, %v8934
    %v8936 = vpop.f32.mrb[0].mxu0
    %v8937 = vpop.f32.mrb[0].mxu0
    %v8938 = vadd.f32 0.0, %v8937
    %v8939 = vpop.f32.mrb[0].mxu0
    %8940 = vmatprep.mubr.bf16.mxu0 0
    %8941 = vmatmul.mubr.bf16.gmra.mrb[0].mxu0 %v7733
    %v8942 = vpop.f32.mrb[0].mxu0
    %v8943 = vadd.f32 0.0, %v8942
    %v8944 = vpop.f32.mrb[0].mxu0
    %v8945 = vpop.f32.mrb[0].mxu0
    %v8946 = vadd.f32 0.0, %v8945
    %v8947 = vpop.f32.mrb[0].mxu0
    %8948 = vmatprep.mubr.bf16.mxu0 0
    %8949 = vmatmul.mubr.bf16.gmra.mrb[0].mxu0 %v7736
    %v8950 = vpop.f32.mrb[0].mxu0
    %v8951 = vadd.f32 0.0, %v8950
    %v8952 = vpop.f32.mrb[0].mxu0
    %v8953 = vpop.f32.mrb[0].mxu0
    %v8954 = vadd.f32 0.0, %v8953
    %v8955 = vpop.f32.mrb[0].mxu0
    %8956 = vmatprep.mubr.bf16.mxu0 0
    %8957 = vmatmul.mubr.bf16.gmra.mrb[0].mxu0 %v7739
    %v8958 = vpop.f32.mrb[0].mxu0
    %v8959 = vadd.f32 0.0, %v8958
    %v8960 = vpop.f32.mrb[0].mxu0
    %v8961 = vpop.f32.mrb[0].mxu0
    %v8962 = vadd.f32 0.0, %v8961
    %v8963 = vpop.f32.mrb[0].mxu0
    %8964 = vmatprep.mubr.bf16.mxu0 0
    %8965 = vmatmul.mubr.bf16.gmra.mrb[0].mxu0 %v7742
    %v8966 = vpop.f32.mrb[0].mxu0
    %v8967 = vadd.f32 0.0, %v8966
    %v8968 = vpop.f32.mrb[0].mxu0
    %v8969 = vpop.f32.mrb[0].mxu0
    %v8970 = vadd.f32 0.0, %v8969
    %v8971 = vpop.f32.mrb[0].mxu0
    %8972 = vmatprep.mubr.bf16.mxu0 0
    %8973 = vmatmul.mubr.bf16.gmra.mrb[0].mxu0 %v7745
    %v8974 = vpop.f32.mrb[0].mxu0
    %v8975 = vadd.f32 0.0, %v8974
    %v8976 = vpop.f32.mrb[0].mxu0
    %v8977 = vpop.f32.mrb[0].mxu0
    %v8978 = vadd.f32 0.0, %v8977
    %v8979 = vpop.f32.mrb[0].mxu0
    %8980 = vmatprep.mubr.bf16.mxu0 0
    %8981 = vmatmul.mubr.bf16.gmra.mrb[0].mxu0 %v7748
    %v8982 = vpop.f32.mrb[0].mxu0
    %v8983 = vadd.f32 0.0, %v8982
    %v8984 = vpop.f32.mrb[0].mxu0
    %v8985 = vpop.f32.mrb[0].mxu0
    %v8986 = vadd.f32 0.0, %v8985
    %v8987 = vpop.f32.mrb[0].mxu0
    %8988 = vmatprep.mubr.bf16.mxu0 0
    %8989 = vmatmul.mubr.bf16.gmra.mrb[0].mxu0 %v7751
    %v8990 = vpop.f32.mrb[0].mxu0
    %v8991 = vadd.f32 0.0, %v8990
    %v8992 = vpop.f32.mrb[0].mxu0
    %v8993 = vpop.f32.mrb[0].mxu0
    %v8994 = vadd.f32 0.0, %v8993
    %v8995 = vpop.f32.mrb[0].mxu0
    %8996 = vmatprep.mubr.bf16.mxu0 0
    %8997 = vmatmul.mubr.bf16.gmra.mrb[0].mxu0 %v7754
    %v8998 = vpop.f32.mrb[0].mxu0
    %v8999 = vadd.f32 0.0, %v8998
    %v9000 = vpop.f32.mrb[0].mxu0
    %v9001 = vpop.f32.mrb[0].mxu0
    %v9002 = vadd.f32 0.0, %v9001
    %v9003 = vpop.f32.mrb[0].mxu0
    %9004 = vmatprep.mubr.bf16.mxu0 0
    %9005 = vmatmul.mubr.bf16.gmra.mrb[0].mxu0 %v7757
    %v9006 = vpop.f32.mrb[0].mxu0
    %v9007 = vadd.f32 0.0, %v9006
    %v9008 = vpop.f32.mrb[0].mxu0
    %v9009 = vpop.f32.mrb[0].mxu0
    %v9010 = vadd.f32 0.0, %v9009
    %v9011 = vpop.f32.mrb[0].mxu0
    %9012 = vmatprep.mubr.bf16.mxu0 0
    %9013 = vmatmul.mubr.bf16.gmra.mrb[0].mxu0 %v7760
    %v9014 = vpop.f32.mrb[0].mxu0
    %v9015 = vadd.f32 0.0, %v9014
    %v9016 = vpop.f32.mrb[0].mxu0
    %v9017 = vpop.f32.mrb[0].mxu0
    %v9018 = vadd.f32 0.0, %v9017
    %v9019 = vpop.f32.mrb[0].mxu0
    %9020 = vmatprep.mubr.bf16.mxu0 0
    %9021 = vmatmul.mubr.bf16.gmra.mrb[0].mxu0 %v7763
    %v9022 = vpop.f32.mrb[0].mxu0
    %v9023 = vadd.f32 0.0, %v9022
    %v9024 = vpop.f32.mrb[0].mxu0
    %v9025 = vpop.f32.mrb[0].mxu0
    %v9026 = vadd.f32 0.0, %v9025
    %v9027 = vpop.f32.mrb[0].mxu0
    %9028 = vdwg.mxu0
    %v9030 = vrot.slane %v8182, 7
    %v9127 = vrot.slane %v7803, 7
    %v9128 = vrot.slane %v7806, 7
    %v9129 = vsel %vm3323, %v9127, %v9128
    %v9130 = vrot.slane %v7811, 7
    %v9131 = vsel %vm3323, %v9128, %v9130
    %v9132 = vrot.slane %v7814, 7
    %v9133 = vsel %vm3323, %v9130, %v9132
    %v9134 = vrot.slane %v7819, 7
    %v9135 = vsel %vm3323, %v9132, %v9134
    %v9136 = vrot.slane %v7822, 7
    %v9137 = vsel %vm3323, %v9134, %v9136
    %v9138 = vrot.slane %v7827, 7
    %v9139 = vsel %vm3323, %v9136, %v9138
    %v9140 = vrot.slane %v7830, 7
    %v9141 = vsel %vm3323, %v9138, %v9140
    %v9142 = vrot.slane %v7835, 7
    %v9143 = vsel %vm3323, %v9140, %v9142
    %v9144 = vrot.slane %v7838, 7
    %v9145 = vsel %vm3323, %v9142, %v9144
    %v9146 = vrot.slane %v7843, 7
    %v9147 = vsel %vm3323, %v9144, %v9146
    %v9148 = vrot.slane %v7846, 7
    %v9149 = vsel %vm3323, %v9146, %v9148
    %v9150 = vrot.slane %v7851, 7
    %v9151 = vsel %vm3323, %v9148, %v9150
    %v9152 = vrot.slane %v7854, 7
    %v9153 = vsel %vm3323, %v9150, %v9152
    %v9154 = vrot.slane %v7859, 7
    %v9155 = vsel %vm3323, %v9152, %v9154
    %v9156 = vrot.slane %v7862, 7
    %v9157 = vsel %vm3323, %v9154, %v9156
    %v9158 = vrot.slane %v7867, 7
    %v9159 = vsel %vm3323, %v9156, %v9158
    %v9160 = vrot.slane %v7870, 7
    %v9161 = vsel %vm3323, %v9158, %v9160
    %v9162 = vrot.slane %v7875, 7
    %v9163 = vsel %vm3323, %v9160, %v9162
    %v9164 = vrot.slane %v7878, 7
    %v9165 = vsel %vm3323, %v9162, %v9164
    %v9166 = vrot.slane %v7883, 7
    %v9167 = vsel %vm3323, %v9164, %v9166
    %v9168 = vrot.slane %v7886, 7
    %v9169 = vsel %vm3323, %v9166, %v9168
    %v9170 = vrot.slane %v7891, 7
    %v9171 = vsel %vm3323, %v9168, %v9170
    %v9172 = vrot.slane %v7894, 7
    %v9173 = vsel %vm3323, %v9170, %v9172
    %v9174 = vrot.slane %v7899, 7
    %v9175 = vsel %vm3323, %v9172, %v9174
    %v9176 = vrot.slane %v7902, 7
    %v9177 = vsel %vm3323, %v9174, %v9176
    %v9178 = vrot.slane %v7907, 7
    %v9179 = vsel %vm3323, %v9176, %v9178
    %v9180 = vrot.slane %v7910, 7
    %v9181 = vsel %vm3323, %v9178, %v9180
    %v9182 = vrot.slane %v7915, 7
    %v9183 = vsel %vm3323, %v9180, %v9182
    %v9184 = vrot.slane %v7918, 7
    %v9185 = vsel %vm3323, %v9182, %v9184
    %v9186 = vrot.slane %v7923, 7
    %v9187 = vsel %vm3323, %v9184, %v9186
    %v9188 = vrot.slane %v7926, 7
    %v9189 = vsel %vm3323, %v9186, %v9188
    %v9190 = vrot.slane %v7931, 7
    %v9191 = vsel %vm3323, %v9188, %v9190
    %v9192 = vrot.slane %v7934, 7
    %v9193 = vsel %vm3323, %v9190, %v9192
    %v9194 = vrot.slane %v7939, 7
    %v9195 = vsel %vm3323, %v9192, %v9194
    %v9196 = vrot.slane %v7942, 7
    %v9197 = vsel %vm3323, %v9194, %v9196
    %v9198 = vrot.slane %v7947, 7
    %v9199 = vsel %vm3323, %v9196, %v9198
    %v9200 = vrot.slane %v7950, 7
    %v9201 = vsel %vm3323, %v9198, %v9200
    %v9202 = vrot.slane %v7955, 7
    %v9203 = vsel %vm3323, %v9200, %v9202
    %v9204 = vrot.slane %v7958, 7
    %v9205 = vsel %vm3323, %v9202, %v9204
    %v9206 = vrot.slane %v7963, 7
    %v9207 = vsel %vm3323, %v9204, %v9206
    %v9208 = vrot.slane %v7966, 7
    %v9209 = vsel %vm3323, %v9206, %v9208
    %v9210 = vrot.slane %v7971, 7
    %v9211 = vsel %vm3323, %v9208, %v9210
    %v9212 = vrot.slane %v7974, 7
    %v9213 = vsel %vm3323, %v9210, %v9212
    %v9214 = vrot.slane %v7979, 7
    %v9215 = vsel %vm3323, %v9212, %v9214
    %v9216 = vrot.slane %v7982, 7
    %v9217 = vsel %vm3323, %v9214, %v9216
    %v9218 = vrot.slane %v7987, 7
    %v9219 = vsel %vm3323, %v9216, %v9218
    %v9220 = vrot.slane %v7990, 7
    %v9221 = vsel %vm3323, %v9218, %v9220
    %v9222 = vrot.slane %v7995, 7
    %v9223 = vsel %vm3323, %v9220, %v9222
    %v9224 = vrot.slane %v7998, 7
    %v9225 = vsel %vm3323, %v9222, %v9224
    %v9226 = vrot.slane %v8003, 7
    %v9227 = vsel %vm3323, %v9224, %v9226
    %v9228 = vrot.slane %v8006, 7
    %v9229 = vsel %vm3323, %v9226, %v9228
    %v9230 = vrot.slane %v8011, 7
    %v9231 = vsel %vm3323, %v9228, %v9230
    %v9232 = vrot.slane %v8014, 7
    %v9233 = vsel %vm3323, %v9230, %v9232
    %v9234 = vrot.slane %v8019, 7
    %v9235 = vsel %vm3323, %v9232, %v9234
    %v9236 = vrot.slane %v8022, 7
    %v9237 = vsel %vm3323, %v9234, %v9236
    %v9238 = vrot.slane %v8027, 7
    %v9239 = vsel %vm3323, %v9236, %v9238
    %v9240 = vrot.slane %v8030, 7
    %v9241 = vsel %vm3323, %v9238, %v9240
    %v9242 = vrot.slane %v8035, 7
    %v9243 = vsel %vm3323, %v9240, %v9242
    %v9244 = vrot.slane %v8038, 7
    %v9245 = vsel %vm3323, %v9242, %v9244
    %v9246 = vrot.slane %v8043, 7
    %v9247 = vsel %vm3323, %v9244, %v9246
    %v9248 = vrot.slane %v8046, 7
    %v9249 = vsel %vm3323, %v9246, %v9248
    %v9250 = vrot.slane %v8051, 7
    %v9251 = vsel %vm3323, %v9248, %v9250
    %v9252 = vrot.slane %v8054, 7
    %v9253 = vsel %vm3323, %v9250, %v9252
    %v9254 = vrot.slane %v8059, 7
    %v9255 = vsel %vm3323, %v9252, %v9254
    %v9256 = vrot.slane %v8062, 7
    %v9257 = vsel %vm3323, %v9254, %v9256
    %v9258 = vrot.slane %v8067, 7
    %v9259 = vsel %vm3323, %v9256, %v9258
    %v9260 = vrot.slane %v8070, 7
    %v9261 = vsel %vm3323, %v9258, %v9260
    %v9262 = vrot.slane %v8075, 7
    %v9263 = vsel %vm3323, %v9260, %v9262
    %v9264 = vrot.slane %v8078, 7
    %v9265 = vsel %vm3323, %v9262, %v9264
    %v9266 = vrot.slane %v8083, 7
    %v9267 = vsel %vm3323, %v9264, %v9266
    %v9268 = vrot.slane %v8086, 7
    %v9269 = vsel %vm3323, %v9266, %v9268
    %v9270 = vrot.slane %v8091, 7
    %v9271 = vsel %vm3323, %v9268, %v9270
    %v9272 = vrot.slane %v8094, 7
    %v9273 = vsel %vm3323, %v9270, %v9272
    %v9274 = vrot.slane %v8099, 7
    %v9275 = vsel %vm3323, %v9272, %v9274
    %v9276 = vrot.slane %v8102, 7
    %v9277 = vsel %vm3323, %v9274, %v9276
    %v9278 = vrot.slane %v8107, 7
    %v9279 = vsel %vm3323, %v9276, %v9278
    %v9280 = vrot.slane %v8110, 7
    %v9281 = vsel %vm3323, %v9278, %v9280
    %v9282 = vrot.slane %v8115, 7
    %v9283 = vsel %vm3323, %v9280, %v9282
    %v9284 = vrot.slane %v8118, 7
    %v9285 = vsel %vm3323, %v9282, %v9284
    %v9286 = vrot.slane %v8123, 7
    %v9287 = vsel %vm3323, %v9284, %v9286
    %v9288 = vrot.slane %v8126, 7
    %v9289 = vsel %vm3323, %v9286, %v9288
    %v9290 = vrot.slane %v8131, 7
    %v9291 = vsel %vm3323, %v9288, %v9290
    %v9292 = vrot.slane %v8134, 7
    %v9293 = vsel %vm3323, %v9290, %v9292
    %v9294 = vrot.slane %v8139, 7
    %v9295 = vsel %vm3323, %v9292, %v9294
    %v9296 = vrot.slane %v8142, 7
    %v9297 = vsel %vm3323, %v9294, %v9296
    %v9298 = vrot.slane %v8147, 7
    %v9299 = vsel %vm3323, %v9296, %v9298
    %v9300 = vrot.slane %v8150, 7
    %v9301 = vsel %vm3323, %v9298, %v9300
    %v9302 = vrot.slane %v8155, 7
    %v9303 = vsel %vm3323, %v9300, %v9302
    %v9304 = vrot.slane %v8158, 7
    %v9305 = vsel %vm3323, %v9302, %v9304
    %v9306 = vrot.slane %v8163, 7
    %v9307 = vsel %vm3323, %v9304, %v9306
    %v9308 = vrot.slane %v8166, 7
    %v9309 = vsel %vm3323, %v9306, %v9308
    %v9310 = vrot.slane %v8171, 7
    %v9311 = vsel %vm3323, %v9308, %v9310
    %v9312 = vrot.slane %v8174, 7
    %v9313 = vsel %vm3323, %v9310, %v9312
    %v9314 = vrot.slane %v8179, 7
    %v9315 = vsel %vm3323, %v9312, %v9314
    %v9316 = vsel %vm3323, %v9314, %v9030
    %v9413 = vsel %vm3323, %v9030, %v9127
    %v9414 = vadd.f32 %v9413, %v8225
    %v9415 = vadd.f32 %v9129, %v8228
    %v9416 = vadd.f32 %v9131, %v8233
    %v9417 = vadd.f32 %v9133, %v8236
    %v9418 = vadd.f32 %v9135, %v8241
    %v9419 = vadd.f32 %v9137, %v8244
    %v9420 = vadd.f32 %v9139, %v8249
    %v9421 = vadd.f32 %v9141, %v8252
    %v9422 = vadd.f32 %v9143, %v8257
    %v9423 = vadd.f32 %v9145, %v8260
    %v9424 = vadd.f32 %v9147, %v8265
    %v9425 = vadd.f32 %v9149, %v8268
    %v9426 = vadd.f32 %v9151, %v8273
    %v9427 = vadd.f32 %v9153, %v8276
    %v9428 = vadd.f32 %v9155, %v8281
    %v9429 = vadd.f32 %v9157, %v8284
    %v9430 = vadd.f32 %v9159, %v8289
    %v9431 = vadd.f32 %v9161, %v8292
    %v9432 = vadd.f32 %v9163, %v8297
    %v9433 = vadd.f32 %v9165, %v8300
    %v9434 = vadd.f32 %v9167, %v8305
    %v9435 = vadd.f32 %v9169, %v8308
    %v9436 = vadd.f32 %v9171, %v8313
    %v9437 = vadd.f32 %v9173, %v8316
    %v9438 = vadd.f32 %v9175, %v8321
    %v9439 = vadd.f32 %v9177, %v8324
    %v9440 = vadd.f32 %v9179, %v8329
    %v9441 = vadd.f32 %v9181, %v8332
    %v9442 = vadd.f32 %v9183, %v8337
    %v9443 = vadd.f32 %v9185, %v8340
    %v9444 = vadd.f32 %v9187, %v8345
    %v9445 = vadd.f32 %v9189, %v8348
    %v9446 = vadd.f32 %v9191, %v8353
    %v9447 = vadd.f32 %v9193, %v8356
    %v9448 = vadd.f32 %v9195, %v8361
    %v9449 = vadd.f32 %v9197, %v8364
    %v9450 = vadd.f32 %v9199, %v8369
    %v9451 = vadd.f32 %v9201, %v8372
    %v9452 = vadd.f32 %v9203, %v8377
    %v9453 = vadd.f32 %v9205, %v8380
    %v9454 = vadd.f32 %v9207, %v8385
    %v9455 = vadd.f32 %v9209, %v8388
    %v9456 = vadd.f32 %v9211, %v8393
    %v9457 = vadd.f32 %v9213, %v8396
    %v9458 = vadd.f32 %v9215, %v8401
    %v9459 = vadd.f32 %v9217, %v8404
    %v9460 = vadd.f32 %v9219, %v8409
    %v9461 = vadd.f32 %v9221, %v8412
    %v9462 = vadd.f32 %v9223, %v8417
    %v9463 = vadd.f32 %v9225, %v8420
    %v9464 = vadd.f32 %v9227, %v8425
    %v9465 = vadd.f32 %v9229, %v8428
    %v9466 = vadd.f32 %v9231, %v8433
    %v9467 = vadd.f32 %v9233, %v8436
    %v9468 = vadd.f32 %v9235, %v8441
    %v9469 = vadd.f32 %v9237, %v8444
    %v9470 = vadd.f32 %v9239, %v8449
    %v9471 = vadd.f32 %v9241, %v8452
    %v9472 = vadd.f32 %v9243, %v8457
    %v9473 = vadd.f32 %v9245, %v8460
    %v9474 = vadd.f32 %v9247, %v8465
    %v9475 = vadd.f32 %v9249, %v8468
    %v9476 = vadd.f32 %v9251, %v8473
    %v9477 = vadd.f32 %v9253, %v8476
    %v9478 = vadd.f32 %v9255, %v8481
    %v9479 = vadd.f32 %v9257, %v8484
    %v9480 = vadd.f32 %v9259, %v8489
    %v9481 = vadd.f32 %v9261, %v8492
    %v9482 = vadd.f32 %v9263, %v8497
    %v9483 = vadd.f32 %v9265, %v8500
    %v9484 = vadd.f32 %v9267, %v8505
    %v9485 = vadd.f32 %v9269, %v8508
    %v9486 = vadd.f32 %v9271, %v8513
    %v9487 = vadd.f32 %v9273, %v8516
    %v9488 = vadd.f32 %v9275, %v8521
    %v9489 = vadd.f32 %v9277, %v8524
    %v9490 = vadd.f32 %v9279, %v8529
    %v9491 = vadd.f32 %v9281, %v8532
    %v9492 = vadd.f32 %v9283, %v8537
    %v9493 = vadd.f32 %v9285, %v8540
    %v9494 = vadd.f32 %v9287, %v8545
    %v9495 = vadd.f32 %v9289, %v8548
    %v9496 = vadd.f32 %v9291, %v8553
    %v9497 = vadd.f32 %v9293, %v8556
    %v9498 = vadd.f32 %v9295, %v8561
    %v9499 = vadd.f32 %v9297, %v8564
    %v9500 = vadd.f32 %v9299, %v8569
    %v9501 = vadd.f32 %v9301, %v8572
    %v9502 = vadd.f32 %v9303, %v8577
    %v9503 = vadd.f32 %v9305, %v8580
    %v9504 = vadd.f32 %v9307, %v8585
    %v9505 = vadd.f32 %v9309, %v8588
    %v9506 = vadd.f32 %v9311, %v8593
    %v9507 = vadd.f32 %v9313, %v8596
    %v9508 = vadd.f32 %v9315, %v8601
    %v9509 = vadd.f32 %v9316, %v8604
    %v9606 = vrot.slane %v8647, 1
    %v9607 = vrot.slane %v8650, 1
    %v9608 = vsel %vm3803, %v9606, %v9607
    %v9609 = vrot.slane %v8655, 1
    %v9610 = vsel %vm3803, %v9607, %v9609
    %v9611 = vrot.slane %v8658, 1
    %v9612 = vsel %vm3803, %v9609, %v9611
    %v9613 = vrot.slane %v8663, 1
    %v9614 = vsel %vm3803, %v9611, %v9613
    %v9615 = vrot.slane %v8666, 1
    %v9616 = vsel %vm3803, %v9613, %v9615
    %v9617 = vrot.slane %v8671, 1
    %v9618 = vsel %vm3803, %v9615, %v9617
    %v9619 = vrot.slane %v8674, 1
    %v9620 = vsel %vm3803, %v9617, %v9619
    %v9621 = vrot.slane %v8679, 1
    %v9622 = vsel %vm3803, %v9619, %v9621
    %v9623 = vrot.slane %v8682, 1
    %v9624 = vsel %vm3803, %v9621, %v9623
    %v9625 = vrot.slane %v8687, 1
    %v9626 = vsel %vm3803, %v9623, %v9625
    %v9627 = vrot.slane %v8690, 1
    %v9628 = vsel %vm3803, %v9625, %v9627
    %v9629 = vrot.slane %v8695, 1
    %v9630 = vsel %vm3803, %v9627, %v9629
    %v9631 = vrot.slane %v8698, 1
    %v9632 = vsel %vm3803, %v9629, %v9631
    %v9633 = vrot.slane %v8703, 1
    %v9634 = vsel %vm3803, %v9631, %v9633
    %v9635 = vrot.slane %v8706, 1
    %v9636 = vsel %vm3803, %v9633, %v9635
    %v9637 = vrot.slane %v8711, 1
    %v9638 = vsel %vm3803, %v9635, %v9637
    %v9639 = vrot.slane %v8714, 1
    %v9640 = vsel %vm3803, %v9637, %v9639
    %v9641 = vrot.slane %v8719, 1
    %v9642 = vsel %vm3803, %v9639, %v9641
    %v9643 = vrot.slane %v8722, 1
    %v9644 = vsel %vm3803, %v9641, %v9643
    %v9645 = vrot.slane %v8727, 1
    %v9646 = vsel %vm3803, %v9643, %v9645
    %v9647 = vrot.slane %v8730, 1
    %v9648 = vsel %vm3803, %v9645, %v9647
    %v9649 = vrot.slane %v8735, 1
    %v9650 = vsel %vm3803, %v9647, %v9649
    %v9651 = vrot.slane %v8738, 1
    %v9652 = vsel %vm3803, %v9649, %v9651
    %v9653 = vrot.slane %v8743, 1
    %v9654 = vsel %vm3803, %v9651, %v9653
    %v9655 = vrot.slane %v8746, 1
    %v9656 = vsel %vm3803, %v9653, %v9655
    %v9657 = vrot.slane %v8751, 1
    %v9658 = vsel %vm3803, %v9655, %v9657
    %v9659 = vrot.slane %v8754, 1
    %v9660 = vsel %vm3803, %v9657, %v9659
    %v9661 = vrot.slane %v8759, 1
    %v9662 = vsel %vm3803, %v9659, %v9661
    %v9663 = vrot.slane %v8762, 1
    %v9664 = vsel %vm3803, %v9661, %v9663
    %v9665 = vrot.slane %v8767, 1
    %v9666 = vsel %vm3803, %v9663, %v9665
    %v9667 = vrot.slane %v8770, 1
    %v9668 = vsel %vm3803, %v9665, %v9667
    %v9669 = vrot.slane %v8775, 1
    %v9670 = vsel %vm3803, %v9667, %v9669
    %v9671 = vrot.slane %v8778, 1
    %v9672 = vsel %vm3803, %v9669, %v9671
    %v9673 = vrot.slane %v8783, 1
    %v9674 = vsel %vm3803, %v9671, %v9673
    %v9675 = vrot.slane %v8786, 1
    %v9676 = vsel %vm3803, %v9673, %v9675
    %v9677 = vrot.slane %v8791, 1
    %v9678 = vsel %vm3803, %v9675, %v9677
    %v9679 = vrot.slane %v8794, 1
    %v9680 = vsel %vm3803, %v9677, %v9679
    %v9681 = vrot.slane %v8799, 1
    %v9682 = vsel %vm3803, %v9679, %v9681
    %v9683 = vrot.slane %v8802, 1
    %v9684 = vsel %vm3803, %v9681, %v9683
    %v9685 = vrot.slane %v8807, 1
    %v9686 = vsel %vm3803, %v9683, %v9685
    %v9687 = vrot.slane %v8810, 1
    %v9688 = vsel %vm3803, %v9685, %v9687
    %v9689 = vrot.slane %v8815, 1
    %v9690 = vsel %vm3803, %v9687, %v9689
    %v9691 = vrot.slane %v8818, 1
    %v9692 = vsel %vm3803, %v9689, %v9691
    %v9693 = vrot.slane %v8823, 1
    %v9694 = vsel %vm3803, %v9691, %v9693
    %v9695 = vrot.slane %v8826, 1
    %v9696 = vsel %vm3803, %v9693, %v9695
    %v9697 = vrot.slane %v8831, 1
    %v9698 = vsel %vm3803, %v9695, %v9697
    %v9699 = vrot.slane %v8834, 1
    %v9700 = vsel %vm3803, %v9697, %v9699
    %v9701 = vrot.slane %v8839, 1
    %v9702 = vsel %vm3803, %v9699, %v9701
    %v9703 = vrot.slane %v8842, 1
    %v9704 = vsel %vm3803, %v9701, %v9703
    %v9705 = vrot.slane %v8847, 1
    %v9706 = vsel %vm3803, %v9703, %v9705
    %v9707 = vrot.slane %v8850, 1
    %v9708 = vsel %vm3803, %v9705, %v9707
    %v9709 = vrot.slane %v8855, 1
    %v9710 = vsel %vm3803, %v9707, %v9709
    %v9711 = vrot.slane %v8858, 1
    %v9712 = vsel %vm3803, %v9709, %v9711
    %v9713 = vrot.slane %v8863, 1
    %v9714 = vsel %vm3803, %v9711, %v9713
    %v9715 = vrot.slane %v8866, 1
    %v9716 = vsel %vm3803, %v9713, %v9715
    %v9717 = vrot.slane %v8871, 1
    %v9718 = vsel %vm3803, %v9715, %v9717
    %v9719 = vrot.slane %v8874, 1
    %v9720 = vsel %vm3803, %v9717, %v9719
    %v9721 = vrot.slane %v8879, 1
    %v9722 = vsel %vm3803, %v9719, %v9721
    %v9723 = vrot.slane %v8882, 1
    %v9724 = vsel %vm3803, %v9721, %v9723
    %v9725 = vrot.slane %v8887, 1
    %v9726 = vsel %vm3803, %v9723, %v9725
    %v9727 = vrot.slane %v8890, 1
    %v9728 = vsel %vm3803, %v9725, %v9727
    %v9729 = vrot.slane %v8895, 1
    %v9730 = vsel %vm3803, %v9727, %v9729
    %v9731 = vrot.slane %v8898, 1
    %v9732 = vsel %vm3803, %v9729, %v9731
    %v9733 = vrot.slane %v8903, 1
    %v9734 = vsel %vm3803, %v9731, %v9733
    %v9735 = vrot.slane %v8906, 1
    %v9736 = vsel %vm3803, %v9733, %v9735
    %v9737 = vrot.slane %v8911, 1
    %v9738 = vsel %vm3803, %v9735, %v9737
    %v9739 = vrot.slane %v8914, 1
    %v9740 = vsel %vm3803, %v9737, %v9739
    %v9741 = vrot.slane %v8919, 1
    %v9742 = vsel %vm3803, %v9739, %v9741
    %v9743 = vrot.slane %v8922, 1
    %v9744 = vsel %vm3803, %v9741, %v9743
    %v9745 = vrot.slane %v8927, 1
    %v9746 = vsel %vm3803, %v9743, %v9745
    %v9747 = vrot.slane %v8930, 1
    %v9748 = vsel %vm3803, %v9745, %v9747
    %v9749 = vrot.slane %v8935, 1
    %v9750 = vsel %vm3803, %v9747, %v9749
    %v9751 = vrot.slane %v8938, 1
    %v9752 = vsel %vm3803, %v9749, %v9751
    %v9753 = vrot.slane %v8943, 1
    %v9754 = vsel %vm3803, %v9751, %v9753
    %v9755 = vrot.slane %v8946, 1
    %v9756 = vsel %vm3803, %v9753, %v9755
    %v9757 = vrot.slane %v8951, 1
    %v9758 = vsel %vm3803, %v9755, %v9757
    %v9759 = vrot.slane %v8954, 1
    %v9760 = vsel %vm3803, %v9757, %v9759
    %v9761 = vrot.slane %v8959, 1
    %v9762 = vsel %vm3803, %v9759, %v9761
    %v9763 = vrot.slane %v8962, 1
    %v9764 = vsel %vm3803, %v9761, %v9763
    %v9765 = vrot.slane %v8967, 1
    %v9766 = vsel %vm3803, %v9763, %v9765
    %v9767 = vrot.slane %v8970, 1
    %v9768 = vsel %vm3803, %v9765, %v9767
    %v9769 = vrot.slane %v8975, 1
    %v9770 = vsel %vm3803, %v9767, %v9769
    %v9771 = vrot.slane %v8978, 1
    %v9772 = vsel %vm3803, %v9769, %v9771
    %v9773 = vrot.slane %v8983, 1
    %v9774 = vsel %vm3803, %v9771, %v9773
    %v9775 = vrot.slane %v8986, 1
    %v9776 = vsel %vm3803, %v9773, %v9775
    %v9777 = vrot.slane %v8991, 1
    %v9778 = vsel %vm3803, %v9775, %v9777
    %v9779 = vrot.slane %v8994, 1
    %v9780 = vsel %vm3803, %v9777, %v9779
    %v9781 = vrot.slane %v8999, 1
    %v9782 = vsel %vm3803, %v9779, %v9781
    %v9783 = vrot.slane %v9002, 1
    %v9784 = vsel %vm3803, %v9781, %v9783
    %v9785 = vrot.slane %v9007, 1
    %v9786 = vsel %vm3803, %v9783, %v9785
    %v9787 = vrot.slane %v9010, 1
    %v9788 = vsel %vm3803, %v9785, %v9787
    %v9789 = vrot.slane %v9015, 1
    %v9790 = vsel %vm3803, %v9787, %v9789
    %v9791 = vrot.slane %v9018, 1
    %v9792 = vsel %vm3803, %v9789, %v9791
    %v9793 = vrot.slane %v9023, 1
    %v9794 = vsel %vm3803, %v9791, %v9793
    %v9795 = vrot.slane %v9026, 1
    %v9796 = vsel %vm3803, %v9793, %v9795
    %v9894 = vsel %vm3803, %v9795, %v9606
    %v9895 = vadd.f32 %v9414, %v9608
    %v9896 = vadd.f32 %v9415, %v9610
    %v9897 = vadd.f32 %v9416, %v9612
    %v9898 = vadd.f32 %v9417, %v9614
    %v9899 = vadd.f32 %v9418, %v9616
    %v9900 = vadd.f32 %v9419, %v9618
    %v9901 = vadd.f32 %v9420, %v9620
    %v9902 = vadd.f32 %v9421, %v9622
    %v9903 = vadd.f32 %v9422, %v9624
    %v9904 = vadd.f32 %v9423, %v9626
    %v9905 = vadd.f32 %v9424, %v9628
    %v9906 = vadd.f32 %v9425, %v9630
    %v9907 = vadd.f32 %v9426, %v9632
    %v9908 = vadd.f32 %v9427, %v9634
    %v9909 = vadd.f32 %v9428, %v9636
    %v9910 = vadd.f32 %v9429, %v9638
    %v9911 = vadd.f32 %v9430, %v9640
    %v9912 = vadd.f32 %v9431, %v9642
    %v9913 = vadd.f32 %v9432, %v9644
    %v9914 = vadd.f32 %v9433, %v9646
    %v9915 = vadd.f32 %v9434, %v9648
    %v9916 = vadd.f32 %v9435, %v9650
    %v9917 = vadd.f32 %v9436, %v9652
    %v9918 = vadd.f32 %v9437, %v9654
    %v9919 = vadd.f32 %v9438, %v9656
    %v9920 = vadd.f32 %v9439, %v9658
    %v9921 = vadd.f32 %v9440, %v9660
    %v9922 = vadd.f32 %v9441, %v9662
    %v9923 = vadd.f32 %v9442, %v9664
    %v9924 = vadd.f32 %v9443, %v9666
    %v9925 = vadd.f32 %v9444, %v9668
    %v9926 = vadd.f32 %v9445, %v9670
    %v9927 = vadd.f32 %v9446, %v9672
    %v9928 = vadd.f32 %v9447, %v9674
    %v9929 = vadd.f32 %v9448, %v9676
    %v9930 = vadd.f32 %v9449, %v9678
    %v9931 = vadd.f32 %v9450, %v9680
    %v9932 = vadd.f32 %v9451, %v9682
    %v9933 = vadd.f32 %v9452, %v9684
    %v9934 = vadd.f32 %v9453, %v9686
    %v9935 = vadd.f32 %v9454, %v9688
    %v9936 = vadd.f32 %v9455, %v9690
    %v9937 = vadd.f32 %v9456, %v9692
    %v9938 = vadd.f32 %v9457, %v9694
    %v9939 = vadd.f32 %v9458, %v9696
    %v9940 = vadd.f32 %v9459, %v9698
    %v9941 = vadd.f32 %v9460, %v9700
    %v9942 = vadd.f32 %v9461, %v9702
    %v9943 = vadd.f32 %v9462, %v9704
    %v9944 = vadd.f32 %v9463, %v9706
    %v9945 = vadd.f32 %v9464, %v9708
    %v9946 = vadd.f32 %v9465, %v9710
    %v9947 = vadd.f32 %v9466, %v9712
    %v9948 = vadd.f32 %v9467, %v9714
    %v9949 = vadd.f32 %v9468, %v9716
    %v9950 = vadd.f32 %v9469, %v9718
    %v9951 = vadd.f32 %v9470, %v9720
    %v9952 = vadd.f32 %v9471, %v9722
    %v9953 = vadd.f32 %v9472, %v9724
    %v9954 = vadd.f32 %v9473, %v9726
    %v9955 = vadd.f32 %v9474, %v9728
    %v9956 = vadd.f32 %v9475, %v9730
    %v9957 = vadd.f32 %v9476, %v9732
    %v9958 = vadd.f32 %v9477, %v9734
    %v9959 = vadd.f32 %v9478, %v9736
    %v9960 = vadd.f32 %v9479, %v9738
    %v9961 = vadd.f32 %v9480, %v9740
    %v9962 = vadd.f32 %v9481, %v9742
    %v9963 = vadd.f32 %v9482, %v9744
    %v9964 = vadd.f32 %v9483, %v9746
    %v9965 = vadd.f32 %v9484, %v9748
    %v9966 = vadd.f32 %v9485, %v9750
    %v9967 = vadd.f32 %v9486, %v9752
    %v9968 = vadd.f32 %v9487, %v9754
    %v9969 = vadd.f32 %v9488, %v9756
    %v9970 = vadd.f32 %v9489, %v9758
    %v9971 = vadd.f32 %v9490, %v9760
    %v9972 = vadd.f32 %v9491, %v9762
    %v9973 = vadd.f32 %v9492, %v9764
    %v9974 = vadd.f32 %v9493, %v9766
    %v9975 = vadd.f32 %v9494, %v9768
    %v9976 = vadd.f32 %v9495, %v9770
    %v9977 = vadd.f32 %v9496, %v9772
    %v9978 = vadd.f32 %v9497, %v9774
    %v9979 = vadd.f32 %v9498, %v9776
    %v9980 = vadd.f32 %v9499, %v9778
    %v9981 = vadd.f32 %v9500, %v9780
    %v9982 = vadd.f32 %v9501, %v9782
    %v9983 = vadd.f32 %v9502, %v9784
    %v9984 = vadd.f32 %v9503, %v9786
    %v9985 = vadd.f32 %v9504, %v9788
    %v9986 = vadd.f32 %v9505, %v9790
    %v9987 = vadd.f32 %v9506, %v9792
    %v9988 = vadd.f32 %v9507, %v9794
    %v9989 = vadd.f32 %v9508, %v9796
    %v9990 = vadd.f32 %v9509, %v9894
    %v9991 = vld [vmem:[#allocation3] sm:$0xff]
    %v9992 = vld [vmem:[#allocation3 + $0x8] sm:$0xff]
    %v9993 = vld [vmem:[#allocation3 + $0x10] sm:$0xff]
    %v9994 = vld [vmem:[#allocation3 + $0x18] sm:$0xff]
    %v9995 = vld [vmem:[#allocation3 + $0x20] sm:$0xff]
    %v9996 = vld [vmem:[#allocation3 + $0x28] sm:$0xff]
    %v9997 = vld [vmem:[#allocation3 + $0x30] sm:$0xff]
    %v9998 = vld [vmem:[#allocation3 + $0x38] sm:$0xff]
    %v9999 = vld [vmem:[#allocation3 + $0x40] sm:$0xff]
    %v10000 = vld [vmem:[#allocation3 + $0x48] sm:$0xff]
    %v10001 = vld [vmem:[#allocation3 + $0x50] sm:$0xff]
    %v10002 = vld [vmem:[#allocation3 + $0x58] sm:$0xff]
    %v10003 = vld [vmem:[#allocation3 + $0x60] sm:$0xff]
    %v10004 = vld [vmem:[#allocation3 + $0x68] sm:$0xff]
    %v10005 = vld [vmem:[#allocation3 + $0x70] sm:$0xff]
    %v10006 = vld [vmem:[#allocation3 + $0x78] sm:$0xff]
    %v10007 = vld [vmem:[#allocation3 + $0x80] sm:$0xff]
    %v10008 = vld [vmem:[#allocation3 + $0x88] sm:$0xff]
    %v10009 = vld [vmem:[#allocation3 + $0x90] sm:$0xff]
    %v10010 = vld [vmem:[#allocation3 + $0x98] sm:$0xff]
    %v10011 = vld [vmem:[#allocation3 + $0xa0] sm:$0xff]
    %v10012 = vld [vmem:[#allocation3 + $0xa8] sm:$0xff]
    %v10013 = vld [vmem:[#allocation3 + $0xb0] sm:$0xff]
    %v10014 = vld [vmem:[#allocation3 + $0xb8] sm:$0xff]
    %v10015 = vld [vmem:[#allocation3 + $0xc0] sm:$0xff]
    %v10016 = vld [vmem:[#allocation3 + $0xc8] sm:$0xff]
    %v10017 = vld [vmem:[#allocation3 + $0xd0] sm:$0xff]
    %v10018 = vld [vmem:[#allocation3 + $0xd8] sm:$0xff]
    %v10019 = vld [vmem:[#allocation3 + $0xe0] sm:$0xff]
    %v10020 = vld [vmem:[#allocation3 + $0xe8] sm:$0xff]
    %v10021 = vld [vmem:[#allocation3 + $0xf0] sm:$0xff]
    %v10022 = vld [vmem:[#allocation3 + $0xf8] sm:$0xff]
    %v10023 = vld [vmem:[#allocation3 + $0x100] sm:$0xff]
    %v10024 = vld [vmem:[#allocation3 + $0x108] sm:$0xff]
    %v10025 = vld [vmem:[#allocation3 + $0x110] sm:$0xff]
    %v10026 = vld [vmem:[#allocation3 + $0x118] sm:$0xff]
    %v10027 = vld [vmem:[#allocation3 + $0x120] sm:$0xff]
    %v10028 = vld [vmem:[#allocation3 + $0x128] sm:$0xff]
    %v10029 = vld [vmem:[#allocation3 + $0x130] sm:$0xff]
    %v10030 = vld [vmem:[#allocation3 + $0x138] sm:$0xff]
    %v10031 = vld [vmem:[#allocation3 + $0x140] sm:$0xff]
    %v10032 = vld [vmem:[#allocation3 + $0x148] sm:$0xff]
    %v10033 = vld [vmem:[#allocation3 + $0x150] sm:$0xff]
    %v10034 = vld [vmem:[#allocation3 + $0x158] sm:$0xff]
    %v10035 = vld [vmem:[#allocation3 + $0x160] sm:$0xff]
    %v10036 = vld [vmem:[#allocation3 + $0x168] sm:$0xff]
    %v10037 = vld [vmem:[#allocation3 + $0x170] sm:$0xff]
    %v10038 = vld [vmem:[#allocation3 + $0x178] sm:$0xff]
    %v10039 = vld [vmem:[#allocation3 + $0x180] sm:$0xff]
    %v10040 = vld [vmem:[#allocation3 + $0x188] sm:$0xff]
    %v10041 = vld [vmem:[#allocation3 + $0x190] sm:$0xff]
    %v10042 = vld [vmem:[#allocation3 + $0x198] sm:$0xff]
    %v10043 = vld [vmem:[#allocation3 + $0x1a0] sm:$0xff]
    %v10044 = vld [vmem:[#allocation3 + $0x1a8] sm:$0xff]
    %v10045 = vld [vmem:[#allocation3 + $0x1b0] sm:$0xff]
    %v10046 = vld [vmem:[#allocation3 + $0x1b8] sm:$0xff]
    %v10047 = vld [vmem:[#allocation3 + $0x1c0] sm:$0xff]
    %v10048 = vld [vmem:[#allocation3 + $0x1c8] sm:$0xff]
    %v10049 = vld [vmem:[#allocation3 + $0x1d0] sm:$0xff]
    %v10050 = vld [vmem:[#allocation3 + $0x1d8] sm:$0xff]
    %v10051 = vld [vmem:[#allocation3 + $0x1e0] sm:$0xff]
    %v10052 = vld [vmem:[#allocation3 + $0x1e8] sm:$0xff]
    %v10053 = vld [vmem:[#allocation3 + $0x1f0] sm:$0xff]
    %v10054 = vld [vmem:[#allocation3 + $0x1f8] sm:$0xff]
    %v10055 = vld [vmem:[#allocation3 + $0x200] sm:$0xff]
    %v10056 = vld [vmem:[#allocation3 + $0x208] sm:$0xff]
    %v10057 = vld [vmem:[#allocation3 + $0x210] sm:$0xff]
    %v10058 = vld [vmem:[#allocation3 + $0x218] sm:$0xff]
    %v10059 = vld [vmem:[#allocation3 + $0x220] sm:$0xff]
    %v10060 = vld [vmem:[#allocation3 + $0x228] sm:$0xff]
    %v10061 = vld [vmem:[#allocation3 + $0x230] sm:$0xff]
    %v10062 = vld [vmem:[#allocation3 + $0x238] sm:$0xff]
    %v10063 = vld [vmem:[#allocation3 + $0x240] sm:$0xff]
    %v10064 = vld [vmem:[#allocation3 + $0x248] sm:$0xff]
    %v10065 = vld [vmem:[#allocation3 + $0x250] sm:$0xff]
    %v10066 = vld [vmem:[#allocation3 + $0x258] sm:$0xff]
    %v10067 = vld [vmem:[#allocation3 + $0x260] sm:$0xff]
    %v10068 = vld [vmem:[#allocation3 + $0x268] sm:$0xff]
    %v10069 = vld [vmem:[#allocation3 + $0x270] sm:$0xff]
    %v10070 = vld [vmem:[#allocation3 + $0x278] sm:$0xff]
    %v10071 = vld [vmem:[#allocation3 + $0x280] sm:$0xff]
    %v10072 = vld [vmem:[#allocation3 + $0x288] sm:$0xff]
    %v10073 = vld [vmem:[#allocation3 + $0x290] sm:$0xff]
    %v10074 = vld [vmem:[#allocation3 + $0x298] sm:$0xff]
    %v10075 = vld [vmem:[#allocation3 + $0x2a0] sm:$0xff]
    %v10076 = vld [vmem:[#allocation3 + $0x2a8] sm:$0xff]
    %v10077 = vld [vmem:[#allocation3 + $0x2b0] sm:$0xff]
    %v10078 = vld [vmem:[#allocation3 + $0x2b8] sm:$0xff]
    %v10079 = vld [vmem:[#allocation3 + $0x2c0] sm:$0xff]
    %v10080 = vld [vmem:[#allocation3 + $0x2c8] sm:$0xff]
    %v10081 = vld [vmem:[#allocation3 + $0x2d0] sm:$0xff]
    %v10082 = vld [vmem:[#allocation3 + $0x2d8] sm:$0xff]
    %v10083 = vld [vmem:[#allocation3 + $0x2e0] sm:$0xff]
    %v10084 = vld [vmem:[#allocation3 + $0x2e8] sm:$0xff]
    %v10085 = vld [vmem:[#allocation3 + $0x2f0] sm:$0xff]
    %v10086 = vld [vmem:[#allocation3 + $0x2f8] sm:$0xff]
    %v10087 = vadd.f32 %v9991, %v9895
    %v10088 = vadd.f32 %v9992, %v9896
    %v10089 = vadd.f32 %v9993, %v9897
    %v10090 = vadd.f32 %v9994, %v9898
    %v10091 = vadd.f32 %v9995, %v9899
    %v10092 = vadd.f32 %v9996, %v9900
    %v10093 = vadd.f32 %v9997, %v9901
    %v10094 = vadd.f32 %v9998, %v9902
    %v10095 = vadd.f32 %v9999, %v9903
    %v10096 = vadd.f32 %v10000, %v9904
    %v10097 = vadd.f32 %v10001, %v9905
    %v10098 = vadd.f32 %v10002, %v9906
    %v10099 = vadd.f32 %v10003, %v9907
    %v10100 = vadd.f32 %v10004, %v9908
    %v10101 = vadd.f32 %v10005, %v9909
    %v10102 = vadd.f32 %v10006, %v9910
    %v10103 = vadd.f32 %v10007, %v9911
    %v10104 = vadd.f32 %v10008, %v9912
    %v10105 = vadd.f32 %v10009, %v9913
    %v10106 = vadd.f32 %v10010, %v9914
    %v10107 = vadd.f32 %v10011, %v9915
    %v10108 = vadd.f32 %v10012, %v9916
    %v10109 = vadd.f32 %v10013, %v9917
    %v10110 = vadd.f32 %v10014, %v9918
    %v10111 = vadd.f32 %v10015, %v9919
    %v10112 = vadd.f32 %v10016, %v9920
    %v10113 = vadd.f32 %v10017, %v9921
    %v10114 = vadd.f32 %v10018, %v9922
    %v10115 = vadd.f32 %v10019, %v9923
    %v10116 = vadd.f32 %v10020, %v9924
    %v10117 = vadd.f32 %v10021, %v9925
    %v10118 = vadd.f32 %v10022, %v9926
    %v10119 = vadd.f32 %v10023, %v9927
    %v10120 = vadd.f32 %v10024, %v9928
    %v10121 = vadd.f32 %v10025, %v9929
    %v10122 = vadd.f32 %v10026, %v9930
    %v10123 = vadd.f32 %v10027, %v9931
    %v10124 = vadd.f32 %v10028, %v9932
    %v10125 = vadd.f32 %v10029, %v9933
    %v10126 = vadd.f32 %v10030, %v9934
    %v10127 = vadd.f32 %v10031, %v9935
    %v10128 = vadd.f32 %v10032, %v9936
    %v10129 = vadd.f32 %v10033, %v9937
    %v10130 = vadd.f32 %v10034, %v9938
    %v10131 = vadd.f32 %v10035, %v9939
    %v10132 = vadd.f32 %v10036, %v9940
    %v10133 = vadd.f32 %v10037, %v9941
    %v10134 = vadd.f32 %v10038, %v9942
    %v10135 = vadd.f32 %v10039, %v9943
    %v10136 = vadd.f32 %v10040, %v9944
    %v10137 = vadd.f32 %v10041, %v9945
    %v10138 = vadd.f32 %v10042, %v9946
    %v10139 = vadd.f32 %v10043, %v9947
    %v10140 = vadd.f32 %v10044, %v9948
    %v10141 = vadd.f32 %v10045, %v9949
    %v10142 = vadd.f32 %v10046, %v9950
    %v10143 = vadd.f32 %v10047, %v9951
    %v10144 = vadd.f32 %v10048, %v9952
    %v10145 = vadd.f32 %v10049, %v9953
    %v10146 = vadd.f32 %v10050, %v9954
    %v10147 = vadd.f32 %v10051, %v9955
    %v10148 = vadd.f32 %v10052, %v9956
    %v10149 = vadd.f32 %v10053, %v9957
    %v10150 = vadd.f32 %v10054, %v9958
    %v10151 = vadd.f32 %v10055, %v9959
    %v10152 = vadd.f32 %v10056, %v9960
    %v10153 = vadd.f32 %v10057, %v9961
    %v10154 = vadd.f32 %v10058, %v9962
    %v10155 = vadd.f32 %v10059, %v9963
    %v10156 = vadd.f32 %v10060, %v9964
    %v10157 = vadd.f32 %v10061, %v9965
    %v10158 = vadd.f32 %v10062, %v9966
    %v10159 = vadd.f32 %v10063, %v9967
    %v10160 = vadd.f32 %v10064, %v9968
    %v10161 = vadd.f32 %v10065, %v9969
    %v10162 = vadd.f32 %v10066, %v9970
    %v10163 = vadd.f32 %v10067, %v9971
    %v10164 = vadd.f32 %v10068, %v9972
    %v10165 = vadd.f32 %v10069, %v9973
    %v10166 = vadd.f32 %v10070, %v9974
    %v10167 = vadd.f32 %v10071, %v9975
    %v10168 = vadd.f32 %v10072, %v9976
    %v10169 = vadd.f32 %v10073, %v9977
    %v10170 = vadd.f32 %v10074, %v9978
    %v10171 = vadd.f32 %v10075, %v9979
    %v10172 = vadd.f32 %v10076, %v9980
    %v10173 = vadd.f32 %v10077, %v9981
    %v10174 = vadd.f32 %v10078, %v9982
    %v10175 = vadd.f32 %v10079, %v9983
    %v10176 = vadd.f32 %v10080, %v9984
    %v10177 = vadd.f32 %v10081, %v9985
    %v10178 = vadd.f32 %v10082, %v9986
    %v10179 = vadd.f32 %v10083, %v9987
    %v10180 = vadd.f32 %v10084, %v9988
    %v10181 = vadd.f32 %v10085, %v9989
    %v10182 = vadd.f32 %v10086, %v9990
    %10183 = vst.msk [vmem:[#allocation3] sm:$0xff] %vm1815, %v10087
    %10184 = vst.msk [vmem:[#allocation3 + $0x8] sm:$0xff] %vm1815, %v10088
    %10185 = vst.msk [vmem:[#allocation3 + $0x10] sm:$0xff] %vm1815, %v10089
    %10186 = vst.msk [vmem:[#allocation3 + $0x18] sm:$0xff] %vm1815, %v10090
    %10187 = vst.msk [vmem:[#allocation3 + $0x20] sm:$0xff] %vm1815, %v10091
    %10188 = vst.msk [vmem:[#allocation3 + $0x28] sm:$0xff] %vm1815, %v10092
    %10189 = vst.msk [vmem:[#allocation3 + $0x30] sm:$0xff] %vm1815, %v10093
    %10190 = vst.msk [vmem:[#allocation3 + $0x38] sm:$0xff] %vm1815, %v10094
    %10191 = vst.msk [vmem:[#allocation3 + $0x40] sm:$0xff] %vm1815, %v10095
    %10192 = vst.msk [vmem:[#allocation3 + $0x48] sm:$0xff] %vm1815, %v10096
    %10193 = vst.msk [vmem:[#allocation3 + $0x50] sm:$0xff] %vm1815, %v10097
    %10194 = vst.msk [vmem:[#allocation3 + $0x58] sm:$0xff] %vm1815, %v10098
    %10195 = vst.msk [vmem:[#allocation3 + $0x60] sm:$0xff] %vm1815, %v10099
    %10196 = vst.msk [vmem:[#allocation3 + $0x68] sm:$0xff] %vm1815, %v10100
    %10197 = vst.msk [vmem:[#allocation3 + $0x70] sm:$0xff] %vm1815, %v10101
    %10198 = vst.msk [vmem:[#allocation3 + $0x78] sm:$0xff] %vm1815, %v10102
    %10199 = vst.msk [vmem:[#allocation3 + $0x80] sm:$0xff] %vm1815, %v10103
    %10200 = vst.msk [vmem:[#allocation3 + $0x88] sm:$0xff] %vm1815, %v10104
    %10201 = vst.msk [vmem:[#allocation3 + $0x90] sm:$0xff] %vm1815, %v10105
    %10202 = vst.msk [vmem:[#allocation3 + $0x98] sm:$0xff] %vm1815, %v10106
    %10203 = vst.msk [vmem:[#allocation3 + $0xa0] sm:$0xff] %vm1815, %v10107
    %10204 = vst.msk [vmem:[#allocation3 + $0xa8] sm:$0xff] %vm1815, %v10108
    %10205 = vst.msk [vmem:[#allocation3 + $0xb0] sm:$0xff] %vm1815, %v10109
    %10206 = vst.msk [vmem:[#allocation3 + $0xb8] sm:$0xff] %vm1815, %v10110
    %10207 = vst.msk [vmem:[#allocation3 + $0xc0] sm:$0xff] %vm1815, %v10111
    %10208 = vst.msk [vmem:[#allocation3 + $0xc8] sm:$0xff] %vm1815, %v10112
    %10209 = vst.msk [vmem:[#allocation3 + $0xd0] sm:$0xff] %vm1815, %v10113
    %10210 = vst.msk [vmem:[#allocation3 + $0xd8] sm:$0xff] %vm1815, %v10114
    %10211 = vst.msk [vmem:[#allocation3 + $0xe0] sm:$0xff] %vm1815, %v10115
    %10212 = vst.msk [vmem:[#allocation3 + $0xe8] sm:$0xff] %vm1815, %v10116
    %10213 = vst.msk [vmem:[#allocation3 + $0xf0] sm:$0xff] %vm1815, %v10117
    %10214 = vst.msk [vmem:[#allocation3 + $0xf8] sm:$0xff] %vm1815, %v10118
    %10215 = vst.msk [vmem:[#allocation3 + $0x100] sm:$0xff] %vm1815, %v10119
    %10216 = vst.msk [vmem:[#allocation3 + $0x108] sm:$0xff] %vm1815, %v10120
    %10217 = vst.msk [vmem:[#allocation3 + $0x110] sm:$0xff] %vm1815, %v10121
    %10218 = vst.msk [vmem:[#allocation3 + $0x118] sm:$0xff] %vm1815, %v10122
    %10219 = vst.msk [vmem:[#allocation3 + $0x120] sm:$0xff] %vm1815, %v10123
    %10220 = vst.msk [vmem:[#allocation3 + $0x128] sm:$0xff] %vm1815, %v10124
    %10221 = vst.msk [vmem:[#allocation3 + $0x130] sm:$0xff] %vm1815, %v10125
    %10222 = vst.msk [vmem:[#allocation3 + $0x138] sm:$0xff] %vm1815, %v10126
    %10223 = vst.msk [vmem:[#allocation3 + $0x140] sm:$0xff] %vm1815, %v10127
    %10224 = vst.msk [vmem:[#allocation3 + $0x148] sm:$0xff] %vm1815, %v10128
    %10225 = vst.msk [vmem:[#allocation3 + $0x150] sm:$0xff] %vm1815, %v10129
    %10226 = vst.msk [vmem:[#allocation3 + $0x158] sm:$0xff] %vm1815, %v10130
    %10227 = vst.msk [vmem:[#allocation3 + $0x160] sm:$0xff] %vm1815, %v10131
    %10228 = vst.msk [vmem:[#allocation3 + $0x168] sm:$0xff] %vm1815, %v10132
    %10229 = vst.msk [vmem:[#allocation3 + $0x170] sm:$0xff] %vm1815, %v10133
    %10230 = vst.msk [vmem:[#allocation3 + $0x178] sm:$0xff] %vm1815, %v10134
    %10231 = vst.msk [vmem:[#allocation3 + $0x180] sm:$0xff] %vm1815, %v10135
    %10232 = vst.msk [vmem:[#allocation3 + $0x188] sm:$0xff] %vm1815, %v10136
    %10233 = vst.msk [vmem:[#allocation3 + $0x190] sm:$0xff] %vm1815, %v10137
    %10234 = vst.msk [vmem:[#allocation3 + $0x198] sm:$0xff] %vm1815, %v10138
    %10235 = vst.msk [vmem:[#allocation3 + $0x1a0] sm:$0xff] %vm1815, %v10139
    %10236 = vst.msk [vmem:[#allocation3 + $0x1a8] sm:$0xff] %vm1815, %v10140
    %10237 = vst.msk [vmem:[#allocation3 + $0x1b0] sm:$0xff] %vm1815, %v10141
    %10238 = vst.msk [vmem:[#allocation3 + $0x1b8] sm:$0xff] %vm1815, %v10142
    %10239 = vst.msk [vmem:[#allocation3 + $0x1c0] sm:$0xff] %vm1815, %v10143
    %10240 = vst.msk [vmem:[#allocation3 + $0x1c8] sm:$0xff] %vm1815, %v10144
    %10241 = vst.msk [vmem:[#allocation3 + $0x1d0] sm:$0xff] %vm1815, %v10145
    %10242 = vst.msk [vmem:[#allocation3 + $0x1d8] sm:$0xff] %vm1815, %v10146
    %10243 = vst.msk [vmem:[#allocation3 + $0x1e0] sm:$0xff] %vm1815, %v10147
    %10244 = vst.msk [vmem:[#allocation3 + $0x1e8] sm:$0xff] %vm1815, %v10148
    %10245 = vst.msk [vmem:[#allocation3 + $0x1f0] sm:$0xff] %vm1815, %v10149
    %10246 = vst.msk [vmem:[#allocation3 + $0x1f8] sm:$0xff] %vm1815, %v10150
    %10247 = vst.msk [vmem:[#allocation3 + $0x200] sm:$0xff] %vm1815, %v10151
    %10248 = vst.msk [vmem:[#allocation3 + $0x208] sm:$0xff] %vm1815, %v10152
    %10249 = vst.msk [vmem:[#allocation3 + $0x210] sm:$0xff] %vm1815, %v10153
    %10250 = vst.msk [vmem:[#allocation3 + $0x218] sm:$0xff] %vm1815, %v10154
    %10251 = vst.msk [vmem:[#allocation3 + $0x220] sm:$0xff] %vm1815, %v10155
    %10252 = vst.msk [vmem:[#allocation3 + $0x228] sm:$0xff] %vm1815, %v10156
    %10253 = vst.msk [vmem:[#allocation3 + $0x230] sm:$0xff] %vm1815, %v10157
    %10254 = vst.msk [vmem:[#allocation3 + $0x238] sm:$0xff] %vm1815, %v10158
    %10255 = vst.msk [vmem:[#allocation3 + $0x240] sm:$0xff] %vm1815, %v10159
    %10256 = vst.msk [vmem:[#allocation3 + $0x248] sm:$0xff] %vm1815, %v10160
    %10257 = vst.msk [vmem:[#allocation3 + $0x250] sm:$0xff] %vm1815, %v10161
    %10258 = vst.msk [vmem:[#allocation3 + $0x258] sm:$0xff] %vm1815, %v10162
    %10259 = vst.msk [vmem:[#allocation3 + $0x260] sm:$0xff] %vm1815, %v10163
    %10260 = vst.msk [vmem:[#allocation3 + $0x268] sm:$0xff] %vm1815, %v10164
    %10261 = vst.msk [vmem:[#allocation3 + $0x270] sm:$0xff] %vm1815, %v10165
    %10262 = vst.msk [vmem:[#allocation3 + $0x278] sm:$0xff] %vm1815, %v10166
    %10263 = vst.msk [vmem:[#allocation3 + $0x280] sm:$0xff] %vm1815, %v10167
    %10264 = vst.msk [vmem:[#allocation3 + $0x288] sm:$0xff] %vm1815, %v10168
    %10265 = vst.msk [vmem:[#allocation3 + $0x290] sm:$0xff] %vm1815, %v10169
    %10266 = vst.msk [vmem:[#allocation3 + $0x298] sm:$0xff] %vm1815, %v10170
    %10267 = vst.msk [vmem:[#allocation3 + $0x2a0] sm:$0xff] %vm1815, %v10171
    %10268 = vst.msk [vmem:[#allocation3 + $0x2a8] sm:$0xff] %vm1815, %v10172
    %10269 = vst.msk [vmem:[#allocation3 + $0x2b0] sm:$0xff] %vm1815, %v10173
    %10270 = vst.msk [vmem:[#allocation3 + $0x2b8] sm:$0xff] %vm1815, %v10174
    %10271 = vst.msk [vmem:[#allocation3 + $0x2c0] sm:$0xff] %vm1815, %v10175
    %10272 = vst.msk [vmem:[#allocation3 + $0x2c8] sm:$0xff] %vm1815, %v10176
    %10273 = vst.msk [vmem:[#allocation3 + $0x2d0] sm:$0xff] %vm1815, %v10177
    %10274 = vst.msk [vmem:[#allocation3 + $0x2d8] sm:$0xff] %vm1815, %v10178
    %10275 = vst.msk [vmem:[#allocation3 + $0x2e0] sm:$0xff] %vm1815, %v10179
    %10276 = vst.msk [vmem:[#allocation3 + $0x2e8] sm:$0xff] %vm1815, %v10180
    %10277 = vst.msk [vmem:[#allocation3 + $0x2f0] sm:$0xff] %vm1815, %v10181
    %10278 = vst.msk [vmem:[#allocation3 + $0x2f8] sm:$0xff] %vm1815, %v10182
    %v10279 = vld [vmem:[#allocation3] sm:$0xff]
    %v10280 = vld [vmem:[#allocation3 + $0x8] sm:$0xff]
    %v10281 = vld [vmem:[#allocation3 + $0x18] sm:$0xff]
    %v10282 = vld [vmem:[#allocation3 + $0x20] sm:$0xff]
    %v10283 = vld [vmem:[#allocation3 + $0x30] sm:$0xff]
    %v10284 = vld [vmem:[#allocation3 + $0x38] sm:$0xff]
    %v10285 = vld [vmem:[#allocation3 + $0x48] sm:$0xff]
    %v10286 = vld [vmem:[#allocation3 + $0x50] sm:$0xff]
    %v10287 = vld [vmem:[#allocation3 + $0x60] sm:$0xff]
    %v10288 = vld [vmem:[#allocation3 + $0x68] sm:$0xff]
    %v10289 = vld [vmem:[#allocation3 + $0x78] sm:$0xff]
    %v10290 = vld [vmem:[#allocation3 + $0x80] sm:$0xff]
    %v10291 = vld [vmem:[#allocation3 + $0x90] sm:$0xff]
    %v10292 = vld [vmem:[#allocation3 + $0x98] sm:$0xff]
    %v10293 = vld [vmem:[#allocation3 + $0xa8] sm:$0xff]
    %v10294 = vld [vmem:[#allocation3 + $0xb0] sm:$0xff]
    %v10295 = vld [vmem:[#allocation3 + $0xc0] sm:$0xff]
    %v10296 = vld [vmem:[#allocation3 + $0xc8] sm:$0xff]
    %v10297 = vld [vmem:[#allocation3 + $0xd8] sm:$0xff]
    %v10298 = vld [vmem:[#allocation3 + $0xe0] sm:$0xff]
    %v10299 = vld [vmem:[#allocation3 + $0xf0] sm:$0xff]
    %v10300 = vld [vmem:[#allocation3 + $0xf8] sm:$0xff]
    %v10301 = vld [vmem:[#allocation3 + $0x108] sm:$0xff]
    %v10302 = vld [vmem:[#allocation3 + $0x110] sm:$0xff]
    %v10303 = vld [vmem:[#allocation3 + $0x120] sm:$0xff]
    %v10304 = vld [vmem:[#allocation3 + $0x128] sm:$0xff]
    %v10305 = vld [vmem:[#allocation3 + $0x138] sm:$0xff]
    %v10306 = vld [vmem:[#allocation3 + $0x140] sm:$0xff]
    %v10307 = vld [vmem:[#allocation3 + $0x150] sm:$0xff]
    %v10308 = vld [vmem:[#allocation3 + $0x158] sm:$0xff]
    %v10309 = vld [vmem:[#allocation3 + $0x168] sm:$0xff]
    %v10310 = vld [vmem:[#allocation3 + $0x170] sm:$0xff]
    %v10311 = vld [vmem:[#allocation3 + $0x180] sm:$0xff]
    %v10312 = vld [vmem:[#allocation3 + $0x188] sm:$0xff]
    %v10313 = vld [vmem:[#allocation3 + $0x198] sm:$0xff]
    %v10314 = vld [vmem:[#allocation3 + $0x1a0] sm:$0xff]
    %v10315 = vld [vmem:[#allocation3 + $0x1b0] sm:$0xff]
    %v10316 = vld [vmem:[#allocation3 + $0x1b8] sm:$0xff]
    %v10317 = vld [vmem:[#allocation3 + $0x1c8] sm:$0xff]
    %v10318 = vld [vmem:[#allocation3 + $0x1d0] sm:$0xff]
    %v10319 = vld [vmem:[#allocation3 + $0x1e0] sm:$0xff]
    %v10320 = vld [vmem:[#allocation3 + $0x1e8] sm:$0xff]
    %v10321 = vld [vmem:[#allocation3 + $0x1f8] sm:$0xff]
    %v10322 = vld [vmem:[#allocation3 + $0x200] sm:$0xff]
    %v10323 = vld [vmem:[#allocation3 + $0x210] sm:$0xff]
    %v10324 = vld [vmem:[#allocation3 + $0x218] sm:$0xff]
    %v10325 = vld [vmem:[#allocation3 + $0x228] sm:$0xff]
    %v10326 = vld [vmem:[#allocation3 + $0x230] sm:$0xff]
    %v10327 = vld [vmem:[#allocation3 + $0x240] sm:$0xff]
    %v10328 = vld [vmem:[#allocation3 + $0x248] sm:$0xff]
    %v10329 = vld [vmem:[#allocation3 + $0x258] sm:$0xff]
    %v10330 = vld [vmem:[#allocation3 + $0x260] sm:$0xff]
    %v10331 = vld [vmem:[#allocation3 + $0x270] sm:$0xff]
    %v10332 = vld [vmem:[#allocation3 + $0x278] sm:$0xff]
    %v10333 = vld [vmem:[#allocation3 + $0x288] sm:$0xff]
    %v10334 = vld [vmem:[#allocation3 + $0x290] sm:$0xff]
    %v10335 = vld [vmem:[#allocation3 + $0x2a0] sm:$0xff]
    %v10336 = vld [vmem:[#allocation3 + $0x2a8] sm:$0xff]
    %v10337 = vld [vmem:[#allocation3 + $0x2b8] sm:$0xff]
    %v10338 = vld [vmem:[#allocation3 + $0x2c0] sm:$0xff]
    %v10339 = vld [vmem:[#allocation3 + $0x2d0] sm:$0xff]
    %v10340 = vld [vmem:[#allocation3 + $0x2d8] sm:$0xff]
    %v10341 = vld [vmem:[#allocation3 + $0x2e8] sm:$0xff]
    %v10342 = vld [vmem:[#allocation3 + $0x2f0] sm:$0xff]
    %v10343 = vlaneseq
    %v10344 = vshrl.u32 %v10343, 7
    %v10345 = vsub.s32 0, %v10344
    %v10346 = vrot.slane %v146, %v10345
    %v10347 = vmul.f32 %v10279, %v10346
    %v10348 = vmul.f32 %v10280, %v10346
    %v10349 = vmul.f32 %v10281, %v10346
    %v10350 = vmul.f32 %v10282, %v10346
    %v10351 = vmul.f32 %v10283, %v10346
    %v10352 = vmul.f32 %v10284, %v10346
    %v10353 = vmul.f32 %v10285, %v10346
    %v10354 = vmul.f32 %v10286, %v10346
    %v10355 = vmul.f32 %v10287, %v10346
    %v10356 = vmul.f32 %v10288, %v10346
    %v10357 = vmul.f32 %v10289, %v10346
    %v10358 = vmul.f32 %v10290, %v10346
    %v10359 = vmul.f32 %v10291, %v10346
    %v10360 = vmul.f32 %v10292, %v10346
    %v10361 = vmul.f32 %v10293, %v10346
    %v10362 = vmul.f32 %v10294, %v10346
    %v10363 = vmul.f32 %v10295, %v10346
    %v10364 = vmul.f32 %v10296, %v10346
    %v10365 = vmul.f32 %v10297, %v10346
    %v10366 = vmul.f32 %v10298, %v10346
    %v10367 = vmul.f32 %v10299, %v10346
    %v10368 = vmul.f32 %v10300, %v10346
    %v10369 = vmul.f32 %v10301, %v10346
    %v10370 = vmul.f32 %v10302, %v10346
    %v10371 = vmul.f32 %v10303, %v10346
    %v10372 = vmul.f32 %v10304, %v10346
    %v10373 = vmul.f32 %v10305, %v10346
    %v10374 = vmul.f32 %v10306, %v10346
    %v10375 = vmul.f32 %v10307, %v10346
    %v10376 = vmul.f32 %v10308, %v10346
    %v10377 = vmul.f32 %v10309, %v10346
    %v10378 = vmul.f32 %v10310, %v10346
    %v10379 = vmul.f32 %v10311, %v10346
    %v10380 = vmul.f32 %v10312, %v10346
    %v10381 = vmul.f32 %v10313, %v10346
    %v10382 = vmul.f32 %v10314, %v10346
    %v10383 = vmul.f32 %v10315, %v10346
    %v10384 = vmul.f32 %v10316, %v10346
    %v10385 = vmul.f32 %v10317, %v10346
    %v10386 = vmul.f32 %v10318, %v10346
    %v10387 = vmul.f32 %v10319, %v10346
    %v10388 = vmul.f32 %v10320, %v10346
    %v10389 = vmul.f32 %v10321, %v10346
    %v10390 = vmul.f32 %v10322, %v10346
    %v10391 = vmul.f32 %v10323, %v10346
    %v10392 = vmul.f32 %v10324, %v10346
    %v10393 = vmul.f32 %v10325, %v10346
    %v10394 = vmul.f32 %v10326, %v10346
    %v10395 = vmul.f32 %v10327, %v10346
    %v10396 = vmul.f32 %v10328, %v10346
    %v10397 = vmul.f32 %v10329, %v10346
    %v10398 = vmul.f32 %v10330, %v10346
    %v10399 = vmul.f32 %v10331, %v10346
    %v10400 = vmul.f32 %v10332, %v10346
    %v10401 = vmul.f32 %v10333, %v10346
    %v10402 = vmul.f32 %v10334, %v10346
    %v10403 = vmul.f32 %v10335, %v10346
    %v10404 = vmul.f32 %v10336, %v10346
    %v10405 = vmul.f32 %v10337, %v10346
    %v10406 = vmul.f32 %v10338, %v10346
    %v10407 = vmul.f32 %v10339, %v10346
    %v10408 = vmul.f32 %v10340, %v10346
    %v10409 = vmul.f32 %v10341, %v10346
    %v10410 = vmul.f32 %v10342, %v10346
    %v10411 = vlaneseq
    %v10412 = vshrl.u32 %v10411, 7
    %v10413 = vsub.s32 0, %v10412
    %v10414 = vrot.slane %v147, %v10413
    %v10415 = vadd.f32 %v10347, %v10414
    %v10416 = vadd.f32 %v10348, %v10414
    %v10417 = vadd.f32 %v10349, %v10414
    %v10418 = vadd.f32 %v10350, %v10414
    %v10419 = vadd.f32 %v10351, %v10414
    %v10420 = vadd.f32 %v10352, %v10414
    %v10421 = vadd.f32 %v10353, %v10414
    %v10422 = vadd.f32 %v10354, %v10414
    %v10423 = vadd.f32 %v10355, %v10414
    %v10424 = vadd.f32 %v10356, %v10414
    %v10425 = vadd.f32 %v10357, %v10414
    %v10426 = vadd.f32 %v10358, %v10414
    %v10427 = vadd.f32 %v10359, %v10414
    %v10428 = vadd.f32 %v10360, %v10414
    %v10429 = vadd.f32 %v10361, %v10414
    %v10430 = vadd.f32 %v10362, %v10414
    %v10431 = vadd.f32 %v10363, %v10414
    %v10432 = vadd.f32 %v10364, %v10414
    %v10433 = vadd.f32 %v10365, %v10414
    %v10434 = vadd.f32 %v10366, %v10414
    %v10435 = vadd.f32 %v10367, %v10414
    %v10436 = vadd.f32 %v10368, %v10414
    %v10437 = vadd.f32 %v10369, %v10414
    %v10438 = vadd.f32 %v10370, %v10414
    %v10439 = vadd.f32 %v10371, %v10414
    %v10440 = vadd.f32 %v10372, %v10414
    %v10441 = vadd.f32 %v10373, %v10414
    %v10442 = vadd.f32 %v10374, %v10414
    %v10443 = vadd.f32 %v10375, %v10414
    %v10444 = vadd.f32 %v10376, %v10414
    %v10445 = vadd.f32 %v10377, %v10414
    %v10446 = vadd.f32 %v10378, %v10414
    %v10447 = vadd.f32 %v10379, %v10414
    %v10448 = vadd.f32 %v10380, %v10414
    %v10449 = vadd.f32 %v10381, %v10414
    %v10450 = vadd.f32 %v10382, %v10414
    %v10451 = vadd.f32 %v10383, %v10414
    %v10452 = vadd.f32 %v10384, %v10414
    %v10453 = vadd.f32 %v10385, %v10414
    %v10454 = vadd.f32 %v10386, %v10414
    %v10455 = vadd.f32 %v10387, %v10414
    %v10456 = vadd.f32 %v10388, %v10414
    %v10457 = vadd.f32 %v10389, %v10414
    %v10458 = vadd.f32 %v10390, %v10414
    %v10459 = vadd.f32 %v10391, %v10414
    %v10460 = vadd.f32 %v10392, %v10414
    %v10461 = vadd.f32 %v10393, %v10414
    %v10462 = vadd.f32 %v10394, %v10414
    %v10463 = vadd.f32 %v10395, %v10414
    %v10464 = vadd.f32 %v10396, %v10414
    %v10465 = vadd.f32 %v10397, %v10414
    %v10466 = vadd.f32 %v10398, %v10414
    %v10467 = vadd.f32 %v10399, %v10414
    %v10468 = vadd.f32 %v10400, %v10414
    %v10469 = vadd.f32 %v10401, %v10414
    %v10470 = vadd.f32 %v10402, %v10414
    %v10471 = vadd.f32 %v10403, %v10414
    %v10472 = vadd.f32 %v10404, %v10414
    %v10473 = vadd.f32 %v10405, %v10414
    %v10474 = vadd.f32 %v10406, %v10414
    %v10475 = vadd.f32 %v10407, %v10414
    %v10476 = vadd.f32 %v10408, %v10414
    %v10477 = vadd.f32 %v10409, %v10414
    %v10478 = vadd.f32 %v10410, %v10414
    %v10479 = vmax.f32 %v10415, 0.0
    %v10480 = vmax.f32 %v10416, 0.0
    %v10481 = vmax.f32 %v10417, 0.0
    %v10482 = vmax.f32 %v10418, 0.0
    %v10483 = vmax.f32 %v10419, 0.0
    %v10484 = vmax.f32 %v10420, 0.0
    %v10485 = vmax.f32 %v10421, 0.0
    %v10486 = vmax.f32 %v10422, 0.0
    %v10487 = vmax.f32 %v10423, 0.0
    %v10488 = vmax.f32 %v10424, 0.0
    %v10489 = vmax.f32 %v10425, 0.0
    %v10490 = vmax.f32 %v10426, 0.0
    %v10491 = vmax.f32 %v10427, 0.0
    %v10492 = vmax.f32 %v10428, 0.0
    %v10493 = vmax.f32 %v10429, 0.0
    %v10494 = vmax.f32 %v10430, 0.0
    %v10495 = vmax.f32 %v10431, 0.0
    %v10496 = vmax.f32 %v10432, 0.0
    %v10497 = vmax.f32 %v10433, 0.0
    %v10498 = vmax.f32 %v10434, 0.0
    %v10499 = vmax.f32 %v10435, 0.0
    %v10500 = vmax.f32 %v10436, 0.0
    %v10501 = vmax.f32 %v10437, 0.0
    %v10502 = vmax.f32 %v10438, 0.0
    %v10503 = vmax.f32 %v10439, 0.0
    %v10504 = vmax.f32 %v10440, 0.0
    %v10505 = vmax.f32 %v10441, 0.0
    %v10506 = vmax.f32 %v10442, 0.0
    %v10507 = vmax.f32 %v10443, 0.0
    %v10508 = vmax.f32 %v10444, 0.0
    %v10509 = vmax.f32 %v10445, 0.0
    %v10510 = vmax.f32 %v10446, 0.0
    %v10511 = vmax.f32 %v10447, 0.0
    %v10512 = vmax.f32 %v10448, 0.0
    %v10513 = vmax.f32 %v10449, 0.0
    %v10514 = vmax.f32 %v10450, 0.0
    %v10515 = vmax.f32 %v10451, 0.0
    %v10516 = vmax.f32 %v10452, 0.0
    %v10517 = vmax.f32 %v10453, 0.0
    %v10518 = vmax.f32 %v10454, 0.0
    %v10519 = vmax.f32 %v10455, 0.0
    %v10520 = vmax.f32 %v10456, 0.0
    %v10521 = vmax.f32 %v10457, 0.0
    %v10522 = vmax.f32 %v10458, 0.0
    %v10523 = vmax.f32 %v10459, 0.0
    %v10524 = vmax.f32 %v10460, 0.0
    %v10525 = vmax.f32 %v10461, 0.0
    %v10526 = vmax.f32 %v10462, 0.0
    %v10527 = vmax.f32 %v10463, 0.0
    %v10528 = vmax.f32 %v10464, 0.0
    %v10529 = vmax.f32 %v10465, 0.0
    %v10530 = vmax.f32 %v10466, 0.0
    %v10531 = vmax.f32 %v10467, 0.0
    %v10532 = vmax.f32 %v10468, 0.0
    %v10533 = vmax.f32 %v10469, 0.0
    %v10534 = vmax.f32 %v10470, 0.0
    %v10535 = vmax.f32 %v10471, 0.0
    %v10536 = vmax.f32 %v10472, 0.0
    %v10537 = vmax.f32 %v10473, 0.0
    %v10538 = vmax.f32 %v10474, 0.0
    %v10539 = vmax.f32 %v10475, 0.0
    %v10540 = vmax.f32 %v10476, 0.0
    %v10541 = vmax.f32 %v10477, 0.0
    %v10542 = vmax.f32 %v10478, 0.0
    %v10543 = vpack.c.bf16 %v10480, %v10479
    %v10544 = vpack.c.bf16 %v10482, %v10481
    %v10545 = vpack.c.bf16 %v10484, %v10483
    %v10546 = vpack.c.bf16 %v10486, %v10485
    %v10547 = vpack.c.bf16 %v10488, %v10487
    %v10548 = vpack.c.bf16 %v10490, %v10489
    %v10549 = vpack.c.bf16 %v10492, %v10491
    %v10550 = vpack.c.bf16 %v10494, %v10493
    %v10551 = vpack.c.bf16 %v10496, %v10495
    %v10552 = vpack.c.bf16 %v10498, %v10497
    %v10553 = vpack.c.bf16 %v10500, %v10499
    %v10554 = vpack.c.bf16 %v10502, %v10501
    %v10555 = vpack.c.bf16 %v10504, %v10503
    %v10556 = vpack.c.bf16 %v10506, %v10505
    %v10557 = vpack.c.bf16 %v10508, %v10507
    %v10558 = vpack.c.bf16 %v10510, %v10509
    %v10559 = vpack.c.bf16 %v10512, %v10511
    %v10560 = vpack.c.bf16 %v10514, %v10513
    %v10561 = vpack.c.bf16 %v10516, %v10515
    %v10562 = vpack.c.bf16 %v10518, %v10517
    %v10563 = vpack.c.bf16 %v10520, %v10519
    %v10564 = vpack.c.bf16 %v10522, %v10521
    %v10565 = vpack.c.bf16 %v10524, %v10523
    %v10566 = vpack.c.bf16 %v10526, %v10525
    %v10567 = vpack.c.bf16 %v10528, %v10527
    %v10568 = vpack.c.bf16 %v10530, %v10529
    %v10569 = vpack.c.bf16 %v10532, %v10531
    %v10570 = vpack.c.bf16 %v10534, %v10533
    %v10571 = vpack.c.bf16 %v10536, %v10535
    %v10572 = vpack.c.bf16 %v10538, %v10537
    %v10573 = vpack.c.bf16 %v10540, %v10539
    %v10574 = vpack.c.bf16 %v10542, %v10541
    %v10575 = vld [vmem:[%s5] sm:$0x3]
    %v10577 = vsel %vm1815, %v10543, 0
    %v10580 = vsel %vm1815, %v10544, 0
    %v10583 = vsel %vm1815, %v10545, 0
    %v10586 = vsel %vm1815, %v10546, 0
    %v10589 = vsel %vm1815, %v10547, 0
    %v10592 = vsel %vm1815, %v10548, 0
    %v10595 = vsel %vm1815, %v10549, 0
    %v10598 = vsel %vm1815, %v10550, 0
    %v10601 = vsel %vm1815, %v10551, 0
    %v10604 = vsel %vm1815, %v10552, 0
    %v10607 = vsel %vm1815, %v10553, 0
    %v10610 = vsel %vm1815, %v10554, 0
    %v10613 = vsel %vm1815, %v10555, 0
    %v10616 = vsel %vm1815, %v10556, 0
    %v10619 = vsel %vm1815, %v10557, 0
    %v10622 = vsel %vm1815, %v10558, 0
    %v10625 = vsel %vm1815, %v10559, 0
    %v10628 = vsel %vm1815, %v10560, 0
    %v10631 = vsel %vm1815, %v10561, 0
    %v10634 = vsel %vm1815, %v10562, 0
    %v10637 = vsel %vm1815, %v10563, 0
    %v10640 = vsel %vm1815, %v10564, 0
    %v10643 = vsel %vm1815, %v10565, 0
    %v10646 = vsel %vm1815, %v10566, 0
    %v10649 = vsel %vm1815, %v10567, 0
    %v10652 = vsel %vm1815, %v10568, 0
    %v10655 = vsel %vm1815, %v10569, 0
    %v10658 = vsel %vm1815, %v10570, 0
    %v10661 = vsel %vm1815, %v10571, 0
    %v10664 = vsel %vm1815, %v10572, 0
    %v10667 = vsel %vm1815, %v10573, 0
    %v10670 = vsel %vm1815, %v10574, 0
    %v10673 = vsel %vm1960, %v10575, 0
    %10675 = vmatprep.subr.bf16.mxu0 0
    %10676 = vmatpush1.bf16.msra.mxu0 %v10673
    %10677 = vmatprep.subr.bf16.mxu0 0
    %10678 = vmatpush1.bf16.msra.mxu0 0
    %10679 = vmatprep.subr.bf16.mxu0 0
    %10680 = vmatpush1.bf16.msra.mxu0 0
    %10681 = vmatprep.subr.bf16.mxu0 0
    %10682 = vmatpush1.bf16.msra.mxu0 0
    %10683 = vmatprep.subr.bf16.mxu0 0
    %10684 = vmatpush1.bf16.msra.mxu0 0
    %10685 = vmatprep.subr.bf16.mxu0 0
    %10686 = vmatpush1.bf16.msra.mxu0 0
    %10687 = vmatprep.subr.bf16.mxu0 0
    %10688 = vmatpush1.bf16.msra.mxu0 0
    %10689 = vmatprep.subr.bf16.mxu0 0
    %10690 = vmatpush1.bf16.msra.mxu0 0
    %10691 = vmatprep.subr.bf16.mxu0 0
    %10692 = vmatpush1.bf16.msra.mxu0 0
    %10693 = vmatprep.subr.bf16.mxu0 0
    %10694 = vmatpush1.bf16.msra.mxu0 0
    %10695 = vmatprep.subr.bf16.mxu0 0
    %10696 = vmatpush1.bf16.msra.mxu0 0
    %10697 = vmatprep.subr.bf16.mxu0 0
    %10698 = vmatpush1.bf16.msra.mxu0 0
    %10699 = vmatprep.subr.bf16.mxu0 0
    %10700 = vmatpush1.bf16.msra.mxu0 0
    %10701 = vmatprep.subr.bf16.mxu0 0
    %10702 = vmatpush1.bf16.msra.mxu0 0
    %10703 = vmatprep.subr.bf16.mxu0 0
    %10704 = vmatpush1.bf16.msra.mxu0 0
    %10705 = vmatprep.subr.bf16.mxu0 0
    %10706 = vmatpush1.bf16.msra.mxu0 0
    %10707 = vmatprep.mubr.bf16.mxu0 0
    %10708 = vmatmul.mubr.bf16.gmra.mrb[0].mxu0 %v10577
    %v10709 = vpop.f32.mrb[0].mxu0
    %v10710 = vadd.f32 0.0, %v10709
    %v10711 = vpop.f32.mrb[0].mxu0
    %v10712 = vpop.f32.mrb[0].mxu0
    %v10713 = vadd.f32 0.0, %v10712
    %v10714 = vpop.f32.mrb[0].mxu0
    %10715 = vmatprep.mubr.bf16.mxu0 0
    %10716 = vmatmul.mubr.bf16.gmra.mrb[0].mxu0 %v10580
    %v10717 = vpop.f32.mrb[0].mxu0
    %v10718 = vadd.f32 0.0, %v10717
    %v10719 = vpop.f32.mrb[0].mxu0
    %v10720 = vpop.f32.mrb[0].mxu0
    %v10721 = vadd.f32 0.0, %v10720
    %v10722 = vpop.f32.mrb[0].mxu0
    %10723 = vmatprep.mubr.bf16.mxu0 0
    %10724 = vmatmul.mubr.bf16.gmra.mrb[0].mxu0 %v10583
    %v10725 = vpop.f32.mrb[0].mxu0
    %v10726 = vadd.f32 0.0, %v10725
    %v10727 = vpop.f32.mrb[0].mxu0
    %v10728 = vpop.f32.mrb[0].mxu0
    %v10729 = vadd.f32 0.0, %v10728
    %v10730 = vpop.f32.mrb[0].mxu0
    %10731 = vmatprep.mubr.bf16.mxu0 0
    %10732 = vmatmul.mubr.bf16.gmra.mrb[0].mxu0 %v10586
    %v10733 = vpop.f32.mrb[0].mxu0
    %v10734 = vadd.f32 0.0, %v10733
    %v10735 = vpop.f32.mrb[0].mxu0
    %v10736 = vpop.f32.mrb[0].mxu0
    %v10737 = vadd.f32 0.0, %v10736
    %v10738 = vpop.f32.mrb[0].mxu0
    %10739 = vmatprep.mubr.bf16.mxu0 0
    %10740 = vmatmul.mubr.bf16.gmra.mrb[0].mxu0 %v10589
    %v10741 = vpop.f32.mrb[0].mxu0
    %v10742 = vadd.f32 0.0, %v10741
    %v10743 = vpop.f32.mrb[0].mxu0
    %v10744 = vpop.f32.mrb[0].mxu0
    %v10745 = vadd.f32 0.0, %v10744
    %v10746 = vpop.f32.mrb[0].mxu0
    %10747 = vmatprep.mubr.bf16.mxu0 0
    %10748 = vmatmul.mubr.bf16.gmra.mrb[0].mxu0 %v10592
    %v10749 = vpop.f32.mrb[0].mxu0
    %v10750 = vadd.f32 0.0, %v10749
    %v10751 = vpop.f32.mrb[0].mxu0
    %v10752 = vpop.f32.mrb[0].mxu0
    %v10753 = vadd.f32 0.0, %v10752
    %v10754 = vpop.f32.mrb[0].mxu0
    %10755 = vmatprep.mubr.bf16.mxu0 0
    %10756 = vmatmul.mubr.bf16.gmra.mrb[0].mxu0 %v10595
    %v10757 = vpop.f32.mrb[0].mxu0
    %v10758 = vadd.f32 0.0, %v10757
    %v10759 = vpop.f32.mrb[0].mxu0
    %v10760 = vpop.f32.mrb[0].mxu0
    %v10761 = vadd.f32 0.0, %v10760
    %v10762 = vpop.f32.mrb[0].mxu0
    %10763 = vmatprep.mubr.bf16.mxu0 0
    %10764 = vmatmul.mubr.bf16.gmra.mrb[0].mxu0 %v10598
    %v10765 = vpop.f32.mrb[0].mxu0
    %v10766 = vadd.f32 0.0, %v10765
    %v10767 = vpop.f32.mrb[0].mxu0
    %v10768 = vpop.f32.mrb[0].mxu0
    %v10769 = vadd.f32 0.0, %v10768
    %v10770 = vpop.f32.mrb[0].mxu0
    %10771 = vmatprep.mubr.bf16.mxu0 0
    %10772 = vmatmul.mubr.bf16.gmra.mrb[0].mxu0 %v10601
    %v10773 = vpop.f32.mrb[0].mxu0
    %v10774 = vadd.f32 0.0, %v10773
    %v10775 = vpop.f32.mrb[0].mxu0
    %v10776 = vpop.f32.mrb[0].mxu0
    %v10777 = vadd.f32 0.0, %v10776
    %v10778 = vpop.f32.mrb[0].mxu0
    %10779 = vmatprep.mubr.bf16.mxu0 0
    %10780 = vmatmul.mubr.bf16.gmra.mrb[0].mxu0 %v10604
    %v10781 = vpop.f32.mrb[0].mxu0
    %v10782 = vadd.f32 0.0, %v10781
    %v10783 = vpop.f32.mrb[0].mxu0
    %v10784 = vpop.f32.mrb[0].mxu0
    %v10785 = vadd.f32 0.0, %v10784
    %v10786 = vpop.f32.mrb[0].mxu0
    %10787 = vmatprep.mubr.bf16.mxu0 0
    %10788 = vmatmul.mubr.bf16.gmra.mrb[0].mxu0 %v10607
    %v10789 = vpop.f32.mrb[0].mxu0
    %v10790 = vadd.f32 0.0, %v10789
    %v10791 = vpop.f32.mrb[0].mxu0
    %v10792 = vpop.f32.mrb[0].mxu0
    %v10793 = vadd.f32 0.0, %v10792
    %v10794 = vpop.f32.mrb[0].mxu0
    %10795 = vmatprep.mubr.bf16.mxu0 0
    %10796 = vmatmul.mubr.bf16.gmra.mrb[0].mxu0 %v10610
    %v10797 = vpop.f32.mrb[0].mxu0
    %v10798 = vadd.f32 0.0, %v10797
    %v10799 = vpop.f32.mrb[0].mxu0
    %v10800 = vpop.f32.mrb[0].mxu0
    %v10801 = vadd.f32 0.0, %v10800
    %v10802 = vpop.f32.mrb[0].mxu0
    %10803 = vmatprep.mubr.bf16.mxu0 0
    %10804 = vmatmul.mubr.bf16.gmra.mrb[0].mxu0 %v10613
    %v10805 = vpop.f32.mrb[0].mxu0
    %v10806 = vadd.f32 0.0, %v10805
    %v10807 = vpop.f32.mrb[0].mxu0
    %v10808 = vpop.f32.mrb[0].mxu0
    %v10809 = vadd.f32 0.0, %v10808
    %v10810 = vpop.f32.mrb[0].mxu0
    %10811 = vmatprep.mubr.bf16.mxu0 0
    %10812 = vmatmul.mubr.bf16.gmra.mrb[0].mxu0 %v10616
    %v10813 = vpop.f32.mrb[0].mxu0
    %v10814 = vadd.f32 0.0, %v10813
    %v10815 = vpop.f32.mrb[0].mxu0
    %v10816 = vpop.f32.mrb[0].mxu0
    %v10817 = vadd.f32 0.0, %v10816
    %v10818 = vpop.f32.mrb[0].mxu0
    %10819 = vmatprep.mubr.bf16.mxu0 0
    %10820 = vmatmul.mubr.bf16.gmra.mrb[0].mxu0 %v10619
    %v10821 = vpop.f32.mrb[0].mxu0
    %v10822 = vadd.f32 0.0, %v10821
    %v10823 = vpop.f32.mrb[0].mxu0
    %v10824 = vpop.f32.mrb[0].mxu0
    %v10825 = vadd.f32 0.0, %v10824
    %v10826 = vpop.f32.mrb[0].mxu0
    %10827 = vmatprep.mubr.bf16.mxu0 0
    %10828 = vmatmul.mubr.bf16.gmra.mrb[0].mxu0 %v10622
    %v10829 = vpop.f32.mrb[0].mxu0
    %v10830 = vadd.f32 0.0, %v10829
    %v10831 = vpop.f32.mrb[0].mxu0
    %v10832 = vpop.f32.mrb[0].mxu0
    %v10833 = vadd.f32 0.0, %v10832
    %v10834 = vpop.f32.mrb[0].mxu0
    %10835 = vmatprep.mubr.bf16.mxu0 0
    %10836 = vmatmul.mubr.bf16.gmra.mrb[0].mxu0 %v10625
    %v10837 = vpop.f32.mrb[0].mxu0
    %v10838 = vadd.f32 0.0, %v10837
    %v10839 = vpop.f32.mrb[0].mxu0
    %v10840 = vpop.f32.mrb[0].mxu0
    %v10841 = vadd.f32 0.0, %v10840
    %v10842 = vpop.f32.mrb[0].mxu0
    %10843 = vmatprep.mubr.bf16.mxu0 0
    %10844 = vmatmul.mubr.bf16.gmra.mrb[0].mxu0 %v10628
    %v10845 = vpop.f32.mrb[0].mxu0
    %v10846 = vadd.f32 0.0, %v10845
    %v10847 = vpop.f32.mrb[0].mxu0
    %v10848 = vpop.f32.mrb[0].mxu0
    %v10849 = vadd.f32 0.0, %v10848
    %v10850 = vpop.f32.mrb[0].mxu0
    %10851 = vmatprep.mubr.bf16.mxu0 0
    %10852 = vmatmul.mubr.bf16.gmra.mrb[0].mxu0 %v10631
    %v10853 = vpop.f32.mrb[0].mxu0
    %v10854 = vadd.f32 0.0, %v10853
    %v10855 = vpop.f32.mrb[0].mxu0
    %v10856 = vpop.f32.mrb[0].mxu0
    %v10857 = vadd.f32 0.0, %v10856
    %v10858 = vpop.f32.mrb[0].mxu0
    %10859 = vmatprep.mubr.bf16.mxu0 0
    %10860 = vmatmul.mubr.bf16.gmra.mrb[0].mxu0 %v10634
    %v10861 = vpop.f32.mrb[0].mxu0
    %v10862 = vadd.f32 0.0, %v10861
    %v10863 = vpop.f32.mrb[0].mxu0
    %v10864 = vpop.f32.mrb[0].mxu0
    %v10865 = vadd.f32 0.0, %v10864
    %v10866 = vpop.f32.mrb[0].mxu0
    %10867 = vmatprep.mubr.bf16.mxu0 0
    %10868 = vmatmul.mubr.bf16.gmra.mrb[0].mxu0 %v10637
    %v10869 = vpop.f32.mrb[0].mxu0
    %v10870 = vadd.f32 0.0, %v10869
    %v10871 = vpop.f32.mrb[0].mxu0
    %v10872 = vpop.f32.mrb[0].mxu0
    %v10873 = vadd.f32 0.0, %v10872
    %v10874 = vpop.f32.mrb[0].mxu0
    %10875 = vmatprep.mubr.bf16.mxu0 0
    %10876 = vmatmul.mubr.bf16.gmra.mrb[0].mxu0 %v10640
    %v10877 = vpop.f32.mrb[0].mxu0
    %v10878 = vadd.f32 0.0, %v10877
    %v10879 = vpop.f32.mrb[0].mxu0
    %v10880 = vpop.f32.mrb[0].mxu0
    %v10881 = vadd.f32 0.0, %v10880
    %v10882 = vpop.f32.mrb[0].mxu0
    %10883 = vmatprep.mubr.bf16.mxu0 0
    %10884 = vmatmul.mubr.bf16.gmra.mrb[0].mxu0 %v10643
    %v10885 = vpop.f32.mrb[0].mxu0
    %v10886 = vadd.f32 0.0, %v10885
    %v10887 = vpop.f32.mrb[0].mxu0
    %v10888 = vpop.f32.mrb[0].mxu0
    %v10889 = vadd.f32 0.0, %v10888
    %v10890 = vpop.f32.mrb[0].mxu0
    %10891 = vmatprep.mubr.bf16.mxu0 0
    %10892 = vmatmul.mubr.bf16.gmra.mrb[0].mxu0 %v10646
    %v10893 = vpop.f32.mrb[0].mxu0
    %v10894 = vadd.f32 0.0, %v10893
    %v10895 = vpop.f32.mrb[0].mxu0
    %v10896 = vpop.f32.mrb[0].mxu0
    %v10897 = vadd.f32 0.0, %v10896
    %v10898 = vpop.f32.mrb[0].mxu0
    %10899 = vmatprep.mubr.bf16.mxu0 0
    %10900 = vmatmul.mubr.bf16.gmra.mrb[0].mxu0 %v10649
    %v10901 = vpop.f32.mrb[0].mxu0
    %v10902 = vadd.f32 0.0, %v10901
    %v10903 = vpop.f32.mrb[0].mxu0
    %v10904 = vpop.f32.mrb[0].mxu0
    %v10905 = vadd.f32 0.0, %v10904
    %v10906 = vpop.f32.mrb[0].mxu0
    %10907 = vmatprep.mubr.bf16.mxu0 0
    %10908 = vmatmul.mubr.bf16.gmra.mrb[0].mxu0 %v10652
    %v10909 = vpop.f32.mrb[0].mxu0
    %v10910 = vadd.f32 0.0, %v10909
    %v10911 = vpop.f32.mrb[0].mxu0
    %v10912 = vpop.f32.mrb[0].mxu0
    %v10913 = vadd.f32 0.0, %v10912
    %v10914 = vpop.f32.mrb[0].mxu0
    %10915 = vmatprep.mubr.bf16.mxu0 0
    %10916 = vmatmul.mubr.bf16.gmra.mrb[0].mxu0 %v10655
    %v10917 = vpop.f32.mrb[0].mxu0
    %v10918 = vadd.f32 0.0, %v10917
    %v10919 = vpop.f32.mrb[0].mxu0
    %v10920 = vpop.f32.mrb[0].mxu0
    %v10921 = vadd.f32 0.0, %v10920
    %v10922 = vpop.f32.mrb[0].mxu0
    %10923 = vmatprep.mubr.bf16.mxu0 0
    %10924 = vmatmul.mubr.bf16.gmra.mrb[0].mxu0 %v10658
    %v10925 = vpop.f32.mrb[0].mxu0
    %v10926 = vadd.f32 0.0, %v10925
    %v10927 = vpop.f32.mrb[0].mxu0
    %v10928 = vpop.f32.mrb[0].mxu0
    %v10929 = vadd.f32 0.0, %v10928
    %v10930 = vpop.f32.mrb[0].mxu0
    %10931 = vmatprep.mubr.bf16.mxu0 0
    %10932 = vmatmul.mubr.bf16.gmra.mrb[0].mxu0 %v10661
    %v10933 = vpop.f32.mrb[0].mxu0
    %v10934 = vadd.f32 0.0, %v10933
    %v10935 = vpop.f32.mrb[0].mxu0
    %v10936 = vpop.f32.mrb[0].mxu0
    %v10937 = vadd.f32 0.0, %v10936
    %v10938 = vpop.f32.mrb[0].mxu0
    %10939 = vmatprep.mubr.bf16.mxu0 0
    %10940 = vmatmul.mubr.bf16.gmra.mrb[0].mxu0 %v10664
    %v10941 = vpop.f32.mrb[0].mxu0
    %v10942 = vadd.f32 0.0, %v10941
    %v10943 = vpop.f32.mrb[0].mxu0
    %v10944 = vpop.f32.mrb[0].mxu0
    %v10945 = vadd.f32 0.0, %v10944
    %v10946 = vpop.f32.mrb[0].mxu0
    %10947 = vmatprep.mubr.bf16.mxu0 0
    %10948 = vmatmul.mubr.bf16.gmra.mrb[0].mxu0 %v10667
    %v10949 = vpop.f32.mrb[0].mxu0
    %v10950 = vadd.f32 0.0, %v10949
    %v10951 = vpop.f32.mrb[0].mxu0
    %v10952 = vpop.f32.mrb[0].mxu0
    %v10953 = vadd.f32 0.0, %v10952
    %v10954 = vpop.f32.mrb[0].mxu0
    %10955 = vmatprep.mubr.bf16.mxu0 0
    %10956 = vmatmul.mubr.bf16.gmra.mrb[0].mxu0 %v10670
    %v10957 = vpop.f32.mrb[0].mxu0
    %v10958 = vadd.f32 0.0, %v10957
    %v10959 = vpop.f32.mrb[0].mxu0
    %v10960 = vpop.f32.mrb[0].mxu0
    %v10961 = vadd.f32 0.0, %v10960
    %v10962 = vpop.f32.mrb[0].mxu0
    %10963 = vdwg.mxu0
    %v10964 = vlaneseq
    %v10965 = vshrl.u32 %v10964, 7
    %v10966 = vsub.s32 0, %v10965
    %v10967 = vrot.slane %v148, %v10966
    %v10968 = vmul.f32 %v10710, %v10967
    %v10969 = vmul.f32 %v10713, %v10967
    %v10970 = vmul.f32 %v10718, %v10967
    %v10971 = vmul.f32 %v10721, %v10967
    %v10972 = vmul.f32 %v10726, %v10967
    %v10973 = vmul.f32 %v10729, %v10967
    %v10974 = vmul.f32 %v10734, %v10967
    %v10975 = vmul.f32 %v10737, %v10967
    %v10976 = vmul.f32 %v10742, %v10967
    %v10977 = vmul.f32 %v10745, %v10967
    %v10978 = vmul.f32 %v10750, %v10967
    %v10979 = vmul.f32 %v10753, %v10967
    %v10980 = vmul.f32 %v10758, %v10967
    %v10981 = vmul.f32 %v10761, %v10967
    %v10982 = vmul.f32 %v10766, %v10967
    %v10983 = vmul.f32 %v10769, %v10967
    %v10984 = vmul.f32 %v10774, %v10967
    %v10985 = vmul.f32 %v10777, %v10967
    %v10986 = vmul.f32 %v10782, %v10967
    %v10987 = vmul.f32 %v10785, %v10967
    %v10988 = vmul.f32 %v10790, %v10967
    %v10989 = vmul.f32 %v10793, %v10967
    %v10990 = vmul.f32 %v10798, %v10967
    %v10991 = vmul.f32 %v10801, %v10967
    %v10992 = vmul.f32 %v10806, %v10967
    %v10993 = vmul.f32 %v10809, %v10967
    %v10994 = vmul.f32 %v10814, %v10967
    %v10995 = vmul.f32 %v10817, %v10967
    %v10996 = vmul.f32 %v10822, %v10967
    %v10997 = vmul.f32 %v10825, %v10967
    %v10998 = vmul.f32 %v10830, %v10967
    %v10999 = vmul.f32 %v10833, %v10967
    %v11000 = vmul.f32 %v10838, %v10967
    %v11001 = vmul.f32 %v10841, %v10967
    %v11002 = vmul.f32 %v10846, %v10967
    %v11003 = vmul.f32 %v10849, %v10967
    %v11004 = vmul.f32 %v10854, %v10967
    %v11005 = vmul.f32 %v10857, %v10967
    %v11006 = vmul.f32 %v10862, %v10967
    %v11007 = vmul.f32 %v10865, %v10967
    %v11008 = vmul.f32 %v10870, %v10967
    %v11009 = vmul.f32 %v10873, %v10967
    %v11010 = vmul.f32 %v10878, %v10967
    %v11011 = vmul.f32 %v10881, %v10967
    %v11012 = vmul.f32 %v10886, %v10967
    %v11013 = vmul.f32 %v10889, %v10967
    %v11014 = vmul.f32 %v10894, %v10967
    %v11015 = vmul.f32 %v10897, %v10967
    %v11016 = vmul.f32 %v10902, %v10967
    %v11017 = vmul.f32 %v10905, %v10967
    %v11018 = vmul.f32 %v10910, %v10967
    %v11019 = vmul.f32 %v10913, %v10967
    %v11020 = vmul.f32 %v10918, %v10967
    %v11021 = vmul.f32 %v10921, %v10967
    %v11022 = vmul.f32 %v10926, %v10967
    %v11023 = vmul.f32 %v10929, %v10967
    %v11024 = vmul.f32 %v10934, %v10967
    %v11025 = vmul.f32 %v10937, %v10967
    %v11026 = vmul.f32 %v10942, %v10967
    %v11027 = vmul.f32 %v10945, %v10967
    %v11028 = vmul.f32 %v10950, %v10967
    %v11029 = vmul.f32 %v10953, %v10967
    %v11030 = vmul.f32 %v10958, %v10967
    %v11031 = vmul.f32 %v10961, %v10967
    %v11032 = vlaneseq
    %v11033 = vshrl.u32 %v11032, 7
    %v11034 = vsub.s32 0, %v11033
    %v11035 = vrot.slane %v149, %v11034
    %v11036 = vadd.f32 %v10968, %v11035
    %v11037 = vadd.f32 %v10969, %v11035
    %v11038 = vadd.f32 %v10970, %v11035
    %v11039 = vadd.f32 %v10971, %v11035
    %v11040 = vadd.f32 %v10972, %v11035
    %v11041 = vadd.f32 %v10973, %v11035
    %v11042 = vadd.f32 %v10974, %v11035
    %v11043 = vadd.f32 %v10975, %v11035
    %v11044 = vadd.f32 %v10976, %v11035
    %v11045 = vadd.f32 %v10977, %v11035
    %v11046 = vadd.f32 %v10978, %v11035
    %v11047 = vadd.f32 %v10979, %v11035
    %v11048 = vadd.f32 %v10980, %v11035
    %v11049 = vadd.f32 %v10981, %v11035
    %v11050 = vadd.f32 %v10982, %v11035
    %v11051 = vadd.f32 %v10983, %v11035
    %v11052 = vadd.f32 %v10984, %v11035
    %v11053 = vadd.f32 %v10985, %v11035
    %v11054 = vadd.f32 %v10986, %v11035
    %v11055 = vadd.f32 %v10987, %v11035
    %v11056 = vadd.f32 %v10988, %v11035
    %v11057 = vadd.f32 %v10989, %v11035
    %v11058 = vadd.f32 %v10990, %v11035
    %v11059 = vadd.f32 %v10991, %v11035
    %v11060 = vadd.f32 %v10992, %v11035
    %v11061 = vadd.f32 %v10993, %v11035
    %v11062 = vadd.f32 %v10994, %v11035
    %v11063 = vadd.f32 %v10995, %v11035
    %v11064 = vadd.f32 %v10996, %v11035
    %v11065 = vadd.f32 %v10997, %v11035
    %v11066 = vadd.f32 %v10998, %v11035
    %v11067 = vadd.f32 %v10999, %v11035
    %v11068 = vadd.f32 %v11000, %v11035
    %v11069 = vadd.f32 %v11001, %v11035
    %v11070 = vadd.f32 %v11002, %v11035
    %v11071 = vadd.f32 %v11003, %v11035
    %v11072 = vadd.f32 %v11004, %v11035
    %v11073 = vadd.f32 %v11005, %v11035
    %v11074 = vadd.f32 %v11006, %v11035
    %v11075 = vadd.f32 %v11007, %v11035
    %v11076 = vadd.f32 %v11008, %v11035
    %v11077 = vadd.f32 %v11009, %v11035
    %v11078 = vadd.f32 %v11010, %v11035
    %v11079 = vadd.f32 %v11011, %v11035
    %v11080 = vadd.f32 %v11012, %v11035
    %v11081 = vadd.f32 %v11013, %v11035
    %v11082 = vadd.f32 %v11014, %v11035
    %v11083 = vadd.f32 %v11015, %v11035
    %v11084 = vadd.f32 %v11016, %v11035
    %v11085 = vadd.f32 %v11017, %v11035
    %v11086 = vadd.f32 %v11018, %v11035
    %v11087 = vadd.f32 %v11019, %v11035
    %v11088 = vadd.f32 %v11020, %v11035
    %v11089 = vadd.f32 %v11021, %v11035
    %v11090 = vadd.f32 %v11022, %v11035
    %v11091 = vadd.f32 %v11023, %v11035
    %v11092 = vadd.f32 %v11024, %v11035
    %v11093 = vadd.f32 %v11025, %v11035
    %v11094 = vadd.f32 %v11026, %v11035
    %v11095 = vadd.f32 %v11027, %v11035
    %v11096 = vadd.f32 %v11028, %v11035
    %v11097 = vadd.f32 %v11029, %v11035
    %v11098 = vadd.f32 %v11030, %v11035
    %v11099 = vadd.f32 %v11031, %v11035
    %v11100 = vld [vmem:[#allocation4] sm:$0xf]
    %v11101 = vld [vmem:[#allocation4 + $0x4] sm:$0xf]
    %v11102 = vld [vmem:[#allocation4 + $0x8] sm:$0xf]
    %v11103 = vld [vmem:[#allocation4 + $0xc] sm:$0xf]
    %v11104 = vld [vmem:[#allocation4 + $0x10] sm:$0xf]
    %v11105 = vld [vmem:[#allocation4 + $0x14] sm:$0xf]
    %v11106 = vld [vmem:[#allocation4 + $0x18] sm:$0xf]
    %v11107 = vld [vmem:[#allocation4 + $0x1c] sm:$0xf]
    %v11108 = vld [vmem:[#allocation4 + $0x20] sm:$0xf]
    %v11109 = vld [vmem:[#allocation4 + $0x24] sm:$0xf]
    %v11110 = vld [vmem:[#allocation4 + $0x28] sm:$0xf]
    %v11111 = vld [vmem:[#allocation4 + $0x2c] sm:$0xf]
    %v11112 = vld [vmem:[#allocation4 + $0x30] sm:$0xf]
    %v11113 = vld [vmem:[#allocation4 + $0x34] sm:$0xf]
    %v11114 = vld [vmem:[#allocation4 + $0x38] sm:$0xf]
    %v11115 = vld [vmem:[#allocation4 + $0x3c] sm:$0xf]
    %v11116 = vld [vmem:[#allocation4 + $0x40] sm:$0xf]
    %v11117 = vld [vmem:[#allocation4 + $0x44] sm:$0xf]
    %v11118 = vld [vmem:[#allocation4 + $0x48] sm:$0xf]
    %v11119 = vld [vmem:[#allocation4 + $0x4c] sm:$0xf]
    %v11120 = vld [vmem:[#allocation4 + $0x50] sm:$0xf]
    %v11121 = vld [vmem:[#allocation4 + $0x54] sm:$0xf]
    %v11122 = vld [vmem:[#allocation4 + $0x58] sm:$0xf]
    %v11123 = vld [vmem:[#allocation4 + $0x5c] sm:$0xf]
    %v11124 = vld [vmem:[#allocation4 + $0x60] sm:$0xf]
    %v11125 = vld [vmem:[#allocation4 + $0x64] sm:$0xf]
    %v11126 = vld [vmem:[#allocation4 + $0x68] sm:$0xf]
    %v11127 = vld [vmem:[#allocation4 + $0x6c] sm:$0xf]
    %v11128 = vld [vmem:[#allocation4 + $0x70] sm:$0xf]
    %v11129 = vld [vmem:[#allocation4 + $0x74] sm:$0xf]
    %v11130 = vld [vmem:[#allocation4 + $0x78] sm:$0xf]
    %v11131 = vld [vmem:[#allocation4 + $0x7c] sm:$0xf]
    %v11132 = vld [vmem:[#allocation4 + $0x80] sm:$0xf]
    %v11133 = vld [vmem:[#allocation4 + $0x84] sm:$0xf]
    %v11134 = vld [vmem:[#allocation4 + $0x88] sm:$0xf]
    %v11135 = vld [vmem:[#allocation4 + $0x8c] sm:$0xf]
    %v11136 = vld [vmem:[#allocation4 + $0x90] sm:$0xf]
    %v11137 = vld [vmem:[#allocation4 + $0x94] sm:$0xf]
    %v11138 = vld [vmem:[#allocation4 + $0x98] sm:$0xf]
    %v11139 = vld [vmem:[#allocation4 + $0x9c] sm:$0xf]
    %v11140 = vld [vmem:[#allocation4 + $0xa0] sm:$0xf]
    %v11141 = vld [vmem:[#allocation4 + $0xa4] sm:$0xf]
    %v11142 = vld [vmem:[#allocation4 + $0xa8] sm:$0xf]
    %v11143 = vld [vmem:[#allocation4 + $0xac] sm:$0xf]
    %v11144 = vld [vmem:[#allocation4 + $0xb0] sm:$0xf]
    %v11145 = vld [vmem:[#allocation4 + $0xb4] sm:$0xf]
    %v11146 = vld [vmem:[#allocation4 + $0xb8] sm:$0xf]
    %v11147 = vld [vmem:[#allocation4 + $0xbc] sm:$0xf]
    %v11148 = vld [vmem:[#allocation4 + $0xc0] sm:$0xf]
    %v11149 = vld [vmem:[#allocation4 + $0xc4] sm:$0xf]
    %v11150 = vld [vmem:[#allocation4 + $0xc8] sm:$0xf]
    %v11151 = vld [vmem:[#allocation4 + $0xcc] sm:$0xf]
    %v11152 = vld [vmem:[#allocation4 + $0xd0] sm:$0xf]
    %v11153 = vld [vmem:[#allocation4 + $0xd4] sm:$0xf]
    %v11154 = vld [vmem:[#allocation4 + $0xd8] sm:$0xf]
    %v11155 = vld [vmem:[#allocation4 + $0xdc] sm:$0xf]
    %v11156 = vld [vmem:[#allocation4 + $0xe0] sm:$0xf]
    %v11157 = vld [vmem:[#allocation4 + $0xe4] sm:$0xf]
    %v11158 = vld [vmem:[#allocation4 + $0xe8] sm:$0xf]
    %v11159 = vld [vmem:[#allocation4 + $0xec] sm:$0xf]
    %v11160 = vld [vmem:[#allocation4 + $0xf0] sm:$0xf]
    %v11161 = vld [vmem:[#allocation4 + $0xf4] sm:$0xf]
    %v11162 = vld [vmem:[#allocation4 + $0xf8] sm:$0xf]
    %v11163 = vld [vmem:[#allocation4 + $0xfc] sm:$0xf]
    %v11164 = vunpack.c.l.bf16 %v11100
    %v11165 = vunpack.c.l.bf16 %v11101
    %v11166 = vunpack.c.l.bf16 %v11102
    %v11167 = vunpack.c.l.bf16 %v11103
    %v11168 = vunpack.c.l.bf16 %v11104
    %v11169 = vunpack.c.l.bf16 %v11105
    %v11170 = vunpack.c.l.bf16 %v11106
    %v11171 = vunpack.c.l.bf16 %v11107
    %v11172 = vunpack.c.l.bf16 %v11108
    %v11173 = vunpack.c.l.bf16 %v11109
    %v11174 = vunpack.c.l.bf16 %v11110
    %v11175 = vunpack.c.l.bf16 %v11111
    %v11176 = vunpack.c.l.bf16 %v11112
    %v11177 = vunpack.c.l.bf16 %v11113
    %v11178 = vunpack.c.l.bf16 %v11114
    %v11179 = vunpack.c.l.bf16 %v11115
    %v11180 = vunpack.c.l.bf16 %v11116
    %v11181 = vunpack.c.l.bf16 %v11117
    %v11182 = vunpack.c.l.bf16 %v11118
    %v11183 = vunpack.c.l.bf16 %v11119
    %v11184 = vunpack.c.l.bf16 %v11120
    %v11185 = vunpack.c.l.bf16 %v11121
    %v11186 = vunpack.c.l.bf16 %v11122
    %v11187 = vunpack.c.l.bf16 %v11123
    %v11188 = vunpack.c.l.bf16 %v11124
    %v11189 = vunpack.c.l.bf16 %v11125
    %v11190 = vunpack.c.l.bf16 %v11126
    %v11191 = vunpack.c.l.bf16 %v11127
    %v11192 = vunpack.c.l.bf16 %v11128
    %v11193 = vunpack.c.l.bf16 %v11129
    %v11194 = vunpack.c.l.bf16 %v11130
    %v11195 = vunpack.c.l.bf16 %v11131
    %v11196 = vunpack.c.l.bf16 %v11132
    %v11197 = vunpack.c.l.bf16 %v11133
    %v11198 = vunpack.c.l.bf16 %v11134
    %v11199 = vunpack.c.l.bf16 %v11135
    %v11200 = vunpack.c.l.bf16 %v11136
    %v11201 = vunpack.c.l.bf16 %v11137
    %v11202 = vunpack.c.l.bf16 %v11138
    %v11203 = vunpack.c.l.bf16 %v11139
    %v11204 = vunpack.c.l.bf16 %v11140
    %v11205 = vunpack.c.l.bf16 %v11141
    %v11206 = vunpack.c.l.bf16 %v11142
    %v11207 = vunpack.c.l.bf16 %v11143
    %v11208 = vunpack.c.l.bf16 %v11144
    %v11209 = vunpack.c.l.bf16 %v11145
    %v11210 = vunpack.c.l.bf16 %v11146
    %v11211 = vunpack.c.l.bf16 %v11147
    %v11212 = vunpack.c.l.bf16 %v11148
    %v11213 = vunpack.c.l.bf16 %v11149
    %v11214 = vunpack.c.l.bf16 %v11150
    %v11215 = vunpack.c.l.bf16 %v11151
    %v11216 = vunpack.c.l.bf16 %v11152
    %v11217 = vunpack.c.l.bf16 %v11153
    %v11218 = vunpack.c.l.bf16 %v11154
    %v11219 = vunpack.c.l.bf16 %v11155
    %v11220 = vunpack.c.l.bf16 %v11156
    %v11221 = vunpack.c.l.bf16 %v11157
    %v11222 = vunpack.c.l.bf16 %v11158
    %v11223 = vunpack.c.l.bf16 %v11159
    %v11224 = vunpack.c.l.bf16 %v11160
    %v11225 = vunpack.c.l.bf16 %v11161
    %v11226 = vunpack.c.l.bf16 %v11162
    %v11227 = vunpack.c.l.bf16 %v11163
    %v11228 = vadd.f32 %v11036, %v11164
    %v11229 = vadd.f32 %v11037, %v11165
    %v11230 = vadd.f32 %v11038, %v11166
    %v11231 = vadd.f32 %v11039, %v11167
    %v11232 = vadd.f32 %v11040, %v11168
    %v11233 = vadd.f32 %v11041, %v11169
    %v11234 = vadd.f32 %v11042, %v11170
    %v11235 = vadd.f32 %v11043, %v11171
    %v11236 = vadd.f32 %v11044, %v11172
    %v11237 = vadd.f32 %v11045, %v11173
    %v11238 = vadd.f32 %v11046, %v11174
    %v11239 = vadd.f32 %v11047, %v11175
    %v11240 = vadd.f32 %v11048, %v11176
    %v11241 = vadd.f32 %v11049, %v11177
    %v11242 = vadd.f32 %v11050, %v11178
    %v11243 = vadd.f32 %v11051, %v11179
    %v11244 = vadd.f32 %v11052, %v11180
    %v11245 = vadd.f32 %v11053, %v11181
    %v11246 = vadd.f32 %v11054, %v11182
    %v11247 = vadd.f32 %v11055, %v11183
    %v11248 = vadd.f32 %v11056, %v11184
    %v11249 = vadd.f32 %v11057, %v11185
    %v11250 = vadd.f32 %v11058, %v11186
    %v11251 = vadd.f32 %v11059, %v11187
    %v11252 = vadd.f32 %v11060, %v11188
    %v11253 = vadd.f32 %v11061, %v11189
    %v11254 = vadd.f32 %v11062, %v11190
    %v11255 = vadd.f32 %v11063, %v11191
    %v11256 = vadd.f32 %v11064, %v11192
    %v11257 = vadd.f32 %v11065, %v11193
    %v11258 = vadd.f32 %v11066, %v11194
    %v11259 = vadd.f32 %v11067, %v11195
    %v11260 = vadd.f32 %v11068, %v11196
    %v11261 = vadd.f32 %v11069, %v11197
    %v11262 = vadd.f32 %v11070, %v11198
    %v11263 = vadd.f32 %v11071, %v11199
    %v11264 = vadd.f32 %v11072, %v11200
    %v11265 = vadd.f32 %v11073, %v11201
    %v11266 = vadd.f32 %v11074, %v11202
    %v11267 = vadd.f32 %v11075, %v11203
    %v11268 = vadd.f32 %v11076, %v11204
    %v11269 = vadd.f32 %v11077, %v11205
    %v11270 = vadd.f32 %v11078, %v11206
    %v11271 = vadd.f32 %v11079, %v11207
    %v11272 = vadd.f32 %v11080, %v11208
    %v11273 = vadd.f32 %v11081, %v11209
    %v11274 = vadd.f32 %v11082, %v11210
    %v11275 = vadd.f32 %v11083, %v11211
    %v11276 = vadd.f32 %v11084, %v11212
    %v11277 = vadd.f32 %v11085, %v11213
    %v11278 = vadd.f32 %v11086, %v11214
    %v11279 = vadd.f32 %v11087, %v11215
    %v11280 = vadd.f32 %v11088, %v11216
    %v11281 = vadd.f32 %v11089, %v11217
    %v11282 = vadd.f32 %v11090, %v11218
    %v11283 = vadd.f32 %v11091, %v11219
    %v11284 = vadd.f32 %v11092, %v11220
    %v11285 = vadd.f32 %v11093, %v11221
    %v11286 = vadd.f32 %v11094, %v11222
    %v11287 = vadd.f32 %v11095, %v11223
    %v11288 = vadd.f32 %v11096, %v11224
    %v11289 = vadd.f32 %v11097, %v11225
    %v11290 = vadd.f32 %v11098, %v11226
    %v11291 = vadd.f32 %v11099, %v11227
    %v11292 = vmax.f32 %v11228, 0.0
    %v11293 = vmax.f32 %v11229, 0.0
    %v11294 = vmax.f32 %v11230, 0.0
    %v11295 = vmax.f32 %v11231, 0.0
    %v11296 = vmax.f32 %v11232, 0.0
    %v11297 = vmax.f32 %v11233, 0.0
    %v11298 = vmax.f32 %v11234, 0.0
    %v11299 = vmax.f32 %v11235, 0.0
    %v11300 = vmax.f32 %v11236, 0.0
    %v11301 = vmax.f32 %v11237, 0.0
    %v11302 = vmax.f32 %v11238, 0.0
    %v11303 = vmax.f32 %v11239, 0.0
    %v11304 = vmax.f32 %v11240, 0.0
    %v11305 = vmax.f32 %v11241, 0.0
    %v11306 = vmax.f32 %v11242, 0.0
    %v11307 = vmax.f32 %v11243, 0.0
    %v11308 = vmax.f32 %v11244, 0.0
    %v11309 = vmax.f32 %v11245, 0.0
    %v11310 = vmax.f32 %v11246, 0.0
    %v11311 = vmax.f32 %v11247, 0.0
    %v11312 = vmax.f32 %v11248, 0.0
    %v11313 = vmax.f32 %v11249, 0.0
    %v11314 = vmax.f32 %v11250, 0.0
    %v11315 = vmax.f32 %v11251, 0.0
    %v11316 = vmax.f32 %v11252, 0.0
    %v11317 = vmax.f32 %v11253, 0.0
    %v11318 = vmax.f32 %v11254, 0.0
    %v11319 = vmax.f32 %v11255, 0.0
    %v11320 = vmax.f32 %v11256, 0.0
    %v11321 = vmax.f32 %v11257, 0.0
    %v11322 = vmax.f32 %v11258, 0.0
    %v11323 = vmax.f32 %v11259, 0.0
    %v11324 = vmax.f32 %v11260, 0.0
    %v11325 = vmax.f32 %v11261, 0.0
    %v11326 = vmax.f32 %v11262, 0.0
    %v11327 = vmax.f32 %v11263, 0.0
    %v11328 = vmax.f32 %v11264, 0.0
    %v11329 = vmax.f32 %v11265, 0.0
    %v11330 = vmax.f32 %v11266, 0.0
    %v11331 = vmax.f32 %v11267, 0.0
    %v11332 = vmax.f32 %v11268, 0.0
    %v11333 = vmax.f32 %v11269, 0.0
    %v11334 = vmax.f32 %v11270, 0.0
    %v11335 = vmax.f32 %v11271, 0.0
    %v11336 = vmax.f32 %v11272, 0.0
    %v11337 = vmax.f32 %v11273, 0.0
    %v11338 = vmax.f32 %v11274, 0.0
    %v11339 = vmax.f32 %v11275, 0.0
    %v11340 = vmax.f32 %v11276, 0.0
    %v11341 = vmax.f32 %v11277, 0.0
    %v11342 = vmax.f32 %v11278, 0.0
    %v11343 = vmax.f32 %v11279, 0.0
    %v11344 = vmax.f32 %v11280, 0.0
    %v11345 = vmax.f32 %v11281, 0.0
    %v11346 = vmax.f32 %v11282, 0.0
    %v11347 = vmax.f32 %v11283, 0.0
    %v11348 = vmax.f32 %v11284, 0.0
    %v11349 = vmax.f32 %v11285, 0.0
    %v11350 = vmax.f32 %v11286, 0.0
    %v11351 = vmax.f32 %v11287, 0.0
    %v11352 = vmax.f32 %v11288, 0.0
    %v11353 = vmax.f32 %v11289, 0.0
    %v11354 = vmax.f32 %v11290, 0.0
    %v11355 = vmax.f32 %v11291, 0.0
    %v11356 = vpack.c.bf16 %v11293, %v11292
    %v11357 = vpack.c.bf16 %v11295, %v11294
    %v11358 = vpack.c.bf16 %v11297, %v11296
    %v11359 = vpack.c.bf16 %v11299, %v11298
    %v11360 = vpack.c.bf16 %v11301, %v11300
    %v11361 = vpack.c.bf16 %v11303, %v11302
    %v11362 = vpack.c.bf16 %v11305, %v11304
    %v11363 = vpack.c.bf16 %v11307, %v11306
    %v11364 = vpack.c.bf16 %v11309, %v11308
    %v11365 = vpack.c.bf16 %v11311, %v11310
    %v11366 = vpack.c.bf16 %v11313, %v11312
    %v11367 = vpack.c.bf16 %v11315, %v11314
    %v11368 = vpack.c.bf16 %v11317, %v11316
    %v11369 = vpack.c.bf16 %v11319, %v11318
    %v11370 = vpack.c.bf16 %v11321, %v11320
    %v11371 = vpack.c.bf16 %v11323, %v11322
    %v11372 = vpack.c.bf16 %v11325, %v11324
    %v11373 = vpack.c.bf16 %v11327, %v11326
    %v11374 = vpack.c.bf16 %v11329, %v11328
    %v11375 = vpack.c.bf16 %v11331, %v11330
    %v11376 = vpack.c.bf16 %v11333, %v11332
    %v11377 = vpack.c.bf16 %v11335, %v11334
    %v11378 = vpack.c.bf16 %v11337, %v11336
    %v11379 = vpack.c.bf16 %v11339, %v11338
    %v11380 = vpack.c.bf16 %v11341, %v11340
    %v11381 = vpack.c.bf16 %v11343, %v11342
    %v11382 = vpack.c.bf16 %v11345, %v11344
    %v11383 = vpack.c.bf16 %v11347, %v11346
    %v11384 = vpack.c.bf16 %v11349, %v11348
    %v11385 = vpack.c.bf16 %v11351, %v11350
    %v11386 = vpack.c.bf16 %v11353, %v11352
    %v11387 = vpack.c.bf16 %v11355, %v11354
    %v11420 = vunpack.c.l.b16 %v11356
    %v11421 = vunpack.c.h.b16 %v11356
    %v11422 = vunpack.c.l.b16 %v11357
    %v11423 = vunpack.c.h.b16 %v11357
    %v11424 = vunpack.c.l.b16 %v11358
    %v11425 = vunpack.c.h.b16 %v11358
    %v11426 = vunpack.c.l.b16 %v11359
    %v11427 = vunpack.c.h.b16 %v11359
    %v11428 = vunpack.c.l.b16 %v11360
    %v11429 = vunpack.c.h.b16 %v11360
    %v11430 = vunpack.c.l.b16 %v11361
    %v11431 = vunpack.c.h.b16 %v11361
    %v11432 = vunpack.c.l.b16 %v11362
    %v11433 = vunpack.c.h.b16 %v11362
    %v11434 = vunpack.c.l.b16 %v11363
    %v11435 = vunpack.c.h.b16 %v11363
    %v11436 = vunpack.c.l.b16 %v11364
    %v11437 = vunpack.c.h.b16 %v11364
    %v11438 = vunpack.c.l.b16 %v11365
    %v11439 = vunpack.c.h.b16 %v11365
    %v11440 = vunpack.c.l.b16 %v11366
    %v11441 = vunpack.c.h.b16 %v11366
    %v11442 = vunpack.c.l.b16 %v11367
    %v11443 = vunpack.c.h.b16 %v11367
    %v11444 = vunpack.c.l.b16 %v11368
    %v11445 = vunpack.c.h.b16 %v11368
    %v11446 = vunpack.c.l.b16 %v11369
    %v11447 = vunpack.c.h.b16 %v11369
    %v11448 = vunpack.c.l.b16 %v11370
    %v11449 = vunpack.c.h.b16 %v11370
    %v11450 = vunpack.c.l.b16 %v11371
    %v11451 = vunpack.c.h.b16 %v11371
    %v11452 = vunpack.c.l.b16 %v11372
    %v11453 = vunpack.c.h.b16 %v11372
    %v11454 = vunpack.c.l.b16 %v11373
    %v11455 = vunpack.c.h.b16 %v11373
    %v11456 = vunpack.c.l.b16 %v11374
    %v11457 = vunpack.c.h.b16 %v11374
    %v11458 = vunpack.c.l.b16 %v11375
    %v11459 = vunpack.c.h.b16 %v11375
    %v11460 = vunpack.c.l.b16 %v11376
    %v11461 = vunpack.c.h.b16 %v11376
    %v11462 = vunpack.c.l.b16 %v11377
    %v11463 = vunpack.c.h.b16 %v11377
    %v11464 = vunpack.c.l.b16 %v11378
    %v11465 = vunpack.c.h.b16 %v11378
    %v11466 = vunpack.c.l.b16 %v11379
    %v11467 = vunpack.c.h.b16 %v11379
    %v11468 = vunpack.c.l.b16 %v11380
    %v11469 = vunpack.c.h.b16 %v11380
    %v11470 = vunpack.c.l.b16 %v11381
    %v11471 = vunpack.c.h.b16 %v11381
    %v11472 = vunpack.c.l.b16 %v11382
    %v11473 = vunpack.c.h.b16 %v11382
    %v11474 = vunpack.c.l.b16 %v11383
    %v11475 = vunpack.c.h.b16 %v11383
    %v11476 = vunpack.c.l.b16 %v11384
    %v11477 = vunpack.c.h.b16 %v11384
    %v11478 = vunpack.c.l.b16 %v11385
    %v11479 = vunpack.c.h.b16 %v11385
    %v11480 = vunpack.c.l.b16 %v11386
    %v11481 = vunpack.c.h.b16 %v11386
    %v11482 = vunpack.c.l.b16 %v11387
    %v11483 = vunpack.c.h.b16 %v11387
    %v11484 = vpack.c.b16 %v11420, %v11420
    %v11485 = vpack.c.b16 %v11421, %v11421
    %v11486 = vpack.c.b16 %v11422, %v11422
    %v11487 = vpack.c.b16 %v11423, %v11423
    %v11488 = vpack.c.b16 %v11424, %v11424
    %v11489 = vpack.c.b16 %v11425, %v11425
    %v11490 = vpack.c.b16 %v11426, %v11426
    %v11491 = vpack.c.b16 %v11427, %v11427
    %v11492 = vpack.c.b16 %v11428, %v11428
    %v11493 = vpack.c.b16 %v11429, %v11429
    %v11494 = vpack.c.b16 %v11430, %v11430
    %v11495 = vpack.c.b16 %v11431, %v11431
    %v11496 = vpack.c.b16 %v11432, %v11432
    %v11497 = vpack.c.b16 %v11433, %v11433
    %v11498 = vpack.c.b16 %v11434, %v11434
    %v11499 = vpack.c.b16 %v11435, %v11435
    %v11500 = vpack.c.b16 %v11436, %v11436
    %v11501 = vpack.c.b16 %v11437, %v11437
    %v11502 = vpack.c.b16 %v11438, %v11438
    %v11503 = vpack.c.b16 %v11439, %v11439
    %v11504 = vpack.c.b16 %v11440, %v11440
    %v11505 = vpack.c.b16 %v11441, %v11441
    %v11506 = vpack.c.b16 %v11442, %v11442
    %v11507 = vpack.c.b16 %v11443, %v11443
    %v11508 = vpack.c.b16 %v11444, %v11444
    %v11509 = vpack.c.b16 %v11445, %v11445
    %v11510 = vpack.c.b16 %v11446, %v11446
    %v11511 = vpack.c.b16 %v11447, %v11447
    %v11512 = vpack.c.b16 %v11448, %v11448
    %v11513 = vpack.c.b16 %v11449, %v11449
    %v11514 = vpack.c.b16 %v11450, %v11450
    %v11515 = vpack.c.b16 %v11451, %v11451
    %v11516 = vpack.c.b16 %v11452, %v11452
    %v11517 = vpack.c.b16 %v11453, %v11453
    %v11518 = vpack.c.b16 %v11454, %v11454
    %v11519 = vpack.c.b16 %v11455, %v11455
    %v11520 = vpack.c.b16 %v11456, %v11456
    %v11521 = vpack.c.b16 %v11457, %v11457
    %v11522 = vpack.c.b16 %v11458, %v11458
    %v11523 = vpack.c.b16 %v11459, %v11459
    %v11524 = vpack.c.b16 %v11460, %v11460
    %v11525 = vpack.c.b16 %v11461, %v11461
    %v11526 = vpack.c.b16 %v11462, %v11462
    %v11527 = vpack.c.b16 %v11463, %v11463
    %v11528 = vpack.c.b16 %v11464, %v11464
    %v11529 = vpack.c.b16 %v11465, %v11465
    %v11530 = vpack.c.b16 %v11466, %v11466
    %v11531 = vpack.c.b16 %v11467, %v11467
    %v11532 = vpack.c.b16 %v11468, %v11468
    %v11533 = vpack.c.b16 %v11469, %v11469
    %v11534 = vpack.c.b16 %v11470, %v11470
    %v11535 = vpack.c.b16 %v11471, %v11471
    %v11536 = vpack.c.b16 %v11472, %v11472
    %v11537 = vpack.c.b16 %v11473, %v11473
    %v11538 = vpack.c.b16 %v11474, %v11474
    %v11539 = vpack.c.b16 %v11475, %v11475
    %v11540 = vpack.c.b16 %v11476, %v11476
    %v11541 = vpack.c.b16 %v11477, %v11477
    %v11542 = vpack.c.b16 %v11478, %v11478
    %v11543 = vpack.c.b16 %v11479, %v11479
    %v11544 = vpack.c.b16 %v11480, %v11480
    %v11545 = vpack.c.b16 %v11481, %v11481
    %v11546 = vpack.c.b16 %v11482, %v11482
    %v11547 = vpack.c.b16 %v11483, %v11483
    %vm11612 = vcmask 125952
    %11613 = vst.msk [vmem:[#allocation10] sm:$0xf] %vm11612, %v11484
    %11614 = vst.msk [vmem:[#allocation10 + $0x4] sm:$0xf] %vm11612, %v11485
    %11615 = vst.msk [vmem:[#allocation10 + $0x8] sm:$0xf] %vm11612, %v11486
    %11616 = vst.msk [vmem:[#allocation10 + $0xc] sm:$0xf] %vm11612, %v11487
    %11617 = vst.msk [vmem:[#allocation10 + $0x10] sm:$0xf] %vm11612, %v11488
    %11618 = vst.msk [vmem:[#allocation10 + $0x14] sm:$0xf] %vm11612, %v11489
    %11619 = vst.msk [vmem:[#allocation10 + $0x18] sm:$0xf] %vm11612, %v11490
    %11620 = vst.msk [vmem:[#allocation10 + $0x1c] sm:$0xf] %vm11612, %v11491
    %11621 = vst.msk [vmem:[#allocation10 + $0x20] sm:$0xf] %vm11612, %v11492
    %11622 = vst.msk [vmem:[#allocation10 + $0x24] sm:$0xf] %vm11612, %v11493
    %11623 = vst.msk [vmem:[#allocation10 + $0x28] sm:$0xf] %vm11612, %v11494
    %11624 = vst.msk [vmem:[#allocation10 + $0x2c] sm:$0xf] %vm11612, %v11495
    %11625 = vst.msk [vmem:[#allocation10 + $0x30] sm:$0xf] %vm11612, %v11496
    %11626 = vst.msk [vmem:[#allocation10 + $0x34] sm:$0xf] %vm11612, %v11497
    %11627 = vst.msk [vmem:[#allocation10 + $0x38] sm:$0xf] %vm11612, %v11498
    %11628 = vst.msk [vmem:[#allocation10 + $0x3c] sm:$0xf] %vm11612, %v11499
    %11629 = vst.msk [vmem:[#allocation10 + $0x40] sm:$0xf] %vm11612, %v11500
    %11630 = vst.msk [vmem:[#allocation10 + $0x44] sm:$0xf] %vm11612, %v11501
    %11631 = vst.msk [vmem:[#allocation10 + $0x48] sm:$0xf] %vm11612, %v11502
    %11632 = vst.msk [vmem:[#allocation10 + $0x4c] sm:$0xf] %vm11612, %v11503
    %11633 = vst.msk [vmem:[#allocation10 + $0x50] sm:$0xf] %vm11612, %v11504
    %11634 = vst.msk [vmem:[#allocation10 + $0x54] sm:$0xf] %vm11612, %v11505
    %11635 = vst.msk [vmem:[#allocation10 + $0x58] sm:$0xf] %vm11612, %v11506
    %11636 = vst.msk [vmem:[#allocation10 + $0x5c] sm:$0xf] %vm11612, %v11507
    %11637 = vst.msk [vmem:[#allocation10 + $0x60] sm:$0xf] %vm11612, %v11508
    %11638 = vst.msk [vmem:[#allocation10 + $0x64] sm:$0xf] %vm11612, %v11509
    %11639 = vst.msk [vmem:[#allocation10 + $0x68] sm:$0xf] %vm11612, %v11510
    %11640 = vst.msk [vmem:[#allocation10 + $0x6c] sm:$0xf] %vm11612, %v11511
    %11641 = vst.msk [vmem:[#allocation10 + $0x70] sm:$0xf] %vm11612, %v11512
    %11642 = vst.msk [vmem:[#allocation10 + $0x74] sm:$0xf] %vm11612, %v11513
    %11643 = vst.msk [vmem:[#allocation10 + $0x78] sm:$0xf] %vm11612, %v11514
    %11644 = vst.msk [vmem:[#allocation10 + $0x7c] sm:$0xf] %vm11612, %v11515
    %11645 = vst.msk [vmem:[#allocation10 + $0x80] sm:$0xf] %vm11612, %v11516
    %11646 = vst.msk [vmem:[#allocation10 + $0x84] sm:$0xf] %vm11612, %v11517
    %11647 = vst.msk [vmem:[#allocation10 + $0x88] sm:$0xf] %vm11612, %v11518
    %11648 = vst.msk [vmem:[#allocation10 + $0x8c] sm:$0xf] %vm11612, %v11519
    %11649 = vst.msk [vmem:[#allocation10 + $0x90] sm:$0xf] %vm11612, %v11520
    %11650 = vst.msk [vmem:[#allocation10 + $0x94] sm:$0xf] %vm11612, %v11521
    %11651 = vst.msk [vmem:[#allocation10 + $0x98] sm:$0xf] %vm11612, %v11522
    %11652 = vst.msk [vmem:[#allocation10 + $0x9c] sm:$0xf] %vm11612, %v11523
    %11653 = vst.msk [vmem:[#allocation10 + $0xa0] sm:$0xf] %vm11612, %v11524
    %11654 = vst.msk [vmem:[#allocation10 + $0xa4] sm:$0xf] %vm11612, %v11525
    %11655 = vst.msk [vmem:[#allocation10 + $0xa8] sm:$0xf] %vm11612, %v11526
    %11656 = vst.msk [vmem:[#allocation10 + $0xac] sm:$0xf] %vm11612, %v11527
    %11657 = vst.msk [vmem:[#allocation10 + $0xb0] sm:$0xf] %vm11612, %v11528
    %11658 = vst.msk [vmem:[#allocation10 + $0xb4] sm:$0xf] %vm11612, %v11529
    %11659 = vst.msk [vmem:[#allocation10 + $0xb8] sm:$0xf] %vm11612, %v11530
    %11660 = vst.msk [vmem:[#allocation10 + $0xbc] sm:$0xf] %vm11612, %v11531
    %11661 = vst.msk [vmem:[#allocation10 + $0xc0] sm:$0xf] %vm11612, %v11532
    %11662 = vst.msk [vmem:[#allocation10 + $0xc4] sm:$0xf] %vm11612, %v11533
    %11663 = vst.msk [vmem:[#allocation10 + $0xc8] sm:$0xf] %vm11612, %v11534
    %11664 = vst.msk [vmem:[#allocation10 + $0xcc] sm:$0xf] %vm11612, %v11535
    %11665 = vst.msk [vmem:[#allocation10 + $0xd0] sm:$0xf] %vm11612, %v11536
    %11666 = vst.msk [vmem:[#allocation10 + $0xd4] sm:$0xf] %vm11612, %v11537
    %11667 = vst.msk [vmem:[#allocation10 + $0xd8] sm:$0xf] %vm11612, %v11538
    %11668 = vst.msk [vmem:[#allocation10 + $0xdc] sm:$0xf] %vm11612, %v11539
    %11669 = vst.msk [vmem:[#allocation10 + $0xe0] sm:$0xf] %vm11612, %v11540
    %11670 = vst.msk [vmem:[#allocation10 + $0xe4] sm:$0xf] %vm11612, %v11541
    %11671 = vst.msk [vmem:[#allocation10 + $0xe8] sm:$0xf] %vm11612, %v11542
    %11672 = vst.msk [vmem:[#allocation10 + $0xec] sm:$0xf] %vm11612, %v11543
    %11673 = vst.msk [vmem:[#allocation10 + $0xf0] sm:$0xf] %vm11612, %v11544
    %11674 = vst.msk [vmem:[#allocation10 + $0xf4] sm:$0xf] %vm11612, %v11545
    %11675 = vst.msk [vmem:[#allocation10 + $0xf8] sm:$0xf] %vm11612, %v11546
    %11676 = vst.msk [vmem:[#allocation10 + $0xfc] sm:$0xf] %vm11612, %v11547
    // Predicated region
    $region50: #{tpu_custom_call.1} parent=1 // pred_check
      _
    $region51: #{tpu_custom_call.1} parent=1 // pred_check_branch
      %11678 = sbr.rel (0) target = $region53
    $region52: #{tpu_custom_call.1} parent=1 // pred_region
      %s11680 = ssub.s32 4096, 4096
      %11681 = vsyncadd [#allocation6], %s11680
      %s11682 = sshll.u32 [#allocation10], 4
      %s11683 = int_to_ptr.vmem [resolvable:$true] %s11682
      %11688 = dma.vmem_to_hbm [thread:$0]  %s11683, 4096, %s8, [#allocation6], 64, 64, 4
    $region53: #{tpu_custom_call.1} parent=1 // pred_fallthru
      _
    // Predicated region
    $region54: #{tpu_custom_call.1} parent=1 // pred_check
      _
    $region55: #{tpu_custom_call.1} parent=1 // pred_check_branch
      %11690 = sbr.rel (0) target = $region57
    $region56: #{tpu_custom_call.1} parent=1 // pred_region
      %11691 = dma.done [#allocation6], 4096
    $region57: #{tpu_custom_call.1} parent=1 // pred_fallthru
      _
    %11692 = vsyncpa [#allocation5], 1
    %11693 = vsyncpa [#allocation8], 1
    %11694 = vsyncpa [#allocation6], 1

</llo_original>
